<compile_context>
chip_gen: v7x
topology: tpu7x:2x2x1
jax: 0.10.0
libtpu: 0.0.40
codegen_flags: <defaults>
</compile_context>

<pallas_src>
import functools

import jax
import jax.numpy as jnp
from jax import lax
from jax.experimental import pallas as pl
from jax.experimental.pallas import tpu as pltpu

K = 5                 # kernel size of both convolutions
C1 = 32               # conv1 output channels
C2 = 64               # conv2 output channels
M1 = 2 * K - 1        # 9: height of the tall conv1 patch window (covers di + ki)
NPATCH = M1 * K       # 45 patch columns per pixel row
KFAT = K * C1         # 160: conv2 contraction width (di folded in)
NFAT = K * C2         # 320: conv2 matmul output width (dj folded in)


def _elu(z):
    # ELU(alpha=1); the discarded branch uses exp(min(z, 0)) so it can never overflow.
    return jnp.where(z > 0.0, z, jnp.exp(jnp.minimum(z, 0.0)) - 1.0)


# ------------------------------ Pallas kernel ------------------------------ #

def _fused_cnn_kernel(p_ref, w1_ref, b1_ref, w2_ref, b2_ref, o_ref, *, rows, mm_dtype):
    """Both convolutions + ELUs for `rows` pixel rows, entirely in VMEM.

    p_ref : (rows, 45)  f32   tall im2col of the 1-ch input: col m*5+kj = x[r + m*Wp + kj]
    w1_ref: (45, 160)   f32   W1fat[m*5+kj, di*32+c] = w1[m-di, kj, c]  (0 outside band)
    b1_ref: (1, 160)    f32   conv1 bias tiled over the 5 di blocks
    w2_ref: (160, 320)        W2fat[di*32+c, dj*64+d] = w2[di, dj, c, d]
    b2_ref: (1, 64)     f32
    o_ref : (rows, 64)  f32   uncropped conv2 output slab (pixel rows x channels)
    """
    # conv1 (fat): one MXU matmul.  a1fat[r, di*32+c] == ELU(conv1)[r + di*Wp, c],
    # i.e. conv1's output already carries the 5 row-shifted copies conv2's di taps
    # need -- the fat conv2 LHS exists without any lane concat / unaligned slicing.
    z1 = jnp.dot(p_ref[...], w1_ref[...], preferred_element_type=jnp.float32)
    a1fat = _elu(z1 + b1_ref[...])

    # conv2 (fat): one MXU matmul, K = 5*C1 (di folded), N = 5*C2 (dj folded).
    out = jnp.dot(a1fat.astype(mm_dtype), w2_ref[...],
                  preferred_element_type=jnp.float32)                 # (rows, 320)

    # dj epilogue:  z2[r, d] = sum_dj out[r + dj, dj*64 + d]
    # 4 sublane rotations (XLU) + adds.  Rows wrapped by the roll (and rows built
    # from zero-pad / neighbouring samples) only ever land at pixel positions with
    # h > Hin-2(K-1)-1 or w > Win-2(K-1)-1, which the wrapper crops away -- this
    # invariant is tied to the K-1 halo of each conv and the Ho2/Wo2 crop.
    acc = out[:, 0:C2]
    for dj in range(1, K):
        chunk = out[:, dj * C2:(dj + 1) * C2]
        acc = acc + pltpu.roll(chunk, shift=rows - dj, axis=0)        # roll "up" by dj rows
    o_ref[...] = _elu(acc + b2_ref[...])


# ------------------------------- JAX wrapper -------------------------------- #

def _pick_batch_block(n, rows_per_sample, row_budget=4096):
    """Samples per grid step: as many as fit the row budget (amortizes the
    ~0.35 us/step overhead), preferring >= 2 grid steps so both v7x TensorCores
    get work.  NB must divide N; for awkward (e.g. prime) batch sizes this falls
    back to NB=1 -- pad the batch upstream if that matters for throughput."""
    divisors = [d for d in range(1, n + 1) if n % d == 0]
    fits = [d for d in divisors if d * rows_per_sample <= row_budget] or [1]
    two_step = [d for d in fits if n // d >= 2]
    return max(two_step) if two_step else max(fits)


def _fold_weights(params, mm_dtype):
    """PyTorch conv weights -> folded matmul operands + biases (trace-time, tiny)."""
    w1 = jnp.transpose(params["conv1_w"][:, 0, :, :], (1, 2, 0)).astype(jnp.float32)  # (ki,kj,c)
    w2 = jnp.transpose(params["conv2_w"], (2, 3, 1, 0)).astype(jnp.float32)           # (di,dj,c,d)

    # W1fat[(m*K + kj), di*C1 + c] = w1[m - di, kj, c]  (zero outside the band).
    zeros = jnp.zeros((C1,), jnp.float32)
    rows = []
    for m in range(M1):
        for kj in range(K):
            pieces = [w1[m - di, kj, :] if 0 <= m - di < K else zeros for di in range(K)]
            rows.append(jnp.concatenate(pieces))
    w1fat = jnp.stack(rows, axis=0)                                                    # (45, 160)

    # W2fat[di*C1 + c, dj*C2 + d] = w2[di, dj, c, d].
    w2fat = jnp.transpose(w2, (0, 2, 1, 3)).reshape(K * C1, K * C2).astype(mm_dtype)   # (160, 320)

    b1fat = jnp.tile(params["conv1_b"].astype(jnp.float32).reshape(1, C1), (1, K))     # (1, 160)
    b2 = params["conv2_b"].astype(jnp.float32).reshape(1, C2)
    return w1fat, b1fat, w2fat, b2


def _build_patches(x_nchw, Wp):
    """Tall (9x5) im2col of the 1-channel input in pixel-rows layout:
    P[r, m*K + kj] = x_flat[r + m*Wp + kj]  (zero beyond the batch)."""
    N, _, Hin, Win = x_nchw.shape
    x = jnp.pad(x_nchw[:, 0, :, :].astype(jnp.float32),
                ((0, 0), (0, 0), (0, Wp - Win)))                       # (N, Hin, Wp)
    xcol = x.reshape(N * Hin * Wp)
    n_rows = xcol.shape[0]
    xcol = jnp.pad(xcol, (0, (M1 - 1) * Wp + (K - 1)))
    cols = [xcol[m * Wp + kj: m * Wp + kj + n_rows]
            for m in range(M1) for kj in range(K)]
    return jnp.stack(cols, axis=1)                                     # (n_rows, 45)


@functools.partial(jax.jit, static_argnames=("bf16_matmul",))
def cnn_forward(x_nchw, params, bf16_matmul=True):
    """Pallas forward pass of CNN_version_5_featmap.  x_nchw: (N, 1, H, W) f32."""
    N, Cin, Hin, Win = x_nchw.shape
    assert Cin == 1
    # Two VALID 5x5 convs need >= 2K-1 pixels per spatial dim; the "garbage only
    # lands in cropped rows" invariant of the roll epilogue relies on the output
    # window being (Hin - 2(K-1)) x (Win - 2(K-1)).
    assert Hin >= 2 * K - 1 and Win >= 2 * K - 1
    Ho2, Wo2 = Hin - 2 * (K - 1), Win - 2 * (K - 1)

    Wp = ((Win + 7) // 8) * 8          # keep every row block a multiple of 8 sublanes
    rows_per_sample = Hin * Wp
    NB = _pick_batch_block(N, rows_per_sample)
    rows_per_block = NB * rows_per_sample
    n_rows = N * rows_per_sample

    mm_dtype = jnp.bfloat16 if bf16_matmul else jnp.float32
    patches = _build_patches(x_nchw, Wp)
    w1fat, b1fat, w2fat, b2 = _fold_weights(params, mm_dtype)

    kernel = functools.partial(_fused_cnn_kernel, rows=rows_per_block, mm_dtype=mm_dtype)

    # Peak VMEM per block row (double-buffered in/out blocks, z1/a1fat, the
    # (rows, 320) conv2 product and epilogue temps, lane-padded to 128) is ~8 KiB;
    # size the scoped limit from that with headroom, well under v7x's 64 MiB.
    vmem_limit = int(min(56 << 20, max(16 << 20, rows_per_block * 12 * 1024)))

    out_slab = pl.pallas_call(
        kernel,
        out_shape=jax.ShapeDtypeStruct((n_rows, C2), jnp.float32),
        grid=(N // NB,),
        in_specs=[
            pl.BlockSpec((rows_per_block, NPATCH), lambda i: (i, 0)),
            pl.BlockSpec((NPATCH, KFAT), lambda i: (0, 0)),
            pl.BlockSpec((1, KFAT), lambda i: (0, 0)),
            pl.BlockSpec((KFAT, NFAT), lambda i: (0, 0)),
            pl.BlockSpec((1, C2), lambda i: (0, 0)),
        ],
        out_specs=pl.BlockSpec((rows_per_block, C2), lambda i: (i, 0)),
        compiler_params=pltpu.CompilerParams(
            dimension_semantics=("parallel",),
            vmem_limit_bytes=vmem_limit,
        ),
    )(patches, w1fat, b1fat, w2fat, b2)

    # Crop the valid window and return NCHW feature maps like the PyTorch module.
    out = out_slab.reshape(N, Hin, Wp, C2)[:, :Ho2, :Wo2, :]
    return jnp.transpose(out, (0, 3, 1, 2))


# ------------------------------ reference & test ----------------------------- #

def _reference_forward(x_nchw, params):
    """Pure-XLA reference identical to the PyTorch module (f32, HIGHEST precision)."""
    dn = ("NCHW", "OIHW", "NCHW")
    y = lax.conv_general_dilated(x_nchw, params["conv1_w"], (1, 1), "VALID",
                                 dimension_numbers=dn,
                                 precision=lax.Precision.HIGHEST)
    y = _elu(y + params["conv1_b"][None, :, None, None])
    y = lax.conv_general_dilated(y, params["conv2_w"], (1, 1), "VALID",
                                 dimension_numbers=dn,
                                 precision=lax.Precision.HIGHEST)
    y = _elu(y + params["conv2_b"][None, :, None, None])
    return y


def init_params(key):
    k1, k2, k3, k4 = jax.random.split(key, 4)
    s = 0.1
    return {
        "conv1_w": s * jax.random.normal(k1, (C1, 1, K, K), jnp.float32),
        "conv1_b": s * jax.random.normal(k2, (C1,), jnp.float32),
        "conv2_w": s * jax.random.normal(k3, (C2, C1, K, K), jnp.float32),
        "conv2_b": s * jax.random.normal(k4, (C2,), jnp.float32),
    }


if __name__ == "__main__":
    key = jax.random.PRNGKey(0)
    kx, kp = jax.random.split(key)
    x = jax.random.normal(kx, (2, 1, 28, 28), jnp.float32)   # NCHW, like PyTorch
    params = init_params(kp)

    # Default path: bf16 MXU operands for conv2 with f32 accumulation.
    out = jax.block_until_ready(cnn_forward(x, params))
    assert out.shape == (2, C2, 20, 20), out.shape
    assert bool(jnp.all(jnp.isfinite(out)))

    ref = _reference_forward(x, params)
    err_bf16 = float(jnp.max(jnp.abs(out - ref)))
    assert err_bf16 < 5e-2, f"bf16 path mismatch vs XLA reference: {err_bf16}"

    # Full-f32 path (both matmul operands f32).
    out_f32 = jax.block_until_ready(cnn_forward(x, params, bf16_matmul=False))
    err_f32 = float(jnp.max(jnp.abs(out_f32 - ref)))
    assert err_f32 < 5e-2, f"f32 path mismatch vs XLA reference: {err_f32}"

    print("KERNEL_OK")
</pallas_src>

<mosaic_0001>
module attributes {stable_mosaic.version = 11 : i64} {
  func.func @_fused_cnn_kernel(%arg0: i32, %arg1: memref<896x45xf32, #tpu.memory_space<vmem>>, %arg2: memref<45x160xf32, #tpu.memory_space<vmem>>, %arg3: memref<1x160xf32, #tpu.memory_space<vmem>>, %arg4: memref<160x320xbf16, #tpu.memory_space<vmem>>, %arg5: memref<1x64xf32, #tpu.memory_space<vmem>>, %arg6: memref<896x64xf32, #tpu.memory_space<vmem>>) attributes {dimension_semantics = [#tpu.dimension_semantics<parallel>], iteration_bounds = array<i64: 2>, scalar_prefetch = 0 : i64, scratch_operands = 0 : i64, tpu.core_type = #tpu.core_type<tc>, window_params = [{transform_indices = @transform_0, window_bounds = array<i64: 896, 45>}, {pipeline_mode = #tpu.pipeline_mode<synchronous>, transform_indices = @transform_1, window_bounds = array<i64: 45, 160>}, {pipeline_mode = #tpu.pipeline_mode<synchronous>, transform_indices = @transform_2, window_bounds = array<i64: 1, 160>}, {pipeline_mode = #tpu.pipeline_mode<synchronous>, transform_indices = @transform_3, window_bounds = array<i64: 160, 320>}, {pipeline_mode = #tpu.pipeline_mode<synchronous>, transform_indices = @transform_4, window_bounds = array<i64: 1, 64>}, {transform_indices = @transform_5, window_bounds = array<i64: 896, 64>}]} {
    %c0 = arith.constant 0 : index
    %c0_0 = arith.constant 0 : index
    %0 = vector.load %arg1[%c0, %c0_0] : memref<896x45xf32, #tpu.memory_space<vmem>>, vector<896x45xf32>
    %c0_1 = arith.constant 0 : index
    %c0_2 = arith.constant 0 : index
    %1 = vector.load %arg2[%c0_1, %c0_2] : memref<45x160xf32, #tpu.memory_space<vmem>>, vector<45x160xf32>
    %cst = arith.constant dense<0.000000e+00> : vector<896x160xf32>
    %2 = tpu.matmul %0, %1, %cst {dimension_numbers = #tpu.dot_dimension_numbers<[1], [0], [0], [1], [0, 0, 1, 1], [], []>} : vector<896x45xf32>, vector<45x160xf32>, vector<896x160xf32> -> vector<896x160xf32>
    %c0_3 = arith.constant 0 : index
    %c0_4 = arith.constant 0 : index
    %3 = vector.load %arg3[%c0_3, %c0_4] : memref<1x160xf32, #tpu.memory_space<vmem>>, vector<1x160xf32>
    %4 = vector.broadcast %3 : vector<1x160xf32> to vector<896x160xf32>
    %5 = arith.addf %2, %4 : vector<896x160xf32>
    %cst_5 = arith.constant 0.000000e+00 : f32
    %6 = vector.broadcast %cst_5 : f32 to vector<896x160xf32>
    %7 = arith.cmpf ogt, %5, %6 : vector<896x160xf32>
    %cst_6 = arith.constant 0.000000e+00 : f32
    %8 = vector.broadcast %cst_6 : f32 to vector<896x160xf32>
    %9 = arith.minimumf %5, %8 : vector<896x160xf32>
    %10 = math.exp %9 : vector<896x160xf32>
    %cst_7 = arith.constant 1.000000e+00 : f32
    %11 = vector.broadcast %cst_7 : f32 to vector<896x160xf32>
    %12 = arith.subf %10, %11 : vector<896x160xf32>
    %13 = arith.select %7, %5, %12 : vector<896x160xi1>, vector<896x160xf32>
    %14 = arith.truncf %13 : vector<896x160xf32> to vector<896x160xbf16>
    %c0_8 = arith.constant 0 : index
    %c0_9 = arith.constant 0 : index
    %15 = vector.load %arg4[%c0_8, %c0_9] : memref<160x320xbf16, #tpu.memory_space<vmem>>, vector<160x320xbf16>
    %cst_10 = arith.constant dense<0.000000e+00> : vector<896x320xf32>
    %16 = tpu.matmul %14, %15, %cst_10 {dimension_numbers = #tpu.dot_dimension_numbers<[1], [0], [0], [1], [0, 0, 1, 1], [], []>} : vector<896x160xbf16>, vector<160x320xbf16>, vector<896x320xf32> -> vector<896x320xf32>
    %17 = vector.extract_strided_slice %16 {offsets = [0, 0], sizes = [896, 64], strides = [1, 1]} : vector<896x320xf32> to vector<896x64xf32>
    %18 = vector.extract_strided_slice %16 {offsets = [0, 64], sizes = [896, 64], strides = [1, 1]} : vector<896x320xf32> to vector<896x64xf32>
    %c895_i32 = arith.constant 895 : i32
    %19 = tpu.dynamic_rotate %18 by %c895_i32 dim 0 : vector<896x64xf32>, i32 -> vector<896x64xf32>
    %20 = arith.addf %17, %19 : vector<896x64xf32>
    %21 = vector.extract_strided_slice %16 {offsets = [0, 128], sizes = [896, 64], strides = [1, 1]} : vector<896x320xf32> to vector<896x64xf32>
    %c894_i32 = arith.constant 894 : i32
    %22 = tpu.dynamic_rotate %21 by %c894_i32 dim 0 : vector<896x64xf32>, i32 -> vector<896x64xf32>
    %23 = arith.addf %20, %22 : vector<896x64xf32>
    %24 = vector.extract_strided_slice %16 {offsets = [0, 192], sizes = [896, 64], strides = [1, 1]} : vector<896x320xf32> to vector<896x64xf32>
    %c893_i32 = arith.constant 893 : i32
    %25 = tpu.dynamic_rotate %24 by %c893_i32 dim 0 : vector<896x64xf32>, i32 -> vector<896x64xf32>
    %26 = arith.addf %23, %25 : vector<896x64xf32>
    %27 = vector.extract_strided_slice %16 {offsets = [0, 256], sizes = [896, 64], strides = [1, 1]} : vector<896x320xf32> to vector<896x64xf32>
    %c892_i32 = arith.constant 892 : i32
    %28 = tpu.dynamic_rotate %27 by %c892_i32 dim 0 : vector<896x64xf32>, i32 -> vector<896x64xf32>
    %29 = arith.addf %26, %28 : vector<896x64xf32>
    %c0_11 = arith.constant 0 : index
    %c0_12 = arith.constant 0 : index
    %30 = vector.load %arg5[%c0_11, %c0_12] : memref<1x64xf32, #tpu.memory_space<vmem>>, vector<1x64xf32>
    %31 = vector.broadcast %30 : vector<1x64xf32> to vector<896x64xf32>
    %32 = arith.addf %29, %31 : vector<896x64xf32>
    %cst_13 = arith.constant 0.000000e+00 : f32
    %33 = vector.broadcast %cst_13 : f32 to vector<896x64xf32>
    %34 = arith.cmpf ogt, %32, %33 : vector<896x64xf32>
    %cst_14 = arith.constant 0.000000e+00 : f32
    %35 = vector.broadcast %cst_14 : f32 to vector<896x64xf32>
    %36 = arith.minimumf %32, %35 : vector<896x64xf32>
    %37 = math.exp %36 : vector<896x64xf32>
    %cst_15 = arith.constant 1.000000e+00 : f32
    %38 = vector.broadcast %cst_15 : f32 to vector<896x64xf32>
    %39 = arith.subf %37, %38 : vector<896x64xf32>
    %40 = arith.select %34, %32, %39 : vector<896x64xi1>, vector<896x64xf32>
    %c0_16 = arith.constant 0 : index
    %c0_17 = arith.constant 0 : index
    %41 = vector.load %arg6[%c0_16, %c0_17] : memref<896x64xf32, #tpu.memory_space<vmem>>, vector<896x64xf32>
    tpu.vector_store %arg6[%c0_16, %c0_17], %40 {strides = array<i32>} : memref<896x64xf32, #tpu.memory_space<vmem>>, vector<896x64xf32>,
    return
  }
  func.func @transform_0(%arg0: i32) -> (i32, i32) {
    %c0_i32 = arith.constant 0 : i32
    %c0_i32_0 = arith.constant 0 : i32
    return %arg0, %c0_i32 : i32, i32
  }
  func.func @transform_1(%arg0: i32) -> (i32, i32) {
    %c0_i32 = arith.constant 0 : i32
    %c0_i32_0 = arith.constant 0 : i32
    %c0_i32_1 = arith.constant 0 : i32
    return %c0_i32, %c0_i32_0 : i32, i32
  }
  func.func @transform_2(%arg0: i32) -> (i32, i32) {
    %c0_i32 = arith.constant 0 : i32
    %c0_i32_0 = arith.constant 0 : i32
    %c0_i32_1 = arith.constant 0 : i32
    return %c0_i32, %c0_i32_0 : i32, i32
  }
  func.func @transform_3(%arg0: i32) -> (i32, i32) {
    %c0_i32 = arith.constant 0 : i32
    %c0_i32_0 = arith.constant 0 : i32
    %c0_i32_1 = arith.constant 0 : i32
    return %c0_i32, %c0_i32_0 : i32, i32
  }
  func.func @transform_4(%arg0: i32) -> (i32, i32) {
    %c0_i32 = arith.constant 0 : i32
    %c0_i32_0 = arith.constant 0 : i32
    %c0_i32_1 = arith.constant 0 : i32
    return %c0_i32, %c0_i32_0 : i32, i32
  }
  func.func @transform_5(%arg0: i32) -> (i32, i32) {
    %c0_i32 = arith.constant 0 : i32
    %c0_i32_0 = arith.constant 0 : i32
    return %arg0, %c0_i32 : i32, i32
  }
}

</mosaic_0001>

<llo_original>
// kernel: cnn_forward.1
$region0: #{cnn_forward.1}
  #allocation0 [shape = 'u32[]', space=smem, size = 0x4, offset = 0x4, fixed_abs, tag = 'smem constant byte address 0x4 - core index']
  #allocation1 [shape = 'u32[144,128]{1,0:T(1,128)}', space=vmem, size = 0x12000, scoped, tag = 'internal scratch']
  %s0 = inlined_call_operand.vmem [shape: f32[1792,45], index: 0, kind: input, shape index: {}]
  %s1 = inlined_call_operand.vmem [shape: f32[45,160], index: 1, kind: input, shape index: {}]
  %s2 = inlined_call_operand.vmem [shape: f32[1,160], index: 2, kind: input, shape index: {}]
  %s3 = inlined_call_operand.vmem [shape: bf16[160,320], index: 3, kind: input, shape index: {}]
  %s4 = inlined_call_operand.vmem [shape: f32[1,64], index: 4, kind: input, shape index: {}]
  %s5 = inlined_call_operand.vmem [shape: f32[1792,64], index: 5, kind: output, shape index: {}]
  %s6 = sld [smem:[#allocation0]]
  $region53: #{cnn_forward.1} parent=0
    _
  %s8 = ssub.s32 1, %s6
  %s9 = scalar_select 0, %s8, %s6
  loop: start=0, step=1, limit=4
  $region2: #{cnn_forward.1} parent=0 // loop_pre_header
    _
  $region3: #{cnn_forward.1} parent=0 // loop_header
    %s11 = sphi 0, %s15
    %p12 = scmp.ge.s32.totalorder %s11, 4
    %s21 = sphi 0, %s23
    %s24 = sphi 0, %s21
    %s25 = sphi 0, %s24
    %s41 = sphi 0, %s25
    %s45 = sphi 0, %s45
    %s47 = sphi 0, %s45
    %s48 = sphi 0, %s47
    %s62 = sphi 0, %s48
    %s66 = sphi 0, %s66
    %s68 = sphi 0, %s66
    %s69 = sphi 0, %s68
    %s83 = sphi 0, %s69
    %s87 = sphi 0, %s87
    %s89 = sphi 0, %s87
    %s90 = sphi 0, %s89
    %s104 = sphi 0, %s90
    %s108 = sphi 0, %s108
    %s110 = sphi 0, %s108
    %s111 = sphi 0, %s110
    %s125 = sphi 0, %s111
    %s131 = sphi 0, %s133
    %s134 = sphi 0, %s131
    %s135 = sphi 0, %s134
    %s151 = sphi 0, %s135
  $region4: #{cnn_forward.1} parent=0 // loop_header_branch
    %14 = sbr.rel (%p12) target = $region8
  $region5: #{cnn_forward.1} parent=0 // loop_body
    %s16 = ssub.s32 %s11, 1
    %s17 = ssub.s32 %s11, 2
    %s18 = sadd.s32 %s11, 1
    %s19 = ssub.s32 %s11, %s18
    %p20 = scmp.eq.s32.totalorder %s19, 0
    %s22 = sadd.s32 %s21, 1
    %s23 = scalar_select %p20, %s21, %s22
    %p26 = pneg %p20
    %p27 = scmp.eq.s32.totalorder %s11, 1
    %p28 = por %p26, %p27
    %p29 = scmp.ne.s32.totalorder %s21, %s24
    %p30 = scmp.eq.s32.totalorder %s11, 0
    %p31 = por %p29, %p30
    %p32 = scmp.ne.s32.totalorder %s21, %s24
    %p33 = scmp.eq.s32.totalorder %s16, 1
    %p34 = por %p32, %p33
    %p35 = scmp.ne.s32.totalorder %s24, %s25
    %p36 = scmp.eq.s32.totalorder %s16, 0
    %p37 = por %p35, %p36
    %p38 = scmp.ne.s32.totalorder %s24, %s25
    %p39 = scmp.eq.s32.totalorder %s17, 1
    %p40 = por %p38, %p39
    %p42 = scmp.ne.s32.totalorder %s25, %s41
    %p43 = scmp.eq.s32.totalorder %s17, 0
    %p44 = por %p42, %p43
    %s46 = sadd.s32 %s45, 1
    %p49 = scmp.eq.s32.totalorder %s11, 1
    %p50 = scmp.ne.s32.totalorder %s45, %s47
    %p51 = scmp.eq.s32.totalorder %s11, 0
    %p52 = por %p50, %p51
    %p53 = scmp.ne.s32.totalorder %s45, %s47
    %p54 = scmp.eq.s32.totalorder %s16, 1
    %p55 = por %p53, %p54
    %p56 = scmp.ne.s32.totalorder %s47, %s48
    %p57 = scmp.eq.s32.totalorder %s16, 0
    %p58 = por %p56, %p57
    %p59 = scmp.ne.s32.totalorder %s47, %s48
    %p60 = scmp.eq.s32.totalorder %s17, 1
    %p61 = por %p59, %p60
    %p63 = scmp.ne.s32.totalorder %s48, %s62
    %p64 = scmp.eq.s32.totalorder %s17, 0
    %p65 = por %p63, %p64
    %s67 = sadd.s32 %s66, 1
    %p70 = scmp.eq.s32.totalorder %s11, 1
    %p71 = scmp.ne.s32.totalorder %s66, %s68
    %p72 = scmp.eq.s32.totalorder %s11, 0
    %p73 = por %p71, %p72
    %p74 = scmp.ne.s32.totalorder %s66, %s68
    %p75 = scmp.eq.s32.totalorder %s16, 1
    %p76 = por %p74, %p75
    %p77 = scmp.ne.s32.totalorder %s68, %s69
    %p78 = scmp.eq.s32.totalorder %s16, 0
    %p79 = por %p77, %p78
    %p80 = scmp.ne.s32.totalorder %s68, %s69
    %p81 = scmp.eq.s32.totalorder %s17, 1
    %p82 = por %p80, %p81
    %p84 = scmp.ne.s32.totalorder %s69, %s83
    %p85 = scmp.eq.s32.totalorder %s17, 0
    %p86 = por %p84, %p85
    %s88 = sadd.s32 %s87, 1
    %p91 = scmp.eq.s32.totalorder %s11, 1
    %p92 = scmp.ne.s32.totalorder %s87, %s89
    %p93 = scmp.eq.s32.totalorder %s11, 0
    %p94 = por %p92, %p93
    %p95 = scmp.ne.s32.totalorder %s87, %s89
    %p96 = scmp.eq.s32.totalorder %s16, 1
    %p97 = por %p95, %p96
    %p98 = scmp.ne.s32.totalorder %s89, %s90
    %p99 = scmp.eq.s32.totalorder %s16, 0
    %p100 = por %p98, %p99
    %p101 = scmp.ne.s32.totalorder %s89, %s90
    %p102 = scmp.eq.s32.totalorder %s17, 1
    %p103 = por %p101, %p102
    %p105 = scmp.ne.s32.totalorder %s90, %s104
    %p106 = scmp.eq.s32.totalorder %s17, 0
    %p107 = por %p105, %p106
    %s109 = sadd.s32 %s108, 1
    %p112 = scmp.eq.s32.totalorder %s11, 1
    %p113 = scmp.ne.s32.totalorder %s108, %s110
    %p114 = scmp.eq.s32.totalorder %s11, 0
    %p115 = por %p113, %p114
    %p116 = scmp.ne.s32.totalorder %s108, %s110
    %p117 = scmp.eq.s32.totalorder %s16, 1
    %p118 = por %p116, %p117
    %p119 = scmp.ne.s32.totalorder %s110, %s111
    %p120 = scmp.eq.s32.totalorder %s16, 0
    %p121 = por %p119, %p120
    %p122 = scmp.ne.s32.totalorder %s110, %s111
    %p123 = scmp.eq.s32.totalorder %s17, 1
    %p124 = por %p122, %p123
    %p126 = scmp.ne.s32.totalorder %s111, %s125
    %p127 = scmp.eq.s32.totalorder %s17, 0
    %p128 = por %p126, %p127
    %s129 = ssub.s32 %s11, %s18
    %p130 = scmp.eq.s32.totalorder %s129, 0
    %s132 = sadd.s32 %s131, 1
    %s133 = scalar_select %p130, %s131, %s132
    %p136 = pneg %p130
    %p137 = scmp.eq.s32.totalorder %s11, 1
    %p138 = por %p136, %p137
    %p139 = scmp.ne.s32.totalorder %s131, %s134
    %p140 = scmp.eq.s32.totalorder %s11, 0
    %p141 = por %p139, %p140
    %p142 = scmp.ne.s32.totalorder %s131, %s134
    %p143 = scmp.eq.s32.totalorder %s16, 1
    %p144 = por %p142, %p143
    %p145 = scmp.ne.s32.totalorder %s134, %s135
    %p146 = scmp.eq.s32.totalorder %s16, 0
    %p147 = por %p145, %p146
    %p148 = scmp.ne.s32.totalorder %s134, %s135
    %p149 = scmp.eq.s32.totalorder %s17, 1
    %p150 = por %p148, %p149
    %p152 = scmp.ne.s32.totalorder %s135, %s151
    %p153 = scmp.eq.s32.totalorder %s17, 0
    %p154 = por %p152, %p153
    %p155 = scmp.le.s32.totalorder 1, %s11
    %p156 = scmp.lt.s32.totalorder %s11, 3
    %p157 = pnand %p155, %p156
    %p158 = pneg %p157
    // Predicated region
    $region9: #{cnn_forward.1} parent=5 // pred_check
      _
    $region10: #{cnn_forward.1} parent=5 // pred_check_branch
      %160 = sbr.rel (%p157) target = $region12
    $region11: #{cnn_forward.1} parent=5 // pred_region
      %s161 = ssub.s32 %s11, 1
      // Predicated region
      $region13: #{cnn_forward.1} parent=11 // pred_check
        %p162 = pneg %p58
      $region14: #{cnn_forward.1} parent=11 // pred_check_branch
        %164 = sbr.rel (%p162) target = $region16
      $region15: #{cnn_forward.1} parent=11 // pred_region
        _
      $region16: #{cnn_forward.1} parent=11 // pred_fallthru
        _
      // Predicated region
      $region17: #{cnn_forward.1} parent=11 // pred_check
        %p165 = pneg %p79
      $region18: #{cnn_forward.1} parent=11 // pred_check_branch
        %167 = sbr.rel (%p165) target = $region20
      $region19: #{cnn_forward.1} parent=11 // pred_region
        _
      $region20: #{cnn_forward.1} parent=11 // pred_fallthru
        _
      // Predicated region
      $region21: #{cnn_forward.1} parent=11 // pred_check
        %p168 = pneg %p100
      $region22: #{cnn_forward.1} parent=11 // pred_check_branch
        %170 = sbr.rel (%p168) target = $region24
      $region23: #{cnn_forward.1} parent=11 // pred_region
        _
      $region24: #{cnn_forward.1} parent=11 // pred_fallthru
        _
      // Predicated region
      $region25: #{cnn_forward.1} parent=11 // pred_check
        %p171 = pneg %p121
      $region26: #{cnn_forward.1} parent=11 // pred_check_branch
        %173 = sbr.rel (%p171) target = $region28
      $region27: #{cnn_forward.1} parent=11 // pred_region
        _
      $region28: #{cnn_forward.1} parent=11 // pred_fallthru
        _
    $region12: #{cnn_forward.1} parent=5 // pred_fallthru
      _
    %p174 = scmp.lt.s32.totalorder %s11, 2
    // Predicated region
    $region29: #{cnn_forward.1} parent=5 // pred_check
      %p175 = pneg %p174
    $region30: #{cnn_forward.1} parent=5 // pred_check_branch
      %177 = sbr.rel (%p175) target = $region32
    $region31: #{cnn_forward.1} parent=5 // pred_region
      // Predicated region
      $region33: #{cnn_forward.1} parent=31 // pred_check
        %p178 = pneg %p31
      $region34: #{cnn_forward.1} parent=31 // pred_check_branch
        %180 = sbr.rel (%p178) target = $region36
      $region35: #{cnn_forward.1} parent=31 // pred_region
        %s181 = smul.u32 112, %s11
        %p182 = scmp.lt.s32.totalorder %s181, 223
        %s183 = scalar_select %p182, %s181, 223
        %s184 = smul.addr %s183, 8
        %s185 = scalar_lea.vmem %s0, %s184
        %s186 = smul.u32 112, %s11
      $region36: #{cnn_forward.1} parent=31 // pred_fallthru
        _
    $region32: #{cnn_forward.1} parent=5 // pred_fallthru
      _
    %p187 = scmp.le.s32.totalorder 1, %s11
    %p188 = scmp.lt.s32.totalorder %s11, 3
    %p189 = pnand %p187, %p188
    %p190 = pneg %p189
    // Predicated region
    $region37: #{cnn_forward.1} parent=5 // pred_check
      _
    $region38: #{cnn_forward.1} parent=5 // pred_check_branch
      %192 = sbr.rel (%p189) target = $region40
    $region39: #{cnn_forward.1} parent=5 // pred_region
      %s193 = ssub.s32 %s11, 1
      %s194 = smul.u32 112, %s16
      %p195 = scmp.lt.s32.totalorder %s194, 223
      %s196 = scalar_select %p195, %s194, 223
      %s197 = smul.addr %s196, 8
      %s198 = scalar_lea.vmem %s0, %s197
      %p199 = pneg %p37
      %p200 = pneg %p34
      %p201 = pneg %p58
      %p202 = pneg %p55
      %p203 = pneg %p79
      %p204 = pneg %p76
      %p205 = pneg %p100
      %p206 = pneg %p97
      %p207 = pneg %p121
      %p208 = pneg %p118
      %p209 = pneg %p147
      %p210 = pneg %p144
      %s211 = smul.u32 112, %s16
      %p212 = scmp.lt.s32.totalorder %s211, 223
      %s213 = scalar_select %p212, %s211, 223
      %s214 = smul.addr %s213, 8
      %s215 = scalar_lea.vmem %s5, %s214
      %s216 = smul.u32 112, %s16
      %p217 = scmp.lt.s32.totalorder %s216, 223
      %s218 = scalar_select %p217, %s216, 223
      %s219 = smul.addr %s218, 8
      %s220 = scalar_lea.vmem %s0, %s219
      %s221 = smul.u32 112, %s16
      %s222 = smul.u32 112, %s16
      %p223 = scmp.lt.s32.totalorder %s222, 223
      %s224 = scalar_select %p223, %s222, 223
      %s225 = smul.addr %s224, 8
      %s226 = scalar_lea.vmem %s5, %s225
      %s227 = smul.u32 112, %s16
      %v229 = vld [vmem:[%s220] sm:$0xff]
      %v230 = vld [vmem:[%s220 + $0x8] sm:$0xff]
      %v231 = vld [vmem:[%s220 + $0x10] sm:$0xff]
      %v232 = vld [vmem:[%s220 + $0x18] sm:$0xff]
      %v233 = vld [vmem:[%s220 + $0x20] sm:$0xff]
      %v234 = vld [vmem:[%s220 + $0x28] sm:$0xff]
      %v235 = vld [vmem:[%s220 + $0x30] sm:$0xff]
      %v236 = vld [vmem:[%s220 + $0x38] sm:$0xff]
      %v237 = vld [vmem:[%s220 + $0x40] sm:$0xff]
      %v238 = vld [vmem:[%s220 + $0x48] sm:$0xff]
      %v239 = vld [vmem:[%s220 + $0x50] sm:$0xff]
      %v240 = vld [vmem:[%s220 + $0x58] sm:$0xff]
      %v241 = vld [vmem:[%s220 + $0x60] sm:$0xff]
      %v242 = vld [vmem:[%s220 + $0x68] sm:$0xff]
      %v243 = vld [vmem:[%s220 + $0x70] sm:$0xff]
      %v244 = vld [vmem:[%s220 + $0x78] sm:$0xff]
      %v245 = vld [vmem:[%s220 + $0x80] sm:$0xff]
      %v246 = vld [vmem:[%s220 + $0x88] sm:$0xff]
      %v247 = vld [vmem:[%s220 + $0x90] sm:$0xff]
      %v248 = vld [vmem:[%s220 + $0x98] sm:$0xff]
      %v249 = vld [vmem:[%s220 + $0xa0] sm:$0xff]
      %v250 = vld [vmem:[%s220 + $0xa8] sm:$0xff]
      %v251 = vld [vmem:[%s220 + $0xb0] sm:$0xff]
      %v252 = vld [vmem:[%s220 + $0xb8] sm:$0xff]
      %v253 = vld [vmem:[%s220 + $0xc0] sm:$0xff]
      %v254 = vld [vmem:[%s220 + $0xc8] sm:$0xff]
      %v255 = vld [vmem:[%s220 + $0xd0] sm:$0xff]
      %v256 = vld [vmem:[%s220 + $0xd8] sm:$0xff]
      %v257 = vld [vmem:[%s220 + $0xe0] sm:$0xff]
      %v258 = vld [vmem:[%s220 + $0xe8] sm:$0xff]
      %v259 = vld [vmem:[%s220 + $0xf0] sm:$0xff]
      %v260 = vld [vmem:[%s220 + $0xf8] sm:$0xff]
      %v261 = vld [vmem:[%s220 + $0x100] sm:$0xff]
      %v262 = vld [vmem:[%s220 + $0x108] sm:$0xff]
      %v263 = vld [vmem:[%s220 + $0x110] sm:$0xff]
      %v264 = vld [vmem:[%s220 + $0x118] sm:$0xff]
      %v265 = vld [vmem:[%s220 + $0x120] sm:$0xff]
      %v266 = vld [vmem:[%s220 + $0x128] sm:$0xff]
      %v267 = vld [vmem:[%s220 + $0x130] sm:$0xff]
      %v268 = vld [vmem:[%s220 + $0x138] sm:$0xff]
      %v269 = vld [vmem:[%s220 + $0x140] sm:$0xff]
      %v270 = vld [vmem:[%s220 + $0x148] sm:$0xff]
      %v271 = vld [vmem:[%s220 + $0x150] sm:$0xff]
      %v272 = vld [vmem:[%s220 + $0x158] sm:$0xff]
      %v273 = vld [vmem:[%s220 + $0x160] sm:$0xff]
      %v274 = vld [vmem:[%s220 + $0x168] sm:$0xff]
      %v275 = vld [vmem:[%s220 + $0x170] sm:$0xff]
      %v276 = vld [vmem:[%s220 + $0x178] sm:$0xff]
      %v277 = vld [vmem:[%s220 + $0x180] sm:$0xff]
      %v278 = vld [vmem:[%s220 + $0x188] sm:$0xff]
      %v279 = vld [vmem:[%s220 + $0x190] sm:$0xff]
      %v280 = vld [vmem:[%s220 + $0x198] sm:$0xff]
      %v281 = vld [vmem:[%s220 + $0x1a0] sm:$0xff]
      %v282 = vld [vmem:[%s220 + $0x1a8] sm:$0xff]
      %v283 = vld [vmem:[%s220 + $0x1b0] sm:$0xff]
      %v284 = vld [vmem:[%s220 + $0x1b8] sm:$0xff]
      %v285 = vld [vmem:[%s220 + $0x1c0] sm:$0xff]
      %v286 = vld [vmem:[%s220 + $0x1c8] sm:$0xff]
      %v287 = vld [vmem:[%s220 + $0x1d0] sm:$0xff]
      %v288 = vld [vmem:[%s220 + $0x1d8] sm:$0xff]
      %v289 = vld [vmem:[%s220 + $0x1e0] sm:$0xff]
      %v290 = vld [vmem:[%s220 + $0x1e8] sm:$0xff]
      %v291 = vld [vmem:[%s220 + $0x1f0] sm:$0xff]
      %v292 = vld [vmem:[%s220 + $0x1f8] sm:$0xff]
      %v293 = vld [vmem:[%s220 + $0x200] sm:$0xff]
      %v294 = vld [vmem:[%s220 + $0x208] sm:$0xff]
      %v295 = vld [vmem:[%s220 + $0x210] sm:$0xff]
      %v296 = vld [vmem:[%s220 + $0x218] sm:$0xff]
      %v297 = vld [vmem:[%s220 + $0x220] sm:$0xff]
      %v298 = vld [vmem:[%s220 + $0x228] sm:$0xff]
      %v299 = vld [vmem:[%s220 + $0x230] sm:$0xff]
      %v300 = vld [vmem:[%s220 + $0x238] sm:$0xff]
      %v301 = vld [vmem:[%s220 + $0x240] sm:$0xff]
      %v302 = vld [vmem:[%s220 + $0x248] sm:$0xff]
      %v303 = vld [vmem:[%s220 + $0x250] sm:$0xff]
      %v304 = vld [vmem:[%s220 + $0x258] sm:$0xff]
      %v305 = vld [vmem:[%s220 + $0x260] sm:$0xff]
      %v306 = vld [vmem:[%s220 + $0x268] sm:$0xff]
      %v307 = vld [vmem:[%s220 + $0x270] sm:$0xff]
      %v308 = vld [vmem:[%s220 + $0x278] sm:$0xff]
      %v309 = vld [vmem:[%s220 + $0x280] sm:$0xff]
      %v310 = vld [vmem:[%s220 + $0x288] sm:$0xff]
      %v311 = vld [vmem:[%s220 + $0x290] sm:$0xff]
      %v312 = vld [vmem:[%s220 + $0x298] sm:$0xff]
      %v313 = vld [vmem:[%s220 + $0x2a0] sm:$0xff]
      %v314 = vld [vmem:[%s220 + $0x2a8] sm:$0xff]
      %v315 = vld [vmem:[%s220 + $0x2b0] sm:$0xff]
      %v316 = vld [vmem:[%s220 + $0x2b8] sm:$0xff]
      %v317 = vld [vmem:[%s220 + $0x2c0] sm:$0xff]
      %v318 = vld [vmem:[%s220 + $0x2c8] sm:$0xff]
      %v319 = vld [vmem:[%s220 + $0x2d0] sm:$0xff]
      %v320 = vld [vmem:[%s220 + $0x2d8] sm:$0xff]
      %v321 = vld [vmem:[%s220 + $0x2e0] sm:$0xff]
      %v322 = vld [vmem:[%s220 + $0x2e8] sm:$0xff]
      %v323 = vld [vmem:[%s220 + $0x2f0] sm:$0xff]
      %v324 = vld [vmem:[%s220 + $0x2f8] sm:$0xff]
      %v325 = vld [vmem:[%s220 + $0x300] sm:$0xff]
      %v326 = vld [vmem:[%s220 + $0x308] sm:$0xff]
      %v327 = vld [vmem:[%s220 + $0x310] sm:$0xff]
      %v328 = vld [vmem:[%s220 + $0x318] sm:$0xff]
      %v329 = vld [vmem:[%s220 + $0x320] sm:$0xff]
      %v330 = vld [vmem:[%s220 + $0x328] sm:$0xff]
      %v331 = vld [vmem:[%s220 + $0x330] sm:$0xff]
      %v332 = vld [vmem:[%s220 + $0x338] sm:$0xff]
      %v333 = vld [vmem:[%s220 + $0x340] sm:$0xff]
      %v334 = vld [vmem:[%s220 + $0x348] sm:$0xff]
      %v335 = vld [vmem:[%s220 + $0x350] sm:$0xff]
      %v336 = vld [vmem:[%s220 + $0x358] sm:$0xff]
      %v337 = vld [vmem:[%s220 + $0x360] sm:$0xff]
      %v338 = vld [vmem:[%s220 + $0x368] sm:$0xff]
      %v339 = vld [vmem:[%s220 + $0x370] sm:$0xff]
      %v340 = vld [vmem:[%s220 + $0x378] sm:$0xff]
      %v341 = vld [vmem:[%s1] sm:$0xff]
      %v342 = vld [vmem:[%s1 + $0x8] sm:$0xff]
      %v343 = vld [vmem:[%s1 + $0x10] sm:$0xff]
      %v344 = vld [vmem:[%s1 + $0x18] sm:$0xff]
      %v345 = vld [vmem:[%s1 + $0x20] sm:$0xff]
      %v346 = vld [vmem:[%s1 + $0x28] sm:$0xff]
      %v347 = vld [vmem:[%s1 + $0x30] sm:$0xff]
      %v348 = vld [vmem:[%s1 + $0x38] sm:$0xff]
      %v349 = vld [vmem:[%s1 + $0x40] sm:$0xff]
      %v350 = vld [vmem:[%s1 + $0x48] sm:$0xff]
      %v351 = vld [vmem:[%s1 + $0x50] sm:$0x1f]
      %v352 = vld [vmem:[%s1 + $0x58] sm:$0x1f]
      %v353 = vld [vmem:[%s2] sm:$0x3]
      %v355 = vlaneseq
      %v356 = vshrl.u32 %v355, 7
      %v357 = vsub.s32 0, %v356
      %v358 = vrot.slane %v353, %v357
      %v359 = vlaneseq
      %v360 = vshrl.u32 %v359, 7
      %v361 = vsub.s32 1, %v360
      %v362 = vrot.slane %v353, %v361
      %vm365 = vcmask 367616
      %v367 = vsel %vm365, %v229, 0
      %v370 = vsel %vm365, %v230, 0
      %v373 = vsel %vm365, %v231, 0
      %v376 = vsel %vm365, %v232, 0
      %v379 = vsel %vm365, %v233, 0
      %v382 = vsel %vm365, %v234, 0
      %v385 = vsel %vm365, %v235, 0
      %v388 = vsel %vm365, %v236, 0
      %v391 = vsel %vm365, %v237, 0
      %v394 = vsel %vm365, %v238, 0
      %v397 = vsel %vm365, %v239, 0
      %v400 = vsel %vm365, %v240, 0
      %v403 = vsel %vm365, %v241, 0
      %v406 = vsel %vm365, %v242, 0
      %v409 = vsel %vm365, %v243, 0
      %v412 = vsel %vm365, %v244, 0
      %v415 = vsel %vm365, %v245, 0
      %v418 = vsel %vm365, %v246, 0
      %v421 = vsel %vm365, %v247, 0
      %v424 = vsel %vm365, %v248, 0
      %v427 = vsel %vm365, %v249, 0
      %v430 = vsel %vm365, %v250, 0
      %v433 = vsel %vm365, %v251, 0
      %v436 = vsel %vm365, %v252, 0
      %v439 = vsel %vm365, %v253, 0
      %v442 = vsel %vm365, %v254, 0
      %v445 = vsel %vm365, %v255, 0
      %v448 = vsel %vm365, %v256, 0
      %v451 = vsel %vm365, %v257, 0
      %v454 = vsel %vm365, %v258, 0
      %v457 = vsel %vm365, %v259, 0
      %v460 = vsel %vm365, %v260, 0
      %v463 = vsel %vm365, %v261, 0
      %v466 = vsel %vm365, %v262, 0
      %v469 = vsel %vm365, %v263, 0
      %v472 = vsel %vm365, %v264, 0
      %v475 = vsel %vm365, %v265, 0
      %v478 = vsel %vm365, %v266, 0
      %v481 = vsel %vm365, %v267, 0
      %v484 = vsel %vm365, %v268, 0
      %v487 = vsel %vm365, %v269, 0
      %v490 = vsel %vm365, %v270, 0
      %v493 = vsel %vm365, %v271, 0
      %v496 = vsel %vm365, %v272, 0
      %v499 = vsel %vm365, %v273, 0
      %v502 = vsel %vm365, %v274, 0
      %v505 = vsel %vm365, %v275, 0
      %v508 = vsel %vm365, %v276, 0
      %v511 = vsel %vm365, %v277, 0
      %v514 = vsel %vm365, %v278, 0
      %v517 = vsel %vm365, %v279, 0
      %v520 = vsel %vm365, %v280, 0
      %v523 = vsel %vm365, %v281, 0
      %v526 = vsel %vm365, %v282, 0
      %v529 = vsel %vm365, %v283, 0
      %v532 = vsel %vm365, %v284, 0
      %v535 = vsel %vm365, %v285, 0
      %v538 = vsel %vm365, %v286, 0
      %v541 = vsel %vm365, %v287, 0
      %v544 = vsel %vm365, %v288, 0
      %v547 = vsel %vm365, %v289, 0
      %v550 = vsel %vm365, %v290, 0
      %v553 = vsel %vm365, %v291, 0
      %v556 = vsel %vm365, %v292, 0
      %v559 = vsel %vm365, %v293, 0
      %v562 = vsel %vm365, %v294, 0
      %v565 = vsel %vm365, %v295, 0
      %v568 = vsel %vm365, %v296, 0
      %v571 = vsel %vm365, %v297, 0
      %v574 = vsel %vm365, %v298, 0
      %v577 = vsel %vm365, %v299, 0
      %v580 = vsel %vm365, %v300, 0
      %v583 = vsel %vm365, %v301, 0
      %v586 = vsel %vm365, %v302, 0
      %v589 = vsel %vm365, %v303, 0
      %v592 = vsel %vm365, %v304, 0
      %v595 = vsel %vm365, %v305, 0
      %v598 = vsel %vm365, %v306, 0
      %v601 = vsel %vm365, %v307, 0
      %v604 = vsel %vm365, %v308, 0
      %v607 = vsel %vm365, %v309, 0
      %v610 = vsel %vm365, %v310, 0
      %v613 = vsel %vm365, %v311, 0
      %v616 = vsel %vm365, %v312, 0
      %v619 = vsel %vm365, %v313, 0
      %v622 = vsel %vm365, %v314, 0
      %v625 = vsel %vm365, %v315, 0
      %v628 = vsel %vm365, %v316, 0
      %v631 = vsel %vm365, %v317, 0
      %v634 = vsel %vm365, %v318, 0
      %v637 = vsel %vm365, %v319, 0
      %v640 = vsel %vm365, %v320, 0
      %v643 = vsel %vm365, %v321, 0
      %v646 = vsel %vm365, %v322, 0
      %v649 = vsel %vm365, %v323, 0
      %v652 = vsel %vm365, %v324, 0
      %v655 = vsel %vm365, %v325, 0
      %v658 = vsel %vm365, %v326, 0
      %v661 = vsel %vm365, %v327, 0
      %v664 = vsel %vm365, %v328, 0
      %v667 = vsel %vm365, %v329, 0
      %v670 = vsel %vm365, %v330, 0
      %v673 = vsel %vm365, %v331, 0
      %v676 = vsel %vm365, %v332, 0
      %v679 = vsel %vm365, %v333, 0
      %v682 = vsel %vm365, %v334, 0
      %v685 = vsel %vm365, %v335, 0
      %v688 = vsel %vm365, %v336, 0
      %v691 = vsel %vm365, %v337, 0
      %v694 = vsel %vm365, %v338, 0
      %v697 = vsel %vm365, %v339, 0
      %v700 = vsel %vm365, %v340, 0
      %vm702 = vcmask 1044480
      %v704 = vsel %vm702, %v351, 0
      %v707 = vsel %vm702, %v352, 0
      %709 = vmatprep.subr.mxu0 %v342
      %710 = vmatpush1.msra.mxu0 %v341
      %711 = vmatprep.subr.mxu0 %v344
      %712 = vmatpush1.msra.mxu0 %v343
      %713 = vmatprep.subr.mxu0 %v346
      %714 = vmatpush1.msra.mxu0 %v345
      %715 = vmatprep.subr.mxu0 %v348
      %716 = vmatpush1.msra.mxu0 %v347
      %717 = vmatprep.subr.mxu0 %v350
      %718 = vmatpush1.msra.mxu0 %v349
      %719 = vmatprep.subr.mxu0 %v707
      %720 = vmatpush1.msra.mxu0 %v704
      %721 = vmatprep.subr.mxu0 0.0
      %722 = vmatpush1.msra.mxu0 0.0
      %723 = vmatprep.subr.mxu0 0.0
      %724 = vmatpush1.msra.mxu0 0.0
      %725 = vmatprep.subr.mxu0 0.0
      %726 = vmatpush1.msra.mxu0 0.0
      %727 = vmatprep.subr.mxu0 0.0
      %728 = vmatpush1.msra.mxu0 0.0
      %729 = vmatprep.subr.mxu0 0.0
      %730 = vmatpush1.msra.mxu0 0.0
      %731 = vmatprep.subr.mxu0 0.0
      %732 = vmatpush1.msra.mxu0 0.0
      %733 = vmatprep.subr.mxu0 0.0
      %734 = vmatpush1.msra.mxu0 0.0
      %735 = vmatprep.subr.mxu0 0.0
      %736 = vmatpush1.msra.mxu0 0.0
      %737 = vmatprep.subr.mxu0 0.0
      %738 = vmatpush1.msra.mxu0 0.0
      %739 = vmatprep.subr.mxu0 0.0
      %740 = vmatpush1.msra.mxu0 0.0
      %741 = vmatprep.subr.mxu0 0.0
      %742 = vmatpush1.msra.mxu0 0.0
      %743 = vmatprep.subr.mxu0 0.0
      %744 = vmatpush1.msra.mxu0 0.0
      %745 = vmatprep.subr.mxu0 0.0
      %746 = vmatpush1.msra.mxu0 0.0
      %747 = vmatprep.subr.mxu0 0.0
      %748 = vmatpush1.msra.mxu0 0.0
      %749 = vmatprep.subr.mxu0 0.0
      %750 = vmatpush1.msra.mxu0 0.0
      %751 = vmatprep.subr.mxu0 0.0
      %752 = vmatpush1.msra.mxu0 0.0
      %753 = vmatprep.subr.mxu0 0.0
      %754 = vmatpush1.msra.mxu0 0.0
      %755 = vmatprep.subr.mxu0 0.0
      %756 = vmatpush1.msra.mxu0 0.0
      %757 = vmatprep.subr.mxu0 0.0
      %758 = vmatpush1.msra.mxu0 0.0
      %759 = vmatprep.subr.mxu0 0.0
      %760 = vmatpush1.msra.mxu0 0.0
      %761 = vmatprep.subr.mxu0 0.0
      %762 = vmatpush1.msra.mxu0 0.0
      %763 = vmatprep.subr.mxu0 0.0
      %764 = vmatpush1.msra.mxu0 0.0
      %765 = vmatprep.subr.mxu0 0.0
      %766 = vmatpush1.msra.mxu0 0.0
      %767 = vmatprep.subr.mxu0 0.0
      %768 = vmatpush1.msra.mxu0 0.0
      %769 = vmatprep.subr.mxu0 0.0
      %770 = vmatpush1.msra.mxu0 0.0
      %771 = vmatprep.subr.mxu0 0.0
      %772 = vmatpush1.msra.mxu0 0.0
      %773 = vmatprep.mubr.f32.mxu0 0.0
      %774 = vmatmul.mubr.f32.gmra.mrb[0].mxu0 %v367
      %v775 = vpop.f32.mrb[0].mxu0
      %v776 = vadd.f32 %v358, %v775
      %v777 = vpop.f32.mrb[0].mxu0
      %v778 = vadd.f32 %v362, %v777
      %779 = vmatprep.mubr.f32.mxu0 0.0
      %780 = vmatmul.mubr.f32.gmra.mrb[0].mxu0 %v370
      %v781 = vpop.f32.mrb[0].mxu0
      %v782 = vadd.f32 %v358, %v781
      %v783 = vpop.f32.mrb[0].mxu0
      %v784 = vadd.f32 %v362, %v783
      %785 = vmatprep.mubr.f32.mxu0 0.0
      %786 = vmatmul.mubr.f32.gmra.mrb[0].mxu0 %v373
      %v787 = vpop.f32.mrb[0].mxu0
      %v788 = vadd.f32 %v358, %v787
      %v789 = vpop.f32.mrb[0].mxu0
      %v790 = vadd.f32 %v362, %v789
      %791 = vmatprep.mubr.f32.mxu0 0.0
      %792 = vmatmul.mubr.f32.gmra.mrb[0].mxu0 %v376
      %v793 = vpop.f32.mrb[0].mxu0
      %v794 = vadd.f32 %v358, %v793
      %v795 = vpop.f32.mrb[0].mxu0
      %v796 = vadd.f32 %v362, %v795
      %797 = vmatprep.mubr.f32.mxu0 0.0
      %798 = vmatmul.mubr.f32.gmra.mrb[0].mxu0 %v379
      %v799 = vpop.f32.mrb[0].mxu0
      %v800 = vadd.f32 %v358, %v799
      %v801 = vpop.f32.mrb[0].mxu0
      %v802 = vadd.f32 %v362, %v801
      %803 = vmatprep.mubr.f32.mxu0 0.0
      %804 = vmatmul.mubr.f32.gmra.mrb[0].mxu0 %v382
      %v805 = vpop.f32.mrb[0].mxu0
      %v806 = vadd.f32 %v358, %v805
      %v807 = vpop.f32.mrb[0].mxu0
      %v808 = vadd.f32 %v362, %v807
      %809 = vmatprep.mubr.f32.mxu0 0.0
      %810 = vmatmul.mubr.f32.gmra.mrb[0].mxu0 %v385
      %v811 = vpop.f32.mrb[0].mxu0
      %v812 = vadd.f32 %v358, %v811
      %v813 = vpop.f32.mrb[0].mxu0
      %v814 = vadd.f32 %v362, %v813
      %815 = vmatprep.mubr.f32.mxu0 0.0
      %816 = vmatmul.mubr.f32.gmra.mrb[0].mxu0 %v388
      %v817 = vpop.f32.mrb[0].mxu0
      %v818 = vadd.f32 %v358, %v817
      %v819 = vpop.f32.mrb[0].mxu0
      %v820 = vadd.f32 %v362, %v819
      %821 = vmatprep.mubr.f32.mxu0 0.0
      %822 = vmatmul.mubr.f32.gmra.mrb[0].mxu0 %v391
      %v823 = vpop.f32.mrb[0].mxu0
      %v824 = vadd.f32 %v358, %v823
      %v825 = vpop.f32.mrb[0].mxu0
      %v826 = vadd.f32 %v362, %v825
      %827 = vmatprep.mubr.f32.mxu0 0.0
      %828 = vmatmul.mubr.f32.gmra.mrb[0].mxu0 %v394
      %v829 = vpop.f32.mrb[0].mxu0
      %v830 = vadd.f32 %v358, %v829
      %v831 = vpop.f32.mrb[0].mxu0
      %v832 = vadd.f32 %v362, %v831
      %833 = vmatprep.mubr.f32.mxu0 0.0
      %834 = vmatmul.mubr.f32.gmra.mrb[0].mxu0 %v397
      %v835 = vpop.f32.mrb[0].mxu0
      %v836 = vadd.f32 %v358, %v835
      %v837 = vpop.f32.mrb[0].mxu0
      %v838 = vadd.f32 %v362, %v837
      %839 = vmatprep.mubr.f32.mxu0 0.0
      %840 = vmatmul.mubr.f32.gmra.mrb[0].mxu0 %v400
      %v841 = vpop.f32.mrb[0].mxu0
      %v842 = vadd.f32 %v358, %v841
      %v843 = vpop.f32.mrb[0].mxu0
      %v844 = vadd.f32 %v362, %v843
      %845 = vmatprep.mubr.f32.mxu0 0.0
      %846 = vmatmul.mubr.f32.gmra.mrb[0].mxu0 %v403
      %v847 = vpop.f32.mrb[0].mxu0
      %v848 = vadd.f32 %v358, %v847
      %v849 = vpop.f32.mrb[0].mxu0
      %v850 = vadd.f32 %v362, %v849
      %851 = vmatprep.mubr.f32.mxu0 0.0
      %852 = vmatmul.mubr.f32.gmra.mrb[0].mxu0 %v406
      %v853 = vpop.f32.mrb[0].mxu0
      %v854 = vadd.f32 %v358, %v853
      %v855 = vpop.f32.mrb[0].mxu0
      %v856 = vadd.f32 %v362, %v855
      %857 = vmatprep.mubr.f32.mxu0 0.0
      %858 = vmatmul.mubr.f32.gmra.mrb[0].mxu0 %v409
      %v859 = vpop.f32.mrb[0].mxu0
      %v860 = vadd.f32 %v358, %v859
      %v861 = vpop.f32.mrb[0].mxu0
      %v862 = vadd.f32 %v362, %v861
      %863 = vmatprep.mubr.f32.mxu0 0.0
      %864 = vmatmul.mubr.f32.gmra.mrb[0].mxu0 %v412
      %v865 = vpop.f32.mrb[0].mxu0
      %v866 = vadd.f32 %v358, %v865
      %v867 = vpop.f32.mrb[0].mxu0
      %v868 = vadd.f32 %v362, %v867
      %869 = vmatprep.mubr.f32.mxu0 0.0
      %870 = vmatmul.mubr.f32.gmra.mrb[0].mxu0 %v415
      %v871 = vpop.f32.mrb[0].mxu0
      %v872 = vadd.f32 %v358, %v871
      %v873 = vpop.f32.mrb[0].mxu0
      %v874 = vadd.f32 %v362, %v873
      %875 = vmatprep.mubr.f32.mxu0 0.0
      %876 = vmatmul.mubr.f32.gmra.mrb[0].mxu0 %v418
      %v877 = vpop.f32.mrb[0].mxu0
      %v878 = vadd.f32 %v358, %v877
      %v879 = vpop.f32.mrb[0].mxu0
      %v880 = vadd.f32 %v362, %v879
      %881 = vmatprep.mubr.f32.mxu0 0.0
      %882 = vmatmul.mubr.f32.gmra.mrb[0].mxu0 %v421
      %v883 = vpop.f32.mrb[0].mxu0
      %v884 = vadd.f32 %v358, %v883
      %v885 = vpop.f32.mrb[0].mxu0
      %v886 = vadd.f32 %v362, %v885
      %887 = vmatprep.mubr.f32.mxu0 0.0
      %888 = vmatmul.mubr.f32.gmra.mrb[0].mxu0 %v424
      %v889 = vpop.f32.mrb[0].mxu0
      %v890 = vadd.f32 %v358, %v889
      %v891 = vpop.f32.mrb[0].mxu0
      %v892 = vadd.f32 %v362, %v891
      %893 = vmatprep.mubr.f32.mxu0 0.0
      %894 = vmatmul.mubr.f32.gmra.mrb[0].mxu0 %v427
      %v895 = vpop.f32.mrb[0].mxu0
      %v896 = vadd.f32 %v358, %v895
      %v897 = vpop.f32.mrb[0].mxu0
      %v898 = vadd.f32 %v362, %v897
      %899 = vmatprep.mubr.f32.mxu0 0.0
      %900 = vmatmul.mubr.f32.gmra.mrb[0].mxu0 %v430
      %v901 = vpop.f32.mrb[0].mxu0
      %v902 = vadd.f32 %v358, %v901
      %v903 = vpop.f32.mrb[0].mxu0
      %v904 = vadd.f32 %v362, %v903
      %905 = vmatprep.mubr.f32.mxu0 0.0
      %906 = vmatmul.mubr.f32.gmra.mrb[0].mxu0 %v433
      %v907 = vpop.f32.mrb[0].mxu0
      %v908 = vadd.f32 %v358, %v907
      %v909 = vpop.f32.mrb[0].mxu0
      %v910 = vadd.f32 %v362, %v909
      %911 = vmatprep.mubr.f32.mxu0 0.0
      %912 = vmatmul.mubr.f32.gmra.mrb[0].mxu0 %v436
      %v913 = vpop.f32.mrb[0].mxu0
      %v914 = vadd.f32 %v358, %v913
      %v915 = vpop.f32.mrb[0].mxu0
      %v916 = vadd.f32 %v362, %v915
      %917 = vmatprep.mubr.f32.mxu0 0.0
      %918 = vmatmul.mubr.f32.gmra.mrb[0].mxu0 %v439
      %v919 = vpop.f32.mrb[0].mxu0
      %v920 = vadd.f32 %v358, %v919
      %v921 = vpop.f32.mrb[0].mxu0
      %v922 = vadd.f32 %v362, %v921
      %923 = vmatprep.mubr.f32.mxu0 0.0
      %924 = vmatmul.mubr.f32.gmra.mrb[0].mxu0 %v442
      %v925 = vpop.f32.mrb[0].mxu0
      %v926 = vadd.f32 %v358, %v925
      %v927 = vpop.f32.mrb[0].mxu0
      %v928 = vadd.f32 %v362, %v927
      %929 = vmatprep.mubr.f32.mxu0 0.0
      %930 = vmatmul.mubr.f32.gmra.mrb[0].mxu0 %v445
      %v931 = vpop.f32.mrb[0].mxu0
      %v932 = vadd.f32 %v358, %v931
      %v933 = vpop.f32.mrb[0].mxu0
      %v934 = vadd.f32 %v362, %v933
      %935 = vmatprep.mubr.f32.mxu0 0.0
      %936 = vmatmul.mubr.f32.gmra.mrb[0].mxu0 %v448
      %v937 = vpop.f32.mrb[0].mxu0
      %v938 = vadd.f32 %v358, %v937
      %v939 = vpop.f32.mrb[0].mxu0
      %v940 = vadd.f32 %v362, %v939
      %941 = vmatprep.mubr.f32.mxu0 0.0
      %942 = vmatmul.mubr.f32.gmra.mrb[0].mxu0 %v451
      %v943 = vpop.f32.mrb[0].mxu0
      %v944 = vadd.f32 %v358, %v943
      %v945 = vpop.f32.mrb[0].mxu0
      %v946 = vadd.f32 %v362, %v945
      %947 = vmatprep.mubr.f32.mxu0 0.0
      %948 = vmatmul.mubr.f32.gmra.mrb[0].mxu0 %v454
      %v949 = vpop.f32.mrb[0].mxu0
      %v950 = vadd.f32 %v358, %v949
      %v951 = vpop.f32.mrb[0].mxu0
      %v952 = vadd.f32 %v362, %v951
      %953 = vmatprep.mubr.f32.mxu0 0.0
      %954 = vmatmul.mubr.f32.gmra.mrb[0].mxu0 %v457
      %v955 = vpop.f32.mrb[0].mxu0
      %v956 = vadd.f32 %v358, %v955
      %v957 = vpop.f32.mrb[0].mxu0
      %v958 = vadd.f32 %v362, %v957
      %959 = vmatprep.mubr.f32.mxu0 0.0
      %960 = vmatmul.mubr.f32.gmra.mrb[0].mxu0 %v460
      %v961 = vpop.f32.mrb[0].mxu0
      %v962 = vadd.f32 %v358, %v961
      %v963 = vpop.f32.mrb[0].mxu0
      %v964 = vadd.f32 %v362, %v963
      %965 = vmatprep.mubr.f32.mxu0 0.0
      %966 = vmatmul.mubr.f32.gmra.mrb[0].mxu0 %v463
      %v967 = vpop.f32.mrb[0].mxu0
      %v968 = vadd.f32 %v358, %v967
      %v969 = vpop.f32.mrb[0].mxu0
      %v970 = vadd.f32 %v362, %v969
      %971 = vmatprep.mubr.f32.mxu0 0.0
      %972 = vmatmul.mubr.f32.gmra.mrb[0].mxu0 %v466
      %v973 = vpop.f32.mrb[0].mxu0
      %v974 = vadd.f32 %v358, %v973
      %v975 = vpop.f32.mrb[0].mxu0
      %v976 = vadd.f32 %v362, %v975
      %977 = vmatprep.mubr.f32.mxu0 0.0
      %978 = vmatmul.mubr.f32.gmra.mrb[0].mxu0 %v469
      %v979 = vpop.f32.mrb[0].mxu0
      %v980 = vadd.f32 %v358, %v979
      %v981 = vpop.f32.mrb[0].mxu0
      %v982 = vadd.f32 %v362, %v981
      %983 = vmatprep.mubr.f32.mxu0 0.0
      %984 = vmatmul.mubr.f32.gmra.mrb[0].mxu0 %v472
      %v985 = vpop.f32.mrb[0].mxu0
      %v986 = vadd.f32 %v358, %v985
      %v987 = vpop.f32.mrb[0].mxu0
      %v988 = vadd.f32 %v362, %v987
      %989 = vmatprep.mubr.f32.mxu0 0.0
      %990 = vmatmul.mubr.f32.gmra.mrb[0].mxu0 %v475
      %v991 = vpop.f32.mrb[0].mxu0
      %v992 = vadd.f32 %v358, %v991
      %v993 = vpop.f32.mrb[0].mxu0
      %v994 = vadd.f32 %v362, %v993
      %995 = vmatprep.mubr.f32.mxu0 0.0
      %996 = vmatmul.mubr.f32.gmra.mrb[0].mxu0 %v478
      %v997 = vpop.f32.mrb[0].mxu0
      %v998 = vadd.f32 %v358, %v997
      %v999 = vpop.f32.mrb[0].mxu0
      %v1000 = vadd.f32 %v362, %v999
      %1001 = vmatprep.mubr.f32.mxu0 0.0
      %1002 = vmatmul.mubr.f32.gmra.mrb[0].mxu0 %v481
      %v1003 = vpop.f32.mrb[0].mxu0
      %v1004 = vadd.f32 %v358, %v1003
      %v1005 = vpop.f32.mrb[0].mxu0
      %v1006 = vadd.f32 %v362, %v1005
      %1007 = vmatprep.mubr.f32.mxu0 0.0
      %1008 = vmatmul.mubr.f32.gmra.mrb[0].mxu0 %v484
      %v1009 = vpop.f32.mrb[0].mxu0
      %v1010 = vadd.f32 %v358, %v1009
      %v1011 = vpop.f32.mrb[0].mxu0
      %v1012 = vadd.f32 %v362, %v1011
      %1013 = vmatprep.mubr.f32.mxu0 0.0
      %1014 = vmatmul.mubr.f32.gmra.mrb[0].mxu0 %v487
      %v1015 = vpop.f32.mrb[0].mxu0
      %v1016 = vadd.f32 %v358, %v1015
      %v1017 = vpop.f32.mrb[0].mxu0
      %v1018 = vadd.f32 %v362, %v1017
      %1019 = vmatprep.mubr.f32.mxu0 0.0
      %1020 = vmatmul.mubr.f32.gmra.mrb[0].mxu0 %v490
      %v1021 = vpop.f32.mrb[0].mxu0
      %v1022 = vadd.f32 %v358, %v1021
      %v1023 = vpop.f32.mrb[0].mxu0
      %v1024 = vadd.f32 %v362, %v1023
      %1025 = vmatprep.mubr.f32.mxu0 0.0
      %1026 = vmatmul.mubr.f32.gmra.mrb[0].mxu0 %v493
      %v1027 = vpop.f32.mrb[0].mxu0
      %v1028 = vadd.f32 %v358, %v1027
      %v1029 = vpop.f32.mrb[0].mxu0
      %v1030 = vadd.f32 %v362, %v1029
      %1031 = vmatprep.mubr.f32.mxu0 0.0
      %1032 = vmatmul.mubr.f32.gmra.mrb[0].mxu0 %v496
      %v1033 = vpop.f32.mrb[0].mxu0
      %v1034 = vadd.f32 %v358, %v1033
      %v1035 = vpop.f32.mrb[0].mxu0
      %v1036 = vadd.f32 %v362, %v1035
      %1037 = vmatprep.mubr.f32.mxu0 0.0
      %1038 = vmatmul.mubr.f32.gmra.mrb[0].mxu0 %v499
      %v1039 = vpop.f32.mrb[0].mxu0
      %v1040 = vadd.f32 %v358, %v1039
      %v1041 = vpop.f32.mrb[0].mxu0
      %v1042 = vadd.f32 %v362, %v1041
      %1043 = vmatprep.mubr.f32.mxu0 0.0
      %1044 = vmatmul.mubr.f32.gmra.mrb[0].mxu0 %v502
      %v1045 = vpop.f32.mrb[0].mxu0
      %v1046 = vadd.f32 %v358, %v1045
      %v1047 = vpop.f32.mrb[0].mxu0
      %v1048 = vadd.f32 %v362, %v1047
      %1049 = vmatprep.mubr.f32.mxu0 0.0
      %1050 = vmatmul.mubr.f32.gmra.mrb[0].mxu0 %v505
      %v1051 = vpop.f32.mrb[0].mxu0
      %v1052 = vadd.f32 %v358, %v1051
      %v1053 = vpop.f32.mrb[0].mxu0
      %v1054 = vadd.f32 %v362, %v1053
      %1055 = vmatprep.mubr.f32.mxu0 0.0
      %1056 = vmatmul.mubr.f32.gmra.mrb[0].mxu0 %v508
      %v1057 = vpop.f32.mrb[0].mxu0
      %v1058 = vadd.f32 %v358, %v1057
      %v1059 = vpop.f32.mrb[0].mxu0
      %v1060 = vadd.f32 %v362, %v1059
      %1061 = vmatprep.mubr.f32.mxu0 0.0
      %1062 = vmatmul.mubr.f32.gmra.mrb[0].mxu0 %v511
      %v1063 = vpop.f32.mrb[0].mxu0
      %v1064 = vadd.f32 %v358, %v1063
      %v1065 = vpop.f32.mrb[0].mxu0
      %v1066 = vadd.f32 %v362, %v1065
      %1067 = vmatprep.mubr.f32.mxu0 0.0
      %1068 = vmatmul.mubr.f32.gmra.mrb[0].mxu0 %v514
      %v1069 = vpop.f32.mrb[0].mxu0
      %v1070 = vadd.f32 %v358, %v1069
      %v1071 = vpop.f32.mrb[0].mxu0
      %v1072 = vadd.f32 %v362, %v1071
      %1073 = vmatprep.mubr.f32.mxu0 0.0
      %1074 = vmatmul.mubr.f32.gmra.mrb[0].mxu0 %v517
      %v1075 = vpop.f32.mrb[0].mxu0
      %v1076 = vadd.f32 %v358, %v1075
      %v1077 = vpop.f32.mrb[0].mxu0
      %v1078 = vadd.f32 %v362, %v1077
      %1079 = vmatprep.mubr.f32.mxu0 0.0
      %1080 = vmatmul.mubr.f32.gmra.mrb[0].mxu0 %v520
      %v1081 = vpop.f32.mrb[0].mxu0
      %v1082 = vadd.f32 %v358, %v1081
      %v1083 = vpop.f32.mrb[0].mxu0
      %v1084 = vadd.f32 %v362, %v1083
      %1085 = vmatprep.mubr.f32.mxu0 0.0
      %1086 = vmatmul.mubr.f32.gmra.mrb[0].mxu0 %v523
      %v1087 = vpop.f32.mrb[0].mxu0
      %v1088 = vadd.f32 %v358, %v1087
      %v1089 = vpop.f32.mrb[0].mxu0
      %v1090 = vadd.f32 %v362, %v1089
      %1091 = vmatprep.mubr.f32.mxu0 0.0
      %1092 = vmatmul.mubr.f32.gmra.mrb[0].mxu0 %v526
      %v1093 = vpop.f32.mrb[0].mxu0
      %v1094 = vadd.f32 %v358, %v1093
      %v1095 = vpop.f32.mrb[0].mxu0
      %v1096 = vadd.f32 %v362, %v1095
      %1097 = vmatprep.mubr.f32.mxu0 0.0
      %1098 = vmatmul.mubr.f32.gmra.mrb[0].mxu0 %v529
      %v1099 = vpop.f32.mrb[0].mxu0
      %v1100 = vadd.f32 %v358, %v1099
      %v1101 = vpop.f32.mrb[0].mxu0
      %v1102 = vadd.f32 %v362, %v1101
      %1103 = vmatprep.mubr.f32.mxu0 0.0
      %1104 = vmatmul.mubr.f32.gmra.mrb[0].mxu0 %v532
      %v1105 = vpop.f32.mrb[0].mxu0
      %v1106 = vadd.f32 %v358, %v1105
      %v1107 = vpop.f32.mrb[0].mxu0
      %v1108 = vadd.f32 %v362, %v1107
      %1109 = vmatprep.mubr.f32.mxu0 0.0
      %1110 = vmatmul.mubr.f32.gmra.mrb[0].mxu0 %v535
      %v1111 = vpop.f32.mrb[0].mxu0
      %v1112 = vadd.f32 %v358, %v1111
      %v1113 = vpop.f32.mrb[0].mxu0
      %v1114 = vadd.f32 %v362, %v1113
      %1115 = vmatprep.mubr.f32.mxu0 0.0
      %1116 = vmatmul.mubr.f32.gmra.mrb[0].mxu0 %v538
      %v1117 = vpop.f32.mrb[0].mxu0
      %v1118 = vadd.f32 %v358, %v1117
      %v1119 = vpop.f32.mrb[0].mxu0
      %v1120 = vadd.f32 %v362, %v1119
      %1121 = vmatprep.mubr.f32.mxu0 0.0
      %1122 = vmatmul.mubr.f32.gmra.mrb[0].mxu0 %v541
      %v1123 = vpop.f32.mrb[0].mxu0
      %v1124 = vadd.f32 %v358, %v1123
      %v1125 = vpop.f32.mrb[0].mxu0
      %v1126 = vadd.f32 %v362, %v1125
      %1127 = vmatprep.mubr.f32.mxu0 0.0
      %1128 = vmatmul.mubr.f32.gmra.mrb[0].mxu0 %v544
      %v1129 = vpop.f32.mrb[0].mxu0
      %v1130 = vadd.f32 %v358, %v1129
      %v1131 = vpop.f32.mrb[0].mxu0
      %v1132 = vadd.f32 %v362, %v1131
      %1133 = vmatprep.mubr.f32.mxu0 0.0
      %1134 = vmatmul.mubr.f32.gmra.mrb[0].mxu0 %v547
      %v1135 = vpop.f32.mrb[0].mxu0
      %v1136 = vadd.f32 %v358, %v1135
      %v1137 = vpop.f32.mrb[0].mxu0
      %v1138 = vadd.f32 %v362, %v1137
      %1139 = vmatprep.mubr.f32.mxu0 0.0
      %1140 = vmatmul.mubr.f32.gmra.mrb[0].mxu0 %v550
      %v1141 = vpop.f32.mrb[0].mxu0
      %v1142 = vadd.f32 %v358, %v1141
      %v1143 = vpop.f32.mrb[0].mxu0
      %v1144 = vadd.f32 %v362, %v1143
      %1145 = vmatprep.mubr.f32.mxu0 0.0
      %1146 = vmatmul.mubr.f32.gmra.mrb[0].mxu0 %v553
      %v1147 = vpop.f32.mrb[0].mxu0
      %v1148 = vadd.f32 %v358, %v1147
      %v1149 = vpop.f32.mrb[0].mxu0
      %v1150 = vadd.f32 %v362, %v1149
      %1151 = vmatprep.mubr.f32.mxu0 0.0
      %1152 = vmatmul.mubr.f32.gmra.mrb[0].mxu0 %v556
      %v1153 = vpop.f32.mrb[0].mxu0
      %v1154 = vadd.f32 %v358, %v1153
      %v1155 = vpop.f32.mrb[0].mxu0
      %v1156 = vadd.f32 %v362, %v1155
      %1157 = vmatprep.mubr.f32.mxu0 0.0
      %1158 = vmatmul.mubr.f32.gmra.mrb[0].mxu0 %v559
      %v1159 = vpop.f32.mrb[0].mxu0
      %v1160 = vadd.f32 %v358, %v1159
      %v1161 = vpop.f32.mrb[0].mxu0
      %v1162 = vadd.f32 %v362, %v1161
      %1163 = vmatprep.mubr.f32.mxu0 0.0
      %1164 = vmatmul.mubr.f32.gmra.mrb[0].mxu0 %v562
      %v1165 = vpop.f32.mrb[0].mxu0
      %v1166 = vadd.f32 %v358, %v1165
      %v1167 = vpop.f32.mrb[0].mxu0
      %v1168 = vadd.f32 %v362, %v1167
      %1169 = vmatprep.mubr.f32.mxu0 0.0
      %1170 = vmatmul.mubr.f32.gmra.mrb[0].mxu0 %v565
      %v1171 = vpop.f32.mrb[0].mxu0
      %v1172 = vadd.f32 %v358, %v1171
      %v1173 = vpop.f32.mrb[0].mxu0
      %v1174 = vadd.f32 %v362, %v1173
      %1175 = vmatprep.mubr.f32.mxu0 0.0
      %1176 = vmatmul.mubr.f32.gmra.mrb[0].mxu0 %v568
      %v1177 = vpop.f32.mrb[0].mxu0
      %v1178 = vadd.f32 %v358, %v1177
      %v1179 = vpop.f32.mrb[0].mxu0
      %v1180 = vadd.f32 %v362, %v1179
      %1181 = vmatprep.mubr.f32.mxu0 0.0
      %1182 = vmatmul.mubr.f32.gmra.mrb[0].mxu0 %v571
      %v1183 = vpop.f32.mrb[0].mxu0
      %v1184 = vadd.f32 %v358, %v1183
      %v1185 = vpop.f32.mrb[0].mxu0
      %v1186 = vadd.f32 %v362, %v1185
      %1187 = vmatprep.mubr.f32.mxu0 0.0
      %1188 = vmatmul.mubr.f32.gmra.mrb[0].mxu0 %v574
      %v1189 = vpop.f32.mrb[0].mxu0
      %v1190 = vadd.f32 %v358, %v1189
      %v1191 = vpop.f32.mrb[0].mxu0
      %v1192 = vadd.f32 %v362, %v1191
      %1193 = vmatprep.mubr.f32.mxu0 0.0
      %1194 = vmatmul.mubr.f32.gmra.mrb[0].mxu0 %v577
      %v1195 = vpop.f32.mrb[0].mxu0
      %v1196 = vadd.f32 %v358, %v1195
      %v1197 = vpop.f32.mrb[0].mxu0
      %v1198 = vadd.f32 %v362, %v1197
      %1199 = vmatprep.mubr.f32.mxu0 0.0
      %1200 = vmatmul.mubr.f32.gmra.mrb[0].mxu0 %v580
      %v1201 = vpop.f32.mrb[0].mxu0
      %v1202 = vadd.f32 %v358, %v1201
      %v1203 = vpop.f32.mrb[0].mxu0
      %v1204 = vadd.f32 %v362, %v1203
      %1205 = vmatprep.mubr.f32.mxu0 0.0
      %1206 = vmatmul.mubr.f32.gmra.mrb[0].mxu0 %v583
      %v1207 = vpop.f32.mrb[0].mxu0
      %v1208 = vadd.f32 %v358, %v1207
      %v1209 = vpop.f32.mrb[0].mxu0
      %v1210 = vadd.f32 %v362, %v1209
      %1211 = vmatprep.mubr.f32.mxu0 0.0
      %1212 = vmatmul.mubr.f32.gmra.mrb[0].mxu0 %v586
      %v1213 = vpop.f32.mrb[0].mxu0
      %v1214 = vadd.f32 %v358, %v1213
      %v1215 = vpop.f32.mrb[0].mxu0
      %v1216 = vadd.f32 %v362, %v1215
      %1217 = vmatprep.mubr.f32.mxu0 0.0
      %1218 = vmatmul.mubr.f32.gmra.mrb[0].mxu0 %v589
      %v1219 = vpop.f32.mrb[0].mxu0
      %v1220 = vadd.f32 %v358, %v1219
      %v1221 = vpop.f32.mrb[0].mxu0
      %v1222 = vadd.f32 %v362, %v1221
      %1223 = vmatprep.mubr.f32.mxu0 0.0
      %1224 = vmatmul.mubr.f32.gmra.mrb[0].mxu0 %v592
      %v1225 = vpop.f32.mrb[0].mxu0
      %v1226 = vadd.f32 %v358, %v1225
      %v1227 = vpop.f32.mrb[0].mxu0
      %v1228 = vadd.f32 %v362, %v1227
      %1229 = vmatprep.mubr.f32.mxu0 0.0
      %1230 = vmatmul.mubr.f32.gmra.mrb[0].mxu0 %v595
      %v1231 = vpop.f32.mrb[0].mxu0
      %v1232 = vadd.f32 %v358, %v1231
      %v1233 = vpop.f32.mrb[0].mxu0
      %v1234 = vadd.f32 %v362, %v1233
      %1235 = vmatprep.mubr.f32.mxu0 0.0
      %1236 = vmatmul.mubr.f32.gmra.mrb[0].mxu0 %v598
      %v1237 = vpop.f32.mrb[0].mxu0
      %v1238 = vadd.f32 %v358, %v1237
      %v1239 = vpop.f32.mrb[0].mxu0
      %v1240 = vadd.f32 %v362, %v1239
      %1241 = vmatprep.mubr.f32.mxu0 0.0
      %1242 = vmatmul.mubr.f32.gmra.mrb[0].mxu0 %v601
      %v1243 = vpop.f32.mrb[0].mxu0
      %v1244 = vadd.f32 %v358, %v1243
      %v1245 = vpop.f32.mrb[0].mxu0
      %v1246 = vadd.f32 %v362, %v1245
      %1247 = vmatprep.mubr.f32.mxu0 0.0
      %1248 = vmatmul.mubr.f32.gmra.mrb[0].mxu0 %v604
      %v1249 = vpop.f32.mrb[0].mxu0
      %v1250 = vadd.f32 %v358, %v1249
      %v1251 = vpop.f32.mrb[0].mxu0
      %v1252 = vadd.f32 %v362, %v1251
      %1253 = vmatprep.mubr.f32.mxu0 0.0
      %1254 = vmatmul.mubr.f32.gmra.mrb[0].mxu0 %v607
      %v1255 = vpop.f32.mrb[0].mxu0
      %v1256 = vadd.f32 %v358, %v1255
      %v1257 = vpop.f32.mrb[0].mxu0
      %v1258 = vadd.f32 %v362, %v1257
      %1259 = vmatprep.mubr.f32.mxu0 0.0
      %1260 = vmatmul.mubr.f32.gmra.mrb[0].mxu0 %v610
      %v1261 = vpop.f32.mrb[0].mxu0
      %v1262 = vadd.f32 %v358, %v1261
      %v1263 = vpop.f32.mrb[0].mxu0
      %v1264 = vadd.f32 %v362, %v1263
      %1265 = vmatprep.mubr.f32.mxu0 0.0
      %1266 = vmatmul.mubr.f32.gmra.mrb[0].mxu0 %v613
      %v1267 = vpop.f32.mrb[0].mxu0
      %v1268 = vadd.f32 %v358, %v1267
      %v1269 = vpop.f32.mrb[0].mxu0
      %v1270 = vadd.f32 %v362, %v1269
      %1271 = vmatprep.mubr.f32.mxu0 0.0
      %1272 = vmatmul.mubr.f32.gmra.mrb[0].mxu0 %v616
      %v1273 = vpop.f32.mrb[0].mxu0
      %v1274 = vadd.f32 %v358, %v1273
      %v1275 = vpop.f32.mrb[0].mxu0
      %v1276 = vadd.f32 %v362, %v1275
      %1277 = vmatprep.mubr.f32.mxu0 0.0
      %1278 = vmatmul.mubr.f32.gmra.mrb[0].mxu0 %v619
      %v1279 = vpop.f32.mrb[0].mxu0
      %v1280 = vadd.f32 %v358, %v1279
      %v1281 = vpop.f32.mrb[0].mxu0
      %v1282 = vadd.f32 %v362, %v1281
      %1283 = vmatprep.mubr.f32.mxu0 0.0
      %1284 = vmatmul.mubr.f32.gmra.mrb[0].mxu0 %v622
      %v1285 = vpop.f32.mrb[0].mxu0
      %v1286 = vadd.f32 %v358, %v1285
      %v1287 = vpop.f32.mrb[0].mxu0
      %v1288 = vadd.f32 %v362, %v1287
      %1289 = vmatprep.mubr.f32.mxu0 0.0
      %1290 = vmatmul.mubr.f32.gmra.mrb[0].mxu0 %v625
      %v1291 = vpop.f32.mrb[0].mxu0
      %v1292 = vadd.f32 %v358, %v1291
      %v1293 = vpop.f32.mrb[0].mxu0
      %v1294 = vadd.f32 %v362, %v1293
      %1295 = vmatprep.mubr.f32.mxu0 0.0
      %1296 = vmatmul.mubr.f32.gmra.mrb[0].mxu0 %v628
      %v1297 = vpop.f32.mrb[0].mxu0
      %v1298 = vadd.f32 %v358, %v1297
      %v1299 = vpop.f32.mrb[0].mxu0
      %v1300 = vadd.f32 %v362, %v1299
      %1301 = vmatprep.mubr.f32.mxu0 0.0
      %1302 = vmatmul.mubr.f32.gmra.mrb[0].mxu0 %v631
      %v1303 = vpop.f32.mrb[0].mxu0
      %v1304 = vadd.f32 %v358, %v1303
      %v1305 = vpop.f32.mrb[0].mxu0
      %v1306 = vadd.f32 %v362, %v1305
      %1307 = vmatprep.mubr.f32.mxu0 0.0
      %1308 = vmatmul.mubr.f32.gmra.mrb[0].mxu0 %v634
      %v1309 = vpop.f32.mrb[0].mxu0
      %v1310 = vadd.f32 %v358, %v1309
      %v1311 = vpop.f32.mrb[0].mxu0
      %v1312 = vadd.f32 %v362, %v1311
      %1313 = vmatprep.mubr.f32.mxu0 0.0
      %1314 = vmatmul.mubr.f32.gmra.mrb[0].mxu0 %v637
      %v1315 = vpop.f32.mrb[0].mxu0
      %v1316 = vadd.f32 %v358, %v1315
      %v1317 = vpop.f32.mrb[0].mxu0
      %v1318 = vadd.f32 %v362, %v1317
      %1319 = vmatprep.mubr.f32.mxu0 0.0
      %1320 = vmatmul.mubr.f32.gmra.mrb[0].mxu0 %v640
      %v1321 = vpop.f32.mrb[0].mxu0
      %v1322 = vadd.f32 %v358, %v1321
      %v1323 = vpop.f32.mrb[0].mxu0
      %v1324 = vadd.f32 %v362, %v1323
      %1325 = vmatprep.mubr.f32.mxu0 0.0
      %1326 = vmatmul.mubr.f32.gmra.mrb[0].mxu0 %v643
      %v1327 = vpop.f32.mrb[0].mxu0
      %v1328 = vadd.f32 %v358, %v1327
      %v1329 = vpop.f32.mrb[0].mxu0
      %v1330 = vadd.f32 %v362, %v1329
      %1331 = vmatprep.mubr.f32.mxu0 0.0
      %1332 = vmatmul.mubr.f32.gmra.mrb[0].mxu0 %v646
      %v1333 = vpop.f32.mrb[0].mxu0
      %v1334 = vadd.f32 %v358, %v1333
      %v1335 = vpop.f32.mrb[0].mxu0
      %v1336 = vadd.f32 %v362, %v1335
      %1337 = vmatprep.mubr.f32.mxu0 0.0
      %1338 = vmatmul.mubr.f32.gmra.mrb[0].mxu0 %v649
      %v1339 = vpop.f32.mrb[0].mxu0
      %v1340 = vadd.f32 %v358, %v1339
      %v1341 = vpop.f32.mrb[0].mxu0
      %v1342 = vadd.f32 %v362, %v1341
      %1343 = vmatprep.mubr.f32.mxu0 0.0
      %1344 = vmatmul.mubr.f32.gmra.mrb[0].mxu0 %v652
      %v1345 = vpop.f32.mrb[0].mxu0
      %v1346 = vadd.f32 %v358, %v1345
      %v1347 = vpop.f32.mrb[0].mxu0
      %v1348 = vadd.f32 %v362, %v1347
      %1349 = vmatprep.mubr.f32.mxu0 0.0
      %1350 = vmatmul.mubr.f32.gmra.mrb[0].mxu0 %v655
      %v1351 = vpop.f32.mrb[0].mxu0
      %v1352 = vadd.f32 %v358, %v1351
      %v1353 = vpop.f32.mrb[0].mxu0
      %v1354 = vadd.f32 %v362, %v1353
      %1355 = vmatprep.mubr.f32.mxu0 0.0
      %1356 = vmatmul.mubr.f32.gmra.mrb[0].mxu0 %v658
      %v1357 = vpop.f32.mrb[0].mxu0
      %v1358 = vadd.f32 %v358, %v1357
      %v1359 = vpop.f32.mrb[0].mxu0
      %v1360 = vadd.f32 %v362, %v1359
      %1361 = vmatprep.mubr.f32.mxu0 0.0
      %1362 = vmatmul.mubr.f32.gmra.mrb[0].mxu0 %v661
      %v1363 = vpop.f32.mrb[0].mxu0
      %v1364 = vadd.f32 %v358, %v1363
      %v1365 = vpop.f32.mrb[0].mxu0
      %v1366 = vadd.f32 %v362, %v1365
      %1367 = vmatprep.mubr.f32.mxu0 0.0
      %1368 = vmatmul.mubr.f32.gmra.mrb[0].mxu0 %v664
      %v1369 = vpop.f32.mrb[0].mxu0
      %v1370 = vadd.f32 %v358, %v1369
      %v1371 = vpop.f32.mrb[0].mxu0
      %v1372 = vadd.f32 %v362, %v1371
      %1373 = vmatprep.mubr.f32.mxu0 0.0
      %1374 = vmatmul.mubr.f32.gmra.mrb[0].mxu0 %v667
      %v1375 = vpop.f32.mrb[0].mxu0
      %v1376 = vadd.f32 %v358, %v1375
      %v1377 = vpop.f32.mrb[0].mxu0
      %v1378 = vadd.f32 %v362, %v1377
      %1379 = vmatprep.mubr.f32.mxu0 0.0
      %1380 = vmatmul.mubr.f32.gmra.mrb[0].mxu0 %v670
      %v1381 = vpop.f32.mrb[0].mxu0
      %v1382 = vadd.f32 %v358, %v1381
      %v1383 = vpop.f32.mrb[0].mxu0
      %v1384 = vadd.f32 %v362, %v1383
      %1385 = vmatprep.mubr.f32.mxu0 0.0
      %1386 = vmatmul.mubr.f32.gmra.mrb[0].mxu0 %v673
      %v1387 = vpop.f32.mrb[0].mxu0
      %v1388 = vadd.f32 %v358, %v1387
      %v1389 = vpop.f32.mrb[0].mxu0
      %v1390 = vadd.f32 %v362, %v1389
      %1391 = vmatprep.mubr.f32.mxu0 0.0
      %1392 = vmatmul.mubr.f32.gmra.mrb[0].mxu0 %v676
      %v1393 = vpop.f32.mrb[0].mxu0
      %v1394 = vadd.f32 %v358, %v1393
      %v1395 = vpop.f32.mrb[0].mxu0
      %v1396 = vadd.f32 %v362, %v1395
      %1397 = vmatprep.mubr.f32.mxu0 0.0
      %1398 = vmatmul.mubr.f32.gmra.mrb[0].mxu0 %v679
      %v1399 = vpop.f32.mrb[0].mxu0
      %v1400 = vadd.f32 %v358, %v1399
      %v1401 = vpop.f32.mrb[0].mxu0
      %v1402 = vadd.f32 %v362, %v1401
      %1403 = vmatprep.mubr.f32.mxu0 0.0
      %1404 = vmatmul.mubr.f32.gmra.mrb[0].mxu0 %v682
      %v1405 = vpop.f32.mrb[0].mxu0
      %v1406 = vadd.f32 %v358, %v1405
      %v1407 = vpop.f32.mrb[0].mxu0
      %v1408 = vadd.f32 %v362, %v1407
      %1409 = vmatprep.mubr.f32.mxu0 0.0
      %1410 = vmatmul.mubr.f32.gmra.mrb[0].mxu0 %v685
      %v1411 = vpop.f32.mrb[0].mxu0
      %v1412 = vadd.f32 %v358, %v1411
      %v1413 = vpop.f32.mrb[0].mxu0
      %v1414 = vadd.f32 %v362, %v1413
      %1415 = vmatprep.mubr.f32.mxu0 0.0
      %1416 = vmatmul.mubr.f32.gmra.mrb[0].mxu0 %v688
      %v1417 = vpop.f32.mrb[0].mxu0
      %v1418 = vadd.f32 %v358, %v1417
      %v1419 = vpop.f32.mrb[0].mxu0
      %v1420 = vadd.f32 %v362, %v1419
      %1421 = vmatprep.mubr.f32.mxu0 0.0
      %1422 = vmatmul.mubr.f32.gmra.mrb[0].mxu0 %v691
      %v1423 = vpop.f32.mrb[0].mxu0
      %v1424 = vadd.f32 %v358, %v1423
      %v1425 = vpop.f32.mrb[0].mxu0
      %v1426 = vadd.f32 %v362, %v1425
      %1427 = vmatprep.mubr.f32.mxu0 0.0
      %1428 = vmatmul.mubr.f32.gmra.mrb[0].mxu0 %v694
      %v1429 = vpop.f32.mrb[0].mxu0
      %v1430 = vadd.f32 %v358, %v1429
      %v1431 = vpop.f32.mrb[0].mxu0
      %v1432 = vadd.f32 %v362, %v1431
      %1433 = vmatprep.mubr.f32.mxu0 0.0
      %1434 = vmatmul.mubr.f32.gmra.mrb[0].mxu0 %v697
      %v1435 = vpop.f32.mrb[0].mxu0
      %v1436 = vadd.f32 %v358, %v1435
      %v1437 = vpop.f32.mrb[0].mxu0
      %v1438 = vadd.f32 %v362, %v1437
      %1439 = vmatprep.mubr.f32.mxu0 0.0
      %1440 = vmatmul.mubr.f32.gmra.mrb[0].mxu0 %v700
      %v1441 = vpop.f32.mrb[0].mxu0
      %v1442 = vadd.f32 %v358, %v1441
      %v1443 = vpop.f32.mrb[0].mxu0
      %v1444 = vadd.f32 %v362, %v1443
      %1445 = vdwg.mxu0
      %vm1446 = vcmp.gt.f32.partialorder %v776, 0.0
      %vm1447 = vcmp.gt.f32.partialorder %v778, 0.0
      %vm1448 = vcmp.gt.f32.partialorder %v782, 0.0
      %vm1449 = vcmp.gt.f32.partialorder %v784, 0.0
      %vm1450 = vcmp.gt.f32.partialorder %v788, 0.0
      %vm1451 = vcmp.gt.f32.partialorder %v790, 0.0
      %vm1452 = vcmp.gt.f32.partialorder %v794, 0.0
      %vm1453 = vcmp.gt.f32.partialorder %v796, 0.0
      %vm1454 = vcmp.gt.f32.partialorder %v800, 0.0
      %vm1455 = vcmp.gt.f32.partialorder %v802, 0.0
      %vm1456 = vcmp.gt.f32.partialorder %v806, 0.0
      %vm1457 = vcmp.gt.f32.partialorder %v808, 0.0
      %vm1458 = vcmp.gt.f32.partialorder %v812, 0.0
      %vm1459 = vcmp.gt.f32.partialorder %v814, 0.0
      %vm1460 = vcmp.gt.f32.partialorder %v818, 0.0
      %vm1461 = vcmp.gt.f32.partialorder %v820, 0.0
      %vm1462 = vcmp.gt.f32.partialorder %v824, 0.0
      %vm1463 = vcmp.gt.f32.partialorder %v826, 0.0
      %vm1464 = vcmp.gt.f32.partialorder %v830, 0.0
      %vm1465 = vcmp.gt.f32.partialorder %v832, 0.0
      %vm1466 = vcmp.gt.f32.partialorder %v836, 0.0
      %vm1467 = vcmp.gt.f32.partialorder %v838, 0.0
      %vm1468 = vcmp.gt.f32.partialorder %v842, 0.0
      %vm1469 = vcmp.gt.f32.partialorder %v844, 0.0
      %vm1470 = vcmp.gt.f32.partialorder %v848, 0.0
      %vm1471 = vcmp.gt.f32.partialorder %v850, 0.0
      %vm1472 = vcmp.gt.f32.partialorder %v854, 0.0
      %vm1473 = vcmp.gt.f32.partialorder %v856, 0.0
      %vm1474 = vcmp.gt.f32.partialorder %v860, 0.0
      %vm1475 = vcmp.gt.f32.partialorder %v862, 0.0
      %vm1476 = vcmp.gt.f32.partialorder %v866, 0.0
      %vm1477 = vcmp.gt.f32.partialorder %v868, 0.0
      %vm1478 = vcmp.gt.f32.partialorder %v872, 0.0
      %vm1479 = vcmp.gt.f32.partialorder %v874, 0.0
      %vm1480 = vcmp.gt.f32.partialorder %v878, 0.0
      %vm1481 = vcmp.gt.f32.partialorder %v880, 0.0
      %vm1482 = vcmp.gt.f32.partialorder %v884, 0.0
      %vm1483 = vcmp.gt.f32.partialorder %v886, 0.0
      %vm1484 = vcmp.gt.f32.partialorder %v890, 0.0
      %vm1485 = vcmp.gt.f32.partialorder %v892, 0.0
      %vm1486 = vcmp.gt.f32.partialorder %v896, 0.0
      %vm1487 = vcmp.gt.f32.partialorder %v898, 0.0
      %vm1488 = vcmp.gt.f32.partialorder %v902, 0.0
      %vm1489 = vcmp.gt.f32.partialorder %v904, 0.0
      %vm1490 = vcmp.gt.f32.partialorder %v908, 0.0
      %vm1491 = vcmp.gt.f32.partialorder %v910, 0.0
      %vm1492 = vcmp.gt.f32.partialorder %v914, 0.0
      %vm1493 = vcmp.gt.f32.partialorder %v916, 0.0
      %vm1494 = vcmp.gt.f32.partialorder %v920, 0.0
      %vm1495 = vcmp.gt.f32.partialorder %v922, 0.0
      %vm1496 = vcmp.gt.f32.partialorder %v926, 0.0
      %vm1497 = vcmp.gt.f32.partialorder %v928, 0.0
      %vm1498 = vcmp.gt.f32.partialorder %v932, 0.0
      %vm1499 = vcmp.gt.f32.partialorder %v934, 0.0
      %vm1500 = vcmp.gt.f32.partialorder %v938, 0.0
      %vm1501 = vcmp.gt.f32.partialorder %v940, 0.0
      %vm1502 = vcmp.gt.f32.partialorder %v944, 0.0
      %vm1503 = vcmp.gt.f32.partialorder %v946, 0.0
      %vm1504 = vcmp.gt.f32.partialorder %v950, 0.0
      %vm1505 = vcmp.gt.f32.partialorder %v952, 0.0
      %vm1506 = vcmp.gt.f32.partialorder %v956, 0.0
      %vm1507 = vcmp.gt.f32.partialorder %v958, 0.0
      %vm1508 = vcmp.gt.f32.partialorder %v962, 0.0
      %vm1509 = vcmp.gt.f32.partialorder %v964, 0.0
      %vm1510 = vcmp.gt.f32.partialorder %v968, 0.0
      %vm1511 = vcmp.gt.f32.partialorder %v970, 0.0
      %vm1512 = vcmp.gt.f32.partialorder %v974, 0.0
      %vm1513 = vcmp.gt.f32.partialorder %v976, 0.0
      %vm1514 = vcmp.gt.f32.partialorder %v980, 0.0
      %vm1515 = vcmp.gt.f32.partialorder %v982, 0.0
      %vm1516 = vcmp.gt.f32.partialorder %v986, 0.0
      %vm1517 = vcmp.gt.f32.partialorder %v988, 0.0
      %vm1518 = vcmp.gt.f32.partialorder %v992, 0.0
      %vm1519 = vcmp.gt.f32.partialorder %v994, 0.0
      %vm1520 = vcmp.gt.f32.partialorder %v998, 0.0
      %vm1521 = vcmp.gt.f32.partialorder %v1000, 0.0
      %vm1522 = vcmp.gt.f32.partialorder %v1004, 0.0
      %vm1523 = vcmp.gt.f32.partialorder %v1006, 0.0
      %vm1524 = vcmp.gt.f32.partialorder %v1010, 0.0
      %vm1525 = vcmp.gt.f32.partialorder %v1012, 0.0
      %vm1526 = vcmp.gt.f32.partialorder %v1016, 0.0
      %vm1527 = vcmp.gt.f32.partialorder %v1018, 0.0
      %vm1528 = vcmp.gt.f32.partialorder %v1022, 0.0
      %vm1529 = vcmp.gt.f32.partialorder %v1024, 0.0
      %vm1530 = vcmp.gt.f32.partialorder %v1028, 0.0
      %vm1531 = vcmp.gt.f32.partialorder %v1030, 0.0
      %vm1532 = vcmp.gt.f32.partialorder %v1034, 0.0
      %vm1533 = vcmp.gt.f32.partialorder %v1036, 0.0
      %vm1534 = vcmp.gt.f32.partialorder %v1040, 0.0
      %vm1535 = vcmp.gt.f32.partialorder %v1042, 0.0
      %vm1536 = vcmp.gt.f32.partialorder %v1046, 0.0
      %vm1537 = vcmp.gt.f32.partialorder %v1048, 0.0
      %vm1538 = vcmp.gt.f32.partialorder %v1052, 0.0
      %vm1539 = vcmp.gt.f32.partialorder %v1054, 0.0
      %vm1540 = vcmp.gt.f32.partialorder %v1058, 0.0
      %vm1541 = vcmp.gt.f32.partialorder %v1060, 0.0
      %vm1542 = vcmp.gt.f32.partialorder %v1064, 0.0
      %vm1543 = vcmp.gt.f32.partialorder %v1066, 0.0
      %vm1544 = vcmp.gt.f32.partialorder %v1070, 0.0
      %vm1545 = vcmp.gt.f32.partialorder %v1072, 0.0
      %vm1546 = vcmp.gt.f32.partialorder %v1076, 0.0
      %vm1547 = vcmp.gt.f32.partialorder %v1078, 0.0
      %vm1548 = vcmp.gt.f32.partialorder %v1082, 0.0
      %vm1549 = vcmp.gt.f32.partialorder %v1084, 0.0
      %vm1550 = vcmp.gt.f32.partialorder %v1088, 0.0
      %vm1551 = vcmp.gt.f32.partialorder %v1090, 0.0
      %vm1552 = vcmp.gt.f32.partialorder %v1094, 0.0
      %vm1553 = vcmp.gt.f32.partialorder %v1096, 0.0
      %vm1554 = vcmp.gt.f32.partialorder %v1100, 0.0
      %vm1555 = vcmp.gt.f32.partialorder %v1102, 0.0
      %vm1556 = vcmp.gt.f32.partialorder %v1106, 0.0
      %vm1557 = vcmp.gt.f32.partialorder %v1108, 0.0
      %vm1558 = vcmp.gt.f32.partialorder %v1112, 0.0
      %vm1559 = vcmp.gt.f32.partialorder %v1114, 0.0
      %vm1560 = vcmp.gt.f32.partialorder %v1118, 0.0
      %vm1561 = vcmp.gt.f32.partialorder %v1120, 0.0
      %vm1562 = vcmp.gt.f32.partialorder %v1124, 0.0
      %vm1563 = vcmp.gt.f32.partialorder %v1126, 0.0
      %vm1564 = vcmp.gt.f32.partialorder %v1130, 0.0
      %vm1565 = vcmp.gt.f32.partialorder %v1132, 0.0
      %vm1566 = vcmp.gt.f32.partialorder %v1136, 0.0
      %vm1567 = vcmp.gt.f32.partialorder %v1138, 0.0
      %vm1568 = vcmp.gt.f32.partialorder %v1142, 0.0
      %vm1569 = vcmp.gt.f32.partialorder %v1144, 0.0
      %vm1570 = vcmp.gt.f32.partialorder %v1148, 0.0
      %vm1571 = vcmp.gt.f32.partialorder %v1150, 0.0
      %vm1572 = vcmp.gt.f32.partialorder %v1154, 0.0
      %vm1573 = vcmp.gt.f32.partialorder %v1156, 0.0
      %vm1574 = vcmp.gt.f32.partialorder %v1160, 0.0
      %vm1575 = vcmp.gt.f32.partialorder %v1162, 0.0
      %vm1576 = vcmp.gt.f32.partialorder %v1166, 0.0
      %vm1577 = vcmp.gt.f32.partialorder %v1168, 0.0
      %vm1578 = vcmp.gt.f32.partialorder %v1172, 0.0
      %vm1579 = vcmp.gt.f32.partialorder %v1174, 0.0
      %vm1580 = vcmp.gt.f32.partialorder %v1178, 0.0
      %vm1581 = vcmp.gt.f32.partialorder %v1180, 0.0
      %vm1582 = vcmp.gt.f32.partialorder %v1184, 0.0
      %vm1583 = vcmp.gt.f32.partialorder %v1186, 0.0
      %vm1584 = vcmp.gt.f32.partialorder %v1190, 0.0
      %vm1585 = vcmp.gt.f32.partialorder %v1192, 0.0
      %vm1586 = vcmp.gt.f32.partialorder %v1196, 0.0
      %vm1587 = vcmp.gt.f32.partialorder %v1198, 0.0
      %vm1588 = vcmp.gt.f32.partialorder %v1202, 0.0
      %vm1589 = vcmp.gt.f32.partialorder %v1204, 0.0
      %vm1590 = vcmp.gt.f32.partialorder %v1208, 0.0
      %vm1591 = vcmp.gt.f32.partialorder %v1210, 0.0
      %vm1592 = vcmp.gt.f32.partialorder %v1214, 0.0
      %vm1593 = vcmp.gt.f32.partialorder %v1216, 0.0
      %vm1594 = vcmp.gt.f32.partialorder %v1220, 0.0
      %vm1595 = vcmp.gt.f32.partialorder %v1222, 0.0
      %vm1596 = vcmp.gt.f32.partialorder %v1226, 0.0
      %vm1597 = vcmp.gt.f32.partialorder %v1228, 0.0
      %vm1598 = vcmp.gt.f32.partialorder %v1232, 0.0
      %vm1599 = vcmp.gt.f32.partialorder %v1234, 0.0
      %vm1600 = vcmp.gt.f32.partialorder %v1238, 0.0
      %vm1601 = vcmp.gt.f32.partialorder %v1240, 0.0
      %vm1602 = vcmp.gt.f32.partialorder %v1244, 0.0
      %vm1603 = vcmp.gt.f32.partialorder %v1246, 0.0
      %vm1604 = vcmp.gt.f32.partialorder %v1250, 0.0
      %vm1605 = vcmp.gt.f32.partialorder %v1252, 0.0
      %vm1606 = vcmp.gt.f32.partialorder %v1256, 0.0
      %vm1607 = vcmp.gt.f32.partialorder %v1258, 0.0
      %vm1608 = vcmp.gt.f32.partialorder %v1262, 0.0
      %vm1609 = vcmp.gt.f32.partialorder %v1264, 0.0
      %vm1610 = vcmp.gt.f32.partialorder %v1268, 0.0
      %vm1611 = vcmp.gt.f32.partialorder %v1270, 0.0
      %vm1612 = vcmp.gt.f32.partialorder %v1274, 0.0
      %vm1613 = vcmp.gt.f32.partialorder %v1276, 0.0
      %vm1614 = vcmp.gt.f32.partialorder %v1280, 0.0
      %vm1615 = vcmp.gt.f32.partialorder %v1282, 0.0
      %vm1616 = vcmp.gt.f32.partialorder %v1286, 0.0
      %vm1617 = vcmp.gt.f32.partialorder %v1288, 0.0
      %vm1618 = vcmp.gt.f32.partialorder %v1292, 0.0
      %vm1619 = vcmp.gt.f32.partialorder %v1294, 0.0
      %vm1620 = vcmp.gt.f32.partialorder %v1298, 0.0
      %vm1621 = vcmp.gt.f32.partialorder %v1300, 0.0
      %vm1622 = vcmp.gt.f32.partialorder %v1304, 0.0
      %vm1623 = vcmp.gt.f32.partialorder %v1306, 0.0
      %vm1624 = vcmp.gt.f32.partialorder %v1310, 0.0
      %vm1625 = vcmp.gt.f32.partialorder %v1312, 0.0
      %vm1626 = vcmp.gt.f32.partialorder %v1316, 0.0
      %vm1627 = vcmp.gt.f32.partialorder %v1318, 0.0
      %vm1628 = vcmp.gt.f32.partialorder %v1322, 0.0
      %vm1629 = vcmp.gt.f32.partialorder %v1324, 0.0
      %vm1630 = vcmp.gt.f32.partialorder %v1328, 0.0
      %vm1631 = vcmp.gt.f32.partialorder %v1330, 0.0
      %vm1632 = vcmp.gt.f32.partialorder %v1334, 0.0
      %vm1633 = vcmp.gt.f32.partialorder %v1336, 0.0
      %vm1634 = vcmp.gt.f32.partialorder %v1340, 0.0
      %vm1635 = vcmp.gt.f32.partialorder %v1342, 0.0
      %vm1636 = vcmp.gt.f32.partialorder %v1346, 0.0
      %vm1637 = vcmp.gt.f32.partialorder %v1348, 0.0
      %vm1638 = vcmp.gt.f32.partialorder %v1352, 0.0
      %vm1639 = vcmp.gt.f32.partialorder %v1354, 0.0
      %vm1640 = vcmp.gt.f32.partialorder %v1358, 0.0
      %vm1641 = vcmp.gt.f32.partialorder %v1360, 0.0
      %vm1642 = vcmp.gt.f32.partialorder %v1364, 0.0
      %vm1643 = vcmp.gt.f32.partialorder %v1366, 0.0
      %vm1644 = vcmp.gt.f32.partialorder %v1370, 0.0
      %vm1645 = vcmp.gt.f32.partialorder %v1372, 0.0
      %vm1646 = vcmp.gt.f32.partialorder %v1376, 0.0
      %vm1647 = vcmp.gt.f32.partialorder %v1378, 0.0
      %vm1648 = vcmp.gt.f32.partialorder %v1382, 0.0
      %vm1649 = vcmp.gt.f32.partialorder %v1384, 0.0
      %vm1650 = vcmp.gt.f32.partialorder %v1388, 0.0
      %vm1651 = vcmp.gt.f32.partialorder %v1390, 0.0
      %vm1652 = vcmp.gt.f32.partialorder %v1394, 0.0
      %vm1653 = vcmp.gt.f32.partialorder %v1396, 0.0
      %vm1654 = vcmp.gt.f32.partialorder %v1400, 0.0
      %vm1655 = vcmp.gt.f32.partialorder %v1402, 0.0
      %vm1656 = vcmp.gt.f32.partialorder %v1406, 0.0
      %vm1657 = vcmp.gt.f32.partialorder %v1408, 0.0
      %vm1658 = vcmp.gt.f32.partialorder %v1412, 0.0
      %vm1659 = vcmp.gt.f32.partialorder %v1414, 0.0
      %vm1660 = vcmp.gt.f32.partialorder %v1418, 0.0
      %vm1661 = vcmp.gt.f32.partialorder %v1420, 0.0
      %vm1662 = vcmp.gt.f32.partialorder %v1424, 0.0
      %vm1663 = vcmp.gt.f32.partialorder %v1426, 0.0
      %vm1664 = vcmp.gt.f32.partialorder %v1430, 0.0
      %vm1665 = vcmp.gt.f32.partialorder %v1432, 0.0
      %vm1666 = vcmp.gt.f32.partialorder %v1436, 0.0
      %vm1667 = vcmp.gt.f32.partialorder %v1438, 0.0
      %vm1668 = vcmp.gt.f32.partialorder %v1442, 0.0
      %vm1669 = vcmp.gt.f32.partialorder %v1444, 0.0
      %v1670 = vmin.f32 %v776, 0.0
      %v1671 = vmin.f32 %v778, 0.0
      %v1672 = vmin.f32 %v782, 0.0
      %v1673 = vmin.f32 %v784, 0.0
      %v1674 = vmin.f32 %v788, 0.0
      %v1675 = vmin.f32 %v790, 0.0
      %v1676 = vmin.f32 %v794, 0.0
      %v1677 = vmin.f32 %v796, 0.0
      %v1678 = vmin.f32 %v800, 0.0
      %v1679 = vmin.f32 %v802, 0.0
      %v1680 = vmin.f32 %v806, 0.0
      %v1681 = vmin.f32 %v808, 0.0
      %v1682 = vmin.f32 %v812, 0.0
      %v1683 = vmin.f32 %v814, 0.0
      %v1684 = vmin.f32 %v818, 0.0
      %v1685 = vmin.f32 %v820, 0.0
      %v1686 = vmin.f32 %v824, 0.0
      %v1687 = vmin.f32 %v826, 0.0
      %v1688 = vmin.f32 %v830, 0.0
      %v1689 = vmin.f32 %v832, 0.0
      %v1690 = vmin.f32 %v836, 0.0
      %v1691 = vmin.f32 %v838, 0.0
      %v1692 = vmin.f32 %v842, 0.0
      %v1693 = vmin.f32 %v844, 0.0
      %v1694 = vmin.f32 %v848, 0.0
      %v1695 = vmin.f32 %v850, 0.0
      %v1696 = vmin.f32 %v854, 0.0
      %v1697 = vmin.f32 %v856, 0.0
      %v1698 = vmin.f32 %v860, 0.0
      %v1699 = vmin.f32 %v862, 0.0
      %v1700 = vmin.f32 %v866, 0.0
      %v1701 = vmin.f32 %v868, 0.0
      %v1702 = vmin.f32 %v872, 0.0
      %v1703 = vmin.f32 %v874, 0.0
      %v1704 = vmin.f32 %v878, 0.0
      %v1705 = vmin.f32 %v880, 0.0
      %v1706 = vmin.f32 %v884, 0.0
      %v1707 = vmin.f32 %v886, 0.0
      %v1708 = vmin.f32 %v890, 0.0
      %v1709 = vmin.f32 %v892, 0.0
      %v1710 = vmin.f32 %v896, 0.0
      %v1711 = vmin.f32 %v898, 0.0
      %v1712 = vmin.f32 %v902, 0.0
      %v1713 = vmin.f32 %v904, 0.0
      %v1714 = vmin.f32 %v908, 0.0
      %v1715 = vmin.f32 %v910, 0.0
      %v1716 = vmin.f32 %v914, 0.0
      %v1717 = vmin.f32 %v916, 0.0
      %v1718 = vmin.f32 %v920, 0.0
      %v1719 = vmin.f32 %v922, 0.0
      %v1720 = vmin.f32 %v926, 0.0
      %v1721 = vmin.f32 %v928, 0.0
      %v1722 = vmin.f32 %v932, 0.0
      %v1723 = vmin.f32 %v934, 0.0
      %v1724 = vmin.f32 %v938, 0.0
      %v1725 = vmin.f32 %v940, 0.0
      %v1726 = vmin.f32 %v944, 0.0
      %v1727 = vmin.f32 %v946, 0.0
      %v1728 = vmin.f32 %v950, 0.0
      %v1729 = vmin.f32 %v952, 0.0
      %v1730 = vmin.f32 %v956, 0.0
      %v1731 = vmin.f32 %v958, 0.0
      %v1732 = vmin.f32 %v962, 0.0
      %v1733 = vmin.f32 %v964, 0.0
      %v1734 = vmin.f32 %v968, 0.0
      %v1735 = vmin.f32 %v970, 0.0
      %v1736 = vmin.f32 %v974, 0.0
      %v1737 = vmin.f32 %v976, 0.0
      %v1738 = vmin.f32 %v980, 0.0
      %v1739 = vmin.f32 %v982, 0.0
      %v1740 = vmin.f32 %v986, 0.0
      %v1741 = vmin.f32 %v988, 0.0
      %v1742 = vmin.f32 %v992, 0.0
      %v1743 = vmin.f32 %v994, 0.0
      %v1744 = vmin.f32 %v998, 0.0
      %v1745 = vmin.f32 %v1000, 0.0
      %v1746 = vmin.f32 %v1004, 0.0
      %v1747 = vmin.f32 %v1006, 0.0
      %v1748 = vmin.f32 %v1010, 0.0
      %v1749 = vmin.f32 %v1012, 0.0
      %v1750 = vmin.f32 %v1016, 0.0
      %v1751 = vmin.f32 %v1018, 0.0
      %v1752 = vmin.f32 %v1022, 0.0
      %v1753 = vmin.f32 %v1024, 0.0
      %v1754 = vmin.f32 %v1028, 0.0
      %v1755 = vmin.f32 %v1030, 0.0
      %v1756 = vmin.f32 %v1034, 0.0
      %v1757 = vmin.f32 %v1036, 0.0
      %v1758 = vmin.f32 %v1040, 0.0
      %v1759 = vmin.f32 %v1042, 0.0
      %v1760 = vmin.f32 %v1046, 0.0
      %v1761 = vmin.f32 %v1048, 0.0
      %v1762 = vmin.f32 %v1052, 0.0
      %v1763 = vmin.f32 %v1054, 0.0
      %v1764 = vmin.f32 %v1058, 0.0
      %v1765 = vmin.f32 %v1060, 0.0
      %v1766 = vmin.f32 %v1064, 0.0
      %v1767 = vmin.f32 %v1066, 0.0
      %v1768 = vmin.f32 %v1070, 0.0
      %v1769 = vmin.f32 %v1072, 0.0
      %v1770 = vmin.f32 %v1076, 0.0
      %v1771 = vmin.f32 %v1078, 0.0
      %v1772 = vmin.f32 %v1082, 0.0
      %v1773 = vmin.f32 %v1084, 0.0
      %v1774 = vmin.f32 %v1088, 0.0
      %v1775 = vmin.f32 %v1090, 0.0
      %v1776 = vmin.f32 %v1094, 0.0
      %v1777 = vmin.f32 %v1096, 0.0
      %v1778 = vmin.f32 %v1100, 0.0
      %v1779 = vmin.f32 %v1102, 0.0
      %v1780 = vmin.f32 %v1106, 0.0
      %v1781 = vmin.f32 %v1108, 0.0
      %v1782 = vmin.f32 %v1112, 0.0
      %v1783 = vmin.f32 %v1114, 0.0
      %v1784 = vmin.f32 %v1118, 0.0
      %v1785 = vmin.f32 %v1120, 0.0
      %v1786 = vmin.f32 %v1124, 0.0
      %v1787 = vmin.f32 %v1126, 0.0
      %v1788 = vmin.f32 %v1130, 0.0
      %v1789 = vmin.f32 %v1132, 0.0
      %v1790 = vmin.f32 %v1136, 0.0
      %v1791 = vmin.f32 %v1138, 0.0
      %v1792 = vmin.f32 %v1142, 0.0
      %v1793 = vmin.f32 %v1144, 0.0
      %v1794 = vmin.f32 %v1148, 0.0
      %v1795 = vmin.f32 %v1150, 0.0
      %v1796 = vmin.f32 %v1154, 0.0
      %v1797 = vmin.f32 %v1156, 0.0
      %v1798 = vmin.f32 %v1160, 0.0
      %v1799 = vmin.f32 %v1162, 0.0
      %v1800 = vmin.f32 %v1166, 0.0
      %v1801 = vmin.f32 %v1168, 0.0
      %v1802 = vmin.f32 %v1172, 0.0
      %v1803 = vmin.f32 %v1174, 0.0
      %v1804 = vmin.f32 %v1178, 0.0
      %v1805 = vmin.f32 %v1180, 0.0
      %v1806 = vmin.f32 %v1184, 0.0
      %v1807 = vmin.f32 %v1186, 0.0
      %v1808 = vmin.f32 %v1190, 0.0
      %v1809 = vmin.f32 %v1192, 0.0
      %v1810 = vmin.f32 %v1196, 0.0
      %v1811 = vmin.f32 %v1198, 0.0
      %v1812 = vmin.f32 %v1202, 0.0
      %v1813 = vmin.f32 %v1204, 0.0
      %v1814 = vmin.f32 %v1208, 0.0
      %v1815 = vmin.f32 %v1210, 0.0
      %v1816 = vmin.f32 %v1214, 0.0
      %v1817 = vmin.f32 %v1216, 0.0
      %v1818 = vmin.f32 %v1220, 0.0
      %v1819 = vmin.f32 %v1222, 0.0
      %v1820 = vmin.f32 %v1226, 0.0
      %v1821 = vmin.f32 %v1228, 0.0
      %v1822 = vmin.f32 %v1232, 0.0
      %v1823 = vmin.f32 %v1234, 0.0
      %v1824 = vmin.f32 %v1238, 0.0
      %v1825 = vmin.f32 %v1240, 0.0
      %v1826 = vmin.f32 %v1244, 0.0
      %v1827 = vmin.f32 %v1246, 0.0
      %v1828 = vmin.f32 %v1250, 0.0
      %v1829 = vmin.f32 %v1252, 0.0
      %v1830 = vmin.f32 %v1256, 0.0
      %v1831 = vmin.f32 %v1258, 0.0
      %v1832 = vmin.f32 %v1262, 0.0
      %v1833 = vmin.f32 %v1264, 0.0
      %v1834 = vmin.f32 %v1268, 0.0
      %v1835 = vmin.f32 %v1270, 0.0
      %v1836 = vmin.f32 %v1274, 0.0
      %v1837 = vmin.f32 %v1276, 0.0
      %v1838 = vmin.f32 %v1280, 0.0
      %v1839 = vmin.f32 %v1282, 0.0
      %v1840 = vmin.f32 %v1286, 0.0
      %v1841 = vmin.f32 %v1288, 0.0
      %v1842 = vmin.f32 %v1292, 0.0
      %v1843 = vmin.f32 %v1294, 0.0
      %v1844 = vmin.f32 %v1298, 0.0
      %v1845 = vmin.f32 %v1300, 0.0
      %v1846 = vmin.f32 %v1304, 0.0
      %v1847 = vmin.f32 %v1306, 0.0
      %v1848 = vmin.f32 %v1310, 0.0
      %v1849 = vmin.f32 %v1312, 0.0
      %v1850 = vmin.f32 %v1316, 0.0
      %v1851 = vmin.f32 %v1318, 0.0
      %v1852 = vmin.f32 %v1322, 0.0
      %v1853 = vmin.f32 %v1324, 0.0
      %v1854 = vmin.f32 %v1328, 0.0
      %v1855 = vmin.f32 %v1330, 0.0
      %v1856 = vmin.f32 %v1334, 0.0
      %v1857 = vmin.f32 %v1336, 0.0
      %v1858 = vmin.f32 %v1340, 0.0
      %v1859 = vmin.f32 %v1342, 0.0
      %v1860 = vmin.f32 %v1346, 0.0
      %v1861 = vmin.f32 %v1348, 0.0
      %v1862 = vmin.f32 %v1352, 0.0
      %v1863 = vmin.f32 %v1354, 0.0
      %v1864 = vmin.f32 %v1358, 0.0
      %v1865 = vmin.f32 %v1360, 0.0
      %v1866 = vmin.f32 %v1364, 0.0
      %v1867 = vmin.f32 %v1366, 0.0
      %v1868 = vmin.f32 %v1370, 0.0
      %v1869 = vmin.f32 %v1372, 0.0
      %v1870 = vmin.f32 %v1376, 0.0
      %v1871 = vmin.f32 %v1378, 0.0
      %v1872 = vmin.f32 %v1382, 0.0
      %v1873 = vmin.f32 %v1384, 0.0
      %v1874 = vmin.f32 %v1388, 0.0
      %v1875 = vmin.f32 %v1390, 0.0
      %v1876 = vmin.f32 %v1394, 0.0
      %v1877 = vmin.f32 %v1396, 0.0
      %v1878 = vmin.f32 %v1400, 0.0
      %v1879 = vmin.f32 %v1402, 0.0
      %v1880 = vmin.f32 %v1406, 0.0
      %v1881 = vmin.f32 %v1408, 0.0
      %v1882 = vmin.f32 %v1412, 0.0
      %v1883 = vmin.f32 %v1414, 0.0
      %v1884 = vmin.f32 %v1418, 0.0
      %v1885 = vmin.f32 %v1420, 0.0
      %v1886 = vmin.f32 %v1424, 0.0
      %v1887 = vmin.f32 %v1426, 0.0
      %v1888 = vmin.f32 %v1430, 0.0
      %v1889 = vmin.f32 %v1432, 0.0
      %v1890 = vmin.f32 %v1436, 0.0
      %v1891 = vmin.f32 %v1438, 0.0
      %v1892 = vmin.f32 %v1442, 0.0
      %v1893 = vmin.f32 %v1444, 0.0
      %v1894 = vmul.f32 %v1670, 1.442695
      %v1895 = vpow.pop %v1894
      %v1896 = vmul.f32 %v1671, 1.442695
      %v1897 = vpow.pop %v1896
      %v1898 = vmul.f32 %v1672, 1.442695
      %v1899 = vpow.pop %v1898
      %v1900 = vmul.f32 %v1673, 1.442695
      %v1901 = vpow.pop %v1900
      %v1902 = vmul.f32 %v1674, 1.442695
      %v1903 = vpow.pop %v1902
      %v1904 = vmul.f32 %v1675, 1.442695
      %v1905 = vpow.pop %v1904
      %v1906 = vmul.f32 %v1676, 1.442695
      %v1907 = vpow.pop %v1906
      %v1908 = vmul.f32 %v1677, 1.442695
      %v1909 = vpow.pop %v1908
      %v1910 = vmul.f32 %v1678, 1.442695
      %v1911 = vpow.pop %v1910
      %v1912 = vmul.f32 %v1679, 1.442695
      %v1913 = vpow.pop %v1912
      %v1914 = vmul.f32 %v1680, 1.442695
      %v1915 = vpow.pop %v1914
      %v1916 = vmul.f32 %v1681, 1.442695
      %v1917 = vpow.pop %v1916
      %v1918 = vmul.f32 %v1682, 1.442695
      %v1919 = vpow.pop %v1918
      %v1920 = vmul.f32 %v1683, 1.442695
      %v1921 = vpow.pop %v1920
      %v1922 = vmul.f32 %v1684, 1.442695
      %v1923 = vpow.pop %v1922
      %v1924 = vmul.f32 %v1685, 1.442695
      %v1925 = vpow.pop %v1924
      %v1926 = vmul.f32 %v1686, 1.442695
      %v1927 = vpow.pop %v1926
      %v1928 = vmul.f32 %v1687, 1.442695
      %v1929 = vpow.pop %v1928
      %v1930 = vmul.f32 %v1688, 1.442695
      %v1931 = vpow.pop %v1930
      %v1932 = vmul.f32 %v1689, 1.442695
      %v1933 = vpow.pop %v1932
      %v1934 = vmul.f32 %v1690, 1.442695
      %v1935 = vpow.pop %v1934
      %v1936 = vmul.f32 %v1691, 1.442695
      %v1937 = vpow.pop %v1936
      %v1938 = vmul.f32 %v1692, 1.442695
      %v1939 = vpow.pop %v1938
      %v1940 = vmul.f32 %v1693, 1.442695
      %v1941 = vpow.pop %v1940
      %v1942 = vmul.f32 %v1694, 1.442695
      %v1943 = vpow.pop %v1942
      %v1944 = vmul.f32 %v1695, 1.442695
      %v1945 = vpow.pop %v1944
      %v1946 = vmul.f32 %v1696, 1.442695
      %v1947 = vpow.pop %v1946
      %v1948 = vmul.f32 %v1697, 1.442695
      %v1949 = vpow.pop %v1948
      %v1950 = vmul.f32 %v1698, 1.442695
      %v1951 = vpow.pop %v1950
      %v1952 = vmul.f32 %v1699, 1.442695
      %v1953 = vpow.pop %v1952
      %v1954 = vmul.f32 %v1700, 1.442695
      %v1955 = vpow.pop %v1954
      %v1956 = vmul.f32 %v1701, 1.442695
      %v1957 = vpow.pop %v1956
      %v1958 = vmul.f32 %v1702, 1.442695
      %v1959 = vpow.pop %v1958
      %v1960 = vmul.f32 %v1703, 1.442695
      %v1961 = vpow.pop %v1960
      %v1962 = vmul.f32 %v1704, 1.442695
      %v1963 = vpow.pop %v1962
      %v1964 = vmul.f32 %v1705, 1.442695
      %v1965 = vpow.pop %v1964
      %v1966 = vmul.f32 %v1706, 1.442695
      %v1967 = vpow.pop %v1966
      %v1968 = vmul.f32 %v1707, 1.442695
      %v1969 = vpow.pop %v1968
      %v1970 = vmul.f32 %v1708, 1.442695
      %v1971 = vpow.pop %v1970
      %v1972 = vmul.f32 %v1709, 1.442695
      %v1973 = vpow.pop %v1972
      %v1974 = vmul.f32 %v1710, 1.442695
      %v1975 = vpow.pop %v1974
      %v1976 = vmul.f32 %v1711, 1.442695
      %v1977 = vpow.pop %v1976
      %v1978 = vmul.f32 %v1712, 1.442695
      %v1979 = vpow.pop %v1978
      %v1980 = vmul.f32 %v1713, 1.442695
      %v1981 = vpow.pop %v1980
      %v1982 = vmul.f32 %v1714, 1.442695
      %v1983 = vpow.pop %v1982
      %v1984 = vmul.f32 %v1715, 1.442695
      %v1985 = vpow.pop %v1984
      %v1986 = vmul.f32 %v1716, 1.442695
      %v1987 = vpow.pop %v1986
      %v1988 = vmul.f32 %v1717, 1.442695
      %v1989 = vpow.pop %v1988
      %v1990 = vmul.f32 %v1718, 1.442695
      %v1991 = vpow.pop %v1990
      %v1992 = vmul.f32 %v1719, 1.442695
      %v1993 = vpow.pop %v1992
      %v1994 = vmul.f32 %v1720, 1.442695
      %v1995 = vpow.pop %v1994
      %v1996 = vmul.f32 %v1721, 1.442695
      %v1997 = vpow.pop %v1996
      %v1998 = vmul.f32 %v1722, 1.442695
      %v1999 = vpow.pop %v1998
      %v2000 = vmul.f32 %v1723, 1.442695
      %v2001 = vpow.pop %v2000
      %v2002 = vmul.f32 %v1724, 1.442695
      %v2003 = vpow.pop %v2002
      %v2004 = vmul.f32 %v1725, 1.442695
      %v2005 = vpow.pop %v2004
      %v2006 = vmul.f32 %v1726, 1.442695
      %v2007 = vpow.pop %v2006
      %v2008 = vmul.f32 %v1727, 1.442695
      %v2009 = vpow.pop %v2008
      %v2010 = vmul.f32 %v1728, 1.442695
      %v2011 = vpow.pop %v2010
      %v2012 = vmul.f32 %v1729, 1.442695
      %v2013 = vpow.pop %v2012
      %v2014 = vmul.f32 %v1730, 1.442695
      %v2015 = vpow.pop %v2014
      %v2016 = vmul.f32 %v1731, 1.442695
      %v2017 = vpow.pop %v2016
      %v2018 = vmul.f32 %v1732, 1.442695
      %v2019 = vpow.pop %v2018
      %v2020 = vmul.f32 %v1733, 1.442695
      %v2021 = vpow.pop %v2020
      %v2022 = vmul.f32 %v1734, 1.442695
      %v2023 = vpow.pop %v2022
      %v2024 = vmul.f32 %v1735, 1.442695
      %v2025 = vpow.pop %v2024
      %v2026 = vmul.f32 %v1736, 1.442695
      %v2027 = vpow.pop %v2026
      %v2028 = vmul.f32 %v1737, 1.442695
      %v2029 = vpow.pop %v2028
      %v2030 = vmul.f32 %v1738, 1.442695
      %v2031 = vpow.pop %v2030
      %v2032 = vmul.f32 %v1739, 1.442695
      %v2033 = vpow.pop %v2032
      %v2034 = vmul.f32 %v1740, 1.442695
      %v2035 = vpow.pop %v2034
      %v2036 = vmul.f32 %v1741, 1.442695
      %v2037 = vpow.pop %v2036
      %v2038 = vmul.f32 %v1742, 1.442695
      %v2039 = vpow.pop %v2038
      %v2040 = vmul.f32 %v1743, 1.442695
      %v2041 = vpow.pop %v2040
      %v2042 = vmul.f32 %v1744, 1.442695
      %v2043 = vpow.pop %v2042
      %v2044 = vmul.f32 %v1745, 1.442695
      %v2045 = vpow.pop %v2044
      %v2046 = vmul.f32 %v1746, 1.442695
      %v2047 = vpow.pop %v2046
      %v2048 = vmul.f32 %v1747, 1.442695
      %v2049 = vpow.pop %v2048
      %v2050 = vmul.f32 %v1748, 1.442695
      %v2051 = vpow.pop %v2050
      %v2052 = vmul.f32 %v1749, 1.442695
      %v2053 = vpow.pop %v2052
      %v2054 = vmul.f32 %v1750, 1.442695
      %v2055 = vpow.pop %v2054
      %v2056 = vmul.f32 %v1751, 1.442695
      %v2057 = vpow.pop %v2056
      %v2058 = vmul.f32 %v1752, 1.442695
      %v2059 = vpow.pop %v2058
      %v2060 = vmul.f32 %v1753, 1.442695
      %v2061 = vpow.pop %v2060
      %v2062 = vmul.f32 %v1754, 1.442695
      %v2063 = vpow.pop %v2062
      %v2064 = vmul.f32 %v1755, 1.442695
      %v2065 = vpow.pop %v2064
      %v2066 = vmul.f32 %v1756, 1.442695
      %v2067 = vpow.pop %v2066
      %v2068 = vmul.f32 %v1757, 1.442695
      %v2069 = vpow.pop %v2068
      %v2070 = vmul.f32 %v1758, 1.442695
      %v2071 = vpow.pop %v2070
      %v2072 = vmul.f32 %v1759, 1.442695
      %v2073 = vpow.pop %v2072
      %v2074 = vmul.f32 %v1760, 1.442695
      %v2075 = vpow.pop %v2074
      %v2076 = vmul.f32 %v1761, 1.442695
      %v2077 = vpow.pop %v2076
      %v2078 = vmul.f32 %v1762, 1.442695
      %v2079 = vpow.pop %v2078
      %v2080 = vmul.f32 %v1763, 1.442695
      %v2081 = vpow.pop %v2080
      %v2082 = vmul.f32 %v1764, 1.442695
      %v2083 = vpow.pop %v2082
      %v2084 = vmul.f32 %v1765, 1.442695
      %v2085 = vpow.pop %v2084
      %v2086 = vmul.f32 %v1766, 1.442695
      %v2087 = vpow.pop %v2086
      %v2088 = vmul.f32 %v1767, 1.442695
      %v2089 = vpow.pop %v2088
      %v2090 = vmul.f32 %v1768, 1.442695
      %v2091 = vpow.pop %v2090
      %v2092 = vmul.f32 %v1769, 1.442695
      %v2093 = vpow.pop %v2092
      %v2094 = vmul.f32 %v1770, 1.442695
      %v2095 = vpow.pop %v2094
      %v2096 = vmul.f32 %v1771, 1.442695
      %v2097 = vpow.pop %v2096
      %v2098 = vmul.f32 %v1772, 1.442695
      %v2099 = vpow.pop %v2098
      %v2100 = vmul.f32 %v1773, 1.442695
      %v2101 = vpow.pop %v2100
      %v2102 = vmul.f32 %v1774, 1.442695
      %v2103 = vpow.pop %v2102
      %v2104 = vmul.f32 %v1775, 1.442695
      %v2105 = vpow.pop %v2104
      %v2106 = vmul.f32 %v1776, 1.442695
      %v2107 = vpow.pop %v2106
      %v2108 = vmul.f32 %v1777, 1.442695
      %v2109 = vpow.pop %v2108
      %v2110 = vmul.f32 %v1778, 1.442695
      %v2111 = vpow.pop %v2110
      %v2112 = vmul.f32 %v1779, 1.442695
      %v2113 = vpow.pop %v2112
      %v2114 = vmul.f32 %v1780, 1.442695
      %v2115 = vpow.pop %v2114
      %v2116 = vmul.f32 %v1781, 1.442695
      %v2117 = vpow.pop %v2116
      %v2118 = vmul.f32 %v1782, 1.442695
      %v2119 = vpow.pop %v2118
      %v2120 = vmul.f32 %v1783, 1.442695
      %v2121 = vpow.pop %v2120
      %v2122 = vmul.f32 %v1784, 1.442695
      %v2123 = vpow.pop %v2122
      %v2124 = vmul.f32 %v1785, 1.442695
      %v2125 = vpow.pop %v2124
      %v2126 = vmul.f32 %v1786, 1.442695
      %v2127 = vpow.pop %v2126
      %v2128 = vmul.f32 %v1787, 1.442695
      %v2129 = vpow.pop %v2128
      %v2130 = vmul.f32 %v1788, 1.442695
      %v2131 = vpow.pop %v2130
      %v2132 = vmul.f32 %v1789, 1.442695
      %v2133 = vpow.pop %v2132
      %v2134 = vmul.f32 %v1790, 1.442695
      %v2135 = vpow.pop %v2134
      %v2136 = vmul.f32 %v1791, 1.442695
      %v2137 = vpow.pop %v2136
      %v2138 = vmul.f32 %v1792, 1.442695
      %v2139 = vpow.pop %v2138
      %v2140 = vmul.f32 %v1793, 1.442695
      %v2141 = vpow.pop %v2140
      %v2142 = vmul.f32 %v1794, 1.442695
      %v2143 = vpow.pop %v2142
      %v2144 = vmul.f32 %v1795, 1.442695
      %v2145 = vpow.pop %v2144
      %v2146 = vmul.f32 %v1796, 1.442695
      %v2147 = vpow.pop %v2146
      %v2148 = vmul.f32 %v1797, 1.442695
      %v2149 = vpow.pop %v2148
      %v2150 = vmul.f32 %v1798, 1.442695
      %v2151 = vpow.pop %v2150
      %v2152 = vmul.f32 %v1799, 1.442695
      %v2153 = vpow.pop %v2152
      %v2154 = vmul.f32 %v1800, 1.442695
      %v2155 = vpow.pop %v2154
      %v2156 = vmul.f32 %v1801, 1.442695
      %v2157 = vpow.pop %v2156
      %v2158 = vmul.f32 %v1802, 1.442695
      %v2159 = vpow.pop %v2158
      %v2160 = vmul.f32 %v1803, 1.442695
      %v2161 = vpow.pop %v2160
      %v2162 = vmul.f32 %v1804, 1.442695
      %v2163 = vpow.pop %v2162
      %v2164 = vmul.f32 %v1805, 1.442695
      %v2165 = vpow.pop %v2164
      %v2166 = vmul.f32 %v1806, 1.442695
      %v2167 = vpow.pop %v2166
      %v2168 = vmul.f32 %v1807, 1.442695
      %v2169 = vpow.pop %v2168
      %v2170 = vmul.f32 %v1808, 1.442695
      %v2171 = vpow.pop %v2170
      %v2172 = vmul.f32 %v1809, 1.442695
      %v2173 = vpow.pop %v2172
      %v2174 = vmul.f32 %v1810, 1.442695
      %v2175 = vpow.pop %v2174
      %v2176 = vmul.f32 %v1811, 1.442695
      %v2177 = vpow.pop %v2176
      %v2178 = vmul.f32 %v1812, 1.442695
      %v2179 = vpow.pop %v2178
      %v2180 = vmul.f32 %v1813, 1.442695
      %v2181 = vpow.pop %v2180
      %v2182 = vmul.f32 %v1814, 1.442695
      %v2183 = vpow.pop %v2182
      %v2184 = vmul.f32 %v1815, 1.442695
      %v2185 = vpow.pop %v2184
      %v2186 = vmul.f32 %v1816, 1.442695
      %v2187 = vpow.pop %v2186
      %v2188 = vmul.f32 %v1817, 1.442695
      %v2189 = vpow.pop %v2188
      %v2190 = vmul.f32 %v1818, 1.442695
      %v2191 = vpow.pop %v2190
      %v2192 = vmul.f32 %v1819, 1.442695
      %v2193 = vpow.pop %v2192
      %v2194 = vmul.f32 %v1820, 1.442695
      %v2195 = vpow.pop %v2194
      %v2196 = vmul.f32 %v1821, 1.442695
      %v2197 = vpow.pop %v2196
      %v2198 = vmul.f32 %v1822, 1.442695
      %v2199 = vpow.pop %v2198
      %v2200 = vmul.f32 %v1823, 1.442695
      %v2201 = vpow.pop %v2200
      %v2202 = vmul.f32 %v1824, 1.442695
      %v2203 = vpow.pop %v2202
      %v2204 = vmul.f32 %v1825, 1.442695
      %v2205 = vpow.pop %v2204
      %v2206 = vmul.f32 %v1826, 1.442695
      %v2207 = vpow.pop %v2206
      %v2208 = vmul.f32 %v1827, 1.442695
      %v2209 = vpow.pop %v2208
      %v2210 = vmul.f32 %v1828, 1.442695
      %v2211 = vpow.pop %v2210
      %v2212 = vmul.f32 %v1829, 1.442695
      %v2213 = vpow.pop %v2212
      %v2214 = vmul.f32 %v1830, 1.442695
      %v2215 = vpow.pop %v2214
      %v2216 = vmul.f32 %v1831, 1.442695
      %v2217 = vpow.pop %v2216
      %v2218 = vmul.f32 %v1832, 1.442695
      %v2219 = vpow.pop %v2218
      %v2220 = vmul.f32 %v1833, 1.442695
      %v2221 = vpow.pop %v2220
      %v2222 = vmul.f32 %v1834, 1.442695
      %v2223 = vpow.pop %v2222
      %v2224 = vmul.f32 %v1835, 1.442695
      %v2225 = vpow.pop %v2224
      %v2226 = vmul.f32 %v1836, 1.442695
      %v2227 = vpow.pop %v2226
      %v2228 = vmul.f32 %v1837, 1.442695
      %v2229 = vpow.pop %v2228
      %v2230 = vmul.f32 %v1838, 1.442695
      %v2231 = vpow.pop %v2230
      %v2232 = vmul.f32 %v1839, 1.442695
      %v2233 = vpow.pop %v2232
      %v2234 = vmul.f32 %v1840, 1.442695
      %v2235 = vpow.pop %v2234
      %v2236 = vmul.f32 %v1841, 1.442695
      %v2237 = vpow.pop %v2236
      %v2238 = vmul.f32 %v1842, 1.442695
      %v2239 = vpow.pop %v2238
      %v2240 = vmul.f32 %v1843, 1.442695
      %v2241 = vpow.pop %v2240
      %v2242 = vmul.f32 %v1844, 1.442695
      %v2243 = vpow.pop %v2242
      %v2244 = vmul.f32 %v1845, 1.442695
      %v2245 = vpow.pop %v2244
      %v2246 = vmul.f32 %v1846, 1.442695
      %v2247 = vpow.pop %v2246
      %v2248 = vmul.f32 %v1847, 1.442695
      %v2249 = vpow.pop %v2248
      %v2250 = vmul.f32 %v1848, 1.442695
      %v2251 = vpow.pop %v2250
      %v2252 = vmul.f32 %v1849, 1.442695
      %v2253 = vpow.pop %v2252
      %v2254 = vmul.f32 %v1850, 1.442695
      %v2255 = vpow.pop %v2254
      %v2256 = vmul.f32 %v1851, 1.442695
      %v2257 = vpow.pop %v2256
      %v2258 = vmul.f32 %v1852, 1.442695
      %v2259 = vpow.pop %v2258
      %v2260 = vmul.f32 %v1853, 1.442695
      %v2261 = vpow.pop %v2260
      %v2262 = vmul.f32 %v1854, 1.442695
      %v2263 = vpow.pop %v2262
      %v2264 = vmul.f32 %v1855, 1.442695
      %v2265 = vpow.pop %v2264
      %v2266 = vmul.f32 %v1856, 1.442695
      %v2267 = vpow.pop %v2266
      %v2268 = vmul.f32 %v1857, 1.442695
      %v2269 = vpow.pop %v2268
      %v2270 = vmul.f32 %v1858, 1.442695
      %v2271 = vpow.pop %v2270
      %v2272 = vmul.f32 %v1859, 1.442695
      %v2273 = vpow.pop %v2272
      %v2274 = vmul.f32 %v1860, 1.442695
      %v2275 = vpow.pop %v2274
      %v2276 = vmul.f32 %v1861, 1.442695
      %v2277 = vpow.pop %v2276
      %v2278 = vmul.f32 %v1862, 1.442695
      %v2279 = vpow.pop %v2278
      %v2280 = vmul.f32 %v1863, 1.442695
      %v2281 = vpow.pop %v2280
      %v2282 = vmul.f32 %v1864, 1.442695
      %v2283 = vpow.pop %v2282
      %v2284 = vmul.f32 %v1865, 1.442695
      %v2285 = vpow.pop %v2284
      %v2286 = vmul.f32 %v1866, 1.442695
      %v2287 = vpow.pop %v2286
      %v2288 = vmul.f32 %v1867, 1.442695
      %v2289 = vpow.pop %v2288
      %v2290 = vmul.f32 %v1868, 1.442695
      %v2291 = vpow.pop %v2290
      %v2292 = vmul.f32 %v1869, 1.442695
      %v2293 = vpow.pop %v2292
      %v2294 = vmul.f32 %v1870, 1.442695
      %v2295 = vpow.pop %v2294
      %v2296 = vmul.f32 %v1871, 1.442695
      %v2297 = vpow.pop %v2296
      %v2298 = vmul.f32 %v1872, 1.442695
      %v2299 = vpow.pop %v2298
      %v2300 = vmul.f32 %v1873, 1.442695
      %v2301 = vpow.pop %v2300
      %v2302 = vmul.f32 %v1874, 1.442695
      %v2303 = vpow.pop %v2302
      %v2304 = vmul.f32 %v1875, 1.442695
      %v2305 = vpow.pop %v2304
      %v2306 = vmul.f32 %v1876, 1.442695
      %v2307 = vpow.pop %v2306
      %v2308 = vmul.f32 %v1877, 1.442695
      %v2309 = vpow.pop %v2308
      %v2310 = vmul.f32 %v1878, 1.442695
      %v2311 = vpow.pop %v2310
      %v2312 = vmul.f32 %v1879, 1.442695
      %v2313 = vpow.pop %v2312
      %v2314 = vmul.f32 %v1880, 1.442695
      %v2315 = vpow.pop %v2314
      %v2316 = vmul.f32 %v1881, 1.442695
      %v2317 = vpow.pop %v2316
      %v2318 = vmul.f32 %v1882, 1.442695
      %v2319 = vpow.pop %v2318
      %v2320 = vmul.f32 %v1883, 1.442695
      %v2321 = vpow.pop %v2320
      %v2322 = vmul.f32 %v1884, 1.442695
      %v2323 = vpow.pop %v2322
      %v2324 = vmul.f32 %v1885, 1.442695
      %v2325 = vpow.pop %v2324
      %v2326 = vmul.f32 %v1886, 1.442695
      %v2327 = vpow.pop %v2326
      %v2328 = vmul.f32 %v1887, 1.442695
      %v2329 = vpow.pop %v2328
      %v2330 = vmul.f32 %v1888, 1.442695
      %v2331 = vpow.pop %v2330
      %v2332 = vmul.f32 %v1889, 1.442695
      %v2333 = vpow.pop %v2332
      %v2334 = vmul.f32 %v1890, 1.442695
      %v2335 = vpow.pop %v2334
      %v2336 = vmul.f32 %v1891, 1.442695
      %v2337 = vpow.pop %v2336
      %v2338 = vmul.f32 %v1892, 1.442695
      %v2339 = vpow.pop %v2338
      %v2340 = vmul.f32 %v1893, 1.442695
      %v2341 = vpow.pop %v2340
      %v2342 = vsub.f32 %v1895, 1.0
      %v2343 = vsub.f32 %v1897, 1.0
      %v2344 = vsub.f32 %v1899, 1.0
      %v2345 = vsub.f32 %v1901, 1.0
      %v2346 = vsub.f32 %v1903, 1.0
      %v2347 = vsub.f32 %v1905, 1.0
      %v2348 = vsub.f32 %v1907, 1.0
      %v2349 = vsub.f32 %v1909, 1.0
      %v2350 = vsub.f32 %v1911, 1.0
      %v2351 = vsub.f32 %v1913, 1.0
      %v2352 = vsub.f32 %v1915, 1.0
      %v2353 = vsub.f32 %v1917, 1.0
      %v2354 = vsub.f32 %v1919, 1.0
      %v2355 = vsub.f32 %v1921, 1.0
      %v2356 = vsub.f32 %v1923, 1.0
      %v2357 = vsub.f32 %v1925, 1.0
      %v2358 = vsub.f32 %v1927, 1.0
      %v2359 = vsub.f32 %v1929, 1.0
      %v2360 = vsub.f32 %v1931, 1.0
      %v2361 = vsub.f32 %v1933, 1.0
      %v2362 = vsub.f32 %v1935, 1.0
      %v2363 = vsub.f32 %v1937, 1.0
      %v2364 = vsub.f32 %v1939, 1.0
      %v2365 = vsub.f32 %v1941, 1.0
      %v2366 = vsub.f32 %v1943, 1.0
      %v2367 = vsub.f32 %v1945, 1.0
      %v2368 = vsub.f32 %v1947, 1.0
      %v2369 = vsub.f32 %v1949, 1.0
      %v2370 = vsub.f32 %v1951, 1.0
      %v2371 = vsub.f32 %v1953, 1.0
      %v2372 = vsub.f32 %v1955, 1.0
      %v2373 = vsub.f32 %v1957, 1.0
      %v2374 = vsub.f32 %v1959, 1.0
      %v2375 = vsub.f32 %v1961, 1.0
      %v2376 = vsub.f32 %v1963, 1.0
      %v2377 = vsub.f32 %v1965, 1.0
      %v2378 = vsub.f32 %v1967, 1.0
      %v2379 = vsub.f32 %v1969, 1.0
      %v2380 = vsub.f32 %v1971, 1.0
      %v2381 = vsub.f32 %v1973, 1.0
      %v2382 = vsub.f32 %v1975, 1.0
      %v2383 = vsub.f32 %v1977, 1.0
      %v2384 = vsub.f32 %v1979, 1.0
      %v2385 = vsub.f32 %v1981, 1.0
      %v2386 = vsub.f32 %v1983, 1.0
      %v2387 = vsub.f32 %v1985, 1.0
      %v2388 = vsub.f32 %v1987, 1.0
      %v2389 = vsub.f32 %v1989, 1.0
      %v2390 = vsub.f32 %v1991, 1.0
      %v2391 = vsub.f32 %v1993, 1.0
      %v2392 = vsub.f32 %v1995, 1.0
      %v2393 = vsub.f32 %v1997, 1.0
      %v2394 = vsub.f32 %v1999, 1.0
      %v2395 = vsub.f32 %v2001, 1.0
      %v2396 = vsub.f32 %v2003, 1.0
      %v2397 = vsub.f32 %v2005, 1.0
      %v2398 = vsub.f32 %v2007, 1.0
      %v2399 = vsub.f32 %v2009, 1.0
      %v2400 = vsub.f32 %v2011, 1.0
      %v2401 = vsub.f32 %v2013, 1.0
      %v2402 = vsub.f32 %v2015, 1.0
      %v2403 = vsub.f32 %v2017, 1.0
      %v2404 = vsub.f32 %v2019, 1.0
      %v2405 = vsub.f32 %v2021, 1.0
      %v2406 = vsub.f32 %v2023, 1.0
      %v2407 = vsub.f32 %v2025, 1.0
      %v2408 = vsub.f32 %v2027, 1.0
      %v2409 = vsub.f32 %v2029, 1.0
      %v2410 = vsub.f32 %v2031, 1.0
      %v2411 = vsub.f32 %v2033, 1.0
      %v2412 = vsub.f32 %v2035, 1.0
      %v2413 = vsub.f32 %v2037, 1.0
      %v2414 = vsub.f32 %v2039, 1.0
      %v2415 = vsub.f32 %v2041, 1.0
      %v2416 = vsub.f32 %v2043, 1.0
      %v2417 = vsub.f32 %v2045, 1.0
      %v2418 = vsub.f32 %v2047, 1.0
      %v2419 = vsub.f32 %v2049, 1.0
      %v2420 = vsub.f32 %v2051, 1.0
      %v2421 = vsub.f32 %v2053, 1.0
      %v2422 = vsub.f32 %v2055, 1.0
      %v2423 = vsub.f32 %v2057, 1.0
      %v2424 = vsub.f32 %v2059, 1.0
      %v2425 = vsub.f32 %v2061, 1.0
      %v2426 = vsub.f32 %v2063, 1.0
      %v2427 = vsub.f32 %v2065, 1.0
      %v2428 = vsub.f32 %v2067, 1.0
      %v2429 = vsub.f32 %v2069, 1.0
      %v2430 = vsub.f32 %v2071, 1.0
      %v2431 = vsub.f32 %v2073, 1.0
      %v2432 = vsub.f32 %v2075, 1.0
      %v2433 = vsub.f32 %v2077, 1.0
      %v2434 = vsub.f32 %v2079, 1.0
      %v2435 = vsub.f32 %v2081, 1.0
      %v2436 = vsub.f32 %v2083, 1.0
      %v2437 = vsub.f32 %v2085, 1.0
      %v2438 = vsub.f32 %v2087, 1.0
      %v2439 = vsub.f32 %v2089, 1.0
      %v2440 = vsub.f32 %v2091, 1.0
      %v2441 = vsub.f32 %v2093, 1.0
      %v2442 = vsub.f32 %v2095, 1.0
      %v2443 = vsub.f32 %v2097, 1.0
      %v2444 = vsub.f32 %v2099, 1.0
      %v2445 = vsub.f32 %v2101, 1.0
      %v2446 = vsub.f32 %v2103, 1.0
      %v2447 = vsub.f32 %v2105, 1.0
      %v2448 = vsub.f32 %v2107, 1.0
      %v2449 = vsub.f32 %v2109, 1.0
      %v2450 = vsub.f32 %v2111, 1.0
      %v2451 = vsub.f32 %v2113, 1.0
      %v2452 = vsub.f32 %v2115, 1.0
      %v2453 = vsub.f32 %v2117, 1.0
      %v2454 = vsub.f32 %v2119, 1.0
      %v2455 = vsub.f32 %v2121, 1.0
      %v2456 = vsub.f32 %v2123, 1.0
      %v2457 = vsub.f32 %v2125, 1.0
      %v2458 = vsub.f32 %v2127, 1.0
      %v2459 = vsub.f32 %v2129, 1.0
      %v2460 = vsub.f32 %v2131, 1.0
      %v2461 = vsub.f32 %v2133, 1.0
      %v2462 = vsub.f32 %v2135, 1.0
      %v2463 = vsub.f32 %v2137, 1.0
      %v2464 = vsub.f32 %v2139, 1.0
      %v2465 = vsub.f32 %v2141, 1.0
      %v2466 = vsub.f32 %v2143, 1.0
      %v2467 = vsub.f32 %v2145, 1.0
      %v2468 = vsub.f32 %v2147, 1.0
      %v2469 = vsub.f32 %v2149, 1.0
      %v2470 = vsub.f32 %v2151, 1.0
      %v2471 = vsub.f32 %v2153, 1.0
      %v2472 = vsub.f32 %v2155, 1.0
      %v2473 = vsub.f32 %v2157, 1.0
      %v2474 = vsub.f32 %v2159, 1.0
      %v2475 = vsub.f32 %v2161, 1.0
      %v2476 = vsub.f32 %v2163, 1.0
      %v2477 = vsub.f32 %v2165, 1.0
      %v2478 = vsub.f32 %v2167, 1.0
      %v2479 = vsub.f32 %v2169, 1.0
      %v2480 = vsub.f32 %v2171, 1.0
      %v2481 = vsub.f32 %v2173, 1.0
      %v2482 = vsub.f32 %v2175, 1.0
      %v2483 = vsub.f32 %v2177, 1.0
      %v2484 = vsub.f32 %v2179, 1.0
      %v2485 = vsub.f32 %v2181, 1.0
      %v2486 = vsub.f32 %v2183, 1.0
      %v2487 = vsub.f32 %v2185, 1.0
      %v2488 = vsub.f32 %v2187, 1.0
      %v2489 = vsub.f32 %v2189, 1.0
      %v2490 = vsub.f32 %v2191, 1.0
      %v2491 = vsub.f32 %v2193, 1.0
      %v2492 = vsub.f32 %v2195, 1.0
      %v2493 = vsub.f32 %v2197, 1.0
      %v2494 = vsub.f32 %v2199, 1.0
      %v2495 = vsub.f32 %v2201, 1.0
      %v2496 = vsub.f32 %v2203, 1.0
      %v2497 = vsub.f32 %v2205, 1.0
      %v2498 = vsub.f32 %v2207, 1.0
      %v2499 = vsub.f32 %v2209, 1.0
      %v2500 = vsub.f32 %v2211, 1.0
      %v2501 = vsub.f32 %v2213, 1.0
      %v2502 = vsub.f32 %v2215, 1.0
      %v2503 = vsub.f32 %v2217, 1.0
      %v2504 = vsub.f32 %v2219, 1.0
      %v2505 = vsub.f32 %v2221, 1.0
      %v2506 = vsub.f32 %v2223, 1.0
      %v2507 = vsub.f32 %v2225, 1.0
      %v2508 = vsub.f32 %v2227, 1.0
      %v2509 = vsub.f32 %v2229, 1.0
      %v2510 = vsub.f32 %v2231, 1.0
      %v2511 = vsub.f32 %v2233, 1.0
      %v2512 = vsub.f32 %v2235, 1.0
      %v2513 = vsub.f32 %v2237, 1.0
      %v2514 = vsub.f32 %v2239, 1.0
      %v2515 = vsub.f32 %v2241, 1.0
      %v2516 = vsub.f32 %v2243, 1.0
      %v2517 = vsub.f32 %v2245, 1.0
      %v2518 = vsub.f32 %v2247, 1.0
      %v2519 = vsub.f32 %v2249, 1.0
      %v2520 = vsub.f32 %v2251, 1.0
      %v2521 = vsub.f32 %v2253, 1.0
      %v2522 = vsub.f32 %v2255, 1.0
      %v2523 = vsub.f32 %v2257, 1.0
      %v2524 = vsub.f32 %v2259, 1.0
      %v2525 = vsub.f32 %v2261, 1.0
      %v2526 = vsub.f32 %v2263, 1.0
      %v2527 = vsub.f32 %v2265, 1.0
      %v2528 = vsub.f32 %v2267, 1.0
      %v2529 = vsub.f32 %v2269, 1.0
      %v2530 = vsub.f32 %v2271, 1.0
      %v2531 = vsub.f32 %v2273, 1.0
      %v2532 = vsub.f32 %v2275, 1.0
      %v2533 = vsub.f32 %v2277, 1.0
      %v2534 = vsub.f32 %v2279, 1.0
      %v2535 = vsub.f32 %v2281, 1.0
      %v2536 = vsub.f32 %v2283, 1.0
      %v2537 = vsub.f32 %v2285, 1.0
      %v2538 = vsub.f32 %v2287, 1.0
      %v2539 = vsub.f32 %v2289, 1.0
      %v2540 = vsub.f32 %v2291, 1.0
      %v2541 = vsub.f32 %v2293, 1.0
      %v2542 = vsub.f32 %v2295, 1.0
      %v2543 = vsub.f32 %v2297, 1.0
      %v2544 = vsub.f32 %v2299, 1.0
      %v2545 = vsub.f32 %v2301, 1.0
      %v2546 = vsub.f32 %v2303, 1.0
      %v2547 = vsub.f32 %v2305, 1.0
      %v2548 = vsub.f32 %v2307, 1.0
      %v2549 = vsub.f32 %v2309, 1.0
      %v2550 = vsub.f32 %v2311, 1.0
      %v2551 = vsub.f32 %v2313, 1.0
      %v2552 = vsub.f32 %v2315, 1.0
      %v2553 = vsub.f32 %v2317, 1.0
      %v2554 = vsub.f32 %v2319, 1.0
      %v2555 = vsub.f32 %v2321, 1.0
      %v2556 = vsub.f32 %v2323, 1.0
      %v2557 = vsub.f32 %v2325, 1.0
      %v2558 = vsub.f32 %v2327, 1.0
      %v2559 = vsub.f32 %v2329, 1.0
      %v2560 = vsub.f32 %v2331, 1.0
      %v2561 = vsub.f32 %v2333, 1.0
      %v2562 = vsub.f32 %v2335, 1.0
      %v2563 = vsub.f32 %v2337, 1.0
      %v2564 = vsub.f32 %v2339, 1.0
      %v2565 = vsub.f32 %v2341, 1.0
      %v2566 = vsel %vm1446, %v776, %v2342
      %v2567 = vsel %vm1447, %v778, %v2343
      %v2568 = vsel %vm1448, %v782, %v2344
      %v2569 = vsel %vm1449, %v784, %v2345
      %v2570 = vsel %vm1450, %v788, %v2346
      %v2571 = vsel %vm1451, %v790, %v2347
      %v2572 = vsel %vm1452, %v794, %v2348
      %v2573 = vsel %vm1453, %v796, %v2349
      %v2574 = vsel %vm1454, %v800, %v2350
      %v2575 = vsel %vm1455, %v802, %v2351
      %v2576 = vsel %vm1456, %v806, %v2352
      %v2577 = vsel %vm1457, %v808, %v2353
      %v2578 = vsel %vm1458, %v812, %v2354
      %v2579 = vsel %vm1459, %v814, %v2355
      %v2580 = vsel %vm1460, %v818, %v2356
      %v2581 = vsel %vm1461, %v820, %v2357
      %v2582 = vsel %vm1462, %v824, %v2358
      %v2583 = vsel %vm1463, %v826, %v2359
      %v2584 = vsel %vm1464, %v830, %v2360
      %v2585 = vsel %vm1465, %v832, %v2361
      %v2586 = vsel %vm1466, %v836, %v2362
      %v2587 = vsel %vm1467, %v838, %v2363
      %v2588 = vsel %vm1468, %v842, %v2364
      %v2589 = vsel %vm1469, %v844, %v2365
      %v2590 = vsel %vm1470, %v848, %v2366
      %v2591 = vsel %vm1471, %v850, %v2367
      %v2592 = vsel %vm1472, %v854, %v2368
      %v2593 = vsel %vm1473, %v856, %v2369
      %v2594 = vsel %vm1474, %v860, %v2370
      %v2595 = vsel %vm1475, %v862, %v2371
      %v2596 = vsel %vm1476, %v866, %v2372
      %v2597 = vsel %vm1477, %v868, %v2373
      %v2598 = vsel %vm1478, %v872, %v2374
      %v2599 = vsel %vm1479, %v874, %v2375
      %v2600 = vsel %vm1480, %v878, %v2376
      %v2601 = vsel %vm1481, %v880, %v2377
      %v2602 = vsel %vm1482, %v884, %v2378
      %v2603 = vsel %vm1483, %v886, %v2379
      %v2604 = vsel %vm1484, %v890, %v2380
      %v2605 = vsel %vm1485, %v892, %v2381
      %v2606 = vsel %vm1486, %v896, %v2382
      %v2607 = vsel %vm1487, %v898, %v2383
      %v2608 = vsel %vm1488, %v902, %v2384
      %v2609 = vsel %vm1489, %v904, %v2385
      %v2610 = vsel %vm1490, %v908, %v2386
      %v2611 = vsel %vm1491, %v910, %v2387
      %v2612 = vsel %vm1492, %v914, %v2388
      %v2613 = vsel %vm1493, %v916, %v2389
      %v2614 = vsel %vm1494, %v920, %v2390
      %v2615 = vsel %vm1495, %v922, %v2391
      %v2616 = vsel %vm1496, %v926, %v2392
      %v2617 = vsel %vm1497, %v928, %v2393
      %v2618 = vsel %vm1498, %v932, %v2394
      %v2619 = vsel %vm1499, %v934, %v2395
      %v2620 = vsel %vm1500, %v938, %v2396
      %v2621 = vsel %vm1501, %v940, %v2397
      %v2622 = vsel %vm1502, %v944, %v2398
      %v2623 = vsel %vm1503, %v946, %v2399
      %v2624 = vsel %vm1504, %v950, %v2400
      %v2625 = vsel %vm1505, %v952, %v2401
      %v2626 = vsel %vm1506, %v956, %v2402
      %v2627 = vsel %vm1507, %v958, %v2403
      %v2628 = vsel %vm1508, %v962, %v2404
      %v2629 = vsel %vm1509, %v964, %v2405
      %v2630 = vsel %vm1510, %v968, %v2406
      %v2631 = vsel %vm1511, %v970, %v2407
      %v2632 = vsel %vm1512, %v974, %v2408
      %v2633 = vsel %vm1513, %v976, %v2409
      %v2634 = vsel %vm1514, %v980, %v2410
      %v2635 = vsel %vm1515, %v982, %v2411
      %v2636 = vsel %vm1516, %v986, %v2412
      %v2637 = vsel %vm1517, %v988, %v2413
      %v2638 = vsel %vm1518, %v992, %v2414
      %v2639 = vsel %vm1519, %v994, %v2415
      %v2640 = vsel %vm1520, %v998, %v2416
      %v2641 = vsel %vm1521, %v1000, %v2417
      %v2642 = vsel %vm1522, %v1004, %v2418
      %v2643 = vsel %vm1523, %v1006, %v2419
      %v2644 = vsel %vm1524, %v1010, %v2420
      %v2645 = vsel %vm1525, %v1012, %v2421
      %v2646 = vsel %vm1526, %v1016, %v2422
      %v2647 = vsel %vm1527, %v1018, %v2423
      %v2648 = vsel %vm1528, %v1022, %v2424
      %v2649 = vsel %vm1529, %v1024, %v2425
      %v2650 = vsel %vm1530, %v1028, %v2426
      %v2651 = vsel %vm1531, %v1030, %v2427
      %v2652 = vsel %vm1532, %v1034, %v2428
      %v2653 = vsel %vm1533, %v1036, %v2429
      %v2654 = vsel %vm1534, %v1040, %v2430
      %v2655 = vsel %vm1535, %v1042, %v2431
      %v2656 = vsel %vm1536, %v1046, %v2432
      %v2657 = vsel %vm1537, %v1048, %v2433
      %v2658 = vsel %vm1538, %v1052, %v2434
      %v2659 = vsel %vm1539, %v1054, %v2435
      %v2660 = vsel %vm1540, %v1058, %v2436
      %v2661 = vsel %vm1541, %v1060, %v2437
      %v2662 = vsel %vm1542, %v1064, %v2438
      %v2663 = vsel %vm1543, %v1066, %v2439
      %v2664 = vsel %vm1544, %v1070, %v2440
      %v2665 = vsel %vm1545, %v1072, %v2441
      %v2666 = vsel %vm1546, %v1076, %v2442
      %v2667 = vsel %vm1547, %v1078, %v2443
      %v2668 = vsel %vm1548, %v1082, %v2444
      %v2669 = vsel %vm1549, %v1084, %v2445
      %v2670 = vsel %vm1550, %v1088, %v2446
      %v2671 = vsel %vm1551, %v1090, %v2447
      %v2672 = vsel %vm1552, %v1094, %v2448
      %v2673 = vsel %vm1553, %v1096, %v2449
      %v2674 = vsel %vm1554, %v1100, %v2450
      %v2675 = vsel %vm1555, %v1102, %v2451
      %v2676 = vsel %vm1556, %v1106, %v2452
      %v2677 = vsel %vm1557, %v1108, %v2453
      %v2678 = vsel %vm1558, %v1112, %v2454
      %v2679 = vsel %vm1559, %v1114, %v2455
      %v2680 = vsel %vm1560, %v1118, %v2456
      %v2681 = vsel %vm1561, %v1120, %v2457
      %v2682 = vsel %vm1562, %v1124, %v2458
      %v2683 = vsel %vm1563, %v1126, %v2459
      %v2684 = vsel %vm1564, %v1130, %v2460
      %v2685 = vsel %vm1565, %v1132, %v2461
      %v2686 = vsel %vm1566, %v1136, %v2462
      %v2687 = vsel %vm1567, %v1138, %v2463
      %v2688 = vsel %vm1568, %v1142, %v2464
      %v2689 = vsel %vm1569, %v1144, %v2465
      %v2690 = vsel %vm1570, %v1148, %v2466
      %v2691 = vsel %vm1571, %v1150, %v2467
      %v2692 = vsel %vm1572, %v1154, %v2468
      %v2693 = vsel %vm1573, %v1156, %v2469
      %v2694 = vsel %vm1574, %v1160, %v2470
      %v2695 = vsel %vm1575, %v1162, %v2471
      %v2696 = vsel %vm1576, %v1166, %v2472
      %v2697 = vsel %vm1577, %v1168, %v2473
      %v2698 = vsel %vm1578, %v1172, %v2474
      %v2699 = vsel %vm1579, %v1174, %v2475
      %v2700 = vsel %vm1580, %v1178, %v2476
      %v2701 = vsel %vm1581, %v1180, %v2477
      %v2702 = vsel %vm1582, %v1184, %v2478
      %v2703 = vsel %vm1583, %v1186, %v2479
      %v2704 = vsel %vm1584, %v1190, %v2480
      %v2705 = vsel %vm1585, %v1192, %v2481
      %v2706 = vsel %vm1586, %v1196, %v2482
      %v2707 = vsel %vm1587, %v1198, %v2483
      %v2708 = vsel %vm1588, %v1202, %v2484
      %v2709 = vsel %vm1589, %v1204, %v2485
      %v2710 = vsel %vm1590, %v1208, %v2486
      %v2711 = vsel %vm1591, %v1210, %v2487
      %v2712 = vsel %vm1592, %v1214, %v2488
      %v2713 = vsel %vm1593, %v1216, %v2489
      %v2714 = vsel %vm1594, %v1220, %v2490
      %v2715 = vsel %vm1595, %v1222, %v2491
      %v2716 = vsel %vm1596, %v1226, %v2492
      %v2717 = vsel %vm1597, %v1228, %v2493
      %v2718 = vsel %vm1598, %v1232, %v2494
      %v2719 = vsel %vm1599, %v1234, %v2495
      %v2720 = vsel %vm1600, %v1238, %v2496
      %v2721 = vsel %vm1601, %v1240, %v2497
      %v2722 = vsel %vm1602, %v1244, %v2498
      %v2723 = vsel %vm1603, %v1246, %v2499
      %v2724 = vsel %vm1604, %v1250, %v2500
      %v2725 = vsel %vm1605, %v1252, %v2501
      %v2726 = vsel %vm1606, %v1256, %v2502
      %v2727 = vsel %vm1607, %v1258, %v2503
      %v2728 = vsel %vm1608, %v1262, %v2504
      %v2729 = vsel %vm1609, %v1264, %v2505
      %v2730 = vsel %vm1610, %v1268, %v2506
      %v2731 = vsel %vm1611, %v1270, %v2507
      %v2732 = vsel %vm1612, %v1274, %v2508
      %v2733 = vsel %vm1613, %v1276, %v2509
      %v2734 = vsel %vm1614, %v1280, %v2510
      %v2735 = vsel %vm1615, %v1282, %v2511
      %v2736 = vsel %vm1616, %v1286, %v2512
      %v2737 = vsel %vm1617, %v1288, %v2513
      %v2738 = vsel %vm1618, %v1292, %v2514
      %v2739 = vsel %vm1619, %v1294, %v2515
      %v2740 = vsel %vm1620, %v1298, %v2516
      %v2741 = vsel %vm1621, %v1300, %v2517
      %v2742 = vsel %vm1622, %v1304, %v2518
      %v2743 = vsel %vm1623, %v1306, %v2519
      %v2744 = vsel %vm1624, %v1310, %v2520
      %v2745 = vsel %vm1625, %v1312, %v2521
      %v2746 = vsel %vm1626, %v1316, %v2522
      %v2747 = vsel %vm1627, %v1318, %v2523
      %v2748 = vsel %vm1628, %v1322, %v2524
      %v2749 = vsel %vm1629, %v1324, %v2525
      %v2750 = vsel %vm1630, %v1328, %v2526
      %v2751 = vsel %vm1631, %v1330, %v2527
      %v2752 = vsel %vm1632, %v1334, %v2528
      %v2753 = vsel %vm1633, %v1336, %v2529
      %v2754 = vsel %vm1634, %v1340, %v2530
      %v2755 = vsel %vm1635, %v1342, %v2531
      %v2756 = vsel %vm1636, %v1346, %v2532
      %v2757 = vsel %vm1637, %v1348, %v2533
      %v2758 = vsel %vm1638, %v1352, %v2534
      %v2759 = vsel %vm1639, %v1354, %v2535
      %v2760 = vsel %vm1640, %v1358, %v2536
      %v2761 = vsel %vm1641, %v1360, %v2537
      %v2762 = vsel %vm1642, %v1364, %v2538
      %v2763 = vsel %vm1643, %v1366, %v2539
      %v2764 = vsel %vm1644, %v1370, %v2540
      %v2765 = vsel %vm1645, %v1372, %v2541
      %v2766 = vsel %vm1646, %v1376, %v2542
      %v2767 = vsel %vm1647, %v1378, %v2543
      %v2768 = vsel %vm1648, %v1382, %v2544
      %v2769 = vsel %vm1649, %v1384, %v2545
      %v2770 = vsel %vm1650, %v1388, %v2546
      %v2771 = vsel %vm1651, %v1390, %v2547
      %v2772 = vsel %vm1652, %v1394, %v2548
      %v2773 = vsel %vm1653, %v1396, %v2549
      %v2774 = vsel %vm1654, %v1400, %v2550
      %v2775 = vsel %vm1655, %v1402, %v2551
      %v2776 = vsel %vm1656, %v1406, %v2552
      %v2777 = vsel %vm1657, %v1408, %v2553
      %v2778 = vsel %vm1658, %v1412, %v2554
      %v2779 = vsel %vm1659, %v1414, %v2555
      %v2780 = vsel %vm1660, %v1418, %v2556
      %v2781 = vsel %vm1661, %v1420, %v2557
      %v2782 = vsel %vm1662, %v1424, %v2558
      %v2783 = vsel %vm1663, %v1426, %v2559
      %v2784 = vsel %vm1664, %v1430, %v2560
      %v2785 = vsel %vm1665, %v1432, %v2561
      %v2786 = vsel %vm1666, %v1436, %v2562
      %v2787 = vsel %vm1667, %v1438, %v2563
      %v2788 = vsel %vm1668, %v1442, %v2564
      %v2789 = vsel %vm1669, %v1444, %v2565
      %v2790 = vpack.c.bf16 %v2568, %v2566
      %v2791 = vpack.c.bf16 %v2569, %v2567
      %v2792 = vpack.c.bf16 %v2572, %v2570
      %v2793 = vpack.c.bf16 %v2573, %v2571
      %v2794 = vpack.c.bf16 %v2576, %v2574
      %v2795 = vpack.c.bf16 %v2577, %v2575
      %v2796 = vpack.c.bf16 %v2580, %v2578
      %v2797 = vpack.c.bf16 %v2581, %v2579
      %v2798 = vpack.c.bf16 %v2584, %v2582
      %v2799 = vpack.c.bf16 %v2585, %v2583
      %v2800 = vpack.c.bf16 %v2588, %v2586
      %v2801 = vpack.c.bf16 %v2589, %v2587
      %v2802 = vpack.c.bf16 %v2592, %v2590
      %v2803 = vpack.c.bf16 %v2593, %v2591
      %v2804 = vpack.c.bf16 %v2596, %v2594
      %v2805 = vpack.c.bf16 %v2597, %v2595
      %v2806 = vpack.c.bf16 %v2600, %v2598
      %v2807 = vpack.c.bf16 %v2601, %v2599
      %v2808 = vpack.c.bf16 %v2604, %v2602
      %v2809 = vpack.c.bf16 %v2605, %v2603
      %v2810 = vpack.c.bf16 %v2608, %v2606
      %v2811 = vpack.c.bf16 %v2609, %v2607
      %v2812 = vpack.c.bf16 %v2612, %v2610
      %v2813 = vpack.c.bf16 %v2613, %v2611
      %v2814 = vpack.c.bf16 %v2616, %v2614
      %v2815 = vpack.c.bf16 %v2617, %v2615
      %v2816 = vpack.c.bf16 %v2620, %v2618
      %v2817 = vpack.c.bf16 %v2621, %v2619
      %v2818 = vpack.c.bf16 %v2624, %v2622
      %v2819 = vpack.c.bf16 %v2625, %v2623
      %v2820 = vpack.c.bf16 %v2628, %v2626
      %v2821 = vpack.c.bf16 %v2629, %v2627
      %v2822 = vpack.c.bf16 %v2632, %v2630
      %v2823 = vpack.c.bf16 %v2633, %v2631
      %v2824 = vpack.c.bf16 %v2636, %v2634
      %v2825 = vpack.c.bf16 %v2637, %v2635
      %v2826 = vpack.c.bf16 %v2640, %v2638
      %v2827 = vpack.c.bf16 %v2641, %v2639
      %v2828 = vpack.c.bf16 %v2644, %v2642
      %v2829 = vpack.c.bf16 %v2645, %v2643
      %v2830 = vpack.c.bf16 %v2648, %v2646
      %v2831 = vpack.c.bf16 %v2649, %v2647
      %v2832 = vpack.c.bf16 %v2652, %v2650
      %v2833 = vpack.c.bf16 %v2653, %v2651
      %v2834 = vpack.c.bf16 %v2656, %v2654
      %v2835 = vpack.c.bf16 %v2657, %v2655
      %v2836 = vpack.c.bf16 %v2660, %v2658
      %v2837 = vpack.c.bf16 %v2661, %v2659
      %v2838 = vpack.c.bf16 %v2664, %v2662
      %v2839 = vpack.c.bf16 %v2665, %v2663
      %v2840 = vpack.c.bf16 %v2668, %v2666
      %v2841 = vpack.c.bf16 %v2669, %v2667
      %v2842 = vpack.c.bf16 %v2672, %v2670
      %v2843 = vpack.c.bf16 %v2673, %v2671
      %v2844 = vpack.c.bf16 %v2676, %v2674
      %v2845 = vpack.c.bf16 %v2677, %v2675
      %v2846 = vpack.c.bf16 %v2680, %v2678
      %v2847 = vpack.c.bf16 %v2681, %v2679
      %v2848 = vpack.c.bf16 %v2684, %v2682
      %v2849 = vpack.c.bf16 %v2685, %v2683
      %v2850 = vpack.c.bf16 %v2688, %v2686
      %v2851 = vpack.c.bf16 %v2689, %v2687
      %v2852 = vpack.c.bf16 %v2692, %v2690
      %v2853 = vpack.c.bf16 %v2693, %v2691
      %v2854 = vpack.c.bf16 %v2696, %v2694
      %v2855 = vpack.c.bf16 %v2697, %v2695
      %v2856 = vpack.c.bf16 %v2700, %v2698
      %v2857 = vpack.c.bf16 %v2701, %v2699
      %v2858 = vpack.c.bf16 %v2704, %v2702
      %v2859 = vpack.c.bf16 %v2705, %v2703
      %v2860 = vpack.c.bf16 %v2708, %v2706
      %v2861 = vpack.c.bf16 %v2709, %v2707
      %v2862 = vpack.c.bf16 %v2712, %v2710
      %v2863 = vpack.c.bf16 %v2713, %v2711
      %v2864 = vpack.c.bf16 %v2716, %v2714
      %v2865 = vpack.c.bf16 %v2717, %v2715
      %v2866 = vpack.c.bf16 %v2720, %v2718
      %v2867 = vpack.c.bf16 %v2721, %v2719
      %v2868 = vpack.c.bf16 %v2724, %v2722
      %v2869 = vpack.c.bf16 %v2725, %v2723
      %v2870 = vpack.c.bf16 %v2728, %v2726
      %v2871 = vpack.c.bf16 %v2729, %v2727
      %v2872 = vpack.c.bf16 %v2732, %v2730
      %v2873 = vpack.c.bf16 %v2733, %v2731
      %v2874 = vpack.c.bf16 %v2736, %v2734
      %v2875 = vpack.c.bf16 %v2737, %v2735
      %v2876 = vpack.c.bf16 %v2740, %v2738
      %v2877 = vpack.c.bf16 %v2741, %v2739
      %v2878 = vpack.c.bf16 %v2744, %v2742
      %v2879 = vpack.c.bf16 %v2745, %v2743
      %v2880 = vpack.c.bf16 %v2748, %v2746
      %v2881 = vpack.c.bf16 %v2749, %v2747
      %v2882 = vpack.c.bf16 %v2752, %v2750
      %v2883 = vpack.c.bf16 %v2753, %v2751
      %v2884 = vpack.c.bf16 %v2756, %v2754
      %v2885 = vpack.c.bf16 %v2757, %v2755
      %v2886 = vpack.c.bf16 %v2760, %v2758
      %v2887 = vpack.c.bf16 %v2761, %v2759
      %v2888 = vpack.c.bf16 %v2764, %v2762
      %v2889 = vpack.c.bf16 %v2765, %v2763
      %v2890 = vpack.c.bf16 %v2768, %v2766
      %v2891 = vpack.c.bf16 %v2769, %v2767
      %v2892 = vpack.c.bf16 %v2772, %v2770
      %v2893 = vpack.c.bf16 %v2773, %v2771
      %v2894 = vpack.c.bf16 %v2776, %v2774
      %v2895 = vpack.c.bf16 %v2777, %v2775
      %v2896 = vpack.c.bf16 %v2780, %v2778
      %v2897 = vpack.c.bf16 %v2781, %v2779
      %v2898 = vpack.c.bf16 %v2784, %v2782
      %v2899 = vpack.c.bf16 %v2785, %v2783
      %v2900 = vpack.c.bf16 %v2788, %v2786
      %v2901 = vpack.c.bf16 %v2789, %v2787
      %v2902 = vld [vmem:[%s3] sm:$0xff]
      %v2903 = vld [vmem:[%s3 + $0x8] sm:$0xf]
      %v2904 = vld [vmem:[%s3 + $0xc] sm:$0xff]
      %v2905 = vld [vmem:[%s3 + $0x14] sm:$0xf]
      %v2906 = vld [vmem:[%s3 + $0x18] sm:$0xff]
      %v2907 = vld [vmem:[%s3 + $0x20] sm:$0xf]
      %v2908 = vld [vmem:[%s3 + $0x24] sm:$0xff]
      %v2909 = vld [vmem:[%s3 + $0x2c] sm:$0xf]
      %v2910 = vld [vmem:[%s3 + $0x30] sm:$0xff]
      %v2911 = vld [vmem:[%s3 + $0x38] sm:$0xf]
      %v2912 = vld [vmem:[%s3 + $0x3c] sm:$0xff]
      %v2913 = vld [vmem:[%s3 + $0x44] sm:$0xf]
      %v2914 = vld [vmem:[%s3 + $0x48] sm:$0xff]
      %v2915 = vld [vmem:[%s3 + $0x50] sm:$0xf]
      %v2916 = vld [vmem:[%s3 + $0x54] sm:$0xff]
      %v2917 = vld [vmem:[%s3 + $0x5c] sm:$0xf]
      %v2918 = vld [vmem:[%s3 + $0x60] sm:$0xff]
      %v2919 = vld [vmem:[%s3 + $0x68] sm:$0xf]
      %v2920 = vld [vmem:[%s3 + $0x6c] sm:$0xff]
      %v2921 = vld [vmem:[%s3 + $0x74] sm:$0xf]
      %v2922 = vld [vmem:[%s3 + $0x78] sm:$0xff]
      %v2923 = vld [vmem:[%s3 + $0x80] sm:$0xf]
      %v2924 = vld [vmem:[%s3 + $0x84] sm:$0xff]
      %v2925 = vld [vmem:[%s3 + $0x8c] sm:$0xf]
      %v2926 = vld [vmem:[%s3 + $0x90] sm:$0xff]
      %v2927 = vld [vmem:[%s3 + $0x98] sm:$0xf]
      %v2928 = vld [vmem:[%s3 + $0x9c] sm:$0xff]
      %v2929 = vld [vmem:[%s3 + $0xa4] sm:$0xf]
      %v2930 = vld [vmem:[%s3 + $0xa8] sm:$0xff]
      %v2931 = vld [vmem:[%s3 + $0xb0] sm:$0xf]
      %v2932 = vld [vmem:[%s3 + $0xb4] sm:$0xff]
      %v2933 = vld [vmem:[%s3 + $0xbc] sm:$0xf]
      %v2934 = vld [vmem:[%s3 + $0xc0] sm:$0xff]
      %v2935 = vld [vmem:[%s3 + $0xc8] sm:$0xf]
      %v2936 = vld [vmem:[%s3 + $0xcc] sm:$0xff]
      %v2937 = vld [vmem:[%s3 + $0xd4] sm:$0xf]
      %v2938 = vld [vmem:[%s3 + $0xd8] sm:$0xff]
      %v2939 = vld [vmem:[%s3 + $0xe0] sm:$0xf]
      %v2940 = vld [vmem:[%s3 + $0xe4] sm:$0xff]
      %v2941 = vld [vmem:[%s3 + $0xec] sm:$0xf]
      %v2982 = vunpack.c.l.b16 %v2902
      %v2983 = vunpack.c.h.b16 %v2902
      %v2984 = vunpack.c.l.b16 %v2903
      %v2985 = vunpack.c.l.b16 %v2904
      %v2986 = vunpack.c.h.b16 %v2904
      %v2987 = vunpack.c.l.b16 %v2905
      %v2988 = vunpack.c.l.b16 %v2906
      %v2989 = vunpack.c.h.b16 %v2906
      %v2990 = vunpack.c.l.b16 %v2907
      %v2991 = vunpack.c.l.b16 %v2908
      %v2992 = vunpack.c.h.b16 %v2908
      %v2993 = vunpack.c.l.b16 %v2909
      %v2994 = vunpack.c.l.b16 %v2910
      %v2995 = vunpack.c.h.b16 %v2910
      %v2996 = vunpack.c.l.b16 %v2911
      %v2997 = vunpack.c.l.b16 %v2912
      %v2998 = vunpack.c.h.b16 %v2912
      %v2999 = vunpack.c.l.b16 %v2913
      %v3000 = vunpack.c.l.b16 %v2914
      %v3001 = vunpack.c.h.b16 %v2914
      %v3002 = vunpack.c.l.b16 %v2915
      %v3003 = vunpack.c.l.b16 %v2916
      %v3004 = vunpack.c.h.b16 %v2916
      %v3005 = vunpack.c.l.b16 %v2917
      %v3006 = vunpack.c.l.b16 %v2918
      %v3007 = vunpack.c.h.b16 %v2918
      %v3008 = vunpack.c.l.b16 %v2919
      %v3009 = vunpack.c.l.b16 %v2920
      %v3010 = vunpack.c.h.b16 %v2920
      %v3011 = vunpack.c.l.b16 %v2921
      %v3012 = vunpack.c.l.b16 %v2922
      %v3013 = vunpack.c.h.b16 %v2922
      %v3014 = vunpack.c.l.b16 %v2923
      %v3015 = vunpack.c.l.b16 %v2924
      %v3016 = vunpack.c.h.b16 %v2924
      %v3017 = vunpack.c.l.b16 %v2925
      %v3018 = vunpack.c.l.b16 %v2926
      %v3019 = vunpack.c.h.b16 %v2926
      %v3020 = vunpack.c.l.b16 %v2927
      %v3021 = vunpack.c.l.b16 %v2928
      %v3022 = vunpack.c.h.b16 %v2928
      %v3023 = vunpack.c.l.b16 %v2929
      %v3024 = vunpack.c.l.b16 %v2930
      %v3025 = vunpack.c.h.b16 %v2930
      %v3026 = vunpack.c.l.b16 %v2931
      %v3027 = vunpack.c.l.b16 %v2932
      %v3028 = vunpack.c.h.b16 %v2932
      %v3029 = vunpack.c.l.b16 %v2933
      %v3030 = vunpack.c.l.b16 %v2934
      %v3031 = vunpack.c.h.b16 %v2934
      %v3032 = vunpack.c.l.b16 %v2935
      %v3033 = vunpack.c.l.b16 %v2936
      %v3034 = vunpack.c.h.b16 %v2936
      %v3035 = vunpack.c.l.b16 %v2937
      %v3036 = vunpack.c.l.b16 %v2938
      %v3037 = vunpack.c.h.b16 %v2938
      %v3038 = vunpack.c.l.b16 %v2939
      %v3039 = vunpack.c.l.b16 %v2940
      %v3040 = vunpack.c.h.b16 %v2940
      %v3041 = vunpack.c.l.b16 %v2941
      %v3042 = vpack.c.b16 %v2985, %v2982
      %v3043 = vpack.c.b16 %v2986, %v2983
      %v3044 = vpack.c.b16 %v2987, %v2984
      %v3045 = vpack.c.b16 %v2991, %v2988
      %v3046 = vpack.c.b16 %v2992, %v2989
      %v3047 = vpack.c.b16 %v2993, %v2990
      %v3048 = vpack.c.b16 %v2997, %v2994
      %v3049 = vpack.c.b16 %v2998, %v2995
      %v3050 = vpack.c.b16 %v2999, %v2996
      %v3051 = vpack.c.b16 %v3003, %v3000
      %v3052 = vpack.c.b16 %v3004, %v3001
      %v3053 = vpack.c.b16 %v3005, %v3002
      %v3054 = vpack.c.b16 %v3009, %v3006
      %v3055 = vpack.c.b16 %v3010, %v3007
      %v3056 = vpack.c.b16 %v3011, %v3008
      %v3057 = vpack.c.b16 %v3015, %v3012
      %v3058 = vpack.c.b16 %v3016, %v3013
      %v3059 = vpack.c.b16 %v3017, %v3014
      %v3060 = vpack.c.b16 %v3021, %v3018
      %v3061 = vpack.c.b16 %v3022, %v3019
      %v3062 = vpack.c.b16 %v3023, %v3020
      %v3063 = vpack.c.b16 %v3027, %v3024
      %v3064 = vpack.c.b16 %v3028, %v3025
      %v3065 = vpack.c.b16 %v3029, %v3026
      %v3066 = vpack.c.b16 %v3033, %v3030
      %v3067 = vpack.c.b16 %v3034, %v3031
      %v3068 = vpack.c.b16 %v3035, %v3032
      %v3069 = vpack.c.b16 %v3039, %v3036
      %v3070 = vpack.c.b16 %v3040, %v3037
      %v3071 = vpack.c.b16 %v3041, %v3038
      %vm3102 = vcmask 261120
      %v3104 = vsel %vm3102, %v2791, 0
      %v3107 = vsel %vm3102, %v2793, 0
      %v3110 = vsel %vm3102, %v2795, 0
      %v3113 = vsel %vm3102, %v2797, 0
      %v3116 = vsel %vm3102, %v2799, 0
      %v3119 = vsel %vm3102, %v2801, 0
      %v3122 = vsel %vm3102, %v2803, 0
      %v3125 = vsel %vm3102, %v2805, 0
      %v3128 = vsel %vm3102, %v2807, 0
      %v3131 = vsel %vm3102, %v2809, 0
      %v3134 = vsel %vm3102, %v2811, 0
      %v3137 = vsel %vm3102, %v2813, 0
      %v3140 = vsel %vm3102, %v2815, 0
      %v3143 = vsel %vm3102, %v2817, 0
      %v3146 = vsel %vm3102, %v2819, 0
      %v3149 = vsel %vm3102, %v2821, 0
      %v3152 = vsel %vm3102, %v2823, 0
      %v3155 = vsel %vm3102, %v2825, 0
      %v3158 = vsel %vm3102, %v2827, 0
      %v3161 = vsel %vm3102, %v2829, 0
      %v3164 = vsel %vm3102, %v2831, 0
      %v3167 = vsel %vm3102, %v2833, 0
      %v3170 = vsel %vm3102, %v2835, 0
      %v3173 = vsel %vm3102, %v2837, 0
      %v3176 = vsel %vm3102, %v2839, 0
      %v3179 = vsel %vm3102, %v2841, 0
      %v3182 = vsel %vm3102, %v2843, 0
      %v3185 = vsel %vm3102, %v2845, 0
      %v3188 = vsel %vm3102, %v2847, 0
      %v3191 = vsel %vm3102, %v2849, 0
      %v3194 = vsel %vm3102, %v2851, 0
      %v3197 = vsel %vm3102, %v2853, 0
      %v3200 = vsel %vm3102, %v2855, 0
      %v3203 = vsel %vm3102, %v2857, 0
      %v3206 = vsel %vm3102, %v2859, 0
      %v3209 = vsel %vm3102, %v2861, 0
      %v3212 = vsel %vm3102, %v2863, 0
      %v3215 = vsel %vm3102, %v2865, 0
      %v3218 = vsel %vm3102, %v2867, 0
      %v3221 = vsel %vm3102, %v2869, 0
      %v3224 = vsel %vm3102, %v2871, 0
      %v3227 = vsel %vm3102, %v2873, 0
      %v3230 = vsel %vm3102, %v2875, 0
      %v3233 = vsel %vm3102, %v2877, 0
      %v3236 = vsel %vm3102, %v2879, 0
      %v3239 = vsel %vm3102, %v2881, 0
      %v3242 = vsel %vm3102, %v2883, 0
      %v3245 = vsel %vm3102, %v2885, 0
      %v3248 = vsel %vm3102, %v2887, 0
      %v3251 = vsel %vm3102, %v2889, 0
      %v3254 = vsel %vm3102, %v2891, 0
      %v3257 = vsel %vm3102, %v2893, 0
      %v3260 = vsel %vm3102, %v2895, 0
      %v3263 = vsel %vm3102, %v2897, 0
      %v3266 = vsel %vm3102, %v2899, 0
      %v3269 = vsel %vm3102, %v2901, 0
      %3271 = vmatprep.subr.bf16.mxu0 %v3043
      %3272 = vmatpush1.bf16.msra.mxu0 %v3042
      %3273 = vmatprep.subr.bf16.mxu0 %v3046
      %3274 = vmatpush1.bf16.msra.mxu0 %v3045
      %3275 = vmatprep.subr.bf16.mxu0 %v3049
      %3276 = vmatpush1.bf16.msra.mxu0 %v3048
      %3277 = vmatprep.subr.bf16.mxu0 %v3052
      %3278 = vmatpush1.bf16.msra.mxu0 %v3051
      %3279 = vmatprep.subr.bf16.mxu0 %v3055
      %3280 = vmatpush1.bf16.msra.mxu0 %v3054
      %3281 = vmatprep.subr.bf16.mxu0 %v3058
      %3282 = vmatpush1.bf16.msra.mxu0 %v3057
      %3283 = vmatprep.subr.bf16.mxu0 %v3061
      %3284 = vmatpush1.bf16.msra.mxu0 %v3060
      %3285 = vmatprep.subr.bf16.mxu0 %v3064
      %3286 = vmatpush1.bf16.msra.mxu0 %v3063
      %3287 = vmatprep.subr.bf16.mxu0 %v3067
      %3288 = vmatpush1.bf16.msra.mxu0 %v3066
      %3289 = vmatprep.subr.bf16.mxu0 %v3070
      %3290 = vmatpush1.bf16.msra.mxu0 %v3069
      %3291 = vmatprep.subr.bf16.mxu0 0
      %3292 = vmatpush1.bf16.msra.mxu0 0
      %3293 = vmatprep.subr.bf16.mxu0 0
      %3294 = vmatpush1.bf16.msra.mxu0 0
      %3295 = vmatprep.subr.bf16.mxu0 0
      %3296 = vmatpush1.bf16.msra.mxu0 0
      %3297 = vmatprep.subr.bf16.mxu0 0
      %3298 = vmatpush1.bf16.msra.mxu0 0
      %3299 = vmatprep.subr.bf16.mxu0 0
      %3300 = vmatpush1.bf16.msra.mxu0 0
      %3301 = vmatprep.subr.bf16.mxu0 0
      %3302 = vmatpush1.bf16.msra.mxu0 0
      %3303 = vmatprep.mubr.bf16.mxu0 %v3104
      %3304 = vmatmul.mubr.bf16.gmra.mrb[0].mxu0 %v2790
      %v3305 = vpop.f32.mrb[0].mxu0
      %v3306 = vadd.f32 0.0, %v3305
      %v3307 = vpop.f32.mrb[0].mxu0
      %v3308 = vadd.f32 0.0, %v3307
      %v3309 = vpop.f32.mrb[0].mxu0
      %v3310 = vadd.f32 0.0, %v3309
      %v3311 = vpop.f32.mrb[0].mxu0
      %v3312 = vadd.f32 0.0, %v3311
      %3313 = vmatprep.mubr.bf16.mxu0 %v3107
      %3314 = vmatmul.mubr.bf16.gmra.mrb[0].mxu0 %v2792
      %v3315 = vpop.f32.mrb[0].mxu0
      %v3316 = vadd.f32 0.0, %v3315
      %v3317 = vpop.f32.mrb[0].mxu0
      %v3318 = vadd.f32 0.0, %v3317
      %v3319 = vpop.f32.mrb[0].mxu0
      %v3320 = vadd.f32 0.0, %v3319
      %v3321 = vpop.f32.mrb[0].mxu0
      %v3322 = vadd.f32 0.0, %v3321
      %3323 = vmatprep.mubr.bf16.mxu0 %v3110
      %3324 = vmatmul.mubr.bf16.gmra.mrb[0].mxu0 %v2794
      %v3325 = vpop.f32.mrb[0].mxu0
      %v3326 = vadd.f32 0.0, %v3325
      %v3327 = vpop.f32.mrb[0].mxu0
      %v3328 = vadd.f32 0.0, %v3327
      %v3329 = vpop.f32.mrb[0].mxu0
      %v3330 = vadd.f32 0.0, %v3329
      %v3331 = vpop.f32.mrb[0].mxu0
      %v3332 = vadd.f32 0.0, %v3331
      %3333 = vmatprep.mubr.bf16.mxu0 %v3113
      %3334 = vmatmul.mubr.bf16.gmra.mrb[0].mxu0 %v2796
      %v3335 = vpop.f32.mrb[0].mxu0
      %v3336 = vadd.f32 0.0, %v3335
      %v3337 = vpop.f32.mrb[0].mxu0
      %v3338 = vadd.f32 0.0, %v3337
      %v3339 = vpop.f32.mrb[0].mxu0
      %v3340 = vadd.f32 0.0, %v3339
      %v3341 = vpop.f32.mrb[0].mxu0
      %v3342 = vadd.f32 0.0, %v3341
      %3343 = vmatprep.mubr.bf16.mxu0 %v3116
      %3344 = vmatmul.mubr.bf16.gmra.mrb[0].mxu0 %v2798
      %v3345 = vpop.f32.mrb[0].mxu0
      %v3346 = vadd.f32 0.0, %v3345
      %v3347 = vpop.f32.mrb[0].mxu0
      %v3348 = vadd.f32 0.0, %v3347
      %v3349 = vpop.f32.mrb[0].mxu0
      %v3350 = vadd.f32 0.0, %v3349
      %v3351 = vpop.f32.mrb[0].mxu0
      %v3352 = vadd.f32 0.0, %v3351
      %3353 = vmatprep.mubr.bf16.mxu0 %v3119
      %3354 = vmatmul.mubr.bf16.gmra.mrb[0].mxu0 %v2800
      %v3355 = vpop.f32.mrb[0].mxu0
      %v3356 = vadd.f32 0.0, %v3355
      %v3357 = vpop.f32.mrb[0].mxu0
      %v3358 = vadd.f32 0.0, %v3357
      %v3359 = vpop.f32.mrb[0].mxu0
      %v3360 = vadd.f32 0.0, %v3359
      %v3361 = vpop.f32.mrb[0].mxu0
      %v3362 = vadd.f32 0.0, %v3361
      %3363 = vmatprep.mubr.bf16.mxu0 %v3122
      %3364 = vmatmul.mubr.bf16.gmra.mrb[0].mxu0 %v2802
      %v3365 = vpop.f32.mrb[0].mxu0
      %v3366 = vadd.f32 0.0, %v3365
      %v3367 = vpop.f32.mrb[0].mxu0
      %v3368 = vadd.f32 0.0, %v3367
      %v3369 = vpop.f32.mrb[0].mxu0
      %v3370 = vadd.f32 0.0, %v3369
      %v3371 = vpop.f32.mrb[0].mxu0
      %v3372 = vadd.f32 0.0, %v3371
      %3373 = vmatprep.mubr.bf16.mxu0 %v3125
      %3374 = vmatmul.mubr.bf16.gmra.mrb[0].mxu0 %v2804
      %v3375 = vpop.f32.mrb[0].mxu0
      %v3376 = vadd.f32 0.0, %v3375
      %v3377 = vpop.f32.mrb[0].mxu0
      %v3378 = vadd.f32 0.0, %v3377
      %v3379 = vpop.f32.mrb[0].mxu0
      %v3380 = vadd.f32 0.0, %v3379
      %v3381 = vpop.f32.mrb[0].mxu0
      %v3382 = vadd.f32 0.0, %v3381
      %3383 = vmatprep.mubr.bf16.mxu0 %v3128
      %3384 = vmatmul.mubr.bf16.gmra.mrb[0].mxu0 %v2806
      %v3385 = vpop.f32.mrb[0].mxu0
      %v3386 = vadd.f32 0.0, %v3385
      %v3387 = vpop.f32.mrb[0].mxu0
      %v3388 = vadd.f32 0.0, %v3387
      %v3389 = vpop.f32.mrb[0].mxu0
      %v3390 = vadd.f32 0.0, %v3389
      %v3391 = vpop.f32.mrb[0].mxu0
      %v3392 = vadd.f32 0.0, %v3391
      %3393 = vmatprep.mubr.bf16.mxu0 %v3131
      %3394 = vmatmul.mubr.bf16.gmra.mrb[0].mxu0 %v2808
      %v3395 = vpop.f32.mrb[0].mxu0
      %v3396 = vadd.f32 0.0, %v3395
      %v3397 = vpop.f32.mrb[0].mxu0
      %v3398 = vadd.f32 0.0, %v3397
      %v3399 = vpop.f32.mrb[0].mxu0
      %v3400 = vadd.f32 0.0, %v3399
      %v3401 = vpop.f32.mrb[0].mxu0
      %v3402 = vadd.f32 0.0, %v3401
      %3403 = vmatprep.mubr.bf16.mxu0 %v3134
      %3404 = vmatmul.mubr.bf16.gmra.mrb[0].mxu0 %v2810
      %v3405 = vpop.f32.mrb[0].mxu0
      %v3406 = vadd.f32 0.0, %v3405
      %v3407 = vpop.f32.mrb[0].mxu0
      %v3408 = vadd.f32 0.0, %v3407
      %v3409 = vpop.f32.mrb[0].mxu0
      %v3410 = vadd.f32 0.0, %v3409
      %v3411 = vpop.f32.mrb[0].mxu0
      %v3412 = vadd.f32 0.0, %v3411
      %3413 = vmatprep.mubr.bf16.mxu0 %v3137
      %3414 = vmatmul.mubr.bf16.gmra.mrb[0].mxu0 %v2812
      %v3415 = vpop.f32.mrb[0].mxu0
      %v3416 = vadd.f32 0.0, %v3415
      %v3417 = vpop.f32.mrb[0].mxu0
      %v3418 = vadd.f32 0.0, %v3417
      %v3419 = vpop.f32.mrb[0].mxu0
      %v3420 = vadd.f32 0.0, %v3419
      %v3421 = vpop.f32.mrb[0].mxu0
      %v3422 = vadd.f32 0.0, %v3421
      %3423 = vmatprep.mubr.bf16.mxu0 %v3140
      %3424 = vmatmul.mubr.bf16.gmra.mrb[0].mxu0 %v2814
      %v3425 = vpop.f32.mrb[0].mxu0
      %v3426 = vadd.f32 0.0, %v3425
      %v3427 = vpop.f32.mrb[0].mxu0
      %v3428 = vadd.f32 0.0, %v3427
      %v3429 = vpop.f32.mrb[0].mxu0
      %v3430 = vadd.f32 0.0, %v3429
      %v3431 = vpop.f32.mrb[0].mxu0
      %v3432 = vadd.f32 0.0, %v3431
      %3433 = vmatprep.mubr.bf16.mxu0 %v3143
      %3434 = vmatmul.mubr.bf16.gmra.mrb[0].mxu0 %v2816
      %v3435 = vpop.f32.mrb[0].mxu0
      %v3436 = vadd.f32 0.0, %v3435
      %v3437 = vpop.f32.mrb[0].mxu0
      %v3438 = vadd.f32 0.0, %v3437
      %v3439 = vpop.f32.mrb[0].mxu0
      %v3440 = vadd.f32 0.0, %v3439
      %v3441 = vpop.f32.mrb[0].mxu0
      %v3442 = vadd.f32 0.0, %v3441
      %3443 = vmatprep.mubr.bf16.mxu0 %v3146
      %3444 = vmatmul.mubr.bf16.gmra.mrb[0].mxu0 %v2818
      %v3445 = vpop.f32.mrb[0].mxu0
      %v3446 = vadd.f32 0.0, %v3445
      %v3447 = vpop.f32.mrb[0].mxu0
      %v3448 = vadd.f32 0.0, %v3447
      %v3449 = vpop.f32.mrb[0].mxu0
      %v3450 = vadd.f32 0.0, %v3449
      %v3451 = vpop.f32.mrb[0].mxu0
      %v3452 = vadd.f32 0.0, %v3451
      %3453 = vmatprep.mubr.bf16.mxu0 %v3149
      %3454 = vmatmul.mubr.bf16.gmra.mrb[0].mxu0 %v2820
      %v3455 = vpop.f32.mrb[0].mxu0
      %v3456 = vadd.f32 0.0, %v3455
      %v3457 = vpop.f32.mrb[0].mxu0
      %v3458 = vadd.f32 0.0, %v3457
      %v3459 = vpop.f32.mrb[0].mxu0
      %v3460 = vadd.f32 0.0, %v3459
      %v3461 = vpop.f32.mrb[0].mxu0
      %v3462 = vadd.f32 0.0, %v3461
      %3463 = vmatprep.mubr.bf16.mxu0 %v3152
      %3464 = vmatmul.mubr.bf16.gmra.mrb[0].mxu0 %v2822
      %v3465 = vpop.f32.mrb[0].mxu0
      %v3466 = vadd.f32 0.0, %v3465
      %v3467 = vpop.f32.mrb[0].mxu0
      %v3468 = vadd.f32 0.0, %v3467
      %v3469 = vpop.f32.mrb[0].mxu0
      %v3470 = vadd.f32 0.0, %v3469
      %v3471 = vpop.f32.mrb[0].mxu0
      %v3472 = vadd.f32 0.0, %v3471
      %3473 = vmatprep.mubr.bf16.mxu0 %v3155
      %3474 = vmatmul.mubr.bf16.gmra.mrb[0].mxu0 %v2824
      %v3475 = vpop.f32.mrb[0].mxu0
      %v3476 = vadd.f32 0.0, %v3475
      %v3477 = vpop.f32.mrb[0].mxu0
      %v3478 = vadd.f32 0.0, %v3477
      %v3479 = vpop.f32.mrb[0].mxu0
      %v3480 = vadd.f32 0.0, %v3479
      %v3481 = vpop.f32.mrb[0].mxu0
      %v3482 = vadd.f32 0.0, %v3481
      %3483 = vmatprep.mubr.bf16.mxu0 %v3158
      %3484 = vmatmul.mubr.bf16.gmra.mrb[0].mxu0 %v2826
      %v3485 = vpop.f32.mrb[0].mxu0
      %v3486 = vadd.f32 0.0, %v3485
      %v3487 = vpop.f32.mrb[0].mxu0
      %v3488 = vadd.f32 0.0, %v3487
      %v3489 = vpop.f32.mrb[0].mxu0
      %v3490 = vadd.f32 0.0, %v3489
      %v3491 = vpop.f32.mrb[0].mxu0
      %v3492 = vadd.f32 0.0, %v3491
      %3493 = vmatprep.mubr.bf16.mxu0 %v3161
      %3494 = vmatmul.mubr.bf16.gmra.mrb[0].mxu0 %v2828
      %v3495 = vpop.f32.mrb[0].mxu0
      %v3496 = vadd.f32 0.0, %v3495
      %v3497 = vpop.f32.mrb[0].mxu0
      %v3498 = vadd.f32 0.0, %v3497
      %v3499 = vpop.f32.mrb[0].mxu0
      %v3500 = vadd.f32 0.0, %v3499
      %v3501 = vpop.f32.mrb[0].mxu0
      %v3502 = vadd.f32 0.0, %v3501
      %3503 = vmatprep.mubr.bf16.mxu0 %v3164
      %3504 = vmatmul.mubr.bf16.gmra.mrb[0].mxu0 %v2830
      %v3505 = vpop.f32.mrb[0].mxu0
      %v3506 = vadd.f32 0.0, %v3505
      %v3507 = vpop.f32.mrb[0].mxu0
      %v3508 = vadd.f32 0.0, %v3507
      %v3509 = vpop.f32.mrb[0].mxu0
      %v3510 = vadd.f32 0.0, %v3509
      %v3511 = vpop.f32.mrb[0].mxu0
      %v3512 = vadd.f32 0.0, %v3511
      %3513 = vmatprep.mubr.bf16.mxu0 %v3167
      %3514 = vmatmul.mubr.bf16.gmra.mrb[0].mxu0 %v2832
      %v3515 = vpop.f32.mrb[0].mxu0
      %v3516 = vadd.f32 0.0, %v3515
      %v3517 = vpop.f32.mrb[0].mxu0
      %v3518 = vadd.f32 0.0, %v3517
      %v3519 = vpop.f32.mrb[0].mxu0
      %v3520 = vadd.f32 0.0, %v3519
      %v3521 = vpop.f32.mrb[0].mxu0
      %v3522 = vadd.f32 0.0, %v3521
      %3523 = vmatprep.mubr.bf16.mxu0 %v3170
      %3524 = vmatmul.mubr.bf16.gmra.mrb[0].mxu0 %v2834
      %v3525 = vpop.f32.mrb[0].mxu0
      %v3526 = vadd.f32 0.0, %v3525
      %v3527 = vpop.f32.mrb[0].mxu0
      %v3528 = vadd.f32 0.0, %v3527
      %v3529 = vpop.f32.mrb[0].mxu0
      %v3530 = vadd.f32 0.0, %v3529
      %v3531 = vpop.f32.mrb[0].mxu0
      %v3532 = vadd.f32 0.0, %v3531
      %3533 = vmatprep.mubr.bf16.mxu0 %v3173
      %3534 = vmatmul.mubr.bf16.gmra.mrb[0].mxu0 %v2836
      %v3535 = vpop.f32.mrb[0].mxu0
      %v3536 = vadd.f32 0.0, %v3535
      %v3537 = vpop.f32.mrb[0].mxu0
      %v3538 = vadd.f32 0.0, %v3537
      %v3539 = vpop.f32.mrb[0].mxu0
      %v3540 = vadd.f32 0.0, %v3539
      %v3541 = vpop.f32.mrb[0].mxu0
      %v3542 = vadd.f32 0.0, %v3541
      %3543 = vmatprep.mubr.bf16.mxu0 %v3176
      %3544 = vmatmul.mubr.bf16.gmra.mrb[0].mxu0 %v2838
      %v3545 = vpop.f32.mrb[0].mxu0
      %v3546 = vadd.f32 0.0, %v3545
      %v3547 = vpop.f32.mrb[0].mxu0
      %v3548 = vadd.f32 0.0, %v3547
      %v3549 = vpop.f32.mrb[0].mxu0
      %v3550 = vadd.f32 0.0, %v3549
      %v3551 = vpop.f32.mrb[0].mxu0
      %v3552 = vadd.f32 0.0, %v3551
      %3553 = vmatprep.mubr.bf16.mxu0 %v3179
      %3554 = vmatmul.mubr.bf16.gmra.mrb[0].mxu0 %v2840
      %v3555 = vpop.f32.mrb[0].mxu0
      %v3556 = vadd.f32 0.0, %v3555
      %v3557 = vpop.f32.mrb[0].mxu0
      %v3558 = vadd.f32 0.0, %v3557
      %v3559 = vpop.f32.mrb[0].mxu0
      %v3560 = vadd.f32 0.0, %v3559
      %v3561 = vpop.f32.mrb[0].mxu0
      %v3562 = vadd.f32 0.0, %v3561
      %3563 = vmatprep.mubr.bf16.mxu0 %v3182
      %3564 = vmatmul.mubr.bf16.gmra.mrb[0].mxu0 %v2842
      %v3565 = vpop.f32.mrb[0].mxu0
      %v3566 = vadd.f32 0.0, %v3565
      %v3567 = vpop.f32.mrb[0].mxu0
      %v3568 = vadd.f32 0.0, %v3567
      %v3569 = vpop.f32.mrb[0].mxu0
      %v3570 = vadd.f32 0.0, %v3569
      %v3571 = vpop.f32.mrb[0].mxu0
      %v3572 = vadd.f32 0.0, %v3571
      %3573 = vmatprep.mubr.bf16.mxu0 %v3185
      %3574 = vmatmul.mubr.bf16.gmra.mrb[0].mxu0 %v2844
      %v3575 = vpop.f32.mrb[0].mxu0
      %v3576 = vadd.f32 0.0, %v3575
      %v3577 = vpop.f32.mrb[0].mxu0
      %v3578 = vadd.f32 0.0, %v3577
      %v3579 = vpop.f32.mrb[0].mxu0
      %v3580 = vadd.f32 0.0, %v3579
      %v3581 = vpop.f32.mrb[0].mxu0
      %v3582 = vadd.f32 0.0, %v3581
      %3583 = vmatprep.mubr.bf16.mxu0 %v3188
      %3584 = vmatmul.mubr.bf16.gmra.mrb[0].mxu0 %v2846
      %v3585 = vpop.f32.mrb[0].mxu0
      %v3586 = vadd.f32 0.0, %v3585
      %v3587 = vpop.f32.mrb[0].mxu0
      %v3588 = vadd.f32 0.0, %v3587
      %v3589 = vpop.f32.mrb[0].mxu0
      %v3590 = vadd.f32 0.0, %v3589
      %v3591 = vpop.f32.mrb[0].mxu0
      %v3592 = vadd.f32 0.0, %v3591
      %3593 = vmatprep.mubr.bf16.mxu0 %v3191
      %3594 = vmatmul.mubr.bf16.gmra.mrb[0].mxu0 %v2848
      %v3595 = vpop.f32.mrb[0].mxu0
      %v3596 = vadd.f32 0.0, %v3595
      %v3597 = vpop.f32.mrb[0].mxu0
      %v3598 = vadd.f32 0.0, %v3597
      %v3599 = vpop.f32.mrb[0].mxu0
      %v3600 = vadd.f32 0.0, %v3599
      %v3601 = vpop.f32.mrb[0].mxu0
      %v3602 = vadd.f32 0.0, %v3601
      %3603 = vmatprep.mubr.bf16.mxu0 %v3194
      %3604 = vmatmul.mubr.bf16.gmra.mrb[0].mxu0 %v2850
      %v3605 = vpop.f32.mrb[0].mxu0
      %v3606 = vadd.f32 0.0, %v3605
      %v3607 = vpop.f32.mrb[0].mxu0
      %v3608 = vadd.f32 0.0, %v3607
      %v3609 = vpop.f32.mrb[0].mxu0
      %v3610 = vadd.f32 0.0, %v3609
      %v3611 = vpop.f32.mrb[0].mxu0
      %v3612 = vadd.f32 0.0, %v3611
      %3613 = vmatprep.mubr.bf16.mxu0 %v3197
      %3614 = vmatmul.mubr.bf16.gmra.mrb[0].mxu0 %v2852
      %v3615 = vpop.f32.mrb[0].mxu0
      %v3616 = vadd.f32 0.0, %v3615
      %v3617 = vpop.f32.mrb[0].mxu0
      %v3618 = vadd.f32 0.0, %v3617
      %v3619 = vpop.f32.mrb[0].mxu0
      %v3620 = vadd.f32 0.0, %v3619
      %v3621 = vpop.f32.mrb[0].mxu0
      %v3622 = vadd.f32 0.0, %v3621
      %3623 = vmatprep.mubr.bf16.mxu0 %v3200
      %3624 = vmatmul.mubr.bf16.gmra.mrb[0].mxu0 %v2854
      %v3625 = vpop.f32.mrb[0].mxu0
      %v3626 = vadd.f32 0.0, %v3625
      %v3627 = vpop.f32.mrb[0].mxu0
      %v3628 = vadd.f32 0.0, %v3627
      %v3629 = vpop.f32.mrb[0].mxu0
      %v3630 = vadd.f32 0.0, %v3629
      %v3631 = vpop.f32.mrb[0].mxu0
      %v3632 = vadd.f32 0.0, %v3631
      %3633 = vmatprep.mubr.bf16.mxu0 %v3203
      %3634 = vmatmul.mubr.bf16.gmra.mrb[0].mxu0 %v2856
      %v3635 = vpop.f32.mrb[0].mxu0
      %v3636 = vadd.f32 0.0, %v3635
      %v3637 = vpop.f32.mrb[0].mxu0
      %v3638 = vadd.f32 0.0, %v3637
      %v3639 = vpop.f32.mrb[0].mxu0
      %v3640 = vadd.f32 0.0, %v3639
      %v3641 = vpop.f32.mrb[0].mxu0
      %v3642 = vadd.f32 0.0, %v3641
      %3643 = vmatprep.mubr.bf16.mxu0 %v3206
      %3644 = vmatmul.mubr.bf16.gmra.mrb[0].mxu0 %v2858
      %v3645 = vpop.f32.mrb[0].mxu0
      %v3646 = vadd.f32 0.0, %v3645
      %v3647 = vpop.f32.mrb[0].mxu0
      %v3648 = vadd.f32 0.0, %v3647
      %v3649 = vpop.f32.mrb[0].mxu0
      %v3650 = vadd.f32 0.0, %v3649
      %v3651 = vpop.f32.mrb[0].mxu0
      %v3652 = vadd.f32 0.0, %v3651
      %3653 = vmatprep.mubr.bf16.mxu0 %v3209
      %3654 = vmatmul.mubr.bf16.gmra.mrb[0].mxu0 %v2860
      %v3655 = vpop.f32.mrb[0].mxu0
      %v3656 = vadd.f32 0.0, %v3655
      %v3657 = vpop.f32.mrb[0].mxu0
      %v3658 = vadd.f32 0.0, %v3657
      %v3659 = vpop.f32.mrb[0].mxu0
      %v3660 = vadd.f32 0.0, %v3659
      %v3661 = vpop.f32.mrb[0].mxu0
      %v3662 = vadd.f32 0.0, %v3661
      %3663 = vmatprep.mubr.bf16.mxu0 %v3212
      %3664 = vmatmul.mubr.bf16.gmra.mrb[0].mxu0 %v2862
      %v3665 = vpop.f32.mrb[0].mxu0
      %v3666 = vadd.f32 0.0, %v3665
      %v3667 = vpop.f32.mrb[0].mxu0
      %v3668 = vadd.f32 0.0, %v3667
      %v3669 = vpop.f32.mrb[0].mxu0
      %v3670 = vadd.f32 0.0, %v3669
      %v3671 = vpop.f32.mrb[0].mxu0
      %v3672 = vadd.f32 0.0, %v3671
      %3673 = vmatprep.mubr.bf16.mxu0 %v3215
      %3674 = vmatmul.mubr.bf16.gmra.mrb[0].mxu0 %v2864
      %v3675 = vpop.f32.mrb[0].mxu0
      %v3676 = vadd.f32 0.0, %v3675
      %v3677 = vpop.f32.mrb[0].mxu0
      %v3678 = vadd.f32 0.0, %v3677
      %v3679 = vpop.f32.mrb[0].mxu0
      %v3680 = vadd.f32 0.0, %v3679
      %v3681 = vpop.f32.mrb[0].mxu0
      %v3682 = vadd.f32 0.0, %v3681
      %3683 = vmatprep.mubr.bf16.mxu0 %v3218
      %3684 = vmatmul.mubr.bf16.gmra.mrb[0].mxu0 %v2866
      %v3685 = vpop.f32.mrb[0].mxu0
      %v3686 = vadd.f32 0.0, %v3685
      %v3687 = vpop.f32.mrb[0].mxu0
      %v3688 = vadd.f32 0.0, %v3687
      %v3689 = vpop.f32.mrb[0].mxu0
      %v3690 = vadd.f32 0.0, %v3689
      %v3691 = vpop.f32.mrb[0].mxu0
      %v3692 = vadd.f32 0.0, %v3691
      %3693 = vmatprep.mubr.bf16.mxu0 %v3221
      %3694 = vmatmul.mubr.bf16.gmra.mrb[0].mxu0 %v2868
      %v3695 = vpop.f32.mrb[0].mxu0
      %v3696 = vadd.f32 0.0, %v3695
      %v3697 = vpop.f32.mrb[0].mxu0
      %v3698 = vadd.f32 0.0, %v3697
      %v3699 = vpop.f32.mrb[0].mxu0
      %v3700 = vadd.f32 0.0, %v3699
      %v3701 = vpop.f32.mrb[0].mxu0
      %v3702 = vadd.f32 0.0, %v3701
      %3703 = vmatprep.mubr.bf16.mxu0 %v3224
      %3704 = vmatmul.mubr.bf16.gmra.mrb[0].mxu0 %v2870
      %v3705 = vpop.f32.mrb[0].mxu0
      %v3706 = vadd.f32 0.0, %v3705
      %v3707 = vpop.f32.mrb[0].mxu0
      %v3708 = vadd.f32 0.0, %v3707
      %v3709 = vpop.f32.mrb[0].mxu0
      %v3710 = vadd.f32 0.0, %v3709
      %v3711 = vpop.f32.mrb[0].mxu0
      %v3712 = vadd.f32 0.0, %v3711
      %3713 = vmatprep.mubr.bf16.mxu0 %v3227
      %3714 = vmatmul.mubr.bf16.gmra.mrb[0].mxu0 %v2872
      %v3715 = vpop.f32.mrb[0].mxu0
      %v3716 = vadd.f32 0.0, %v3715
      %v3717 = vpop.f32.mrb[0].mxu0
      %v3718 = vadd.f32 0.0, %v3717
      %v3719 = vpop.f32.mrb[0].mxu0
      %v3720 = vadd.f32 0.0, %v3719
      %v3721 = vpop.f32.mrb[0].mxu0
      %v3722 = vadd.f32 0.0, %v3721
      %3723 = vmatprep.mubr.bf16.mxu0 %v3230
      %3724 = vmatmul.mubr.bf16.gmra.mrb[0].mxu0 %v2874
      %v3725 = vpop.f32.mrb[0].mxu0
      %v3726 = vadd.f32 0.0, %v3725
      %v3727 = vpop.f32.mrb[0].mxu0
      %v3728 = vadd.f32 0.0, %v3727
      %v3729 = vpop.f32.mrb[0].mxu0
      %v3730 = vadd.f32 0.0, %v3729
      %v3731 = vpop.f32.mrb[0].mxu0
      %v3732 = vadd.f32 0.0, %v3731
      %3733 = vmatprep.mubr.bf16.mxu0 %v3233
      %3734 = vmatmul.mubr.bf16.gmra.mrb[0].mxu0 %v2876
      %v3735 = vpop.f32.mrb[0].mxu0
      %v3736 = vadd.f32 0.0, %v3735
      %v3737 = vpop.f32.mrb[0].mxu0
      %v3738 = vadd.f32 0.0, %v3737
      %v3739 = vpop.f32.mrb[0].mxu0
      %v3740 = vadd.f32 0.0, %v3739
      %v3741 = vpop.f32.mrb[0].mxu0
      %v3742 = vadd.f32 0.0, %v3741
      %3743 = vmatprep.mubr.bf16.mxu0 %v3236
      %3744 = vmatmul.mubr.bf16.gmra.mrb[0].mxu0 %v2878
      %v3745 = vpop.f32.mrb[0].mxu0
      %v3746 = vadd.f32 0.0, %v3745
      %v3747 = vpop.f32.mrb[0].mxu0
      %v3748 = vadd.f32 0.0, %v3747
      %v3749 = vpop.f32.mrb[0].mxu0
      %v3750 = vadd.f32 0.0, %v3749
      %v3751 = vpop.f32.mrb[0].mxu0
      %v3752 = vadd.f32 0.0, %v3751
      %3753 = vmatprep.mubr.bf16.mxu0 %v3239
      %3754 = vmatmul.mubr.bf16.gmra.mrb[0].mxu0 %v2880
      %v3755 = vpop.f32.mrb[0].mxu0
      %v3756 = vadd.f32 0.0, %v3755
      %v3757 = vpop.f32.mrb[0].mxu0
      %v3758 = vadd.f32 0.0, %v3757
      %v3759 = vpop.f32.mrb[0].mxu0
      %v3760 = vadd.f32 0.0, %v3759
      %v3761 = vpop.f32.mrb[0].mxu0
      %v3762 = vadd.f32 0.0, %v3761
      %3763 = vmatprep.mubr.bf16.mxu0 %v3242
      %3764 = vmatmul.mubr.bf16.gmra.mrb[0].mxu0 %v2882
      %v3765 = vpop.f32.mrb[0].mxu0
      %v3766 = vadd.f32 0.0, %v3765
      %v3767 = vpop.f32.mrb[0].mxu0
      %v3768 = vadd.f32 0.0, %v3767
      %v3769 = vpop.f32.mrb[0].mxu0
      %v3770 = vadd.f32 0.0, %v3769
      %v3771 = vpop.f32.mrb[0].mxu0
      %v3772 = vadd.f32 0.0, %v3771
      %3773 = vmatprep.mubr.bf16.mxu0 %v3245
      %3774 = vmatmul.mubr.bf16.gmra.mrb[0].mxu0 %v2884
      %v3775 = vpop.f32.mrb[0].mxu0
      %v3776 = vadd.f32 0.0, %v3775
      %v3777 = vpop.f32.mrb[0].mxu0
      %v3778 = vadd.f32 0.0, %v3777
      %v3779 = vpop.f32.mrb[0].mxu0
      %v3780 = vadd.f32 0.0, %v3779
      %v3781 = vpop.f32.mrb[0].mxu0
      %v3782 = vadd.f32 0.0, %v3781
      %3783 = vmatprep.mubr.bf16.mxu0 %v3248
      %3784 = vmatmul.mubr.bf16.gmra.mrb[0].mxu0 %v2886
      %v3785 = vpop.f32.mrb[0].mxu0
      %v3786 = vadd.f32 0.0, %v3785
      %v3787 = vpop.f32.mrb[0].mxu0
      %v3788 = vadd.f32 0.0, %v3787
      %v3789 = vpop.f32.mrb[0].mxu0
      %v3790 = vadd.f32 0.0, %v3789
      %v3791 = vpop.f32.mrb[0].mxu0
      %v3792 = vadd.f32 0.0, %v3791
      %3793 = vmatprep.mubr.bf16.mxu0 %v3251
      %3794 = vmatmul.mubr.bf16.gmra.mrb[0].mxu0 %v2888
      %v3795 = vpop.f32.mrb[0].mxu0
      %v3796 = vadd.f32 0.0, %v3795
      %v3797 = vpop.f32.mrb[0].mxu0
      %v3798 = vadd.f32 0.0, %v3797
      %v3799 = vpop.f32.mrb[0].mxu0
      %v3800 = vadd.f32 0.0, %v3799
      %v3801 = vpop.f32.mrb[0].mxu0
      %v3802 = vadd.f32 0.0, %v3801
      %3803 = vmatprep.mubr.bf16.mxu0 %v3254
      %3804 = vmatmul.mubr.bf16.gmra.mrb[0].mxu0 %v2890
      %v3805 = vpop.f32.mrb[0].mxu0
      %v3806 = vadd.f32 0.0, %v3805
      %v3807 = vpop.f32.mrb[0].mxu0
      %v3808 = vadd.f32 0.0, %v3807
      %v3809 = vpop.f32.mrb[0].mxu0
      %v3810 = vadd.f32 0.0, %v3809
      %v3811 = vpop.f32.mrb[0].mxu0
      %v3812 = vadd.f32 0.0, %v3811
      %3813 = vmatprep.mubr.bf16.mxu0 %v3257
      %3814 = vmatmul.mubr.bf16.gmra.mrb[0].mxu0 %v2892
      %v3815 = vpop.f32.mrb[0].mxu0
      %v3816 = vadd.f32 0.0, %v3815
      %v3817 = vpop.f32.mrb[0].mxu0
      %v3818 = vadd.f32 0.0, %v3817
      %v3819 = vpop.f32.mrb[0].mxu0
      %v3820 = vadd.f32 0.0, %v3819
      %v3821 = vpop.f32.mrb[0].mxu0
      %v3822 = vadd.f32 0.0, %v3821
      %3823 = vmatprep.mubr.bf16.mxu0 %v3260
      %3824 = vmatmul.mubr.bf16.gmra.mrb[0].mxu0 %v2894
      %v3825 = vpop.f32.mrb[0].mxu0
      %v3826 = vadd.f32 0.0, %v3825
      %v3827 = vpop.f32.mrb[0].mxu0
      %v3828 = vadd.f32 0.0, %v3827
      %v3829 = vpop.f32.mrb[0].mxu0
      %v3830 = vadd.f32 0.0, %v3829
      %v3831 = vpop.f32.mrb[0].mxu0
      %v3832 = vadd.f32 0.0, %v3831
      %3833 = vmatprep.mubr.bf16.mxu0 %v3263
      %3834 = vmatmul.mubr.bf16.gmra.mrb[0].mxu0 %v2896
      %v3835 = vpop.f32.mrb[0].mxu0
      %v3836 = vadd.f32 0.0, %v3835
      %v3837 = vpop.f32.mrb[0].mxu0
      %v3838 = vadd.f32 0.0, %v3837
      %v3839 = vpop.f32.mrb[0].mxu0
      %v3840 = vadd.f32 0.0, %v3839
      %v3841 = vpop.f32.mrb[0].mxu0
      %v3842 = vadd.f32 0.0, %v3841
      %3843 = vmatprep.mubr.bf16.mxu0 %v3266
      %3844 = vmatmul.mubr.bf16.gmra.mrb[0].mxu0 %v2898
      %v3845 = vpop.f32.mrb[0].mxu0
      %v3846 = vadd.f32 0.0, %v3845
      %v3847 = vpop.f32.mrb[0].mxu0
      %v3848 = vadd.f32 0.0, %v3847
      %v3849 = vpop.f32.mrb[0].mxu0
      %v3850 = vadd.f32 0.0, %v3849
      %v3851 = vpop.f32.mrb[0].mxu0
      %v3852 = vadd.f32 0.0, %v3851
      %3853 = vmatprep.mubr.bf16.mxu0 %v3269
      %3854 = vmatmul.mubr.bf16.gmra.mrb[0].mxu0 %v2900
      %v3855 = vpop.f32.mrb[0].mxu0
      %v3856 = vadd.f32 0.0, %v3855
      %v3857 = vpop.f32.mrb[0].mxu0
      %v3858 = vadd.f32 0.0, %v3857
      %v3859 = vpop.f32.mrb[0].mxu0
      %v3860 = vadd.f32 0.0, %v3859
      %v3861 = vpop.f32.mrb[0].mxu0
      %v3862 = vadd.f32 0.0, %v3861
      %3863 = vdwg.mxu0
      %3864 = vmatprep.subr.bf16.mxu0 0
      %3865 = vmatpush1.bf16.msra.mxu0 %v3044
      %3866 = vmatprep.subr.bf16.mxu0 0
      %3867 = vmatpush1.bf16.msra.mxu0 %v3047
      %3868 = vmatprep.subr.bf16.mxu0 0
      %3869 = vmatpush1.bf16.msra.mxu0 %v3050
      %3870 = vmatprep.subr.bf16.mxu0 0
      %3871 = vmatpush1.bf16.msra.mxu0 %v3053
      %3872 = vmatprep.subr.bf16.mxu0 0
      %3873 = vmatpush1.bf16.msra.mxu0 %v3056
      %3874 = vmatprep.subr.bf16.mxu0 0
      %3875 = vmatpush1.bf16.msra.mxu0 %v3059
      %3876 = vmatprep.subr.bf16.mxu0 0
      %3877 = vmatpush1.bf16.msra.mxu0 %v3062
      %3878 = vmatprep.subr.bf16.mxu0 0
      %3879 = vmatpush1.bf16.msra.mxu0 %v3065
      %3880 = vmatprep.subr.bf16.mxu0 0
      %3881 = vmatpush1.bf16.msra.mxu0 %v3068
      %3882 = vmatprep.subr.bf16.mxu0 0
      %3883 = vmatpush1.bf16.msra.mxu0 %v3071
      %3884 = vmatprep.subr.bf16.mxu0 0
      %3885 = vmatpush1.bf16.msra.mxu0 0
      %3886 = vmatprep.subr.bf16.mxu0 0
      %3887 = vmatpush1.bf16.msra.mxu0 0
      %3888 = vmatprep.subr.bf16.mxu0 0
      %3889 = vmatpush1.bf16.msra.mxu0 0
      %3890 = vmatprep.subr.bf16.mxu0 0
      %3891 = vmatpush1.bf16.msra.mxu0 0
      %3892 = vmatprep.subr.bf16.mxu0 0
      %3893 = vmatpush1.bf16.msra.mxu0 0
      %3894 = vmatprep.subr.bf16.mxu0 0
      %3895 = vmatpush1.bf16.msra.mxu0 0
      %3896 = vmatprep.mubr.bf16.mxu0 %v3104
      %3897 = vmatmul.mubr.bf16.gmra.mrb[0].mxu0 %v2790
      %v3898 = vpop.f32.mrb[0].mxu0
      %v3899 = vadd.f32 0.0, %v3898
      %v3900 = vpop.f32.mrb[0].mxu0
      %v3901 = vpop.f32.mrb[0].mxu0
      %v3902 = vadd.f32 0.0, %v3901
      %v3903 = vpop.f32.mrb[0].mxu0
      %3904 = vmatprep.mubr.bf16.mxu0 %v3107
      %3905 = vmatmul.mubr.bf16.gmra.mrb[0].mxu0 %v2792
      %v3906 = vpop.f32.mrb[0].mxu0
      %v3907 = vadd.f32 0.0, %v3906
      %v3908 = vpop.f32.mrb[0].mxu0
      %v3909 = vpop.f32.mrb[0].mxu0
      %v3910 = vadd.f32 0.0, %v3909
      %v3911 = vpop.f32.mrb[0].mxu0
      %3912 = vmatprep.mubr.bf16.mxu0 %v3110
      %3913 = vmatmul.mubr.bf16.gmra.mrb[0].mxu0 %v2794
      %v3914 = vpop.f32.mrb[0].mxu0
      %v3915 = vadd.f32 0.0, %v3914
      %v3916 = vpop.f32.mrb[0].mxu0
      %v3917 = vpop.f32.mrb[0].mxu0
      %v3918 = vadd.f32 0.0, %v3917
      %v3919 = vpop.f32.mrb[0].mxu0
      %3920 = vmatprep.mubr.bf16.mxu0 %v3113
      %3921 = vmatmul.mubr.bf16.gmra.mrb[0].mxu0 %v2796
      %v3922 = vpop.f32.mrb[0].mxu0
      %v3923 = vadd.f32 0.0, %v3922
      %v3924 = vpop.f32.mrb[0].mxu0
      %v3925 = vpop.f32.mrb[0].mxu0
      %v3926 = vadd.f32 0.0, %v3925
      %v3927 = vpop.f32.mrb[0].mxu0
      %3928 = vmatprep.mubr.bf16.mxu0 %v3116
      %3929 = vmatmul.mubr.bf16.gmra.mrb[0].mxu0 %v2798
      %v3930 = vpop.f32.mrb[0].mxu0
      %v3931 = vadd.f32 0.0, %v3930
      %v3932 = vpop.f32.mrb[0].mxu0
      %v3933 = vpop.f32.mrb[0].mxu0
      %v3934 = vadd.f32 0.0, %v3933
      %v3935 = vpop.f32.mrb[0].mxu0
      %3936 = vmatprep.mubr.bf16.mxu0 %v3119
      %3937 = vmatmul.mubr.bf16.gmra.mrb[0].mxu0 %v2800
      %v3938 = vpop.f32.mrb[0].mxu0
      %v3939 = vadd.f32 0.0, %v3938
      %v3940 = vpop.f32.mrb[0].mxu0
      %v3941 = vpop.f32.mrb[0].mxu0
      %v3942 = vadd.f32 0.0, %v3941
      %v3943 = vpop.f32.mrb[0].mxu0
      %3944 = vmatprep.mubr.bf16.mxu0 %v3122
      %3945 = vmatmul.mubr.bf16.gmra.mrb[0].mxu0 %v2802
      %v3946 = vpop.f32.mrb[0].mxu0
      %v3947 = vadd.f32 0.0, %v3946
      %v3948 = vpop.f32.mrb[0].mxu0
      %v3949 = vpop.f32.mrb[0].mxu0
      %v3950 = vadd.f32 0.0, %v3949
      %v3951 = vpop.f32.mrb[0].mxu0
      %3952 = vmatprep.mubr.bf16.mxu0 %v3125
      %3953 = vmatmul.mubr.bf16.gmra.mrb[0].mxu0 %v2804
      %v3954 = vpop.f32.mrb[0].mxu0
      %v3955 = vadd.f32 0.0, %v3954
      %v3956 = vpop.f32.mrb[0].mxu0
      %v3957 = vpop.f32.mrb[0].mxu0
      %v3958 = vadd.f32 0.0, %v3957
      %v3959 = vpop.f32.mrb[0].mxu0
      %3960 = vmatprep.mubr.bf16.mxu0 %v3128
      %3961 = vmatmul.mubr.bf16.gmra.mrb[0].mxu0 %v2806
      %v3962 = vpop.f32.mrb[0].mxu0
      %v3963 = vadd.f32 0.0, %v3962
      %v3964 = vpop.f32.mrb[0].mxu0
      %v3965 = vpop.f32.mrb[0].mxu0
      %v3966 = vadd.f32 0.0, %v3965
      %v3967 = vpop.f32.mrb[0].mxu0
      %3968 = vmatprep.mubr.bf16.mxu0 %v3131
      %3969 = vmatmul.mubr.bf16.gmra.mrb[0].mxu0 %v2808
      %v3970 = vpop.f32.mrb[0].mxu0
      %v3971 = vadd.f32 0.0, %v3970
      %v3972 = vpop.f32.mrb[0].mxu0
      %v3973 = vpop.f32.mrb[0].mxu0
      %v3974 = vadd.f32 0.0, %v3973
      %v3975 = vpop.f32.mrb[0].mxu0
      %3976 = vmatprep.mubr.bf16.mxu0 %v3134
      %3977 = vmatmul.mubr.bf16.gmra.mrb[0].mxu0 %v2810
      %v3978 = vpop.f32.mrb[0].mxu0
      %v3979 = vadd.f32 0.0, %v3978
      %v3980 = vpop.f32.mrb[0].mxu0
      %v3981 = vpop.f32.mrb[0].mxu0
      %v3982 = vadd.f32 0.0, %v3981
      %v3983 = vpop.f32.mrb[0].mxu0
      %3984 = vmatprep.mubr.bf16.mxu0 %v3137
      %3985 = vmatmul.mubr.bf16.gmra.mrb[0].mxu0 %v2812
      %v3986 = vpop.f32.mrb[0].mxu0
      %v3987 = vadd.f32 0.0, %v3986
      %v3988 = vpop.f32.mrb[0].mxu0
      %v3989 = vpop.f32.mrb[0].mxu0
      %v3990 = vadd.f32 0.0, %v3989
      %v3991 = vpop.f32.mrb[0].mxu0
      %3992 = vmatprep.mubr.bf16.mxu0 %v3140
      %3993 = vmatmul.mubr.bf16.gmra.mrb[0].mxu0 %v2814
      %v3994 = vpop.f32.mrb[0].mxu0
      %v3995 = vadd.f32 0.0, %v3994
      %v3996 = vpop.f32.mrb[0].mxu0
      %v3997 = vpop.f32.mrb[0].mxu0
      %v3998 = vadd.f32 0.0, %v3997
      %v3999 = vpop.f32.mrb[0].mxu0
      %4000 = vmatprep.mubr.bf16.mxu0 %v3143
      %4001 = vmatmul.mubr.bf16.gmra.mrb[0].mxu0 %v2816
      %v4002 = vpop.f32.mrb[0].mxu0
      %v4003 = vadd.f32 0.0, %v4002
      %v4004 = vpop.f32.mrb[0].mxu0
      %v4005 = vpop.f32.mrb[0].mxu0
      %v4006 = vadd.f32 0.0, %v4005
      %v4007 = vpop.f32.mrb[0].mxu0
      %4008 = vmatprep.mubr.bf16.mxu0 %v3146
      %4009 = vmatmul.mubr.bf16.gmra.mrb[0].mxu0 %v2818
      %v4010 = vpop.f32.mrb[0].mxu0
      %v4011 = vadd.f32 0.0, %v4010
      %v4012 = vpop.f32.mrb[0].mxu0
      %v4013 = vpop.f32.mrb[0].mxu0
      %v4014 = vadd.f32 0.0, %v4013
      %v4015 = vpop.f32.mrb[0].mxu0
      %4016 = vmatprep.mubr.bf16.mxu0 %v3149
      %4017 = vmatmul.mubr.bf16.gmra.mrb[0].mxu0 %v2820
      %v4018 = vpop.f32.mrb[0].mxu0
      %v4019 = vadd.f32 0.0, %v4018
      %v4020 = vpop.f32.mrb[0].mxu0
      %v4021 = vpop.f32.mrb[0].mxu0
      %v4022 = vadd.f32 0.0, %v4021
      %v4023 = vpop.f32.mrb[0].mxu0
      %4024 = vmatprep.mubr.bf16.mxu0 %v3152
      %4025 = vmatmul.mubr.bf16.gmra.mrb[0].mxu0 %v2822
      %v4026 = vpop.f32.mrb[0].mxu0
      %v4027 = vadd.f32 0.0, %v4026
      %v4028 = vpop.f32.mrb[0].mxu0
      %v4029 = vpop.f32.mrb[0].mxu0
      %v4030 = vadd.f32 0.0, %v4029
      %v4031 = vpop.f32.mrb[0].mxu0
      %4032 = vmatprep.mubr.bf16.mxu0 %v3155
      %4033 = vmatmul.mubr.bf16.gmra.mrb[0].mxu0 %v2824
      %v4034 = vpop.f32.mrb[0].mxu0
      %v4035 = vadd.f32 0.0, %v4034
      %v4036 = vpop.f32.mrb[0].mxu0
      %v4037 = vpop.f32.mrb[0].mxu0
      %v4038 = vadd.f32 0.0, %v4037
      %v4039 = vpop.f32.mrb[0].mxu0
      %4040 = vmatprep.mubr.bf16.mxu0 %v3158
      %4041 = vmatmul.mubr.bf16.gmra.mrb[0].mxu0 %v2826
      %v4042 = vpop.f32.mrb[0].mxu0
      %v4043 = vadd.f32 0.0, %v4042
      %v4044 = vpop.f32.mrb[0].mxu0
      %v4045 = vpop.f32.mrb[0].mxu0
      %v4046 = vadd.f32 0.0, %v4045
      %v4047 = vpop.f32.mrb[0].mxu0
      %4048 = vmatprep.mubr.bf16.mxu0 %v3161
      %4049 = vmatmul.mubr.bf16.gmra.mrb[0].mxu0 %v2828
      %v4050 = vpop.f32.mrb[0].mxu0
      %v4051 = vadd.f32 0.0, %v4050
      %v4052 = vpop.f32.mrb[0].mxu0
      %v4053 = vpop.f32.mrb[0].mxu0
      %v4054 = vadd.f32 0.0, %v4053
      %v4055 = vpop.f32.mrb[0].mxu0
      %4056 = vmatprep.mubr.bf16.mxu0 %v3164
      %4057 = vmatmul.mubr.bf16.gmra.mrb[0].mxu0 %v2830
      %v4058 = vpop.f32.mrb[0].mxu0
      %v4059 = vadd.f32 0.0, %v4058
      %v4060 = vpop.f32.mrb[0].mxu0
      %v4061 = vpop.f32.mrb[0].mxu0
      %v4062 = vadd.f32 0.0, %v4061
      %v4063 = vpop.f32.mrb[0].mxu0
      %4064 = vmatprep.mubr.bf16.mxu0 %v3167
      %4065 = vmatmul.mubr.bf16.gmra.mrb[0].mxu0 %v2832
      %v4066 = vpop.f32.mrb[0].mxu0
      %v4067 = vadd.f32 0.0, %v4066
      %v4068 = vpop.f32.mrb[0].mxu0
      %v4069 = vpop.f32.mrb[0].mxu0
      %v4070 = vadd.f32 0.0, %v4069
      %v4071 = vpop.f32.mrb[0].mxu0
      %4072 = vmatprep.mubr.bf16.mxu0 %v3170
      %4073 = vmatmul.mubr.bf16.gmra.mrb[0].mxu0 %v2834
      %v4074 = vpop.f32.mrb[0].mxu0
      %v4075 = vadd.f32 0.0, %v4074
      %v4076 = vpop.f32.mrb[0].mxu0
      %v4077 = vpop.f32.mrb[0].mxu0
      %v4078 = vadd.f32 0.0, %v4077
      %v4079 = vpop.f32.mrb[0].mxu0
      %4080 = vmatprep.mubr.bf16.mxu0 %v3173
      %4081 = vmatmul.mubr.bf16.gmra.mrb[0].mxu0 %v2836
      %v4082 = vpop.f32.mrb[0].mxu0
      %v4083 = vadd.f32 0.0, %v4082
      %v4084 = vpop.f32.mrb[0].mxu0
      %v4085 = vpop.f32.mrb[0].mxu0
      %v4086 = vadd.f32 0.0, %v4085
      %v4087 = vpop.f32.mrb[0].mxu0
      %4088 = vmatprep.mubr.bf16.mxu0 %v3176
      %4089 = vmatmul.mubr.bf16.gmra.mrb[0].mxu0 %v2838
      %v4090 = vpop.f32.mrb[0].mxu0
      %v4091 = vadd.f32 0.0, %v4090
      %v4092 = vpop.f32.mrb[0].mxu0
      %v4093 = vpop.f32.mrb[0].mxu0
      %v4094 = vadd.f32 0.0, %v4093
      %v4095 = vpop.f32.mrb[0].mxu0
      %4096 = vmatprep.mubr.bf16.mxu0 %v3179
      %4097 = vmatmul.mubr.bf16.gmra.mrb[0].mxu0 %v2840
      %v4098 = vpop.f32.mrb[0].mxu0
      %v4099 = vadd.f32 0.0, %v4098
      %v4100 = vpop.f32.mrb[0].mxu0
      %v4101 = vpop.f32.mrb[0].mxu0
      %v4102 = vadd.f32 0.0, %v4101
      %v4103 = vpop.f32.mrb[0].mxu0
      %4104 = vmatprep.mubr.bf16.mxu0 %v3182
      %4105 = vmatmul.mubr.bf16.gmra.mrb[0].mxu0 %v2842
      %v4106 = vpop.f32.mrb[0].mxu0
      %v4107 = vadd.f32 0.0, %v4106
      %v4108 = vpop.f32.mrb[0].mxu0
      %v4109 = vpop.f32.mrb[0].mxu0
      %v4110 = vadd.f32 0.0, %v4109
      %v4111 = vpop.f32.mrb[0].mxu0
      %4112 = vmatprep.mubr.bf16.mxu0 %v3185
      %4113 = vmatmul.mubr.bf16.gmra.mrb[0].mxu0 %v2844
      %v4114 = vpop.f32.mrb[0].mxu0
      %v4115 = vadd.f32 0.0, %v4114
      %v4116 = vpop.f32.mrb[0].mxu0
      %v4117 = vpop.f32.mrb[0].mxu0
      %v4118 = vadd.f32 0.0, %v4117
      %v4119 = vpop.f32.mrb[0].mxu0
      %4120 = vmatprep.mubr.bf16.mxu0 %v3188
      %4121 = vmatmul.mubr.bf16.gmra.mrb[0].mxu0 %v2846
      %v4122 = vpop.f32.mrb[0].mxu0
      %v4123 = vadd.f32 0.0, %v4122
      %v4124 = vpop.f32.mrb[0].mxu0
      %v4125 = vpop.f32.mrb[0].mxu0
      %v4126 = vadd.f32 0.0, %v4125
      %v4127 = vpop.f32.mrb[0].mxu0
      %4128 = vmatprep.mubr.bf16.mxu0 %v3191
      %4129 = vmatmul.mubr.bf16.gmra.mrb[0].mxu0 %v2848
      %v4130 = vpop.f32.mrb[0].mxu0
      %v4131 = vadd.f32 0.0, %v4130
      %v4132 = vpop.f32.mrb[0].mxu0
      %v4133 = vpop.f32.mrb[0].mxu0
      %v4134 = vadd.f32 0.0, %v4133
      %v4135 = vpop.f32.mrb[0].mxu0
      %4136 = vmatprep.mubr.bf16.mxu0 %v3194
      %4137 = vmatmul.mubr.bf16.gmra.mrb[0].mxu0 %v2850
      %v4138 = vpop.f32.mrb[0].mxu0
      %v4139 = vadd.f32 0.0, %v4138
      %v4140 = vpop.f32.mrb[0].mxu0
      %v4141 = vpop.f32.mrb[0].mxu0
      %v4142 = vadd.f32 0.0, %v4141
      %v4143 = vpop.f32.mrb[0].mxu0
      %4144 = vmatprep.mubr.bf16.mxu0 %v3197
      %4145 = vmatmul.mubr.bf16.gmra.mrb[0].mxu0 %v2852
      %v4146 = vpop.f32.mrb[0].mxu0
      %v4147 = vadd.f32 0.0, %v4146
      %v4148 = vpop.f32.mrb[0].mxu0
      %v4149 = vpop.f32.mrb[0].mxu0
      %v4150 = vadd.f32 0.0, %v4149
      %v4151 = vpop.f32.mrb[0].mxu0
      %4152 = vmatprep.mubr.bf16.mxu0 %v3200
      %4153 = vmatmul.mubr.bf16.gmra.mrb[0].mxu0 %v2854
      %v4154 = vpop.f32.mrb[0].mxu0
      %v4155 = vadd.f32 0.0, %v4154
      %v4156 = vpop.f32.mrb[0].mxu0
      %v4157 = vpop.f32.mrb[0].mxu0
      %v4158 = vadd.f32 0.0, %v4157
      %v4159 = vpop.f32.mrb[0].mxu0
      %4160 = vmatprep.mubr.bf16.mxu0 %v3203
      %4161 = vmatmul.mubr.bf16.gmra.mrb[0].mxu0 %v2856
      %v4162 = vpop.f32.mrb[0].mxu0
      %v4163 = vadd.f32 0.0, %v4162
      %v4164 = vpop.f32.mrb[0].mxu0
      %v4165 = vpop.f32.mrb[0].mxu0
      %v4166 = vadd.f32 0.0, %v4165
      %v4167 = vpop.f32.mrb[0].mxu0
      %4168 = vmatprep.mubr.bf16.mxu0 %v3206
      %4169 = vmatmul.mubr.bf16.gmra.mrb[0].mxu0 %v2858
      %v4170 = vpop.f32.mrb[0].mxu0
      %v4171 = vadd.f32 0.0, %v4170
      %v4172 = vpop.f32.mrb[0].mxu0
      %v4173 = vpop.f32.mrb[0].mxu0
      %v4174 = vadd.f32 0.0, %v4173
      %v4175 = vpop.f32.mrb[0].mxu0
      %4176 = vmatprep.mubr.bf16.mxu0 %v3209
      %4177 = vmatmul.mubr.bf16.gmra.mrb[0].mxu0 %v2860
      %v4178 = vpop.f32.mrb[0].mxu0
      %v4179 = vadd.f32 0.0, %v4178
      %v4180 = vpop.f32.mrb[0].mxu0
      %v4181 = vpop.f32.mrb[0].mxu0
      %v4182 = vadd.f32 0.0, %v4181
      %v4183 = vpop.f32.mrb[0].mxu0
      %4184 = vmatprep.mubr.bf16.mxu0 %v3212
      %4185 = vmatmul.mubr.bf16.gmra.mrb[0].mxu0 %v2862
      %v4186 = vpop.f32.mrb[0].mxu0
      %v4187 = vadd.f32 0.0, %v4186
      %v4188 = vpop.f32.mrb[0].mxu0
      %v4189 = vpop.f32.mrb[0].mxu0
      %v4190 = vadd.f32 0.0, %v4189
      %v4191 = vpop.f32.mrb[0].mxu0
      %4192 = vmatprep.mubr.bf16.mxu0 %v3215
      %4193 = vmatmul.mubr.bf16.gmra.mrb[0].mxu0 %v2864
      %v4194 = vpop.f32.mrb[0].mxu0
      %v4195 = vadd.f32 0.0, %v4194
      %v4196 = vpop.f32.mrb[0].mxu0
      %v4197 = vpop.f32.mrb[0].mxu0
      %v4198 = vadd.f32 0.0, %v4197
      %v4199 = vpop.f32.mrb[0].mxu0
      %4200 = vmatprep.mubr.bf16.mxu0 %v3218
      %4201 = vmatmul.mubr.bf16.gmra.mrb[0].mxu0 %v2866
      %v4202 = vpop.f32.mrb[0].mxu0
      %v4203 = vadd.f32 0.0, %v4202
      %v4204 = vpop.f32.mrb[0].mxu0
      %v4205 = vpop.f32.mrb[0].mxu0
      %v4206 = vadd.f32 0.0, %v4205
      %v4207 = vpop.f32.mrb[0].mxu0
      %4208 = vmatprep.mubr.bf16.mxu0 %v3221
      %4209 = vmatmul.mubr.bf16.gmra.mrb[0].mxu0 %v2868
      %v4210 = vpop.f32.mrb[0].mxu0
      %v4211 = vadd.f32 0.0, %v4210
      %v4212 = vpop.f32.mrb[0].mxu0
      %v4213 = vpop.f32.mrb[0].mxu0
      %v4214 = vadd.f32 0.0, %v4213
      %v4215 = vpop.f32.mrb[0].mxu0
      %4216 = vmatprep.mubr.bf16.mxu0 %v3224
      %4217 = vmatmul.mubr.bf16.gmra.mrb[0].mxu0 %v2870
      %v4218 = vpop.f32.mrb[0].mxu0
      %v4219 = vadd.f32 0.0, %v4218
      %v4220 = vpop.f32.mrb[0].mxu0
      %v4221 = vpop.f32.mrb[0].mxu0
      %v4222 = vadd.f32 0.0, %v4221
      %v4223 = vpop.f32.mrb[0].mxu0
      %4224 = vmatprep.mubr.bf16.mxu0 %v3227
      %4225 = vmatmul.mubr.bf16.gmra.mrb[0].mxu0 %v2872
      %v4226 = vpop.f32.mrb[0].mxu0
      %v4227 = vadd.f32 0.0, %v4226
      %v4228 = vpop.f32.mrb[0].mxu0
      %v4229 = vpop.f32.mrb[0].mxu0
      %v4230 = vadd.f32 0.0, %v4229
      %v4231 = vpop.f32.mrb[0].mxu0
      %4232 = vmatprep.mubr.bf16.mxu0 %v3230
      %4233 = vmatmul.mubr.bf16.gmra.mrb[0].mxu0 %v2874
      %v4234 = vpop.f32.mrb[0].mxu0
      %v4235 = vadd.f32 0.0, %v4234
      %v4236 = vpop.f32.mrb[0].mxu0
      %v4237 = vpop.f32.mrb[0].mxu0
      %v4238 = vadd.f32 0.0, %v4237
      %v4239 = vpop.f32.mrb[0].mxu0
      %4240 = vmatprep.mubr.bf16.mxu0 %v3233
      %4241 = vmatmul.mubr.bf16.gmra.mrb[0].mxu0 %v2876
      %v4242 = vpop.f32.mrb[0].mxu0
      %v4243 = vadd.f32 0.0, %v4242
      %v4244 = vpop.f32.mrb[0].mxu0
      %v4245 = vpop.f32.mrb[0].mxu0
      %v4246 = vadd.f32 0.0, %v4245
      %v4247 = vpop.f32.mrb[0].mxu0
      %4248 = vmatprep.mubr.bf16.mxu0 %v3236
      %4249 = vmatmul.mubr.bf16.gmra.mrb[0].mxu0 %v2878
      %v4250 = vpop.f32.mrb[0].mxu0
      %v4251 = vadd.f32 0.0, %v4250
      %v4252 = vpop.f32.mrb[0].mxu0
      %v4253 = vpop.f32.mrb[0].mxu0
      %v4254 = vadd.f32 0.0, %v4253
      %v4255 = vpop.f32.mrb[0].mxu0
      %4256 = vmatprep.mubr.bf16.mxu0 %v3239
      %4257 = vmatmul.mubr.bf16.gmra.mrb[0].mxu0 %v2880
      %v4258 = vpop.f32.mrb[0].mxu0
      %v4259 = vadd.f32 0.0, %v4258
      %v4260 = vpop.f32.mrb[0].mxu0
      %v4261 = vpop.f32.mrb[0].mxu0
      %v4262 = vadd.f32 0.0, %v4261
      %v4263 = vpop.f32.mrb[0].mxu0
      %4264 = vmatprep.mubr.bf16.mxu0 %v3242
      %4265 = vmatmul.mubr.bf16.gmra.mrb[0].mxu0 %v2882
      %v4266 = vpop.f32.mrb[0].mxu0
      %v4267 = vadd.f32 0.0, %v4266
      %v4268 = vpop.f32.mrb[0].mxu0
      %v4269 = vpop.f32.mrb[0].mxu0
      %v4270 = vadd.f32 0.0, %v4269
      %v4271 = vpop.f32.mrb[0].mxu0
      %4272 = vmatprep.mubr.bf16.mxu0 %v3245
      %4273 = vmatmul.mubr.bf16.gmra.mrb[0].mxu0 %v2884
      %v4274 = vpop.f32.mrb[0].mxu0
      %v4275 = vadd.f32 0.0, %v4274
      %v4276 = vpop.f32.mrb[0].mxu0
      %v4277 = vpop.f32.mrb[0].mxu0
      %v4278 = vadd.f32 0.0, %v4277
      %v4279 = vpop.f32.mrb[0].mxu0
      %4280 = vmatprep.mubr.bf16.mxu0 %v3248
      %4281 = vmatmul.mubr.bf16.gmra.mrb[0].mxu0 %v2886
      %v4282 = vpop.f32.mrb[0].mxu0
      %v4283 = vadd.f32 0.0, %v4282
      %v4284 = vpop.f32.mrb[0].mxu0
      %v4285 = vpop.f32.mrb[0].mxu0
      %v4286 = vadd.f32 0.0, %v4285
      %v4287 = vpop.f32.mrb[0].mxu0
      %4288 = vmatprep.mubr.bf16.mxu0 %v3251
      %4289 = vmatmul.mubr.bf16.gmra.mrb[0].mxu0 %v2888
      %v4290 = vpop.f32.mrb[0].mxu0
      %v4291 = vadd.f32 0.0, %v4290
      %v4292 = vpop.f32.mrb[0].mxu0
      %v4293 = vpop.f32.mrb[0].mxu0
      %v4294 = vadd.f32 0.0, %v4293
      %v4295 = vpop.f32.mrb[0].mxu0
      %4296 = vmatprep.mubr.bf16.mxu0 %v3254
      %4297 = vmatmul.mubr.bf16.gmra.mrb[0].mxu0 %v2890
      %v4298 = vpop.f32.mrb[0].mxu0
      %v4299 = vadd.f32 0.0, %v4298
      %v4300 = vpop.f32.mrb[0].mxu0
      %v4301 = vpop.f32.mrb[0].mxu0
      %v4302 = vadd.f32 0.0, %v4301
      %v4303 = vpop.f32.mrb[0].mxu0
      %4304 = vmatprep.mubr.bf16.mxu0 %v3257
      %4305 = vmatmul.mubr.bf16.gmra.mrb[0].mxu0 %v2892
      %v4306 = vpop.f32.mrb[0].mxu0
      %v4307 = vadd.f32 0.0, %v4306
      %v4308 = vpop.f32.mrb[0].mxu0
      %v4309 = vpop.f32.mrb[0].mxu0
      %v4310 = vadd.f32 0.0, %v4309
      %v4311 = vpop.f32.mrb[0].mxu0
      %4312 = vmatprep.mubr.bf16.mxu0 %v3260
      %4313 = vmatmul.mubr.bf16.gmra.mrb[0].mxu0 %v2894
      %v4314 = vpop.f32.mrb[0].mxu0
      %v4315 = vadd.f32 0.0, %v4314
      %v4316 = vpop.f32.mrb[0].mxu0
      %v4317 = vpop.f32.mrb[0].mxu0
      %v4318 = vadd.f32 0.0, %v4317
      %v4319 = vpop.f32.mrb[0].mxu0
      %4320 = vmatprep.mubr.bf16.mxu0 %v3263
      %4321 = vmatmul.mubr.bf16.gmra.mrb[0].mxu0 %v2896
      %v4322 = vpop.f32.mrb[0].mxu0
      %v4323 = vadd.f32 0.0, %v4322
      %v4324 = vpop.f32.mrb[0].mxu0
      %v4325 = vpop.f32.mrb[0].mxu0
      %v4326 = vadd.f32 0.0, %v4325
      %v4327 = vpop.f32.mrb[0].mxu0
      %4328 = vmatprep.mubr.bf16.mxu0 %v3266
      %4329 = vmatmul.mubr.bf16.gmra.mrb[0].mxu0 %v2898
      %v4330 = vpop.f32.mrb[0].mxu0
      %v4331 = vadd.f32 0.0, %v4330
      %v4332 = vpop.f32.mrb[0].mxu0
      %v4333 = vpop.f32.mrb[0].mxu0
      %v4334 = vadd.f32 0.0, %v4333
      %v4335 = vpop.f32.mrb[0].mxu0
      %4336 = vmatprep.mubr.bf16.mxu0 %v3269
      %4337 = vmatmul.mubr.bf16.gmra.mrb[0].mxu0 %v2900
      %v4338 = vpop.f32.mrb[0].mxu0
      %v4339 = vadd.f32 0.0, %v4338
      %v4340 = vpop.f32.mrb[0].mxu0
      %v4341 = vpop.f32.mrb[0].mxu0
      %v4342 = vadd.f32 0.0, %v4341
      %v4343 = vpop.f32.mrb[0].mxu0
      %4344 = vdwg.mxu0
      %4457 = vrot.lane.b32.xlu0 %v3306, 64
      %v4458 = vpop.permute.xlu0 %4457
      %4459 = vrot.lane.b32.xlu0 %v3310, 64
      %v4460 = vpop.permute.xlu0 %4459
      %4461 = vrot.lane.b32.xlu0 %v3316, 64
      %v4462 = vpop.permute.xlu0 %4461
      %4463 = vrot.lane.b32.xlu0 %v3320, 64
      %v4464 = vpop.permute.xlu0 %4463
      %4465 = vrot.lane.b32.xlu0 %v3326, 64
      %v4466 = vpop.permute.xlu0 %4465
      %4467 = vrot.lane.b32.xlu0 %v3330, 64
      %v4468 = vpop.permute.xlu0 %4467
      %4469 = vrot.lane.b32.xlu0 %v3336, 64
      %v4470 = vpop.permute.xlu0 %4469
      %4471 = vrot.lane.b32.xlu0 %v3340, 64
      %v4472 = vpop.permute.xlu0 %4471
      %4473 = vrot.lane.b32.xlu0 %v3346, 64
      %v4474 = vpop.permute.xlu0 %4473
      %4475 = vrot.lane.b32.xlu0 %v3350, 64
      %v4476 = vpop.permute.xlu0 %4475
      %4477 = vrot.lane.b32.xlu0 %v3356, 64
      %v4478 = vpop.permute.xlu0 %4477
      %4479 = vrot.lane.b32.xlu0 %v3360, 64
      %v4480 = vpop.permute.xlu0 %4479
      %4481 = vrot.lane.b32.xlu0 %v3366, 64
      %v4482 = vpop.permute.xlu0 %4481
      %4483 = vrot.lane.b32.xlu0 %v3370, 64
      %v4484 = vpop.permute.xlu0 %4483
      %4485 = vrot.lane.b32.xlu0 %v3376, 64
      %v4486 = vpop.permute.xlu0 %4485
      %4487 = vrot.lane.b32.xlu0 %v3380, 64
      %v4488 = vpop.permute.xlu0 %4487
      %4489 = vrot.lane.b32.xlu0 %v3386, 64
      %v4490 = vpop.permute.xlu0 %4489
      %4491 = vrot.lane.b32.xlu0 %v3390, 64
      %v4492 = vpop.permute.xlu0 %4491
      %4493 = vrot.lane.b32.xlu0 %v3396, 64
      %v4494 = vpop.permute.xlu0 %4493
      %4495 = vrot.lane.b32.xlu0 %v3400, 64
      %v4496 = vpop.permute.xlu0 %4495
      %4497 = vrot.lane.b32.xlu0 %v3406, 64
      %v4498 = vpop.permute.xlu0 %4497
      %4499 = vrot.lane.b32.xlu0 %v3410, 64
      %v4500 = vpop.permute.xlu0 %4499
      %4501 = vrot.lane.b32.xlu0 %v3416, 64
      %v4502 = vpop.permute.xlu0 %4501
      %4503 = vrot.lane.b32.xlu0 %v3420, 64
      %v4504 = vpop.permute.xlu0 %4503
      %4505 = vrot.lane.b32.xlu0 %v3426, 64
      %v4506 = vpop.permute.xlu0 %4505
      %4507 = vrot.lane.b32.xlu0 %v3430, 64
      %v4508 = vpop.permute.xlu0 %4507
      %4509 = vrot.lane.b32.xlu0 %v3436, 64
      %v4510 = vpop.permute.xlu0 %4509
      %4511 = vrot.lane.b32.xlu0 %v3440, 64
      %v4512 = vpop.permute.xlu0 %4511
      %4513 = vrot.lane.b32.xlu0 %v3446, 64
      %v4514 = vpop.permute.xlu0 %4513
      %4515 = vrot.lane.b32.xlu0 %v3450, 64
      %v4516 = vpop.permute.xlu0 %4515
      %4517 = vrot.lane.b32.xlu0 %v3456, 64
      %v4518 = vpop.permute.xlu0 %4517
      %4519 = vrot.lane.b32.xlu0 %v3460, 64
      %v4520 = vpop.permute.xlu0 %4519
      %4521 = vrot.lane.b32.xlu0 %v3466, 64
      %v4522 = vpop.permute.xlu0 %4521
      %4523 = vrot.lane.b32.xlu0 %v3470, 64
      %v4524 = vpop.permute.xlu0 %4523
      %4525 = vrot.lane.b32.xlu0 %v3476, 64
      %v4526 = vpop.permute.xlu0 %4525
      %4527 = vrot.lane.b32.xlu0 %v3480, 64
      %v4528 = vpop.permute.xlu0 %4527
      %4529 = vrot.lane.b32.xlu0 %v3486, 64
      %v4530 = vpop.permute.xlu0 %4529
      %4531 = vrot.lane.b32.xlu0 %v3490, 64
      %v4532 = vpop.permute.xlu0 %4531
      %4533 = vrot.lane.b32.xlu0 %v3496, 64
      %v4534 = vpop.permute.xlu0 %4533
      %4535 = vrot.lane.b32.xlu0 %v3500, 64
      %v4536 = vpop.permute.xlu0 %4535
      %4537 = vrot.lane.b32.xlu0 %v3506, 64
      %v4538 = vpop.permute.xlu0 %4537
      %4539 = vrot.lane.b32.xlu0 %v3510, 64
      %v4540 = vpop.permute.xlu0 %4539
      %4541 = vrot.lane.b32.xlu0 %v3516, 64
      %v4542 = vpop.permute.xlu0 %4541
      %4543 = vrot.lane.b32.xlu0 %v3520, 64
      %v4544 = vpop.permute.xlu0 %4543
      %4545 = vrot.lane.b32.xlu0 %v3526, 64
      %v4546 = vpop.permute.xlu0 %4545
      %4547 = vrot.lane.b32.xlu0 %v3530, 64
      %v4548 = vpop.permute.xlu0 %4547
      %4549 = vrot.lane.b32.xlu0 %v3536, 64
      %v4550 = vpop.permute.xlu0 %4549
      %4551 = vrot.lane.b32.xlu0 %v3540, 64
      %v4552 = vpop.permute.xlu0 %4551
      %4553 = vrot.lane.b32.xlu0 %v3546, 64
      %v4554 = vpop.permute.xlu0 %4553
      %4555 = vrot.lane.b32.xlu0 %v3550, 64
      %v4556 = vpop.permute.xlu0 %4555
      %4557 = vrot.lane.b32.xlu0 %v3556, 64
      %v4558 = vpop.permute.xlu0 %4557
      %4559 = vrot.lane.b32.xlu0 %v3560, 64
      %v4560 = vpop.permute.xlu0 %4559
      %4561 = vrot.lane.b32.xlu0 %v3566, 64
      %v4562 = vpop.permute.xlu0 %4561
      %4563 = vrot.lane.b32.xlu0 %v3570, 64
      %v4564 = vpop.permute.xlu0 %4563
      %4565 = vrot.lane.b32.xlu0 %v3576, 64
      %v4566 = vpop.permute.xlu0 %4565
      %4567 = vrot.lane.b32.xlu0 %v3580, 64
      %v4568 = vpop.permute.xlu0 %4567
      %4569 = vrot.lane.b32.xlu0 %v3586, 64
      %v4570 = vpop.permute.xlu0 %4569
      %4571 = vrot.lane.b32.xlu0 %v3590, 64
      %v4572 = vpop.permute.xlu0 %4571
      %4573 = vrot.lane.b32.xlu0 %v3596, 64
      %v4574 = vpop.permute.xlu0 %4573
      %4575 = vrot.lane.b32.xlu0 %v3600, 64
      %v4576 = vpop.permute.xlu0 %4575
      %4577 = vrot.lane.b32.xlu0 %v3606, 64
      %v4578 = vpop.permute.xlu0 %4577
      %4579 = vrot.lane.b32.xlu0 %v3610, 64
      %v4580 = vpop.permute.xlu0 %4579
      %4581 = vrot.lane.b32.xlu0 %v3616, 64
      %v4582 = vpop.permute.xlu0 %4581
      %4583 = vrot.lane.b32.xlu0 %v3620, 64
      %v4584 = vpop.permute.xlu0 %4583
      %4585 = vrot.lane.b32.xlu0 %v3626, 64
      %v4586 = vpop.permute.xlu0 %4585
      %4587 = vrot.lane.b32.xlu0 %v3630, 64
      %v4588 = vpop.permute.xlu0 %4587
      %4589 = vrot.lane.b32.xlu0 %v3636, 64
      %v4590 = vpop.permute.xlu0 %4589
      %4591 = vrot.lane.b32.xlu0 %v3640, 64
      %v4592 = vpop.permute.xlu0 %4591
      %4593 = vrot.lane.b32.xlu0 %v3646, 64
      %v4594 = vpop.permute.xlu0 %4593
      %4595 = vrot.lane.b32.xlu0 %v3650, 64
      %v4596 = vpop.permute.xlu0 %4595
      %4597 = vrot.lane.b32.xlu0 %v3656, 64
      %v4598 = vpop.permute.xlu0 %4597
      %4599 = vrot.lane.b32.xlu0 %v3660, 64
      %v4600 = vpop.permute.xlu0 %4599
      %4601 = vrot.lane.b32.xlu0 %v3666, 64
      %v4602 = vpop.permute.xlu0 %4601
      %4603 = vrot.lane.b32.xlu0 %v3670, 64
      %v4604 = vpop.permute.xlu0 %4603
      %4605 = vrot.lane.b32.xlu0 %v3676, 64
      %v4606 = vpop.permute.xlu0 %4605
      %4607 = vrot.lane.b32.xlu0 %v3680, 64
      %v4608 = vpop.permute.xlu0 %4607
      %4609 = vrot.lane.b32.xlu0 %v3686, 64
      %v4610 = vpop.permute.xlu0 %4609
      %4611 = vrot.lane.b32.xlu0 %v3690, 64
      %v4612 = vpop.permute.xlu0 %4611
      %4613 = vrot.lane.b32.xlu0 %v3696, 64
      %v4614 = vpop.permute.xlu0 %4613
      %4615 = vrot.lane.b32.xlu0 %v3700, 64
      %v4616 = vpop.permute.xlu0 %4615
      %4617 = vrot.lane.b32.xlu0 %v3706, 64
      %v4618 = vpop.permute.xlu0 %4617
      %4619 = vrot.lane.b32.xlu0 %v3710, 64
      %v4620 = vpop.permute.xlu0 %4619
      %4621 = vrot.lane.b32.xlu0 %v3716, 64
      %v4622 = vpop.permute.xlu0 %4621
      %4623 = vrot.lane.b32.xlu0 %v3720, 64
      %v4624 = vpop.permute.xlu0 %4623
      %4625 = vrot.lane.b32.xlu0 %v3726, 64
      %v4626 = vpop.permute.xlu0 %4625
      %4627 = vrot.lane.b32.xlu0 %v3730, 64
      %v4628 = vpop.permute.xlu0 %4627
      %4629 = vrot.lane.b32.xlu0 %v3736, 64
      %v4630 = vpop.permute.xlu0 %4629
      %4631 = vrot.lane.b32.xlu0 %v3740, 64
      %v4632 = vpop.permute.xlu0 %4631
      %4633 = vrot.lane.b32.xlu0 %v3746, 64
      %v4634 = vpop.permute.xlu0 %4633
      %4635 = vrot.lane.b32.xlu0 %v3750, 64
      %v4636 = vpop.permute.xlu0 %4635
      %4637 = vrot.lane.b32.xlu0 %v3756, 64
      %v4638 = vpop.permute.xlu0 %4637
      %4639 = vrot.lane.b32.xlu0 %v3760, 64
      %v4640 = vpop.permute.xlu0 %4639
      %4641 = vrot.lane.b32.xlu0 %v3766, 64
      %v4642 = vpop.permute.xlu0 %4641
      %4643 = vrot.lane.b32.xlu0 %v3770, 64
      %v4644 = vpop.permute.xlu0 %4643
      %4645 = vrot.lane.b32.xlu0 %v3776, 64
      %v4646 = vpop.permute.xlu0 %4645
      %4647 = vrot.lane.b32.xlu0 %v3780, 64
      %v4648 = vpop.permute.xlu0 %4647
      %4649 = vrot.lane.b32.xlu0 %v3786, 64
      %v4650 = vpop.permute.xlu0 %4649
      %4651 = vrot.lane.b32.xlu0 %v3790, 64
      %v4652 = vpop.permute.xlu0 %4651
      %4653 = vrot.lane.b32.xlu0 %v3796, 64
      %v4654 = vpop.permute.xlu0 %4653
      %4655 = vrot.lane.b32.xlu0 %v3800, 64
      %v4656 = vpop.permute.xlu0 %4655
      %4657 = vrot.lane.b32.xlu0 %v3806, 64
      %v4658 = vpop.permute.xlu0 %4657
      %4659 = vrot.lane.b32.xlu0 %v3810, 64
      %v4660 = vpop.permute.xlu0 %4659
      %4661 = vrot.lane.b32.xlu0 %v3816, 64
      %v4662 = vpop.permute.xlu0 %4661
      %4663 = vrot.lane.b32.xlu0 %v3820, 64
      %v4664 = vpop.permute.xlu0 %4663
      %4665 = vrot.lane.b32.xlu0 %v3826, 64
      %v4666 = vpop.permute.xlu0 %4665
      %4667 = vrot.lane.b32.xlu0 %v3830, 64
      %v4668 = vpop.permute.xlu0 %4667
      %4669 = vrot.lane.b32.xlu0 %v3836, 64
      %v4670 = vpop.permute.xlu0 %4669
      %4671 = vrot.lane.b32.xlu0 %v3840, 64
      %v4672 = vpop.permute.xlu0 %4671
      %4673 = vrot.lane.b32.xlu0 %v3846, 64
      %v4674 = vpop.permute.xlu0 %4673
      %4675 = vrot.lane.b32.xlu0 %v3850, 64
      %v4676 = vpop.permute.xlu0 %4675
      %4677 = vrot.lane.b32.xlu0 %v3856, 64
      %v4678 = vpop.permute.xlu0 %4677
      %4679 = vrot.lane.b32.xlu0 %v3860, 64
      %v4680 = vpop.permute.xlu0 %4679
      %v4793 = vrot.slane %v4458, 1
      %v4794 = vrot.slane %v4460, 1
      %v4795 = vrot.slane %v4462, 1
      %v4796 = vrot.slane %v4464, 1
      %v4797 = vrot.slane %v4466, 1
      %v4798 = vrot.slane %v4468, 1
      %v4799 = vrot.slane %v4470, 1
      %v4800 = vrot.slane %v4472, 1
      %v4801 = vrot.slane %v4474, 1
      %v4802 = vrot.slane %v4476, 1
      %v4803 = vrot.slane %v4478, 1
      %v4804 = vrot.slane %v4480, 1
      %v4805 = vrot.slane %v4482, 1
      %v4806 = vrot.slane %v4484, 1
      %v4807 = vrot.slane %v4486, 1
      %v4808 = vrot.slane %v4488, 1
      %v4809 = vrot.slane %v4490, 1
      %v4810 = vrot.slane %v4492, 1
      %v4811 = vrot.slane %v4494, 1
      %v4812 = vrot.slane %v4496, 1
      %v4813 = vrot.slane %v4498, 1
      %v4814 = vrot.slane %v4500, 1
      %v4815 = vrot.slane %v4502, 1
      %v4816 = vrot.slane %v4504, 1
      %v4817 = vrot.slane %v4506, 1
      %v4818 = vrot.slane %v4508, 1
      %v4819 = vrot.slane %v4510, 1
      %v4820 = vrot.slane %v4512, 1
      %v4821 = vrot.slane %v4514, 1
      %v4822 = vrot.slane %v4516, 1
      %v4823 = vrot.slane %v4518, 1
      %v4824 = vrot.slane %v4520, 1
      %v4825 = vrot.slane %v4522, 1
      %v4826 = vrot.slane %v4524, 1
      %v4827 = vrot.slane %v4526, 1
      %v4828 = vrot.slane %v4528, 1
      %v4829 = vrot.slane %v4530, 1
      %v4830 = vrot.slane %v4532, 1
      %v4831 = vrot.slane %v4534, 1
      %v4832 = vrot.slane %v4536, 1
      %v4833 = vrot.slane %v4538, 1
      %v4834 = vrot.slane %v4540, 1
      %v4835 = vrot.slane %v4542, 1
      %v4836 = vrot.slane %v4544, 1
      %v4837 = vrot.slane %v4546, 1
      %v4838 = vrot.slane %v4548, 1
      %v4839 = vrot.slane %v4550, 1
      %v4840 = vrot.slane %v4552, 1
      %v4841 = vrot.slane %v4554, 1
      %v4842 = vrot.slane %v4556, 1
      %v4843 = vrot.slane %v4558, 1
      %v4844 = vrot.slane %v4560, 1
      %v4845 = vrot.slane %v4562, 1
      %v4846 = vrot.slane %v4564, 1
      %v4847 = vrot.slane %v4566, 1
      %v4848 = vrot.slane %v4568, 1
      %v4849 = vrot.slane %v4570, 1
      %v4850 = vrot.slane %v4572, 1
      %v4851 = vrot.slane %v4574, 1
      %v4852 = vrot.slane %v4576, 1
      %v4853 = vrot.slane %v4578, 1
      %v4854 = vrot.slane %v4580, 1
      %v4855 = vrot.slane %v4582, 1
      %v4856 = vrot.slane %v4584, 1
      %v4857 = vrot.slane %v4586, 1
      %v4858 = vrot.slane %v4588, 1
      %v4859 = vrot.slane %v4590, 1
      %v4860 = vrot.slane %v4592, 1
      %v4861 = vrot.slane %v4594, 1
      %v4862 = vrot.slane %v4596, 1
      %v4863 = vrot.slane %v4598, 1
      %v4864 = vrot.slane %v4600, 1
      %v4865 = vrot.slane %v4602, 1
      %v4866 = vrot.slane %v4604, 1
      %v4867 = vrot.slane %v4606, 1
      %v4868 = vrot.slane %v4608, 1
      %v4869 = vrot.slane %v4610, 1
      %v4870 = vrot.slane %v4612, 1
      %v4871 = vrot.slane %v4614, 1
      %v4872 = vrot.slane %v4616, 1
      %v4873 = vrot.slane %v4618, 1
      %v4874 = vrot.slane %v4620, 1
      %v4875 = vrot.slane %v4622, 1
      %v4876 = vrot.slane %v4624, 1
      %v4877 = vrot.slane %v4626, 1
      %v4878 = vrot.slane %v4628, 1
      %v4879 = vrot.slane %v4630, 1
      %v4880 = vrot.slane %v4632, 1
      %v4881 = vrot.slane %v4634, 1
      %v4882 = vrot.slane %v4636, 1
      %v4883 = vrot.slane %v4638, 1
      %v4884 = vrot.slane %v4640, 1
      %v4885 = vrot.slane %v4642, 1
      %v4886 = vrot.slane %v4644, 1
      %v4887 = vrot.slane %v4646, 1
      %v4888 = vrot.slane %v4648, 1
      %v4889 = vrot.slane %v4650, 1
      %v4890 = vrot.slane %v4652, 1
      %v4891 = vrot.slane %v4654, 1
      %v4892 = vrot.slane %v4656, 1
      %v4893 = vrot.slane %v4658, 1
      %v4894 = vrot.slane %v4660, 1
      %v4895 = vrot.slane %v4662, 1
      %v4896 = vrot.slane %v4664, 1
      %v4897 = vrot.slane %v4666, 1
      %v4898 = vrot.slane %v4668, 1
      %v4899 = vrot.slane %v4670, 1
      %v4900 = vrot.slane %v4672, 1
      %v4901 = vrot.slane %v4674, 1
      %v4902 = vrot.slane %v4676, 1
      %v4903 = vrot.slane %v4678, 1
      %v4904 = vrot.slane %v4680, 1
      %v4905 = vlaneseq
      %v4906 = vshrl.u32 %v4905, 7
      %vm4907 = vcmp.lt.s32.totalorder %v4906, 7
      %v4908 = vsel %vm4907, %v4903, %v4904
      %v4909 = vsel %vm4907, %v4902, %v4903
      %v4910 = vsel %vm4907, %v4901, %v4902
      %v4911 = vsel %vm4907, %v4900, %v4901
      %v4912 = vsel %vm4907, %v4899, %v4900
      %v4913 = vsel %vm4907, %v4898, %v4899
      %v4914 = vsel %vm4907, %v4897, %v4898
      %v4915 = vsel %vm4907, %v4896, %v4897
      %v4916 = vsel %vm4907, %v4895, %v4896
      %v4917 = vsel %vm4907, %v4894, %v4895
      %v4918 = vsel %vm4907, %v4893, %v4894
      %v4919 = vsel %vm4907, %v4892, %v4893
      %v4920 = vsel %vm4907, %v4891, %v4892
      %v4921 = vsel %vm4907, %v4890, %v4891
      %v4922 = vsel %vm4907, %v4889, %v4890
      %v4923 = vsel %vm4907, %v4888, %v4889
      %v4924 = vsel %vm4907, %v4887, %v4888
      %v4925 = vsel %vm4907, %v4886, %v4887
      %v4926 = vsel %vm4907, %v4885, %v4886
      %v4927 = vsel %vm4907, %v4884, %v4885
      %v4928 = vsel %vm4907, %v4883, %v4884
      %v4929 = vsel %vm4907, %v4882, %v4883
      %v4930 = vsel %vm4907, %v4881, %v4882
      %v4931 = vsel %vm4907, %v4880, %v4881
      %v4932 = vsel %vm4907, %v4879, %v4880
      %v4933 = vsel %vm4907, %v4878, %v4879
      %v4934 = vsel %vm4907, %v4877, %v4878
      %v4935 = vsel %vm4907, %v4876, %v4877
      %v4936 = vsel %vm4907, %v4875, %v4876
      %v4937 = vsel %vm4907, %v4874, %v4875
      %v4938 = vsel %vm4907, %v4873, %v4874
      %v4939 = vsel %vm4907, %v4872, %v4873
      %v4940 = vsel %vm4907, %v4871, %v4872
      %v4941 = vsel %vm4907, %v4870, %v4871
      %v4942 = vsel %vm4907, %v4869, %v4870
      %v4943 = vsel %vm4907, %v4868, %v4869
      %v4944 = vsel %vm4907, %v4867, %v4868
      %v4945 = vsel %vm4907, %v4866, %v4867
      %v4946 = vsel %vm4907, %v4865, %v4866
      %v4947 = vsel %vm4907, %v4864, %v4865
      %v4948 = vsel %vm4907, %v4863, %v4864
      %v4949 = vsel %vm4907, %v4862, %v4863
      %v4950 = vsel %vm4907, %v4861, %v4862
      %v4951 = vsel %vm4907, %v4860, %v4861
      %v4952 = vsel %vm4907, %v4859, %v4860
      %v4953 = vsel %vm4907, %v4858, %v4859
      %v4954 = vsel %vm4907, %v4857, %v4858
      %v4955 = vsel %vm4907, %v4856, %v4857
      %v4956 = vsel %vm4907, %v4855, %v4856
      %v4957 = vsel %vm4907, %v4854, %v4855
      %v4958 = vsel %vm4907, %v4853, %v4854
      %v4959 = vsel %vm4907, %v4852, %v4853
      %v4960 = vsel %vm4907, %v4851, %v4852
      %v4961 = vsel %vm4907, %v4850, %v4851
      %v4962 = vsel %vm4907, %v4849, %v4850
      %v4963 = vsel %vm4907, %v4848, %v4849
      %v4964 = vsel %vm4907, %v4847, %v4848
      %v4965 = vsel %vm4907, %v4846, %v4847
      %v4966 = vsel %vm4907, %v4845, %v4846
      %v4967 = vsel %vm4907, %v4844, %v4845
      %v4968 = vsel %vm4907, %v4843, %v4844
      %v4969 = vsel %vm4907, %v4842, %v4843
      %v4970 = vsel %vm4907, %v4841, %v4842
      %v4971 = vsel %vm4907, %v4840, %v4841
      %v4972 = vsel %vm4907, %v4839, %v4840
      %v4973 = vsel %vm4907, %v4838, %v4839
      %v4974 = vsel %vm4907, %v4837, %v4838
      %v4975 = vsel %vm4907, %v4836, %v4837
      %v4976 = vsel %vm4907, %v4835, %v4836
      %v4977 = vsel %vm4907, %v4834, %v4835
      %v4978 = vsel %vm4907, %v4833, %v4834
      %v4979 = vsel %vm4907, %v4832, %v4833
      %v4980 = vsel %vm4907, %v4831, %v4832
      %v4981 = vsel %vm4907, %v4830, %v4831
      %v4982 = vsel %vm4907, %v4829, %v4830
      %v4983 = vsel %vm4907, %v4828, %v4829
      %v4984 = vsel %vm4907, %v4827, %v4828
      %v4985 = vsel %vm4907, %v4826, %v4827
      %v4986 = vsel %vm4907, %v4825, %v4826
      %v4987 = vsel %vm4907, %v4824, %v4825
      %v4988 = vsel %vm4907, %v4823, %v4824
      %v4989 = vsel %vm4907, %v4822, %v4823
      %v4990 = vsel %vm4907, %v4821, %v4822
      %v4991 = vsel %vm4907, %v4820, %v4821
      %v4992 = vsel %vm4907, %v4819, %v4820
      %v4993 = vsel %vm4907, %v4818, %v4819
      %v4994 = vsel %vm4907, %v4817, %v4818
      %v4995 = vsel %vm4907, %v4816, %v4817
      %v4996 = vsel %vm4907, %v4815, %v4816
      %v4997 = vsel %vm4907, %v4814, %v4815
      %v4998 = vsel %vm4907, %v4813, %v4814
      %v4999 = vsel %vm4907, %v4812, %v4813
      %v5000 = vsel %vm4907, %v4811, %v4812
      %v5001 = vsel %vm4907, %v4810, %v4811
      %v5002 = vsel %vm4907, %v4809, %v4810
      %v5003 = vsel %vm4907, %v4808, %v4809
      %v5004 = vsel %vm4907, %v4807, %v4808
      %v5005 = vsel %vm4907, %v4806, %v4807
      %v5006 = vsel %vm4907, %v4805, %v4806
      %v5007 = vsel %vm4907, %v4804, %v4805
      %v5008 = vsel %vm4907, %v4803, %v4804
      %v5009 = vsel %vm4907, %v4802, %v4803
      %v5010 = vsel %vm4907, %v4801, %v4802
      %v5011 = vsel %vm4907, %v4800, %v4801
      %v5012 = vsel %vm4907, %v4799, %v4800
      %v5013 = vsel %vm4907, %v4798, %v4799
      %v5014 = vsel %vm4907, %v4797, %v4798
      %v5015 = vsel %vm4907, %v4796, %v4797
      %v5016 = vsel %vm4907, %v4795, %v4796
      %v5017 = vsel %vm4907, %v4794, %v4795
      %v5018 = vsel %vm4907, %v4793, %v4794
      %v5019 = vsel %vm4907, %v4904, %v4793
      %v5020 = vadd.f32 %v3306, %v5018
      %v5021 = vadd.f32 %v3310, %v5017
      %v5022 = vadd.f32 %v3316, %v5016
      %v5023 = vadd.f32 %v3320, %v5015
      %v5024 = vadd.f32 %v3326, %v5014
      %v5025 = vadd.f32 %v3330, %v5013
      %v5026 = vadd.f32 %v3336, %v5012
      %v5027 = vadd.f32 %v3340, %v5011
      %v5028 = vadd.f32 %v3346, %v5010
      %v5029 = vadd.f32 %v3350, %v5009
      %v5030 = vadd.f32 %v3356, %v5008
      %v5031 = vadd.f32 %v3360, %v5007
      %v5032 = vadd.f32 %v3366, %v5006
      %v5033 = vadd.f32 %v3370, %v5005
      %v5034 = vadd.f32 %v3376, %v5004
      %v5035 = vadd.f32 %v3380, %v5003
      %v5036 = vadd.f32 %v3386, %v5002
      %v5037 = vadd.f32 %v3390, %v5001
      %v5038 = vadd.f32 %v3396, %v5000
      %v5039 = vadd.f32 %v3400, %v4999
      %v5040 = vadd.f32 %v3406, %v4998
      %v5041 = vadd.f32 %v3410, %v4997
      %v5042 = vadd.f32 %v3416, %v4996
      %v5043 = vadd.f32 %v3420, %v4995
      %v5044 = vadd.f32 %v3426, %v4994
      %v5045 = vadd.f32 %v3430, %v4993
      %v5046 = vadd.f32 %v3436, %v4992
      %v5047 = vadd.f32 %v3440, %v4991
      %v5048 = vadd.f32 %v3446, %v4990
      %v5049 = vadd.f32 %v3450, %v4989
      %v5050 = vadd.f32 %v3456, %v4988
      %v5051 = vadd.f32 %v3460, %v4987
      %v5052 = vadd.f32 %v3466, %v4986
      %v5053 = vadd.f32 %v3470, %v4985
      %v5054 = vadd.f32 %v3476, %v4984
      %v5055 = vadd.f32 %v3480, %v4983
      %v5056 = vadd.f32 %v3486, %v4982
      %v5057 = vadd.f32 %v3490, %v4981
      %v5058 = vadd.f32 %v3496, %v4980
      %v5059 = vadd.f32 %v3500, %v4979
      %v5060 = vadd.f32 %v3506, %v4978
      %v5061 = vadd.f32 %v3510, %v4977
      %v5062 = vadd.f32 %v3516, %v4976
      %v5063 = vadd.f32 %v3520, %v4975
      %v5064 = vadd.f32 %v3526, %v4974
      %v5065 = vadd.f32 %v3530, %v4973
      %v5066 = vadd.f32 %v3536, %v4972
      %v5067 = vadd.f32 %v3540, %v4971
      %v5068 = vadd.f32 %v3546, %v4970
      %v5069 = vadd.f32 %v3550, %v4969
      %v5070 = vadd.f32 %v3556, %v4968
      %v5071 = vadd.f32 %v3560, %v4967
      %v5072 = vadd.f32 %v3566, %v4966
      %v5073 = vadd.f32 %v3570, %v4965
      %v5074 = vadd.f32 %v3576, %v4964
      %v5075 = vadd.f32 %v3580, %v4963
      %v5076 = vadd.f32 %v3586, %v4962
      %v5077 = vadd.f32 %v3590, %v4961
      %v5078 = vadd.f32 %v3596, %v4960
      %v5079 = vadd.f32 %v3600, %v4959
      %v5080 = vadd.f32 %v3606, %v4958
      %v5081 = vadd.f32 %v3610, %v4957
      %v5082 = vadd.f32 %v3616, %v4956
      %v5083 = vadd.f32 %v3620, %v4955
      %v5084 = vadd.f32 %v3626, %v4954
      %v5085 = vadd.f32 %v3630, %v4953
      %v5086 = vadd.f32 %v3636, %v4952
      %v5087 = vadd.f32 %v3640, %v4951
      %v5088 = vadd.f32 %v3646, %v4950
      %v5089 = vadd.f32 %v3650, %v4949
      %v5090 = vadd.f32 %v3656, %v4948
      %v5091 = vadd.f32 %v3660, %v4947
      %v5092 = vadd.f32 %v3666, %v4946
      %v5093 = vadd.f32 %v3670, %v4945
      %v5094 = vadd.f32 %v3676, %v4944
      %v5095 = vadd.f32 %v3680, %v4943
      %v5096 = vadd.f32 %v3686, %v4942
      %v5097 = vadd.f32 %v3690, %v4941
      %v5098 = vadd.f32 %v3696, %v4940
      %v5099 = vadd.f32 %v3700, %v4939
      %v5100 = vadd.f32 %v3706, %v4938
      %v5101 = vadd.f32 %v3710, %v4937
      %v5102 = vadd.f32 %v3716, %v4936
      %v5103 = vadd.f32 %v3720, %v4935
      %v5104 = vadd.f32 %v3726, %v4934
      %v5105 = vadd.f32 %v3730, %v4933
      %v5106 = vadd.f32 %v3736, %v4932
      %v5107 = vadd.f32 %v3740, %v4931
      %v5108 = vadd.f32 %v3746, %v4930
      %v5109 = vadd.f32 %v3750, %v4929
      %v5110 = vadd.f32 %v3756, %v4928
      %v5111 = vadd.f32 %v3760, %v4927
      %v5112 = vadd.f32 %v3766, %v4926
      %v5113 = vadd.f32 %v3770, %v4925
      %v5114 = vadd.f32 %v3776, %v4924
      %v5115 = vadd.f32 %v3780, %v4923
      %v5116 = vadd.f32 %v3786, %v4922
      %v5117 = vadd.f32 %v3790, %v4921
      %v5118 = vadd.f32 %v3796, %v4920
      %v5119 = vadd.f32 %v3800, %v4919
      %v5120 = vadd.f32 %v3806, %v4918
      %v5121 = vadd.f32 %v3810, %v4917
      %v5122 = vadd.f32 %v3816, %v4916
      %v5123 = vadd.f32 %v3820, %v4915
      %v5124 = vadd.f32 %v3826, %v4914
      %v5125 = vadd.f32 %v3830, %v4913
      %v5126 = vadd.f32 %v3836, %v4912
      %v5127 = vadd.f32 %v3840, %v4911
      %v5128 = vadd.f32 %v3846, %v4910
      %v5129 = vadd.f32 %v3850, %v4909
      %v5130 = vadd.f32 %v3856, %v4908
      %v5131 = vadd.f32 %v3860, %v5019
      %v5132 = vrot.slane %v3308, 2
      %v5133 = vrot.slane %v3312, 2
      %v5134 = vrot.slane %v3318, 2
      %v5135 = vrot.slane %v3322, 2
      %v5136 = vrot.slane %v3328, 2
      %v5137 = vrot.slane %v3332, 2
      %v5138 = vrot.slane %v3338, 2
      %v5139 = vrot.slane %v3342, 2
      %v5140 = vrot.slane %v3348, 2
      %v5141 = vrot.slane %v3352, 2
      %v5142 = vrot.slane %v3358, 2
      %v5143 = vrot.slane %v3362, 2
      %v5144 = vrot.slane %v3368, 2
      %v5145 = vrot.slane %v3372, 2
      %v5146 = vrot.slane %v3378, 2
      %v5147 = vrot.slane %v3382, 2
      %v5148 = vrot.slane %v3388, 2
      %v5149 = vrot.slane %v3392, 2
      %v5150 = vrot.slane %v3398, 2
      %v5151 = vrot.slane %v3402, 2
      %v5152 = vrot.slane %v3408, 2
      %v5153 = vrot.slane %v3412, 2
      %v5154 = vrot.slane %v3418, 2
      %v5155 = vrot.slane %v3422, 2
      %v5156 = vrot.slane %v3428, 2
      %v5157 = vrot.slane %v3432, 2
      %v5158 = vrot.slane %v3438, 2
      %v5159 = vrot.slane %v3442, 2
      %v5160 = vrot.slane %v3448, 2
      %v5161 = vrot.slane %v3452, 2
      %v5162 = vrot.slane %v3458, 2
      %v5163 = vrot.slane %v3462, 2
      %v5164 = vrot.slane %v3468, 2
      %v5165 = vrot.slane %v3472, 2
      %v5166 = vrot.slane %v3478, 2
      %v5167 = vrot.slane %v3482, 2
      %v5168 = vrot.slane %v3488, 2
      %v5169 = vrot.slane %v3492, 2
      %v5170 = vrot.slane %v3498, 2
      %v5171 = vrot.slane %v3502, 2
      %v5172 = vrot.slane %v3508, 2
      %v5173 = vrot.slane %v3512, 2
      %v5174 = vrot.slane %v3518, 2
      %v5175 = vrot.slane %v3522, 2
      %v5176 = vrot.slane %v3528, 2
      %v5177 = vrot.slane %v3532, 2
      %v5178 = vrot.slane %v3538, 2
      %v5179 = vrot.slane %v3542, 2
      %v5180 = vrot.slane %v3548, 2
      %v5181 = vrot.slane %v3552, 2
      %v5182 = vrot.slane %v3558, 2
      %v5183 = vrot.slane %v3562, 2
      %v5184 = vrot.slane %v3568, 2
      %v5185 = vrot.slane %v3572, 2
      %v5186 = vrot.slane %v3578, 2
      %v5187 = vrot.slane %v3582, 2
      %v5188 = vrot.slane %v3588, 2
      %v5189 = vrot.slane %v3592, 2
      %v5190 = vrot.slane %v3598, 2
      %v5191 = vrot.slane %v3602, 2
      %v5192 = vrot.slane %v3608, 2
      %v5193 = vrot.slane %v3612, 2
      %v5194 = vrot.slane %v3618, 2
      %v5195 = vrot.slane %v3622, 2
      %v5196 = vrot.slane %v3628, 2
      %v5197 = vrot.slane %v3632, 2
      %v5198 = vrot.slane %v3638, 2
      %v5199 = vrot.slane %v3642, 2
      %v5200 = vrot.slane %v3648, 2
      %v5201 = vrot.slane %v3652, 2
      %v5202 = vrot.slane %v3658, 2
      %v5203 = vrot.slane %v3662, 2
      %v5204 = vrot.slane %v3668, 2
      %v5205 = vrot.slane %v3672, 2
      %v5206 = vrot.slane %v3678, 2
      %v5207 = vrot.slane %v3682, 2
      %v5208 = vrot.slane %v3688, 2
      %v5209 = vrot.slane %v3692, 2
      %v5210 = vrot.slane %v3698, 2
      %v5211 = vrot.slane %v3702, 2
      %v5212 = vrot.slane %v3708, 2
      %v5213 = vrot.slane %v3712, 2
      %v5214 = vrot.slane %v3718, 2
      %v5215 = vrot.slane %v3722, 2
      %v5216 = vrot.slane %v3728, 2
      %v5217 = vrot.slane %v3732, 2
      %v5218 = vrot.slane %v3738, 2
      %v5219 = vrot.slane %v3742, 2
      %v5220 = vrot.slane %v3748, 2
      %v5221 = vrot.slane %v3752, 2
      %v5222 = vrot.slane %v3758, 2
      %v5223 = vrot.slane %v3762, 2
      %v5224 = vrot.slane %v3768, 2
      %v5225 = vrot.slane %v3772, 2
      %v5226 = vrot.slane %v3778, 2
      %v5227 = vrot.slane %v3782, 2
      %v5228 = vrot.slane %v3788, 2
      %v5229 = vrot.slane %v3792, 2
      %v5230 = vrot.slane %v3798, 2
      %v5231 = vrot.slane %v3802, 2
      %v5232 = vrot.slane %v3808, 2
      %v5233 = vrot.slane %v3812, 2
      %v5234 = vrot.slane %v3818, 2
      %v5235 = vrot.slane %v3822, 2
      %v5236 = vrot.slane %v3828, 2
      %v5237 = vrot.slane %v3832, 2
      %v5238 = vrot.slane %v3838, 2
      %v5239 = vrot.slane %v3842, 2
      %v5240 = vrot.slane %v3848, 2
      %v5241 = vrot.slane %v3852, 2
      %v5242 = vrot.slane %v3858, 2
      %v5243 = vrot.slane %v3862, 2
      %vm5244 = vcmp.lt.s32.totalorder %v4906, 6
      %v5245 = vsel %vm5244, %v5242, %v5243
      %v5246 = vsel %vm5244, %v5241, %v5242
      %v5247 = vsel %vm5244, %v5240, %v5241
      %v5248 = vsel %vm5244, %v5239, %v5240
      %v5249 = vsel %vm5244, %v5238, %v5239
      %v5250 = vsel %vm5244, %v5237, %v5238
      %v5251 = vsel %vm5244, %v5236, %v5237
      %v5252 = vsel %vm5244, %v5235, %v5236
      %v5253 = vsel %vm5244, %v5234, %v5235
      %v5254 = vsel %vm5244, %v5233, %v5234
      %v5255 = vsel %vm5244, %v5232, %v5233
      %v5256 = vsel %vm5244, %v5231, %v5232
      %v5257 = vsel %vm5244, %v5230, %v5231
      %v5258 = vsel %vm5244, %v5229, %v5230
      %v5259 = vsel %vm5244, %v5228, %v5229
      %v5260 = vsel %vm5244, %v5227, %v5228
      %v5261 = vsel %vm5244, %v5226, %v5227
      %v5262 = vsel %vm5244, %v5225, %v5226
      %v5263 = vsel %vm5244, %v5224, %v5225
      %v5264 = vsel %vm5244, %v5223, %v5224
      %v5265 = vsel %vm5244, %v5222, %v5223
      %v5266 = vsel %vm5244, %v5221, %v5222
      %v5267 = vsel %vm5244, %v5220, %v5221
      %v5268 = vsel %vm5244, %v5219, %v5220
      %v5269 = vsel %vm5244, %v5218, %v5219
      %v5270 = vsel %vm5244, %v5217, %v5218
      %v5271 = vsel %vm5244, %v5216, %v5217
      %v5272 = vsel %vm5244, %v5215, %v5216
      %v5273 = vsel %vm5244, %v5214, %v5215
      %v5274 = vsel %vm5244, %v5213, %v5214
      %v5275 = vsel %vm5244, %v5212, %v5213
      %v5276 = vsel %vm5244, %v5211, %v5212
      %v5277 = vsel %vm5244, %v5210, %v5211
      %v5278 = vsel %vm5244, %v5209, %v5210
      %v5279 = vsel %vm5244, %v5208, %v5209
      %v5280 = vsel %vm5244, %v5207, %v5208
      %v5281 = vsel %vm5244, %v5206, %v5207
      %v5282 = vsel %vm5244, %v5205, %v5206
      %v5283 = vsel %vm5244, %v5204, %v5205
      %v5284 = vsel %vm5244, %v5203, %v5204
      %v5285 = vsel %vm5244, %v5202, %v5203
      %v5286 = vsel %vm5244, %v5201, %v5202
      %v5287 = vsel %vm5244, %v5200, %v5201
      %v5288 = vsel %vm5244, %v5199, %v5200
      %v5289 = vsel %vm5244, %v5198, %v5199
      %v5290 = vsel %vm5244, %v5197, %v5198
      %v5291 = vsel %vm5244, %v5196, %v5197
      %v5292 = vsel %vm5244, %v5195, %v5196
      %v5293 = vsel %vm5244, %v5194, %v5195
      %v5294 = vsel %vm5244, %v5193, %v5194
      %v5295 = vsel %vm5244, %v5192, %v5193
      %v5296 = vsel %vm5244, %v5191, %v5192
      %v5297 = vsel %vm5244, %v5190, %v5191
      %v5298 = vsel %vm5244, %v5189, %v5190
      %v5299 = vsel %vm5244, %v5188, %v5189
      %v5300 = vsel %vm5244, %v5187, %v5188
      %v5301 = vsel %vm5244, %v5186, %v5187
      %v5302 = vsel %vm5244, %v5185, %v5186
      %v5303 = vsel %vm5244, %v5184, %v5185
      %v5304 = vsel %vm5244, %v5183, %v5184
      %v5305 = vsel %vm5244, %v5182, %v5183
      %v5306 = vsel %vm5244, %v5181, %v5182
      %v5307 = vsel %vm5244, %v5180, %v5181
      %v5308 = vsel %vm5244, %v5179, %v5180
      %v5309 = vsel %vm5244, %v5178, %v5179
      %v5310 = vsel %vm5244, %v5177, %v5178
      %v5311 = vsel %vm5244, %v5176, %v5177
      %v5312 = vsel %vm5244, %v5175, %v5176
      %v5313 = vsel %vm5244, %v5174, %v5175
      %v5314 = vsel %vm5244, %v5173, %v5174
      %v5315 = vsel %vm5244, %v5172, %v5173
      %v5316 = vsel %vm5244, %v5171, %v5172
      %v5317 = vsel %vm5244, %v5170, %v5171
      %v5318 = vsel %vm5244, %v5169, %v5170
      %v5319 = vsel %vm5244, %v5168, %v5169
      %v5320 = vsel %vm5244, %v5167, %v5168
      %v5321 = vsel %vm5244, %v5166, %v5167
      %v5322 = vsel %vm5244, %v5165, %v5166
      %v5323 = vsel %vm5244, %v5164, %v5165
      %v5324 = vsel %vm5244, %v5163, %v5164
      %v5325 = vsel %vm5244, %v5162, %v5163
      %v5326 = vsel %vm5244, %v5161, %v5162
      %v5327 = vsel %vm5244, %v5160, %v5161
      %v5328 = vsel %vm5244, %v5159, %v5160
      %v5329 = vsel %vm5244, %v5158, %v5159
      %v5330 = vsel %vm5244, %v5157, %v5158
      %v5331 = vsel %vm5244, %v5156, %v5157
      %v5332 = vsel %vm5244, %v5155, %v5156
      %v5333 = vsel %vm5244, %v5154, %v5155
      %v5334 = vsel %vm5244, %v5153, %v5154
      %v5335 = vsel %vm5244, %v5152, %v5153
      %v5336 = vsel %vm5244, %v5151, %v5152
      %v5337 = vsel %vm5244, %v5150, %v5151
      %v5338 = vsel %vm5244, %v5149, %v5150
      %v5339 = vsel %vm5244, %v5148, %v5149
      %v5340 = vsel %vm5244, %v5147, %v5148
      %v5341 = vsel %vm5244, %v5146, %v5147
      %v5342 = vsel %vm5244, %v5145, %v5146
      %v5343 = vsel %vm5244, %v5144, %v5145
      %v5344 = vsel %vm5244, %v5143, %v5144
      %v5345 = vsel %vm5244, %v5142, %v5143
      %v5346 = vsel %vm5244, %v5141, %v5142
      %v5347 = vsel %vm5244, %v5140, %v5141
      %v5348 = vsel %vm5244, %v5139, %v5140
      %v5349 = vsel %vm5244, %v5138, %v5139
      %v5350 = vsel %vm5244, %v5137, %v5138
      %v5351 = vsel %vm5244, %v5136, %v5137
      %v5352 = vsel %vm5244, %v5135, %v5136
      %v5353 = vsel %vm5244, %v5134, %v5135
      %v5354 = vsel %vm5244, %v5133, %v5134
      %v5355 = vsel %vm5244, %v5132, %v5133
      %v5356 = vsel %vm5244, %v5243, %v5132
      %v5357 = vadd.f32 %v5020, %v5355
      %v5358 = vadd.f32 %v5021, %v5354
      %v5359 = vadd.f32 %v5022, %v5353
      %v5360 = vadd.f32 %v5023, %v5352
      %v5361 = vadd.f32 %v5024, %v5351
      %v5362 = vadd.f32 %v5025, %v5350
      %v5363 = vadd.f32 %v5026, %v5349
      %v5364 = vadd.f32 %v5027, %v5348
      %v5365 = vadd.f32 %v5028, %v5347
      %v5366 = vadd.f32 %v5029, %v5346
      %v5367 = vadd.f32 %v5030, %v5345
      %v5368 = vadd.f32 %v5031, %v5344
      %v5369 = vadd.f32 %v5032, %v5343
      %v5370 = vadd.f32 %v5033, %v5342
      %v5371 = vadd.f32 %v5034, %v5341
      %v5372 = vadd.f32 %v5035, %v5340
      %v5373 = vadd.f32 %v5036, %v5339
      %v5374 = vadd.f32 %v5037, %v5338
      %v5375 = vadd.f32 %v5038, %v5337
      %v5376 = vadd.f32 %v5039, %v5336
      %v5377 = vadd.f32 %v5040, %v5335
      %v5378 = vadd.f32 %v5041, %v5334
      %v5379 = vadd.f32 %v5042, %v5333
      %v5380 = vadd.f32 %v5043, %v5332
      %v5381 = vadd.f32 %v5044, %v5331
      %v5382 = vadd.f32 %v5045, %v5330
      %v5383 = vadd.f32 %v5046, %v5329
      %v5384 = vadd.f32 %v5047, %v5328
      %v5385 = vadd.f32 %v5048, %v5327
      %v5386 = vadd.f32 %v5049, %v5326
      %v5387 = vadd.f32 %v5050, %v5325
      %v5388 = vadd.f32 %v5051, %v5324
      %v5389 = vadd.f32 %v5052, %v5323
      %v5390 = vadd.f32 %v5053, %v5322
      %v5391 = vadd.f32 %v5054, %v5321
      %v5392 = vadd.f32 %v5055, %v5320
      %v5393 = vadd.f32 %v5056, %v5319
      %v5394 = vadd.f32 %v5057, %v5318
      %v5395 = vadd.f32 %v5058, %v5317
      %v5396 = vadd.f32 %v5059, %v5316
      %v5397 = vadd.f32 %v5060, %v5315
      %v5398 = vadd.f32 %v5061, %v5314
      %v5399 = vadd.f32 %v5062, %v5313
      %v5400 = vadd.f32 %v5063, %v5312
      %v5401 = vadd.f32 %v5064, %v5311
      %v5402 = vadd.f32 %v5065, %v5310
      %v5403 = vadd.f32 %v5066, %v5309
      %v5404 = vadd.f32 %v5067, %v5308
      %v5405 = vadd.f32 %v5068, %v5307
      %v5406 = vadd.f32 %v5069, %v5306
      %v5407 = vadd.f32 %v5070, %v5305
      %v5408 = vadd.f32 %v5071, %v5304
      %v5409 = vadd.f32 %v5072, %v5303
      %v5410 = vadd.f32 %v5073, %v5302
      %v5411 = vadd.f32 %v5074, %v5301
      %v5412 = vadd.f32 %v5075, %v5300
      %v5413 = vadd.f32 %v5076, %v5299
      %v5414 = vadd.f32 %v5077, %v5298
      %v5415 = vadd.f32 %v5078, %v5297
      %v5416 = vadd.f32 %v5079, %v5296
      %v5417 = vadd.f32 %v5080, %v5295
      %v5418 = vadd.f32 %v5081, %v5294
      %v5419 = vadd.f32 %v5082, %v5293
      %v5420 = vadd.f32 %v5083, %v5292
      %v5421 = vadd.f32 %v5084, %v5291
      %v5422 = vadd.f32 %v5085, %v5290
      %v5423 = vadd.f32 %v5086, %v5289
      %v5424 = vadd.f32 %v5087, %v5288
      %v5425 = vadd.f32 %v5088, %v5287
      %v5426 = vadd.f32 %v5089, %v5286
      %v5427 = vadd.f32 %v5090, %v5285
      %v5428 = vadd.f32 %v5091, %v5284
      %v5429 = vadd.f32 %v5092, %v5283
      %v5430 = vadd.f32 %v5093, %v5282
      %v5431 = vadd.f32 %v5094, %v5281
      %v5432 = vadd.f32 %v5095, %v5280
      %v5433 = vadd.f32 %v5096, %v5279
      %v5434 = vadd.f32 %v5097, %v5278
      %v5435 = vadd.f32 %v5098, %v5277
      %v5436 = vadd.f32 %v5099, %v5276
      %v5437 = vadd.f32 %v5100, %v5275
      %v5438 = vadd.f32 %v5101, %v5274
      %v5439 = vadd.f32 %v5102, %v5273
      %v5440 = vadd.f32 %v5103, %v5272
      %v5441 = vadd.f32 %v5104, %v5271
      %v5442 = vadd.f32 %v5105, %v5270
      %v5443 = vadd.f32 %v5106, %v5269
      %v5444 = vadd.f32 %v5107, %v5268
      %v5445 = vadd.f32 %v5108, %v5267
      %v5446 = vadd.f32 %v5109, %v5266
      %v5447 = vadd.f32 %v5110, %v5265
      %v5448 = vadd.f32 %v5111, %v5264
      %v5449 = vadd.f32 %v5112, %v5263
      %v5450 = vadd.f32 %v5113, %v5262
      %v5451 = vadd.f32 %v5114, %v5261
      %v5452 = vadd.f32 %v5115, %v5260
      %v5453 = vadd.f32 %v5116, %v5259
      %v5454 = vadd.f32 %v5117, %v5258
      %v5455 = vadd.f32 %v5118, %v5257
      %v5456 = vadd.f32 %v5119, %v5256
      %v5457 = vadd.f32 %v5120, %v5255
      %v5458 = vadd.f32 %v5121, %v5254
      %v5459 = vadd.f32 %v5122, %v5253
      %v5460 = vadd.f32 %v5123, %v5252
      %v5461 = vadd.f32 %v5124, %v5251
      %v5462 = vadd.f32 %v5125, %v5250
      %v5463 = vadd.f32 %v5126, %v5249
      %v5464 = vadd.f32 %v5127, %v5248
      %v5465 = vadd.f32 %v5128, %v5247
      %v5466 = vadd.f32 %v5129, %v5246
      %v5467 = vadd.f32 %v5130, %v5245
      %v5468 = vadd.f32 %v5131, %v5356
      %5581 = vrot.lane.b32.xlu0 %v3308, 64
      %v5582 = vpop.permute.xlu0 %5581
      %5583 = vrot.lane.b32.xlu0 %v3312, 64
      %v5584 = vpop.permute.xlu0 %5583
      %5585 = vrot.lane.b32.xlu0 %v3318, 64
      %v5586 = vpop.permute.xlu0 %5585
      %5587 = vrot.lane.b32.xlu0 %v3322, 64
      %v5588 = vpop.permute.xlu0 %5587
      %5589 = vrot.lane.b32.xlu0 %v3328, 64
      %v5590 = vpop.permute.xlu0 %5589
      %5591 = vrot.lane.b32.xlu0 %v3332, 64
      %v5592 = vpop.permute.xlu0 %5591
      %5593 = vrot.lane.b32.xlu0 %v3338, 64
      %v5594 = vpop.permute.xlu0 %5593
      %5595 = vrot.lane.b32.xlu0 %v3342, 64
      %v5596 = vpop.permute.xlu0 %5595
      %5597 = vrot.lane.b32.xlu0 %v3348, 64
      %v5598 = vpop.permute.xlu0 %5597
      %5599 = vrot.lane.b32.xlu0 %v3352, 64
      %v5600 = vpop.permute.xlu0 %5599
      %5601 = vrot.lane.b32.xlu0 %v3358, 64
      %v5602 = vpop.permute.xlu0 %5601
      %5603 = vrot.lane.b32.xlu0 %v3362, 64
      %v5604 = vpop.permute.xlu0 %5603
      %5605 = vrot.lane.b32.xlu0 %v3368, 64
      %v5606 = vpop.permute.xlu0 %5605
      %5607 = vrot.lane.b32.xlu0 %v3372, 64
      %v5608 = vpop.permute.xlu0 %5607
      %5609 = vrot.lane.b32.xlu0 %v3378, 64
      %v5610 = vpop.permute.xlu0 %5609
      %5611 = vrot.lane.b32.xlu0 %v3382, 64
      %v5612 = vpop.permute.xlu0 %5611
      %5613 = vrot.lane.b32.xlu0 %v3388, 64
      %v5614 = vpop.permute.xlu0 %5613
      %5615 = vrot.lane.b32.xlu0 %v3392, 64
      %v5616 = vpop.permute.xlu0 %5615
      %5617 = vrot.lane.b32.xlu0 %v3398, 64
      %v5618 = vpop.permute.xlu0 %5617
      %5619 = vrot.lane.b32.xlu0 %v3402, 64
      %v5620 = vpop.permute.xlu0 %5619
      %5621 = vrot.lane.b32.xlu0 %v3408, 64
      %v5622 = vpop.permute.xlu0 %5621
      %5623 = vrot.lane.b32.xlu0 %v3412, 64
      %v5624 = vpop.permute.xlu0 %5623
      %5625 = vrot.lane.b32.xlu0 %v3418, 64
      %v5626 = vpop.permute.xlu0 %5625
      %5627 = vrot.lane.b32.xlu0 %v3422, 64
      %v5628 = vpop.permute.xlu0 %5627
      %5629 = vrot.lane.b32.xlu0 %v3428, 64
      %v5630 = vpop.permute.xlu0 %5629
      %5631 = vrot.lane.b32.xlu0 %v3432, 64
      %v5632 = vpop.permute.xlu0 %5631
      %5633 = vrot.lane.b32.xlu0 %v3438, 64
      %v5634 = vpop.permute.xlu0 %5633
      %5635 = vrot.lane.b32.xlu0 %v3442, 64
      %v5636 = vpop.permute.xlu0 %5635
      %5637 = vrot.lane.b32.xlu0 %v3448, 64
      %v5638 = vpop.permute.xlu0 %5637
      %5639 = vrot.lane.b32.xlu0 %v3452, 64
      %v5640 = vpop.permute.xlu0 %5639
      %5641 = vrot.lane.b32.xlu0 %v3458, 64
      %v5642 = vpop.permute.xlu0 %5641
      %5643 = vrot.lane.b32.xlu0 %v3462, 64
      %v5644 = vpop.permute.xlu0 %5643
      %5645 = vrot.lane.b32.xlu0 %v3468, 64
      %v5646 = vpop.permute.xlu0 %5645
      %5647 = vrot.lane.b32.xlu0 %v3472, 64
      %v5648 = vpop.permute.xlu0 %5647
      %5649 = vrot.lane.b32.xlu0 %v3478, 64
      %v5650 = vpop.permute.xlu0 %5649
      %5651 = vrot.lane.b32.xlu0 %v3482, 64
      %v5652 = vpop.permute.xlu0 %5651
      %5653 = vrot.lane.b32.xlu0 %v3488, 64
      %v5654 = vpop.permute.xlu0 %5653
      %5655 = vrot.lane.b32.xlu0 %v3492, 64
      %v5656 = vpop.permute.xlu0 %5655
      %5657 = vrot.lane.b32.xlu0 %v3498, 64
      %v5658 = vpop.permute.xlu0 %5657
      %5659 = vrot.lane.b32.xlu0 %v3502, 64
      %v5660 = vpop.permute.xlu0 %5659
      %5661 = vrot.lane.b32.xlu0 %v3508, 64
      %v5662 = vpop.permute.xlu0 %5661
      %5663 = vrot.lane.b32.xlu0 %v3512, 64
      %v5664 = vpop.permute.xlu0 %5663
      %5665 = vrot.lane.b32.xlu0 %v3518, 64
      %v5666 = vpop.permute.xlu0 %5665
      %5667 = vrot.lane.b32.xlu0 %v3522, 64
      %v5668 = vpop.permute.xlu0 %5667
      %5669 = vrot.lane.b32.xlu0 %v3528, 64
      %v5670 = vpop.permute.xlu0 %5669
      %5671 = vrot.lane.b32.xlu0 %v3532, 64
      %v5672 = vpop.permute.xlu0 %5671
      %5673 = vrot.lane.b32.xlu0 %v3538, 64
      %v5674 = vpop.permute.xlu0 %5673
      %5675 = vrot.lane.b32.xlu0 %v3542, 64
      %v5676 = vpop.permute.xlu0 %5675
      %5677 = vrot.lane.b32.xlu0 %v3548, 64
      %v5678 = vpop.permute.xlu0 %5677
      %5679 = vrot.lane.b32.xlu0 %v3552, 64
      %v5680 = vpop.permute.xlu0 %5679
      %5681 = vrot.lane.b32.xlu0 %v3558, 64
      %v5682 = vpop.permute.xlu0 %5681
      %5683 = vrot.lane.b32.xlu0 %v3562, 64
      %v5684 = vpop.permute.xlu0 %5683
      %5685 = vrot.lane.b32.xlu0 %v3568, 64
      %v5686 = vpop.permute.xlu0 %5685
      %5687 = vrot.lane.b32.xlu0 %v3572, 64
      %v5688 = vpop.permute.xlu0 %5687
      %5689 = vrot.lane.b32.xlu0 %v3578, 64
      %v5690 = vpop.permute.xlu0 %5689
      %5691 = vrot.lane.b32.xlu0 %v3582, 64
      %v5692 = vpop.permute.xlu0 %5691
      %5693 = vrot.lane.b32.xlu0 %v3588, 64
      %v5694 = vpop.permute.xlu0 %5693
      %5695 = vrot.lane.b32.xlu0 %v3592, 64
      %v5696 = vpop.permute.xlu0 %5695
      %5697 = vrot.lane.b32.xlu0 %v3598, 64
      %v5698 = vpop.permute.xlu0 %5697
      %5699 = vrot.lane.b32.xlu0 %v3602, 64
      %v5700 = vpop.permute.xlu0 %5699
      %5701 = vrot.lane.b32.xlu0 %v3608, 64
      %v5702 = vpop.permute.xlu0 %5701
      %5703 = vrot.lane.b32.xlu0 %v3612, 64
      %v5704 = vpop.permute.xlu0 %5703
      %5705 = vrot.lane.b32.xlu0 %v3618, 64
      %v5706 = vpop.permute.xlu0 %5705
      %5707 = vrot.lane.b32.xlu0 %v3622, 64
      %v5708 = vpop.permute.xlu0 %5707
      %5709 = vrot.lane.b32.xlu0 %v3628, 64
      %v5710 = vpop.permute.xlu0 %5709
      %5711 = vrot.lane.b32.xlu0 %v3632, 64
      %v5712 = vpop.permute.xlu0 %5711
      %5713 = vrot.lane.b32.xlu0 %v3638, 64
      %v5714 = vpop.permute.xlu0 %5713
      %5715 = vrot.lane.b32.xlu0 %v3642, 64
      %v5716 = vpop.permute.xlu0 %5715
      %5717 = vrot.lane.b32.xlu0 %v3648, 64
      %v5718 = vpop.permute.xlu0 %5717
      %5719 = vrot.lane.b32.xlu0 %v3652, 64
      %v5720 = vpop.permute.xlu0 %5719
      %5721 = vrot.lane.b32.xlu0 %v3658, 64
      %v5722 = vpop.permute.xlu0 %5721
      %5723 = vrot.lane.b32.xlu0 %v3662, 64
      %v5724 = vpop.permute.xlu0 %5723
      %5725 = vrot.lane.b32.xlu0 %v3668, 64
      %v5726 = vpop.permute.xlu0 %5725
      %5727 = vrot.lane.b32.xlu0 %v3672, 64
      %v5728 = vpop.permute.xlu0 %5727
      %5729 = vrot.lane.b32.xlu0 %v3678, 64
      %v5730 = vpop.permute.xlu0 %5729
      %5731 = vrot.lane.b32.xlu0 %v3682, 64
      %v5732 = vpop.permute.xlu0 %5731
      %5733 = vrot.lane.b32.xlu0 %v3688, 64
      %v5734 = vpop.permute.xlu0 %5733
      %5735 = vrot.lane.b32.xlu0 %v3692, 64
      %v5736 = vpop.permute.xlu0 %5735
      %5737 = vrot.lane.b32.xlu0 %v3698, 64
      %v5738 = vpop.permute.xlu0 %5737
      %5739 = vrot.lane.b32.xlu0 %v3702, 64
      %v5740 = vpop.permute.xlu0 %5739
      %5741 = vrot.lane.b32.xlu0 %v3708, 64
      %v5742 = vpop.permute.xlu0 %5741
      %5743 = vrot.lane.b32.xlu0 %v3712, 64
      %v5744 = vpop.permute.xlu0 %5743
      %5745 = vrot.lane.b32.xlu0 %v3718, 64
      %v5746 = vpop.permute.xlu0 %5745
      %5747 = vrot.lane.b32.xlu0 %v3722, 64
      %v5748 = vpop.permute.xlu0 %5747
      %5749 = vrot.lane.b32.xlu0 %v3728, 64
      %v5750 = vpop.permute.xlu0 %5749
      %5751 = vrot.lane.b32.xlu0 %v3732, 64
      %v5752 = vpop.permute.xlu0 %5751
      %5753 = vrot.lane.b32.xlu0 %v3738, 64
      %v5754 = vpop.permute.xlu0 %5753
      %5755 = vrot.lane.b32.xlu0 %v3742, 64
      %v5756 = vpop.permute.xlu0 %5755
      %5757 = vrot.lane.b32.xlu0 %v3748, 64
      %v5758 = vpop.permute.xlu0 %5757
      %5759 = vrot.lane.b32.xlu0 %v3752, 64
      %v5760 = vpop.permute.xlu0 %5759
      %5761 = vrot.lane.b32.xlu0 %v3758, 64
      %v5762 = vpop.permute.xlu0 %5761
      %5763 = vrot.lane.b32.xlu0 %v3762, 64
      %v5764 = vpop.permute.xlu0 %5763
      %5765 = vrot.lane.b32.xlu0 %v3768, 64
      %v5766 = vpop.permute.xlu0 %5765
      %5767 = vrot.lane.b32.xlu0 %v3772, 64
      %v5768 = vpop.permute.xlu0 %5767
      %5769 = vrot.lane.b32.xlu0 %v3778, 64
      %v5770 = vpop.permute.xlu0 %5769
      %5771 = vrot.lane.b32.xlu0 %v3782, 64
      %v5772 = vpop.permute.xlu0 %5771
      %5773 = vrot.lane.b32.xlu0 %v3788, 64
      %v5774 = vpop.permute.xlu0 %5773
      %5775 = vrot.lane.b32.xlu0 %v3792, 64
      %v5776 = vpop.permute.xlu0 %5775
      %5777 = vrot.lane.b32.xlu0 %v3798, 64
      %v5778 = vpop.permute.xlu0 %5777
      %5779 = vrot.lane.b32.xlu0 %v3802, 64
      %v5780 = vpop.permute.xlu0 %5779
      %5781 = vrot.lane.b32.xlu0 %v3808, 64
      %v5782 = vpop.permute.xlu0 %5781
      %5783 = vrot.lane.b32.xlu0 %v3812, 64
      %v5784 = vpop.permute.xlu0 %5783
      %5785 = vrot.lane.b32.xlu0 %v3818, 64
      %v5786 = vpop.permute.xlu0 %5785
      %5787 = vrot.lane.b32.xlu0 %v3822, 64
      %v5788 = vpop.permute.xlu0 %5787
      %5789 = vrot.lane.b32.xlu0 %v3828, 64
      %v5790 = vpop.permute.xlu0 %5789
      %5791 = vrot.lane.b32.xlu0 %v3832, 64
      %v5792 = vpop.permute.xlu0 %5791
      %5793 = vrot.lane.b32.xlu0 %v3838, 64
      %v5794 = vpop.permute.xlu0 %5793
      %5795 = vrot.lane.b32.xlu0 %v3842, 64
      %v5796 = vpop.permute.xlu0 %5795
      %5797 = vrot.lane.b32.xlu0 %v3848, 64
      %v5798 = vpop.permute.xlu0 %5797
      %5799 = vrot.lane.b32.xlu0 %v3852, 64
      %v5800 = vpop.permute.xlu0 %5799
      %5801 = vrot.lane.b32.xlu0 %v3858, 64
      %v5802 = vpop.permute.xlu0 %5801
      %5803 = vrot.lane.b32.xlu0 %v3862, 64
      %v5804 = vpop.permute.xlu0 %5803
      %v5917 = vrot.slane %v5582, 3
      %v5918 = vrot.slane %v5584, 3
      %v5919 = vrot.slane %v5586, 3
      %v5920 = vrot.slane %v5588, 3
      %v5921 = vrot.slane %v5590, 3
      %v5922 = vrot.slane %v5592, 3
      %v5923 = vrot.slane %v5594, 3
      %v5924 = vrot.slane %v5596, 3
      %v5925 = vrot.slane %v5598, 3
      %v5926 = vrot.slane %v5600, 3
      %v5927 = vrot.slane %v5602, 3
      %v5928 = vrot.slane %v5604, 3
      %v5929 = vrot.slane %v5606, 3
      %v5930 = vrot.slane %v5608, 3
      %v5931 = vrot.slane %v5610, 3
      %v5932 = vrot.slane %v5612, 3
      %v5933 = vrot.slane %v5614, 3
      %v5934 = vrot.slane %v5616, 3
      %v5935 = vrot.slane %v5618, 3
      %v5936 = vrot.slane %v5620, 3
      %v5937 = vrot.slane %v5622, 3
      %v5938 = vrot.slane %v5624, 3
      %v5939 = vrot.slane %v5626, 3
      %v5940 = vrot.slane %v5628, 3
      %v5941 = vrot.slane %v5630, 3
      %v5942 = vrot.slane %v5632, 3
      %v5943 = vrot.slane %v5634, 3
      %v5944 = vrot.slane %v5636, 3
      %v5945 = vrot.slane %v5638, 3
      %v5946 = vrot.slane %v5640, 3
      %v5947 = vrot.slane %v5642, 3
      %v5948 = vrot.slane %v5644, 3
      %v5949 = vrot.slane %v5646, 3
      %v5950 = vrot.slane %v5648, 3
      %v5951 = vrot.slane %v5650, 3
      %v5952 = vrot.slane %v5652, 3
      %v5953 = vrot.slane %v5654, 3
      %v5954 = vrot.slane %v5656, 3
      %v5955 = vrot.slane %v5658, 3
      %v5956 = vrot.slane %v5660, 3
      %v5957 = vrot.slane %v5662, 3
      %v5958 = vrot.slane %v5664, 3
      %v5959 = vrot.slane %v5666, 3
      %v5960 = vrot.slane %v5668, 3
      %v5961 = vrot.slane %v5670, 3
      %v5962 = vrot.slane %v5672, 3
      %v5963 = vrot.slane %v5674, 3
      %v5964 = vrot.slane %v5676, 3
      %v5965 = vrot.slane %v5678, 3
      %v5966 = vrot.slane %v5680, 3
      %v5967 = vrot.slane %v5682, 3
      %v5968 = vrot.slane %v5684, 3
      %v5969 = vrot.slane %v5686, 3
      %v5970 = vrot.slane %v5688, 3
      %v5971 = vrot.slane %v5690, 3
      %v5972 = vrot.slane %v5692, 3
      %v5973 = vrot.slane %v5694, 3
      %v5974 = vrot.slane %v5696, 3
      %v5975 = vrot.slane %v5698, 3
      %v5976 = vrot.slane %v5700, 3
      %v5977 = vrot.slane %v5702, 3
      %v5978 = vrot.slane %v5704, 3
      %v5979 = vrot.slane %v5706, 3
      %v5980 = vrot.slane %v5708, 3
      %v5981 = vrot.slane %v5710, 3
      %v5982 = vrot.slane %v5712, 3
      %v5983 = vrot.slane %v5714, 3
      %v5984 = vrot.slane %v5716, 3
      %v5985 = vrot.slane %v5718, 3
      %v5986 = vrot.slane %v5720, 3
      %v5987 = vrot.slane %v5722, 3
      %v5988 = vrot.slane %v5724, 3
      %v5989 = vrot.slane %v5726, 3
      %v5990 = vrot.slane %v5728, 3
      %v5991 = vrot.slane %v5730, 3
      %v5992 = vrot.slane %v5732, 3
      %v5993 = vrot.slane %v5734, 3
      %v5994 = vrot.slane %v5736, 3
      %v5995 = vrot.slane %v5738, 3
      %v5996 = vrot.slane %v5740, 3
      %v5997 = vrot.slane %v5742, 3
      %v5998 = vrot.slane %v5744, 3
      %v5999 = vrot.slane %v5746, 3
      %v6000 = vrot.slane %v5748, 3
      %v6001 = vrot.slane %v5750, 3
      %v6002 = vrot.slane %v5752, 3
      %v6003 = vrot.slane %v5754, 3
      %v6004 = vrot.slane %v5756, 3
      %v6005 = vrot.slane %v5758, 3
      %v6006 = vrot.slane %v5760, 3
      %v6007 = vrot.slane %v5762, 3
      %v6008 = vrot.slane %v5764, 3
      %v6009 = vrot.slane %v5766, 3
      %v6010 = vrot.slane %v5768, 3
      %v6011 = vrot.slane %v5770, 3
      %v6012 = vrot.slane %v5772, 3
      %v6013 = vrot.slane %v5774, 3
      %v6014 = vrot.slane %v5776, 3
      %v6015 = vrot.slane %v5778, 3
      %v6016 = vrot.slane %v5780, 3
      %v6017 = vrot.slane %v5782, 3
      %v6018 = vrot.slane %v5784, 3
      %v6019 = vrot.slane %v5786, 3
      %v6020 = vrot.slane %v5788, 3
      %v6021 = vrot.slane %v5790, 3
      %v6022 = vrot.slane %v5792, 3
      %v6023 = vrot.slane %v5794, 3
      %v6024 = vrot.slane %v5796, 3
      %v6025 = vrot.slane %v5798, 3
      %v6026 = vrot.slane %v5800, 3
      %v6027 = vrot.slane %v5802, 3
      %v6028 = vrot.slane %v5804, 3
      %vm6029 = vcmp.lt.s32.totalorder %v4906, 5
      %v6030 = vsel %vm6029, %v6027, %v6028
      %v6031 = vsel %vm6029, %v6026, %v6027
      %v6032 = vsel %vm6029, %v6025, %v6026
      %v6033 = vsel %vm6029, %v6024, %v6025
      %v6034 = vsel %vm6029, %v6023, %v6024
      %v6035 = vsel %vm6029, %v6022, %v6023
      %v6036 = vsel %vm6029, %v6021, %v6022
      %v6037 = vsel %vm6029, %v6020, %v6021
      %v6038 = vsel %vm6029, %v6019, %v6020
      %v6039 = vsel %vm6029, %v6018, %v6019
      %v6040 = vsel %vm6029, %v6017, %v6018
      %v6041 = vsel %vm6029, %v6016, %v6017
      %v6042 = vsel %vm6029, %v6015, %v6016
      %v6043 = vsel %vm6029, %v6014, %v6015
      %v6044 = vsel %vm6029, %v6013, %v6014
      %v6045 = vsel %vm6029, %v6012, %v6013
      %v6046 = vsel %vm6029, %v6011, %v6012
      %v6047 = vsel %vm6029, %v6010, %v6011
      %v6048 = vsel %vm6029, %v6009, %v6010
      %v6049 = vsel %vm6029, %v6008, %v6009
      %v6050 = vsel %vm6029, %v6007, %v6008
      %v6051 = vsel %vm6029, %v6006, %v6007
      %v6052 = vsel %vm6029, %v6005, %v6006
      %v6053 = vsel %vm6029, %v6004, %v6005
      %v6054 = vsel %vm6029, %v6003, %v6004
      %v6055 = vsel %vm6029, %v6002, %v6003
      %v6056 = vsel %vm6029, %v6001, %v6002
      %v6057 = vsel %vm6029, %v6000, %v6001
      %v6058 = vsel %vm6029, %v5999, %v6000
      %v6059 = vsel %vm6029, %v5998, %v5999
      %v6060 = vsel %vm6029, %v5997, %v5998
      %v6061 = vsel %vm6029, %v5996, %v5997
      %v6062 = vsel %vm6029, %v5995, %v5996
      %v6063 = vsel %vm6029, %v5994, %v5995
      %v6064 = vsel %vm6029, %v5993, %v5994
      %v6065 = vsel %vm6029, %v5992, %v5993
      %v6066 = vsel %vm6029, %v5991, %v5992
      %v6067 = vsel %vm6029, %v5990, %v5991
      %v6068 = vsel %vm6029, %v5989, %v5990
      %v6069 = vsel %vm6029, %v5988, %v5989
      %v6070 = vsel %vm6029, %v5987, %v5988
      %v6071 = vsel %vm6029, %v5986, %v5987
      %v6072 = vsel %vm6029, %v5985, %v5986
      %v6073 = vsel %vm6029, %v5984, %v5985
      %v6074 = vsel %vm6029, %v5983, %v5984
      %v6075 = vsel %vm6029, %v5982, %v5983
      %v6076 = vsel %vm6029, %v5981, %v5982
      %v6077 = vsel %vm6029, %v5980, %v5981
      %v6078 = vsel %vm6029, %v5979, %v5980
      %v6079 = vsel %vm6029, %v5978, %v5979
      %v6080 = vsel %vm6029, %v5977, %v5978
      %v6081 = vsel %vm6029, %v5976, %v5977
      %v6082 = vsel %vm6029, %v5975, %v5976
      %v6083 = vsel %vm6029, %v5974, %v5975
      %v6084 = vsel %vm6029, %v5973, %v5974
      %v6085 = vsel %vm6029, %v5972, %v5973
      %v6086 = vsel %vm6029, %v5971, %v5972
      %v6087 = vsel %vm6029, %v5970, %v5971
      %v6088 = vsel %vm6029, %v5969, %v5970
      %v6089 = vsel %vm6029, %v5968, %v5969
      %v6090 = vsel %vm6029, %v5967, %v5968
      %v6091 = vsel %vm6029, %v5966, %v5967
      %v6092 = vsel %vm6029, %v5965, %v5966
      %v6093 = vsel %vm6029, %v5964, %v5965
      %v6094 = vsel %vm6029, %v5963, %v5964
      %v6095 = vsel %vm6029, %v5962, %v5963
      %v6096 = vsel %vm6029, %v5961, %v5962
      %v6097 = vsel %vm6029, %v5960, %v5961
      %v6098 = vsel %vm6029, %v5959, %v5960
      %v6099 = vsel %vm6029, %v5958, %v5959
      %v6100 = vsel %vm6029, %v5957, %v5958
      %v6101 = vsel %vm6029, %v5956, %v5957
      %v6102 = vsel %vm6029, %v5955, %v5956
      %v6103 = vsel %vm6029, %v5954, %v5955
      %v6104 = vsel %vm6029, %v5953, %v5954
      %v6105 = vsel %vm6029, %v5952, %v5953
      %v6106 = vsel %vm6029, %v5951, %v5952
      %v6107 = vsel %vm6029, %v5950, %v5951
      %v6108 = vsel %vm6029, %v5949, %v5950
      %v6109 = vsel %vm6029, %v5948, %v5949
      %v6110 = vsel %vm6029, %v5947, %v5948
      %v6111 = vsel %vm6029, %v5946, %v5947
      %v6112 = vsel %vm6029, %v5945, %v5946
      %v6113 = vsel %vm6029, %v5944, %v5945
      %v6114 = vsel %vm6029, %v5943, %v5944
      %v6115 = vsel %vm6029, %v5942, %v5943
      %v6116 = vsel %vm6029, %v5941, %v5942
      %v6117 = vsel %vm6029, %v5940, %v5941
      %v6118 = vsel %vm6029, %v5939, %v5940
      %v6119 = vsel %vm6029, %v5938, %v5939
      %v6120 = vsel %vm6029, %v5937, %v5938
      %v6121 = vsel %vm6029, %v5936, %v5937
      %v6122 = vsel %vm6029, %v5935, %v5936
      %v6123 = vsel %vm6029, %v5934, %v5935
      %v6124 = vsel %vm6029, %v5933, %v5934
      %v6125 = vsel %vm6029, %v5932, %v5933
      %v6126 = vsel %vm6029, %v5931, %v5932
      %v6127 = vsel %vm6029, %v5930, %v5931
      %v6128 = vsel %vm6029, %v5929, %v5930
      %v6129 = vsel %vm6029, %v5928, %v5929
      %v6130 = vsel %vm6029, %v5927, %v5928
      %v6131 = vsel %vm6029, %v5926, %v5927
      %v6132 = vsel %vm6029, %v5925, %v5926
      %v6133 = vsel %vm6029, %v5924, %v5925
      %v6134 = vsel %vm6029, %v5923, %v5924
      %v6135 = vsel %vm6029, %v5922, %v5923
      %v6136 = vsel %vm6029, %v5921, %v5922
      %v6137 = vsel %vm6029, %v5920, %v5921
      %v6138 = vsel %vm6029, %v5919, %v5920
      %v6139 = vsel %vm6029, %v5918, %v5919
      %v6140 = vsel %vm6029, %v5917, %v5918
      %v6141 = vsel %vm6029, %v6028, %v5917
      %v6142 = vadd.f32 %v5357, %v6140
      %v6143 = vadd.f32 %v5358, %v6139
      %v6144 = vadd.f32 %v5359, %v6138
      %v6145 = vadd.f32 %v5360, %v6137
      %v6146 = vadd.f32 %v5361, %v6136
      %v6147 = vadd.f32 %v5362, %v6135
      %v6148 = vadd.f32 %v5363, %v6134
      %v6149 = vadd.f32 %v5364, %v6133
      %v6150 = vadd.f32 %v5365, %v6132
      %v6151 = vadd.f32 %v5366, %v6131
      %v6152 = vadd.f32 %v5367, %v6130
      %v6153 = vadd.f32 %v5368, %v6129
      %v6154 = vadd.f32 %v5369, %v6128
      %v6155 = vadd.f32 %v5370, %v6127
      %v6156 = vadd.f32 %v5371, %v6126
      %v6157 = vadd.f32 %v5372, %v6125
      %v6158 = vadd.f32 %v5373, %v6124
      %v6159 = vadd.f32 %v5374, %v6123
      %v6160 = vadd.f32 %v5375, %v6122
      %v6161 = vadd.f32 %v5376, %v6121
      %v6162 = vadd.f32 %v5377, %v6120
      %v6163 = vadd.f32 %v5378, %v6119
      %v6164 = vadd.f32 %v5379, %v6118
      %v6165 = vadd.f32 %v5380, %v6117
      %v6166 = vadd.f32 %v5381, %v6116
      %v6167 = vadd.f32 %v5382, %v6115
      %v6168 = vadd.f32 %v5383, %v6114
      %v6169 = vadd.f32 %v5384, %v6113
      %v6170 = vadd.f32 %v5385, %v6112
      %v6171 = vadd.f32 %v5386, %v6111
      %v6172 = vadd.f32 %v5387, %v6110
      %v6173 = vadd.f32 %v5388, %v6109
      %v6174 = vadd.f32 %v5389, %v6108
      %v6175 = vadd.f32 %v5390, %v6107
      %v6176 = vadd.f32 %v5391, %v6106
      %v6177 = vadd.f32 %v5392, %v6105
      %v6178 = vadd.f32 %v5393, %v6104
      %v6179 = vadd.f32 %v5394, %v6103
      %v6180 = vadd.f32 %v5395, %v6102
      %v6181 = vadd.f32 %v5396, %v6101
      %v6182 = vadd.f32 %v5397, %v6100
      %v6183 = vadd.f32 %v5398, %v6099
      %v6184 = vadd.f32 %v5399, %v6098
      %v6185 = vadd.f32 %v5400, %v6097
      %v6186 = vadd.f32 %v5401, %v6096
      %v6187 = vadd.f32 %v5402, %v6095
      %v6188 = vadd.f32 %v5403, %v6094
      %v6189 = vadd.f32 %v5404, %v6093
      %v6190 = vadd.f32 %v5405, %v6092
      %v6191 = vadd.f32 %v5406, %v6091
      %v6192 = vadd.f32 %v5407, %v6090
      %v6193 = vadd.f32 %v5408, %v6089
      %v6194 = vadd.f32 %v5409, %v6088
      %v6195 = vadd.f32 %v5410, %v6087
      %v6196 = vadd.f32 %v5411, %v6086
      %v6197 = vadd.f32 %v5412, %v6085
      %v6198 = vadd.f32 %v5413, %v6084
      %v6199 = vadd.f32 %v5414, %v6083
      %v6200 = vadd.f32 %v5415, %v6082
      %v6201 = vadd.f32 %v5416, %v6081
      %v6202 = vadd.f32 %v5417, %v6080
      %v6203 = vadd.f32 %v5418, %v6079
      %v6204 = vadd.f32 %v5419, %v6078
      %v6205 = vadd.f32 %v5420, %v6077
      %v6206 = vadd.f32 %v5421, %v6076
      %v6207 = vadd.f32 %v5422, %v6075
      %v6208 = vadd.f32 %v5423, %v6074
      %v6209 = vadd.f32 %v5424, %v6073
      %v6210 = vadd.f32 %v5425, %v6072
      %v6211 = vadd.f32 %v5426, %v6071
      %v6212 = vadd.f32 %v5427, %v6070
      %v6213 = vadd.f32 %v5428, %v6069
      %v6214 = vadd.f32 %v5429, %v6068
      %v6215 = vadd.f32 %v5430, %v6067
      %v6216 = vadd.f32 %v5431, %v6066
      %v6217 = vadd.f32 %v5432, %v6065
      %v6218 = vadd.f32 %v5433, %v6064
      %v6219 = vadd.f32 %v5434, %v6063
      %v6220 = vadd.f32 %v5435, %v6062
      %v6221 = vadd.f32 %v5436, %v6061
      %v6222 = vadd.f32 %v5437, %v6060
      %v6223 = vadd.f32 %v5438, %v6059
      %v6224 = vadd.f32 %v5439, %v6058
      %v6225 = vadd.f32 %v5440, %v6057
      %v6226 = vadd.f32 %v5441, %v6056
      %v6227 = vadd.f32 %v5442, %v6055
      %v6228 = vadd.f32 %v5443, %v6054
      %v6229 = vadd.f32 %v5444, %v6053
      %v6230 = vadd.f32 %v5445, %v6052
      %v6231 = vadd.f32 %v5446, %v6051
      %v6232 = vadd.f32 %v5447, %v6050
      %v6233 = vadd.f32 %v5448, %v6049
      %v6234 = vadd.f32 %v5449, %v6048
      %v6235 = vadd.f32 %v5450, %v6047
      %v6236 = vadd.f32 %v5451, %v6046
      %v6237 = vadd.f32 %v5452, %v6045
      %v6238 = vadd.f32 %v5453, %v6044
      %v6239 = vadd.f32 %v5454, %v6043
      %v6240 = vadd.f32 %v5455, %v6042
      %v6241 = vadd.f32 %v5456, %v6041
      %v6242 = vadd.f32 %v5457, %v6040
      %v6243 = vadd.f32 %v5458, %v6039
      %v6244 = vadd.f32 %v5459, %v6038
      %v6245 = vadd.f32 %v5460, %v6037
      %v6246 = vadd.f32 %v5461, %v6036
      %v6247 = vadd.f32 %v5462, %v6035
      %v6248 = vadd.f32 %v5463, %v6034
      %v6249 = vadd.f32 %v5464, %v6033
      %v6250 = vadd.f32 %v5465, %v6032
      %v6251 = vadd.f32 %v5466, %v6031
      %v6252 = vadd.f32 %v5467, %v6030
      %v6253 = vadd.f32 %v5468, %v6141
      %v6254 = vrot.slane %v3899, 4
      %v6255 = vrot.slane %v3902, 4
      %v6256 = vrot.slane %v3907, 4
      %v6257 = vrot.slane %v3910, 4
      %v6258 = vrot.slane %v3915, 4
      %v6259 = vrot.slane %v3918, 4
      %v6260 = vrot.slane %v3923, 4
      %v6261 = vrot.slane %v3926, 4
      %v6262 = vrot.slane %v3931, 4
      %v6263 = vrot.slane %v3934, 4
      %v6264 = vrot.slane %v3939, 4
      %v6265 = vrot.slane %v3942, 4
      %v6266 = vrot.slane %v3947, 4
      %v6267 = vrot.slane %v3950, 4
      %v6268 = vrot.slane %v3955, 4
      %v6269 = vrot.slane %v3958, 4
      %v6270 = vrot.slane %v3963, 4
      %v6271 = vrot.slane %v3966, 4
      %v6272 = vrot.slane %v3971, 4
      %v6273 = vrot.slane %v3974, 4
      %v6274 = vrot.slane %v3979, 4
      %v6275 = vrot.slane %v3982, 4
      %v6276 = vrot.slane %v3987, 4
      %v6277 = vrot.slane %v3990, 4
      %v6278 = vrot.slane %v3995, 4
      %v6279 = vrot.slane %v3998, 4
      %v6280 = vrot.slane %v4003, 4
      %v6281 = vrot.slane %v4006, 4
      %v6282 = vrot.slane %v4011, 4
      %v6283 = vrot.slane %v4014, 4
      %v6284 = vrot.slane %v4019, 4
      %v6285 = vrot.slane %v4022, 4
      %v6286 = vrot.slane %v4027, 4
      %v6287 = vrot.slane %v4030, 4
      %v6288 = vrot.slane %v4035, 4
      %v6289 = vrot.slane %v4038, 4
      %v6290 = vrot.slane %v4043, 4
      %v6291 = vrot.slane %v4046, 4
      %v6292 = vrot.slane %v4051, 4
      %v6293 = vrot.slane %v4054, 4
      %v6294 = vrot.slane %v4059, 4
      %v6295 = vrot.slane %v4062, 4
      %v6296 = vrot.slane %v4067, 4
      %v6297 = vrot.slane %v4070, 4
      %v6298 = vrot.slane %v4075, 4
      %v6299 = vrot.slane %v4078, 4
      %v6300 = vrot.slane %v4083, 4
      %v6301 = vrot.slane %v4086, 4
      %v6302 = vrot.slane %v4091, 4
      %v6303 = vrot.slane %v4094, 4
      %v6304 = vrot.slane %v4099, 4
      %v6305 = vrot.slane %v4102, 4
      %v6306 = vrot.slane %v4107, 4
      %v6307 = vrot.slane %v4110, 4
      %v6308 = vrot.slane %v4115, 4
      %v6309 = vrot.slane %v4118, 4
      %v6310 = vrot.slane %v4123, 4
      %v6311 = vrot.slane %v4126, 4
      %v6312 = vrot.slane %v4131, 4
      %v6313 = vrot.slane %v4134, 4
      %v6314 = vrot.slane %v4139, 4
      %v6315 = vrot.slane %v4142, 4
      %v6316 = vrot.slane %v4147, 4
      %v6317 = vrot.slane %v4150, 4
      %v6318 = vrot.slane %v4155, 4
      %v6319 = vrot.slane %v4158, 4
      %v6320 = vrot.slane %v4163, 4
      %v6321 = vrot.slane %v4166, 4
      %v6322 = vrot.slane %v4171, 4
      %v6323 = vrot.slane %v4174, 4
      %v6324 = vrot.slane %v4179, 4
      %v6325 = vrot.slane %v4182, 4
      %v6326 = vrot.slane %v4187, 4
      %v6327 = vrot.slane %v4190, 4
      %v6328 = vrot.slane %v4195, 4
      %v6329 = vrot.slane %v4198, 4
      %v6330 = vrot.slane %v4203, 4
      %v6331 = vrot.slane %v4206, 4
      %v6332 = vrot.slane %v4211, 4
      %v6333 = vrot.slane %v4214, 4
      %v6334 = vrot.slane %v4219, 4
      %v6335 = vrot.slane %v4222, 4
      %v6336 = vrot.slane %v4227, 4
      %v6337 = vrot.slane %v4230, 4
      %v6338 = vrot.slane %v4235, 4
      %v6339 = vrot.slane %v4238, 4
      %v6340 = vrot.slane %v4243, 4
      %v6341 = vrot.slane %v4246, 4
      %v6342 = vrot.slane %v4251, 4
      %v6343 = vrot.slane %v4254, 4
      %v6344 = vrot.slane %v4259, 4
      %v6345 = vrot.slane %v4262, 4
      %v6346 = vrot.slane %v4267, 4
      %v6347 = vrot.slane %v4270, 4
      %v6348 = vrot.slane %v4275, 4
      %v6349 = vrot.slane %v4278, 4
      %v6350 = vrot.slane %v4283, 4
      %v6351 = vrot.slane %v4286, 4
      %v6352 = vrot.slane %v4291, 4
      %v6353 = vrot.slane %v4294, 4
      %v6354 = vrot.slane %v4299, 4
      %v6355 = vrot.slane %v4302, 4
      %v6356 = vrot.slane %v4307, 4
      %v6357 = vrot.slane %v4310, 4
      %v6358 = vrot.slane %v4315, 4
      %v6359 = vrot.slane %v4318, 4
      %v6360 = vrot.slane %v4323, 4
      %v6361 = vrot.slane %v4326, 4
      %v6362 = vrot.slane %v4331, 4
      %v6363 = vrot.slane %v4334, 4
      %v6364 = vrot.slane %v4339, 4
      %v6365 = vrot.slane %v4342, 4
      %vm6366 = vcmp.lt.s32.totalorder %v4906, 4
      %v6367 = vsel %vm6366, %v6364, %v6365
      %v6368 = vsel %vm6366, %v6363, %v6364
      %v6369 = vsel %vm6366, %v6362, %v6363
      %v6370 = vsel %vm6366, %v6361, %v6362
      %v6371 = vsel %vm6366, %v6360, %v6361
      %v6372 = vsel %vm6366, %v6359, %v6360
      %v6373 = vsel %vm6366, %v6358, %v6359
      %v6374 = vsel %vm6366, %v6357, %v6358
      %v6375 = vsel %vm6366, %v6356, %v6357
      %v6376 = vsel %vm6366, %v6355, %v6356
      %v6377 = vsel %vm6366, %v6354, %v6355
      %v6378 = vsel %vm6366, %v6353, %v6354
      %v6379 = vsel %vm6366, %v6352, %v6353
      %v6380 = vsel %vm6366, %v6351, %v6352
      %v6381 = vsel %vm6366, %v6350, %v6351
      %v6382 = vsel %vm6366, %v6349, %v6350
      %v6383 = vsel %vm6366, %v6348, %v6349
      %v6384 = vsel %vm6366, %v6347, %v6348
      %v6385 = vsel %vm6366, %v6346, %v6347
      %v6386 = vsel %vm6366, %v6345, %v6346
      %v6387 = vsel %vm6366, %v6344, %v6345
      %v6388 = vsel %vm6366, %v6343, %v6344
      %v6389 = vsel %vm6366, %v6342, %v6343
      %v6390 = vsel %vm6366, %v6341, %v6342
      %v6391 = vsel %vm6366, %v6340, %v6341
      %v6392 = vsel %vm6366, %v6339, %v6340
      %v6393 = vsel %vm6366, %v6338, %v6339
      %v6394 = vsel %vm6366, %v6337, %v6338
      %v6395 = vsel %vm6366, %v6336, %v6337
      %v6396 = vsel %vm6366, %v6335, %v6336
      %v6397 = vsel %vm6366, %v6334, %v6335
      %v6398 = vsel %vm6366, %v6333, %v6334
      %v6399 = vsel %vm6366, %v6332, %v6333
      %v6400 = vsel %vm6366, %v6331, %v6332
      %v6401 = vsel %vm6366, %v6330, %v6331
      %v6402 = vsel %vm6366, %v6329, %v6330
      %v6403 = vsel %vm6366, %v6328, %v6329
      %v6404 = vsel %vm6366, %v6327, %v6328
      %v6405 = vsel %vm6366, %v6326, %v6327
      %v6406 = vsel %vm6366, %v6325, %v6326
      %v6407 = vsel %vm6366, %v6324, %v6325
      %v6408 = vsel %vm6366, %v6323, %v6324
      %v6409 = vsel %vm6366, %v6322, %v6323
      %v6410 = vsel %vm6366, %v6321, %v6322
      %v6411 = vsel %vm6366, %v6320, %v6321
      %v6412 = vsel %vm6366, %v6319, %v6320
      %v6413 = vsel %vm6366, %v6318, %v6319
      %v6414 = vsel %vm6366, %v6317, %v6318
      %v6415 = vsel %vm6366, %v6316, %v6317
      %v6416 = vsel %vm6366, %v6315, %v6316
      %v6417 = vsel %vm6366, %v6314, %v6315
      %v6418 = vsel %vm6366, %v6313, %v6314
      %v6419 = vsel %vm6366, %v6312, %v6313
      %v6420 = vsel %vm6366, %v6311, %v6312
      %v6421 = vsel %vm6366, %v6310, %v6311
      %v6422 = vsel %vm6366, %v6309, %v6310
      %v6423 = vsel %vm6366, %v6308, %v6309
      %v6424 = vsel %vm6366, %v6307, %v6308
      %v6425 = vsel %vm6366, %v6306, %v6307
      %v6426 = vsel %vm6366, %v6305, %v6306
      %v6427 = vsel %vm6366, %v6304, %v6305
      %v6428 = vsel %vm6366, %v6303, %v6304
      %v6429 = vsel %vm6366, %v6302, %v6303
      %v6430 = vsel %vm6366, %v6301, %v6302
      %v6431 = vsel %vm6366, %v6300, %v6301
      %v6432 = vsel %vm6366, %v6299, %v6300
      %v6433 = vsel %vm6366, %v6298, %v6299
      %v6434 = vsel %vm6366, %v6297, %v6298
      %v6435 = vsel %vm6366, %v6296, %v6297
      %v6436 = vsel %vm6366, %v6295, %v6296
      %v6437 = vsel %vm6366, %v6294, %v6295
      %v6438 = vsel %vm6366, %v6293, %v6294
      %v6439 = vsel %vm6366, %v6292, %v6293
      %v6440 = vsel %vm6366, %v6291, %v6292
      %v6441 = vsel %vm6366, %v6290, %v6291
      %v6442 = vsel %vm6366, %v6289, %v6290
      %v6443 = vsel %vm6366, %v6288, %v6289
      %v6444 = vsel %vm6366, %v6287, %v6288
      %v6445 = vsel %vm6366, %v6286, %v6287
      %v6446 = vsel %vm6366, %v6285, %v6286
      %v6447 = vsel %vm6366, %v6284, %v6285
      %v6448 = vsel %vm6366, %v6283, %v6284
      %v6449 = vsel %vm6366, %v6282, %v6283
      %v6450 = vsel %vm6366, %v6281, %v6282
      %v6451 = vsel %vm6366, %v6280, %v6281
      %v6452 = vsel %vm6366, %v6279, %v6280
      %v6453 = vsel %vm6366, %v6278, %v6279
      %v6454 = vsel %vm6366, %v6277, %v6278
      %v6455 = vsel %vm6366, %v6276, %v6277
      %v6456 = vsel %vm6366, %v6275, %v6276
      %v6457 = vsel %vm6366, %v6274, %v6275
      %v6458 = vsel %vm6366, %v6273, %v6274
      %v6459 = vsel %vm6366, %v6272, %v6273
      %v6460 = vsel %vm6366, %v6271, %v6272
      %v6461 = vsel %vm6366, %v6270, %v6271
      %v6462 = vsel %vm6366, %v6269, %v6270
      %v6463 = vsel %vm6366, %v6268, %v6269
      %v6464 = vsel %vm6366, %v6267, %v6268
      %v6465 = vsel %vm6366, %v6266, %v6267
      %v6466 = vsel %vm6366, %v6265, %v6266
      %v6467 = vsel %vm6366, %v6264, %v6265
      %v6468 = vsel %vm6366, %v6263, %v6264
      %v6469 = vsel %vm6366, %v6262, %v6263
      %v6470 = vsel %vm6366, %v6261, %v6262
      %v6471 = vsel %vm6366, %v6260, %v6261
      %v6472 = vsel %vm6366, %v6259, %v6260
      %v6473 = vsel %vm6366, %v6258, %v6259
      %v6474 = vsel %vm6366, %v6257, %v6258
      %v6475 = vsel %vm6366, %v6256, %v6257
      %v6476 = vsel %vm6366, %v6255, %v6256
      %v6477 = vsel %vm6366, %v6254, %v6255
      %v6478 = vsel %vm6366, %v6365, %v6254
      %v6479 = vadd.f32 %v6142, %v6477
      %v6480 = vadd.f32 %v6143, %v6476
      %v6481 = vadd.f32 %v6144, %v6475
      %v6482 = vadd.f32 %v6145, %v6474
      %v6483 = vadd.f32 %v6146, %v6473
      %v6484 = vadd.f32 %v6147, %v6472
      %v6485 = vadd.f32 %v6148, %v6471
      %v6486 = vadd.f32 %v6149, %v6470
      %v6487 = vadd.f32 %v6150, %v6469
      %v6488 = vadd.f32 %v6151, %v6468
      %v6489 = vadd.f32 %v6152, %v6467
      %v6490 = vadd.f32 %v6153, %v6466
      %v6491 = vadd.f32 %v6154, %v6465
      %v6492 = vadd.f32 %v6155, %v6464
      %v6493 = vadd.f32 %v6156, %v6463
      %v6494 = vadd.f32 %v6157, %v6462
      %v6495 = vadd.f32 %v6158, %v6461
      %v6496 = vadd.f32 %v6159, %v6460
      %v6497 = vadd.f32 %v6160, %v6459
      %v6498 = vadd.f32 %v6161, %v6458
      %v6499 = vadd.f32 %v6162, %v6457
      %v6500 = vadd.f32 %v6163, %v6456
      %v6501 = vadd.f32 %v6164, %v6455
      %v6502 = vadd.f32 %v6165, %v6454
      %v6503 = vadd.f32 %v6166, %v6453
      %v6504 = vadd.f32 %v6167, %v6452
      %v6505 = vadd.f32 %v6168, %v6451
      %v6506 = vadd.f32 %v6169, %v6450
      %v6507 = vadd.f32 %v6170, %v6449
      %v6508 = vadd.f32 %v6171, %v6448
      %v6509 = vadd.f32 %v6172, %v6447
      %v6510 = vadd.f32 %v6173, %v6446
      %v6511 = vadd.f32 %v6174, %v6445
      %v6512 = vadd.f32 %v6175, %v6444
      %v6513 = vadd.f32 %v6176, %v6443
      %v6514 = vadd.f32 %v6177, %v6442
      %v6515 = vadd.f32 %v6178, %v6441
      %v6516 = vadd.f32 %v6179, %v6440
      %v6517 = vadd.f32 %v6180, %v6439
      %v6518 = vadd.f32 %v6181, %v6438
      %v6519 = vadd.f32 %v6182, %v6437
      %v6520 = vadd.f32 %v6183, %v6436
      %v6521 = vadd.f32 %v6184, %v6435
      %v6522 = vadd.f32 %v6185, %v6434
      %v6523 = vadd.f32 %v6186, %v6433
      %v6524 = vadd.f32 %v6187, %v6432
      %v6525 = vadd.f32 %v6188, %v6431
      %v6526 = vadd.f32 %v6189, %v6430
      %v6527 = vadd.f32 %v6190, %v6429
      %v6528 = vadd.f32 %v6191, %v6428
      %v6529 = vadd.f32 %v6192, %v6427
      %v6530 = vadd.f32 %v6193, %v6426
      %v6531 = vadd.f32 %v6194, %v6425
      %v6532 = vadd.f32 %v6195, %v6424
      %v6533 = vadd.f32 %v6196, %v6423
      %v6534 = vadd.f32 %v6197, %v6422
      %v6535 = vadd.f32 %v6198, %v6421
      %v6536 = vadd.f32 %v6199, %v6420
      %v6537 = vadd.f32 %v6200, %v6419
      %v6538 = vadd.f32 %v6201, %v6418
      %v6539 = vadd.f32 %v6202, %v6417
      %v6540 = vadd.f32 %v6203, %v6416
      %v6541 = vadd.f32 %v6204, %v6415
      %v6542 = vadd.f32 %v6205, %v6414
      %v6543 = vadd.f32 %v6206, %v6413
      %v6544 = vadd.f32 %v6207, %v6412
      %v6545 = vadd.f32 %v6208, %v6411
      %v6546 = vadd.f32 %v6209, %v6410
      %v6547 = vadd.f32 %v6210, %v6409
      %v6548 = vadd.f32 %v6211, %v6408
      %v6549 = vadd.f32 %v6212, %v6407
      %v6550 = vadd.f32 %v6213, %v6406
      %v6551 = vadd.f32 %v6214, %v6405
      %v6552 = vadd.f32 %v6215, %v6404
      %v6553 = vadd.f32 %v6216, %v6403
      %v6554 = vadd.f32 %v6217, %v6402
      %v6555 = vadd.f32 %v6218, %v6401
      %v6556 = vadd.f32 %v6219, %v6400
      %v6557 = vadd.f32 %v6220, %v6399
      %v6558 = vadd.f32 %v6221, %v6398
      %v6559 = vadd.f32 %v6222, %v6397
      %v6560 = vadd.f32 %v6223, %v6396
      %v6561 = vadd.f32 %v6224, %v6395
      %v6562 = vadd.f32 %v6225, %v6394
      %v6563 = vadd.f32 %v6226, %v6393
      %v6564 = vadd.f32 %v6227, %v6392
      %v6565 = vadd.f32 %v6228, %v6391
      %v6566 = vadd.f32 %v6229, %v6390
      %v6567 = vadd.f32 %v6230, %v6389
      %v6568 = vadd.f32 %v6231, %v6388
      %v6569 = vadd.f32 %v6232, %v6387
      %v6570 = vadd.f32 %v6233, %v6386
      %v6571 = vadd.f32 %v6234, %v6385
      %v6572 = vadd.f32 %v6235, %v6384
      %v6573 = vadd.f32 %v6236, %v6383
      %v6574 = vadd.f32 %v6237, %v6382
      %v6575 = vadd.f32 %v6238, %v6381
      %v6576 = vadd.f32 %v6239, %v6380
      %v6577 = vadd.f32 %v6240, %v6379
      %v6578 = vadd.f32 %v6241, %v6378
      %v6579 = vadd.f32 %v6242, %v6377
      %v6580 = vadd.f32 %v6243, %v6376
      %v6581 = vadd.f32 %v6244, %v6375
      %v6582 = vadd.f32 %v6245, %v6374
      %v6583 = vadd.f32 %v6246, %v6373
      %v6584 = vadd.f32 %v6247, %v6372
      %v6585 = vadd.f32 %v6248, %v6371
      %v6586 = vadd.f32 %v6249, %v6370
      %v6587 = vadd.f32 %v6250, %v6369
      %v6588 = vadd.f32 %v6251, %v6368
      %v6589 = vadd.f32 %v6252, %v6367
      %v6590 = vadd.f32 %v6253, %v6478
      %v6591 = vld [vmem:[%s4] sm:$0x1]
      %v6593 = vlaneseq
      %v6594 = vshrl.u32 %v6593, 7
      %v6595 = vsub.s32 0, %v6594
      %v6596 = vrot.slane %v6591, %v6595
      %v6598 = vadd.f32 %v6479, %v6596
      %v6599 = vadd.f32 %v6480, %v6596
      %v6600 = vadd.f32 %v6481, %v6596
      %v6601 = vadd.f32 %v6482, %v6596
      %v6602 = vadd.f32 %v6483, %v6596
      %v6603 = vadd.f32 %v6484, %v6596
      %v6604 = vadd.f32 %v6485, %v6596
      %v6605 = vadd.f32 %v6486, %v6596
      %v6606 = vadd.f32 %v6487, %v6596
      %v6607 = vadd.f32 %v6488, %v6596
      %v6608 = vadd.f32 %v6489, %v6596
      %v6609 = vadd.f32 %v6490, %v6596
      %v6610 = vadd.f32 %v6491, %v6596
      %v6611 = vadd.f32 %v6492, %v6596
      %v6612 = vadd.f32 %v6493, %v6596
      %v6613 = vadd.f32 %v6494, %v6596
      %v6614 = vadd.f32 %v6495, %v6596
      %v6615 = vadd.f32 %v6496, %v6596
      %v6616 = vadd.f32 %v6497, %v6596
      %v6617 = vadd.f32 %v6498, %v6596
      %v6618 = vadd.f32 %v6499, %v6596
      %v6619 = vadd.f32 %v6500, %v6596
      %v6620 = vadd.f32 %v6501, %v6596
      %v6621 = vadd.f32 %v6502, %v6596
      %v6622 = vadd.f32 %v6503, %v6596
      %v6623 = vadd.f32 %v6504, %v6596
      %v6624 = vadd.f32 %v6505, %v6596
      %v6625 = vadd.f32 %v6506, %v6596
      %v6626 = vadd.f32 %v6507, %v6596
      %v6627 = vadd.f32 %v6508, %v6596
      %v6628 = vadd.f32 %v6509, %v6596
      %v6629 = vadd.f32 %v6510, %v6596
      %v6630 = vadd.f32 %v6511, %v6596
      %v6631 = vadd.f32 %v6512, %v6596
      %v6632 = vadd.f32 %v6513, %v6596
      %v6633 = vadd.f32 %v6514, %v6596
      %v6634 = vadd.f32 %v6515, %v6596
      %v6635 = vadd.f32 %v6516, %v6596
      %v6636 = vadd.f32 %v6517, %v6596
      %v6637 = vadd.f32 %v6518, %v6596
      %v6638 = vadd.f32 %v6519, %v6596
      %v6639 = vadd.f32 %v6520, %v6596
      %v6640 = vadd.f32 %v6521, %v6596
      %v6641 = vadd.f32 %v6522, %v6596
      %v6642 = vadd.f32 %v6523, %v6596
      %v6643 = vadd.f32 %v6524, %v6596
      %v6644 = vadd.f32 %v6525, %v6596
      %v6645 = vadd.f32 %v6526, %v6596
      %v6646 = vadd.f32 %v6527, %v6596
      %v6647 = vadd.f32 %v6528, %v6596
      %v6648 = vadd.f32 %v6529, %v6596
      %v6649 = vadd.f32 %v6530, %v6596
      %v6650 = vadd.f32 %v6531, %v6596
      %v6651 = vadd.f32 %v6532, %v6596
      %v6652 = vadd.f32 %v6533, %v6596
      %v6653 = vadd.f32 %v6534, %v6596
      %v6654 = vadd.f32 %v6535, %v6596
      %v6655 = vadd.f32 %v6536, %v6596
      %v6656 = vadd.f32 %v6537, %v6596
      %v6657 = vadd.f32 %v6538, %v6596
      %v6658 = vadd.f32 %v6539, %v6596
      %v6659 = vadd.f32 %v6540, %v6596
      %v6660 = vadd.f32 %v6541, %v6596
      %v6661 = vadd.f32 %v6542, %v6596
      %v6662 = vadd.f32 %v6543, %v6596
      %v6663 = vadd.f32 %v6544, %v6596
      %v6664 = vadd.f32 %v6545, %v6596
      %v6665 = vadd.f32 %v6546, %v6596
      %v6666 = vadd.f32 %v6547, %v6596
      %v6667 = vadd.f32 %v6548, %v6596
      %v6668 = vadd.f32 %v6549, %v6596
      %v6669 = vadd.f32 %v6550, %v6596
      %v6670 = vadd.f32 %v6551, %v6596
      %v6671 = vadd.f32 %v6552, %v6596
      %v6672 = vadd.f32 %v6553, %v6596
      %v6673 = vadd.f32 %v6554, %v6596
      %v6674 = vadd.f32 %v6555, %v6596
      %v6675 = vadd.f32 %v6556, %v6596
      %v6676 = vadd.f32 %v6557, %v6596
      %v6677 = vadd.f32 %v6558, %v6596
      %v6678 = vadd.f32 %v6559, %v6596
      %v6679 = vadd.f32 %v6560, %v6596
      %v6680 = vadd.f32 %v6561, %v6596
      %v6681 = vadd.f32 %v6562, %v6596
      %v6682 = vadd.f32 %v6563, %v6596
      %v6683 = vadd.f32 %v6564, %v6596
      %v6684 = vadd.f32 %v6565, %v6596
      %v6685 = vadd.f32 %v6566, %v6596
      %v6686 = vadd.f32 %v6567, %v6596
      %v6687 = vadd.f32 %v6568, %v6596
      %v6688 = vadd.f32 %v6569, %v6596
      %v6689 = vadd.f32 %v6570, %v6596
      %v6690 = vadd.f32 %v6571, %v6596
      %v6691 = vadd.f32 %v6572, %v6596
      %v6692 = vadd.f32 %v6573, %v6596
      %v6693 = vadd.f32 %v6574, %v6596
      %v6694 = vadd.f32 %v6575, %v6596
      %v6695 = vadd.f32 %v6576, %v6596
      %v6696 = vadd.f32 %v6577, %v6596
      %v6697 = vadd.f32 %v6578, %v6596
      %v6698 = vadd.f32 %v6579, %v6596
      %v6699 = vadd.f32 %v6580, %v6596
      %v6700 = vadd.f32 %v6581, %v6596
      %v6701 = vadd.f32 %v6582, %v6596
      %v6702 = vadd.f32 %v6583, %v6596
      %v6703 = vadd.f32 %v6584, %v6596
      %v6704 = vadd.f32 %v6585, %v6596
      %v6705 = vadd.f32 %v6586, %v6596
      %v6706 = vadd.f32 %v6587, %v6596
      %v6707 = vadd.f32 %v6588, %v6596
      %v6708 = vadd.f32 %v6589, %v6596
      %v6709 = vadd.f32 %v6590, %v6596
      %vm6710 = vcmp.gt.f32.partialorder %v6598, 0.0
      %vm6711 = vcmp.gt.f32.partialorder %v6599, 0.0
      %vm6712 = vcmp.gt.f32.partialorder %v6600, 0.0
      %vm6713 = vcmp.gt.f32.partialorder %v6601, 0.0
      %vm6714 = vcmp.gt.f32.partialorder %v6602, 0.0
      %vm6715 = vcmp.gt.f32.partialorder %v6603, 0.0
      %vm6716 = vcmp.gt.f32.partialorder %v6604, 0.0
      %vm6717 = vcmp.gt.f32.partialorder %v6605, 0.0
      %vm6718 = vcmp.gt.f32.partialorder %v6606, 0.0
      %vm6719 = vcmp.gt.f32.partialorder %v6607, 0.0
      %vm6720 = vcmp.gt.f32.partialorder %v6608, 0.0
      %vm6721 = vcmp.gt.f32.partialorder %v6609, 0.0
      %vm6722 = vcmp.gt.f32.partialorder %v6610, 0.0
      %vm6723 = vcmp.gt.f32.partialorder %v6611, 0.0
      %vm6724 = vcmp.gt.f32.partialorder %v6612, 0.0
      %vm6725 = vcmp.gt.f32.partialorder %v6613, 0.0
      %vm6726 = vcmp.gt.f32.partialorder %v6614, 0.0
      %vm6727 = vcmp.gt.f32.partialorder %v6615, 0.0
      %vm6728 = vcmp.gt.f32.partialorder %v6616, 0.0
      %vm6729 = vcmp.gt.f32.partialorder %v6617, 0.0
      %vm6730 = vcmp.gt.f32.partialorder %v6618, 0.0
      %vm6731 = vcmp.gt.f32.partialorder %v6619, 0.0
      %vm6732 = vcmp.gt.f32.partialorder %v6620, 0.0
      %vm6733 = vcmp.gt.f32.partialorder %v6621, 0.0
      %vm6734 = vcmp.gt.f32.partialorder %v6622, 0.0
      %vm6735 = vcmp.gt.f32.partialorder %v6623, 0.0
      %vm6736 = vcmp.gt.f32.partialorder %v6624, 0.0
      %vm6737 = vcmp.gt.f32.partialorder %v6625, 0.0
      %vm6738 = vcmp.gt.f32.partialorder %v6626, 0.0
      %vm6739 = vcmp.gt.f32.partialorder %v6627, 0.0
      %vm6740 = vcmp.gt.f32.partialorder %v6628, 0.0
      %vm6741 = vcmp.gt.f32.partialorder %v6629, 0.0
      %vm6742 = vcmp.gt.f32.partialorder %v6630, 0.0
      %vm6743 = vcmp.gt.f32.partialorder %v6631, 0.0
      %vm6744 = vcmp.gt.f32.partialorder %v6632, 0.0
      %vm6745 = vcmp.gt.f32.partialorder %v6633, 0.0
      %vm6746 = vcmp.gt.f32.partialorder %v6634, 0.0
      %vm6747 = vcmp.gt.f32.partialorder %v6635, 0.0
      %vm6748 = vcmp.gt.f32.partialorder %v6636, 0.0
      %vm6749 = vcmp.gt.f32.partialorder %v6637, 0.0
      %vm6750 = vcmp.gt.f32.partialorder %v6638, 0.0
      %vm6751 = vcmp.gt.f32.partialorder %v6639, 0.0
      %vm6752 = vcmp.gt.f32.partialorder %v6640, 0.0
      %vm6753 = vcmp.gt.f32.partialorder %v6641, 0.0
      %vm6754 = vcmp.gt.f32.partialorder %v6642, 0.0
      %vm6755 = vcmp.gt.f32.partialorder %v6643, 0.0
      %vm6756 = vcmp.gt.f32.partialorder %v6644, 0.0
      %vm6757 = vcmp.gt.f32.partialorder %v6645, 0.0
      %vm6758 = vcmp.gt.f32.partialorder %v6646, 0.0
      %vm6759 = vcmp.gt.f32.partialorder %v6647, 0.0
      %vm6760 = vcmp.gt.f32.partialorder %v6648, 0.0
      %vm6761 = vcmp.gt.f32.partialorder %v6649, 0.0
      %vm6762 = vcmp.gt.f32.partialorder %v6650, 0.0
      %vm6763 = vcmp.gt.f32.partialorder %v6651, 0.0
      %vm6764 = vcmp.gt.f32.partialorder %v6652, 0.0
      %vm6765 = vcmp.gt.f32.partialorder %v6653, 0.0
      %vm6766 = vcmp.gt.f32.partialorder %v6654, 0.0
      %vm6767 = vcmp.gt.f32.partialorder %v6655, 0.0
      %vm6768 = vcmp.gt.f32.partialorder %v6656, 0.0
      %vm6769 = vcmp.gt.f32.partialorder %v6657, 0.0
      %vm6770 = vcmp.gt.f32.partialorder %v6658, 0.0
      %vm6771 = vcmp.gt.f32.partialorder %v6659, 0.0
      %vm6772 = vcmp.gt.f32.partialorder %v6660, 0.0
      %vm6773 = vcmp.gt.f32.partialorder %v6661, 0.0
      %vm6774 = vcmp.gt.f32.partialorder %v6662, 0.0
      %vm6775 = vcmp.gt.f32.partialorder %v6663, 0.0
      %vm6776 = vcmp.gt.f32.partialorder %v6664, 0.0
      %vm6777 = vcmp.gt.f32.partialorder %v6665, 0.0
      %vm6778 = vcmp.gt.f32.partialorder %v6666, 0.0
      %vm6779 = vcmp.gt.f32.partialorder %v6667, 0.0
      %vm6780 = vcmp.gt.f32.partialorder %v6668, 0.0
      %vm6781 = vcmp.gt.f32.partialorder %v6669, 0.0
      %vm6782 = vcmp.gt.f32.partialorder %v6670, 0.0
      %vm6783 = vcmp.gt.f32.partialorder %v6671, 0.0
      %vm6784 = vcmp.gt.f32.partialorder %v6672, 0.0
      %vm6785 = vcmp.gt.f32.partialorder %v6673, 0.0
      %vm6786 = vcmp.gt.f32.partialorder %v6674, 0.0
      %vm6787 = vcmp.gt.f32.partialorder %v6675, 0.0
      %vm6788 = vcmp.gt.f32.partialorder %v6676, 0.0
      %vm6789 = vcmp.gt.f32.partialorder %v6677, 0.0
      %vm6790 = vcmp.gt.f32.partialorder %v6678, 0.0
      %vm6791 = vcmp.gt.f32.partialorder %v6679, 0.0
      %vm6792 = vcmp.gt.f32.partialorder %v6680, 0.0
      %vm6793 = vcmp.gt.f32.partialorder %v6681, 0.0
      %vm6794 = vcmp.gt.f32.partialorder %v6682, 0.0
      %vm6795 = vcmp.gt.f32.partialorder %v6683, 0.0
      %vm6796 = vcmp.gt.f32.partialorder %v6684, 0.0
      %vm6797 = vcmp.gt.f32.partialorder %v6685, 0.0
      %vm6798 = vcmp.gt.f32.partialorder %v6686, 0.0
      %vm6799 = vcmp.gt.f32.partialorder %v6687, 0.0
      %vm6800 = vcmp.gt.f32.partialorder %v6688, 0.0
      %vm6801 = vcmp.gt.f32.partialorder %v6689, 0.0
      %vm6802 = vcmp.gt.f32.partialorder %v6690, 0.0
      %vm6803 = vcmp.gt.f32.partialorder %v6691, 0.0
      %vm6804 = vcmp.gt.f32.partialorder %v6692, 0.0
      %vm6805 = vcmp.gt.f32.partialorder %v6693, 0.0
      %vm6806 = vcmp.gt.f32.partialorder %v6694, 0.0
      %vm6807 = vcmp.gt.f32.partialorder %v6695, 0.0
      %vm6808 = vcmp.gt.f32.partialorder %v6696, 0.0
      %vm6809 = vcmp.gt.f32.partialorder %v6697, 0.0
      %vm6810 = vcmp.gt.f32.partialorder %v6698, 0.0
      %vm6811 = vcmp.gt.f32.partialorder %v6699, 0.0
      %vm6812 = vcmp.gt.f32.partialorder %v6700, 0.0
      %vm6813 = vcmp.gt.f32.partialorder %v6701, 0.0
      %vm6814 = vcmp.gt.f32.partialorder %v6702, 0.0
      %vm6815 = vcmp.gt.f32.partialorder %v6703, 0.0
      %vm6816 = vcmp.gt.f32.partialorder %v6704, 0.0
      %vm6817 = vcmp.gt.f32.partialorder %v6705, 0.0
      %vm6818 = vcmp.gt.f32.partialorder %v6706, 0.0
      %vm6819 = vcmp.gt.f32.partialorder %v6707, 0.0
      %vm6820 = vcmp.gt.f32.partialorder %v6708, 0.0
      %vm6821 = vcmp.gt.f32.partialorder %v6709, 0.0
      %v6822 = vmin.f32 %v6598, 0.0
      %v6823 = vmin.f32 %v6599, 0.0
      %v6824 = vmin.f32 %v6600, 0.0
      %v6825 = vmin.f32 %v6601, 0.0
      %v6826 = vmin.f32 %v6602, 0.0
      %v6827 = vmin.f32 %v6603, 0.0
      %v6828 = vmin.f32 %v6604, 0.0
      %v6829 = vmin.f32 %v6605, 0.0
      %v6830 = vmin.f32 %v6606, 0.0
      %v6831 = vmin.f32 %v6607, 0.0
      %v6832 = vmin.f32 %v6608, 0.0
      %v6833 = vmin.f32 %v6609, 0.0
      %v6834 = vmin.f32 %v6610, 0.0
      %v6835 = vmin.f32 %v6611, 0.0
      %v6836 = vmin.f32 %v6612, 0.0
      %v6837 = vmin.f32 %v6613, 0.0
      %v6838 = vmin.f32 %v6614, 0.0
      %v6839 = vmin.f32 %v6615, 0.0
      %v6840 = vmin.f32 %v6616, 0.0
      %v6841 = vmin.f32 %v6617, 0.0
      %v6842 = vmin.f32 %v6618, 0.0
      %v6843 = vmin.f32 %v6619, 0.0
      %v6844 = vmin.f32 %v6620, 0.0
      %v6845 = vmin.f32 %v6621, 0.0
      %v6846 = vmin.f32 %v6622, 0.0
      %v6847 = vmin.f32 %v6623, 0.0
      %v6848 = vmin.f32 %v6624, 0.0
      %v6849 = vmin.f32 %v6625, 0.0
      %v6850 = vmin.f32 %v6626, 0.0
      %v6851 = vmin.f32 %v6627, 0.0
      %v6852 = vmin.f32 %v6628, 0.0
      %v6853 = vmin.f32 %v6629, 0.0
      %v6854 = vmin.f32 %v6630, 0.0
      %v6855 = vmin.f32 %v6631, 0.0
      %v6856 = vmin.f32 %v6632, 0.0
      %v6857 = vmin.f32 %v6633, 0.0
      %v6858 = vmin.f32 %v6634, 0.0
      %v6859 = vmin.f32 %v6635, 0.0
      %v6860 = vmin.f32 %v6636, 0.0
      %v6861 = vmin.f32 %v6637, 0.0
      %v6862 = vmin.f32 %v6638, 0.0
      %v6863 = vmin.f32 %v6639, 0.0
      %v6864 = vmin.f32 %v6640, 0.0
      %v6865 = vmin.f32 %v6641, 0.0
      %v6866 = vmin.f32 %v6642, 0.0
      %v6867 = vmin.f32 %v6643, 0.0
      %v6868 = vmin.f32 %v6644, 0.0
      %v6869 = vmin.f32 %v6645, 0.0
      %v6870 = vmin.f32 %v6646, 0.0
      %v6871 = vmin.f32 %v6647, 0.0
      %v6872 = vmin.f32 %v6648, 0.0
      %v6873 = vmin.f32 %v6649, 0.0
      %v6874 = vmin.f32 %v6650, 0.0
      %v6875 = vmin.f32 %v6651, 0.0
      %v6876 = vmin.f32 %v6652, 0.0
      %v6877 = vmin.f32 %v6653, 0.0
      %v6878 = vmin.f32 %v6654, 0.0
      %v6879 = vmin.f32 %v6655, 0.0
      %v6880 = vmin.f32 %v6656, 0.0
      %v6881 = vmin.f32 %v6657, 0.0
      %v6882 = vmin.f32 %v6658, 0.0
      %v6883 = vmin.f32 %v6659, 0.0
      %v6884 = vmin.f32 %v6660, 0.0
      %v6885 = vmin.f32 %v6661, 0.0
      %v6886 = vmin.f32 %v6662, 0.0
      %v6887 = vmin.f32 %v6663, 0.0
      %v6888 = vmin.f32 %v6664, 0.0
      %v6889 = vmin.f32 %v6665, 0.0
      %v6890 = vmin.f32 %v6666, 0.0
      %v6891 = vmin.f32 %v6667, 0.0
      %v6892 = vmin.f32 %v6668, 0.0
      %v6893 = vmin.f32 %v6669, 0.0
      %v6894 = vmin.f32 %v6670, 0.0
      %v6895 = vmin.f32 %v6671, 0.0
      %v6896 = vmin.f32 %v6672, 0.0
      %v6897 = vmin.f32 %v6673, 0.0
      %v6898 = vmin.f32 %v6674, 0.0
      %v6899 = vmin.f32 %v6675, 0.0
      %v6900 = vmin.f32 %v6676, 0.0
      %v6901 = vmin.f32 %v6677, 0.0
      %v6902 = vmin.f32 %v6678, 0.0
      %v6903 = vmin.f32 %v6679, 0.0
      %v6904 = vmin.f32 %v6680, 0.0
      %v6905 = vmin.f32 %v6681, 0.0
      %v6906 = vmin.f32 %v6682, 0.0
      %v6907 = vmin.f32 %v6683, 0.0
      %v6908 = vmin.f32 %v6684, 0.0
      %v6909 = vmin.f32 %v6685, 0.0
      %v6910 = vmin.f32 %v6686, 0.0
      %v6911 = vmin.f32 %v6687, 0.0
      %v6912 = vmin.f32 %v6688, 0.0
      %v6913 = vmin.f32 %v6689, 0.0
      %v6914 = vmin.f32 %v6690, 0.0
      %v6915 = vmin.f32 %v6691, 0.0
      %v6916 = vmin.f32 %v6692, 0.0
      %v6917 = vmin.f32 %v6693, 0.0
      %v6918 = vmin.f32 %v6694, 0.0
      %v6919 = vmin.f32 %v6695, 0.0
      %v6920 = vmin.f32 %v6696, 0.0
      %v6921 = vmin.f32 %v6697, 0.0
      %v6922 = vmin.f32 %v6698, 0.0
      %v6923 = vmin.f32 %v6699, 0.0
      %v6924 = vmin.f32 %v6700, 0.0
      %v6925 = vmin.f32 %v6701, 0.0
      %v6926 = vmin.f32 %v6702, 0.0
      %v6927 = vmin.f32 %v6703, 0.0
      %v6928 = vmin.f32 %v6704, 0.0
      %v6929 = vmin.f32 %v6705, 0.0
      %v6930 = vmin.f32 %v6706, 0.0
      %v6931 = vmin.f32 %v6707, 0.0
      %v6932 = vmin.f32 %v6708, 0.0
      %v6933 = vmin.f32 %v6709, 0.0
      %v6934 = vmul.f32 %v6822, 1.442695
      %v6935 = vpow.pop %v6934
      %v6936 = vmul.f32 %v6823, 1.442695
      %v6937 = vpow.pop %v6936
      %v6938 = vmul.f32 %v6824, 1.442695
      %v6939 = vpow.pop %v6938
      %v6940 = vmul.f32 %v6825, 1.442695
      %v6941 = vpow.pop %v6940
      %v6942 = vmul.f32 %v6826, 1.442695
      %v6943 = vpow.pop %v6942
      %v6944 = vmul.f32 %v6827, 1.442695
      %v6945 = vpow.pop %v6944
      %v6946 = vmul.f32 %v6828, 1.442695
      %v6947 = vpow.pop %v6946
      %v6948 = vmul.f32 %v6829, 1.442695
      %v6949 = vpow.pop %v6948
      %v6950 = vmul.f32 %v6830, 1.442695
      %v6951 = vpow.pop %v6950
      %v6952 = vmul.f32 %v6831, 1.442695
      %v6953 = vpow.pop %v6952
      %v6954 = vmul.f32 %v6832, 1.442695
      %v6955 = vpow.pop %v6954
      %v6956 = vmul.f32 %v6833, 1.442695
      %v6957 = vpow.pop %v6956
      %v6958 = vmul.f32 %v6834, 1.442695
      %v6959 = vpow.pop %v6958
      %v6960 = vmul.f32 %v6835, 1.442695
      %v6961 = vpow.pop %v6960
      %v6962 = vmul.f32 %v6836, 1.442695
      %v6963 = vpow.pop %v6962
      %v6964 = vmul.f32 %v6837, 1.442695
      %v6965 = vpow.pop %v6964
      %v6966 = vmul.f32 %v6838, 1.442695
      %v6967 = vpow.pop %v6966
      %v6968 = vmul.f32 %v6839, 1.442695
      %v6969 = vpow.pop %v6968
      %v6970 = vmul.f32 %v6840, 1.442695
      %v6971 = vpow.pop %v6970
      %v6972 = vmul.f32 %v6841, 1.442695
      %v6973 = vpow.pop %v6972
      %v6974 = vmul.f32 %v6842, 1.442695
      %v6975 = vpow.pop %v6974
      %v6976 = vmul.f32 %v6843, 1.442695
      %v6977 = vpow.pop %v6976
      %v6978 = vmul.f32 %v6844, 1.442695
      %v6979 = vpow.pop %v6978
      %v6980 = vmul.f32 %v6845, 1.442695
      %v6981 = vpow.pop %v6980
      %v6982 = vmul.f32 %v6846, 1.442695
      %v6983 = vpow.pop %v6982
      %v6984 = vmul.f32 %v6847, 1.442695
      %v6985 = vpow.pop %v6984
      %v6986 = vmul.f32 %v6848, 1.442695
      %v6987 = vpow.pop %v6986
      %v6988 = vmul.f32 %v6849, 1.442695
      %v6989 = vpow.pop %v6988
      %v6990 = vmul.f32 %v6850, 1.442695
      %v6991 = vpow.pop %v6990
      %v6992 = vmul.f32 %v6851, 1.442695
      %v6993 = vpow.pop %v6992
      %v6994 = vmul.f32 %v6852, 1.442695
      %v6995 = vpow.pop %v6994
      %v6996 = vmul.f32 %v6853, 1.442695
      %v6997 = vpow.pop %v6996
      %v6998 = vmul.f32 %v6854, 1.442695
      %v6999 = vpow.pop %v6998
      %v7000 = vmul.f32 %v6855, 1.442695
      %v7001 = vpow.pop %v7000
      %v7002 = vmul.f32 %v6856, 1.442695
      %v7003 = vpow.pop %v7002
      %v7004 = vmul.f32 %v6857, 1.442695
      %v7005 = vpow.pop %v7004
      %v7006 = vmul.f32 %v6858, 1.442695
      %v7007 = vpow.pop %v7006
      %v7008 = vmul.f32 %v6859, 1.442695
      %v7009 = vpow.pop %v7008
      %v7010 = vmul.f32 %v6860, 1.442695
      %v7011 = vpow.pop %v7010
      %v7012 = vmul.f32 %v6861, 1.442695
      %v7013 = vpow.pop %v7012
      %v7014 = vmul.f32 %v6862, 1.442695
      %v7015 = vpow.pop %v7014
      %v7016 = vmul.f32 %v6863, 1.442695
      %v7017 = vpow.pop %v7016
      %v7018 = vmul.f32 %v6864, 1.442695
      %v7019 = vpow.pop %v7018
      %v7020 = vmul.f32 %v6865, 1.442695
      %v7021 = vpow.pop %v7020
      %v7022 = vmul.f32 %v6866, 1.442695
      %v7023 = vpow.pop %v7022
      %v7024 = vmul.f32 %v6867, 1.442695
      %v7025 = vpow.pop %v7024
      %v7026 = vmul.f32 %v6868, 1.442695
      %v7027 = vpow.pop %v7026
      %v7028 = vmul.f32 %v6869, 1.442695
      %v7029 = vpow.pop %v7028
      %v7030 = vmul.f32 %v6870, 1.442695
      %v7031 = vpow.pop %v7030
      %v7032 = vmul.f32 %v6871, 1.442695
      %v7033 = vpow.pop %v7032
      %v7034 = vmul.f32 %v6872, 1.442695
      %v7035 = vpow.pop %v7034
      %v7036 = vmul.f32 %v6873, 1.442695
      %v7037 = vpow.pop %v7036
      %v7038 = vmul.f32 %v6874, 1.442695
      %v7039 = vpow.pop %v7038
      %v7040 = vmul.f32 %v6875, 1.442695
      %v7041 = vpow.pop %v7040
      %v7042 = vmul.f32 %v6876, 1.442695
      %v7043 = vpow.pop %v7042
      %v7044 = vmul.f32 %v6877, 1.442695
      %v7045 = vpow.pop %v7044
      %v7046 = vmul.f32 %v6878, 1.442695
      %v7047 = vpow.pop %v7046
      %v7048 = vmul.f32 %v6879, 1.442695
      %v7049 = vpow.pop %v7048
      %v7050 = vmul.f32 %v6880, 1.442695
      %v7051 = vpow.pop %v7050
      %v7052 = vmul.f32 %v6881, 1.442695
      %v7053 = vpow.pop %v7052
      %v7054 = vmul.f32 %v6882, 1.442695
      %v7055 = vpow.pop %v7054
      %v7056 = vmul.f32 %v6883, 1.442695
      %v7057 = vpow.pop %v7056
      %v7058 = vmul.f32 %v6884, 1.442695
      %v7059 = vpow.pop %v7058
      %v7060 = vmul.f32 %v6885, 1.442695
      %v7061 = vpow.pop %v7060
      %v7062 = vmul.f32 %v6886, 1.442695
      %v7063 = vpow.pop %v7062
      %v7064 = vmul.f32 %v6887, 1.442695
      %v7065 = vpow.pop %v7064
      %v7066 = vmul.f32 %v6888, 1.442695
      %v7067 = vpow.pop %v7066
      %v7068 = vmul.f32 %v6889, 1.442695
      %v7069 = vpow.pop %v7068
      %v7070 = vmul.f32 %v6890, 1.442695
      %v7071 = vpow.pop %v7070
      %v7072 = vmul.f32 %v6891, 1.442695
      %v7073 = vpow.pop %v7072
      %v7074 = vmul.f32 %v6892, 1.442695
      %v7075 = vpow.pop %v7074
      %v7076 = vmul.f32 %v6893, 1.442695
      %v7077 = vpow.pop %v7076
      %v7078 = vmul.f32 %v6894, 1.442695
      %v7079 = vpow.pop %v7078
      %v7080 = vmul.f32 %v6895, 1.442695
      %v7081 = vpow.pop %v7080
      %v7082 = vmul.f32 %v6896, 1.442695
      %v7083 = vpow.pop %v7082
      %v7084 = vmul.f32 %v6897, 1.442695
      %v7085 = vpow.pop %v7084
      %v7086 = vmul.f32 %v6898, 1.442695
      %v7087 = vpow.pop %v7086
      %v7088 = vmul.f32 %v6899, 1.442695
      %v7089 = vpow.pop %v7088
      %v7090 = vmul.f32 %v6900, 1.442695
      %v7091 = vpow.pop %v7090
      %v7092 = vmul.f32 %v6901, 1.442695
      %v7093 = vpow.pop %v7092
      %v7094 = vmul.f32 %v6902, 1.442695
      %v7095 = vpow.pop %v7094
      %v7096 = vmul.f32 %v6903, 1.442695
      %v7097 = vpow.pop %v7096
      %v7098 = vmul.f32 %v6904, 1.442695
      %v7099 = vpow.pop %v7098
      %v7100 = vmul.f32 %v6905, 1.442695
      %v7101 = vpow.pop %v7100
      %v7102 = vmul.f32 %v6906, 1.442695
      %v7103 = vpow.pop %v7102
      %v7104 = vmul.f32 %v6907, 1.442695
      %v7105 = vpow.pop %v7104
      %v7106 = vmul.f32 %v6908, 1.442695
      %v7107 = vpow.pop %v7106
      %v7108 = vmul.f32 %v6909, 1.442695
      %v7109 = vpow.pop %v7108
      %v7110 = vmul.f32 %v6910, 1.442695
      %v7111 = vpow.pop %v7110
      %v7112 = vmul.f32 %v6911, 1.442695
      %v7113 = vpow.pop %v7112
      %v7114 = vmul.f32 %v6912, 1.442695
      %v7115 = vpow.pop %v7114
      %v7116 = vmul.f32 %v6913, 1.442695
      %v7117 = vpow.pop %v7116
      %v7118 = vmul.f32 %v6914, 1.442695
      %v7119 = vpow.pop %v7118
      %v7120 = vmul.f32 %v6915, 1.442695
      %v7121 = vpow.pop %v7120
      %v7122 = vmul.f32 %v6916, 1.442695
      %v7123 = vpow.pop %v7122
      %v7124 = vmul.f32 %v6917, 1.442695
      %v7125 = vpow.pop %v7124
      %v7126 = vmul.f32 %v6918, 1.442695
      %v7127 = vpow.pop %v7126
      %v7128 = vmul.f32 %v6919, 1.442695
      %v7129 = vpow.pop %v7128
      %v7130 = vmul.f32 %v6920, 1.442695
      %v7131 = vpow.pop %v7130
      %v7132 = vmul.f32 %v6921, 1.442695
      %v7133 = vpow.pop %v7132
      %v7134 = vmul.f32 %v6922, 1.442695
      %v7135 = vpow.pop %v7134
      %v7136 = vmul.f32 %v6923, 1.442695
      %v7137 = vpow.pop %v7136
      %v7138 = vmul.f32 %v6924, 1.442695
      %v7139 = vpow.pop %v7138
      %v7140 = vmul.f32 %v6925, 1.442695
      %v7141 = vpow.pop %v7140
      %v7142 = vmul.f32 %v6926, 1.442695
      %v7143 = vpow.pop %v7142
      %v7144 = vmul.f32 %v6927, 1.442695
      %v7145 = vpow.pop %v7144
      %v7146 = vmul.f32 %v6928, 1.442695
      %v7147 = vpow.pop %v7146
      %v7148 = vmul.f32 %v6929, 1.442695
      %v7149 = vpow.pop %v7148
      %v7150 = vmul.f32 %v6930, 1.442695
      %v7151 = vpow.pop %v7150
      %v7152 = vmul.f32 %v6931, 1.442695
      %v7153 = vpow.pop %v7152
      %v7154 = vmul.f32 %v6932, 1.442695
      %v7155 = vpow.pop %v7154
      %v7156 = vmul.f32 %v6933, 1.442695
      %v7157 = vpow.pop %v7156
      %v7158 = vsub.f32 %v6935, 1.0
      %v7159 = vsub.f32 %v6937, 1.0
      %v7160 = vsub.f32 %v6939, 1.0
      %v7161 = vsub.f32 %v6941, 1.0
      %v7162 = vsub.f32 %v6943, 1.0
      %v7163 = vsub.f32 %v6945, 1.0
      %v7164 = vsub.f32 %v6947, 1.0
      %v7165 = vsub.f32 %v6949, 1.0
      %v7166 = vsub.f32 %v6951, 1.0
      %v7167 = vsub.f32 %v6953, 1.0
      %v7168 = vsub.f32 %v6955, 1.0
      %v7169 = vsub.f32 %v6957, 1.0
      %v7170 = vsub.f32 %v6959, 1.0
      %v7171 = vsub.f32 %v6961, 1.0
      %v7172 = vsub.f32 %v6963, 1.0
      %v7173 = vsub.f32 %v6965, 1.0
      %v7174 = vsub.f32 %v6967, 1.0
      %v7175 = vsub.f32 %v6969, 1.0
      %v7176 = vsub.f32 %v6971, 1.0
      %v7177 = vsub.f32 %v6973, 1.0
      %v7178 = vsub.f32 %v6975, 1.0
      %v7179 = vsub.f32 %v6977, 1.0
      %v7180 = vsub.f32 %v6979, 1.0
      %v7181 = vsub.f32 %v6981, 1.0
      %v7182 = vsub.f32 %v6983, 1.0
      %v7183 = vsub.f32 %v6985, 1.0
      %v7184 = vsub.f32 %v6987, 1.0
      %v7185 = vsub.f32 %v6989, 1.0
      %v7186 = vsub.f32 %v6991, 1.0
      %v7187 = vsub.f32 %v6993, 1.0
      %v7188 = vsub.f32 %v6995, 1.0
      %v7189 = vsub.f32 %v6997, 1.0
      %v7190 = vsub.f32 %v6999, 1.0
      %v7191 = vsub.f32 %v7001, 1.0
      %v7192 = vsub.f32 %v7003, 1.0
      %v7193 = vsub.f32 %v7005, 1.0
      %v7194 = vsub.f32 %v7007, 1.0
      %v7195 = vsub.f32 %v7009, 1.0
      %v7196 = vsub.f32 %v7011, 1.0
      %v7197 = vsub.f32 %v7013, 1.0
      %v7198 = vsub.f32 %v7015, 1.0
      %v7199 = vsub.f32 %v7017, 1.0
      %v7200 = vsub.f32 %v7019, 1.0
      %v7201 = vsub.f32 %v7021, 1.0
      %v7202 = vsub.f32 %v7023, 1.0
      %v7203 = vsub.f32 %v7025, 1.0
      %v7204 = vsub.f32 %v7027, 1.0
      %v7205 = vsub.f32 %v7029, 1.0
      %v7206 = vsub.f32 %v7031, 1.0
      %v7207 = vsub.f32 %v7033, 1.0
      %v7208 = vsub.f32 %v7035, 1.0
      %v7209 = vsub.f32 %v7037, 1.0
      %v7210 = vsub.f32 %v7039, 1.0
      %v7211 = vsub.f32 %v7041, 1.0
      %v7212 = vsub.f32 %v7043, 1.0
      %v7213 = vsub.f32 %v7045, 1.0
      %v7214 = vsub.f32 %v7047, 1.0
      %v7215 = vsub.f32 %v7049, 1.0
      %v7216 = vsub.f32 %v7051, 1.0
      %v7217 = vsub.f32 %v7053, 1.0
      %v7218 = vsub.f32 %v7055, 1.0
      %v7219 = vsub.f32 %v7057, 1.0
      %v7220 = vsub.f32 %v7059, 1.0
      %v7221 = vsub.f32 %v7061, 1.0
      %v7222 = vsub.f32 %v7063, 1.0
      %v7223 = vsub.f32 %v7065, 1.0
      %v7224 = vsub.f32 %v7067, 1.0
      %v7225 = vsub.f32 %v7069, 1.0
      %v7226 = vsub.f32 %v7071, 1.0
      %v7227 = vsub.f32 %v7073, 1.0
      %v7228 = vsub.f32 %v7075, 1.0
      %v7229 = vsub.f32 %v7077, 1.0
      %v7230 = vsub.f32 %v7079, 1.0
      %v7231 = vsub.f32 %v7081, 1.0
      %v7232 = vsub.f32 %v7083, 1.0
      %v7233 = vsub.f32 %v7085, 1.0
      %v7234 = vsub.f32 %v7087, 1.0
      %v7235 = vsub.f32 %v7089, 1.0
      %v7236 = vsub.f32 %v7091, 1.0
      %v7237 = vsub.f32 %v7093, 1.0
      %v7238 = vsub.f32 %v7095, 1.0
      %v7239 = vsub.f32 %v7097, 1.0
      %v7240 = vsub.f32 %v7099, 1.0
      %v7241 = vsub.f32 %v7101, 1.0
      %v7242 = vsub.f32 %v7103, 1.0
      %v7243 = vsub.f32 %v7105, 1.0
      %v7244 = vsub.f32 %v7107, 1.0
      %v7245 = vsub.f32 %v7109, 1.0
      %v7246 = vsub.f32 %v7111, 1.0
      %v7247 = vsub.f32 %v7113, 1.0
      %v7248 = vsub.f32 %v7115, 1.0
      %v7249 = vsub.f32 %v7117, 1.0
      %v7250 = vsub.f32 %v7119, 1.0
      %v7251 = vsub.f32 %v7121, 1.0
      %v7252 = vsub.f32 %v7123, 1.0
      %v7253 = vsub.f32 %v7125, 1.0
      %v7254 = vsub.f32 %v7127, 1.0
      %v7255 = vsub.f32 %v7129, 1.0
      %v7256 = vsub.f32 %v7131, 1.0
      %v7257 = vsub.f32 %v7133, 1.0
      %v7258 = vsub.f32 %v7135, 1.0
      %v7259 = vsub.f32 %v7137, 1.0
      %v7260 = vsub.f32 %v7139, 1.0
      %v7261 = vsub.f32 %v7141, 1.0
      %v7262 = vsub.f32 %v7143, 1.0
      %v7263 = vsub.f32 %v7145, 1.0
      %v7264 = vsub.f32 %v7147, 1.0
      %v7265 = vsub.f32 %v7149, 1.0
      %v7266 = vsub.f32 %v7151, 1.0
      %v7267 = vsub.f32 %v7153, 1.0
      %v7268 = vsub.f32 %v7155, 1.0
      %v7269 = vsub.f32 %v7157, 1.0
      %v7270 = vsel %vm6710, %v6598, %v7158
      %v7271 = vsel %vm6711, %v6599, %v7159
      %v7272 = vsel %vm6712, %v6600, %v7160
      %v7273 = vsel %vm6713, %v6601, %v7161
      %v7274 = vsel %vm6714, %v6602, %v7162
      %v7275 = vsel %vm6715, %v6603, %v7163
      %v7276 = vsel %vm6716, %v6604, %v7164
      %v7277 = vsel %vm6717, %v6605, %v7165
      %v7278 = vsel %vm6718, %v6606, %v7166
      %v7279 = vsel %vm6719, %v6607, %v7167
      %v7280 = vsel %vm6720, %v6608, %v7168
      %v7281 = vsel %vm6721, %v6609, %v7169
      %v7282 = vsel %vm6722, %v6610, %v7170
      %v7283 = vsel %vm6723, %v6611, %v7171
      %v7284 = vsel %vm6724, %v6612, %v7172
      %v7285 = vsel %vm6725, %v6613, %v7173
      %v7286 = vsel %vm6726, %v6614, %v7174
      %v7287 = vsel %vm6727, %v6615, %v7175
      %v7288 = vsel %vm6728, %v6616, %v7176
      %v7289 = vsel %vm6729, %v6617, %v7177
      %v7290 = vsel %vm6730, %v6618, %v7178
      %v7291 = vsel %vm6731, %v6619, %v7179
      %v7292 = vsel %vm6732, %v6620, %v7180
      %v7293 = vsel %vm6733, %v6621, %v7181
      %v7294 = vsel %vm6734, %v6622, %v7182
      %v7295 = vsel %vm6735, %v6623, %v7183
      %v7296 = vsel %vm6736, %v6624, %v7184
      %v7297 = vsel %vm6737, %v6625, %v7185
      %v7298 = vsel %vm6738, %v6626, %v7186
      %v7299 = vsel %vm6739, %v6627, %v7187
      %v7300 = vsel %vm6740, %v6628, %v7188
      %v7301 = vsel %vm6741, %v6629, %v7189
      %v7302 = vsel %vm6742, %v6630, %v7190
      %v7303 = vsel %vm6743, %v6631, %v7191
      %v7304 = vsel %vm6744, %v6632, %v7192
      %v7305 = vsel %vm6745, %v6633, %v7193
      %v7306 = vsel %vm6746, %v6634, %v7194
      %v7307 = vsel %vm6747, %v6635, %v7195
      %v7308 = vsel %vm6748, %v6636, %v7196
      %v7309 = vsel %vm6749, %v6637, %v7197
      %v7310 = vsel %vm6750, %v6638, %v7198
      %v7311 = vsel %vm6751, %v6639, %v7199
      %v7312 = vsel %vm6752, %v6640, %v7200
      %v7313 = vsel %vm6753, %v6641, %v7201
      %v7314 = vsel %vm6754, %v6642, %v7202
      %v7315 = vsel %vm6755, %v6643, %v7203
      %v7316 = vsel %vm6756, %v6644, %v7204
      %v7317 = vsel %vm6757, %v6645, %v7205
      %v7318 = vsel %vm6758, %v6646, %v7206
      %v7319 = vsel %vm6759, %v6647, %v7207
      %v7320 = vsel %vm6760, %v6648, %v7208
      %v7321 = vsel %vm6761, %v6649, %v7209
      %v7322 = vsel %vm6762, %v6650, %v7210
      %v7323 = vsel %vm6763, %v6651, %v7211
      %v7324 = vsel %vm6764, %v6652, %v7212
      %v7325 = vsel %vm6765, %v6653, %v7213
      %v7326 = vsel %vm6766, %v6654, %v7214
      %v7327 = vsel %vm6767, %v6655, %v7215
      %v7328 = vsel %vm6768, %v6656, %v7216
      %v7329 = vsel %vm6769, %v6657, %v7217
      %v7330 = vsel %vm6770, %v6658, %v7218
      %v7331 = vsel %vm6771, %v6659, %v7219
      %v7332 = vsel %vm6772, %v6660, %v7220
      %v7333 = vsel %vm6773, %v6661, %v7221
      %v7334 = vsel %vm6774, %v6662, %v7222
      %v7335 = vsel %vm6775, %v6663, %v7223
      %v7336 = vsel %vm6776, %v6664, %v7224
      %v7337 = vsel %vm6777, %v6665, %v7225
      %v7338 = vsel %vm6778, %v6666, %v7226
      %v7339 = vsel %vm6779, %v6667, %v7227
      %v7340 = vsel %vm6780, %v6668, %v7228
      %v7341 = vsel %vm6781, %v6669, %v7229
      %v7342 = vsel %vm6782, %v6670, %v7230
      %v7343 = vsel %vm6783, %v6671, %v7231
      %v7344 = vsel %vm6784, %v6672, %v7232
      %v7345 = vsel %vm6785, %v6673, %v7233
      %v7346 = vsel %vm6786, %v6674, %v7234
      %v7347 = vsel %vm6787, %v6675, %v7235
      %v7348 = vsel %vm6788, %v6676, %v7236
      %v7349 = vsel %vm6789, %v6677, %v7237
      %v7350 = vsel %vm6790, %v6678, %v7238
      %v7351 = vsel %vm6791, %v6679, %v7239
      %v7352 = vsel %vm6792, %v6680, %v7240
      %v7353 = vsel %vm6793, %v6681, %v7241
      %v7354 = vsel %vm6794, %v6682, %v7242
      %v7355 = vsel %vm6795, %v6683, %v7243
      %v7356 = vsel %vm6796, %v6684, %v7244
      %v7357 = vsel %vm6797, %v6685, %v7245
      %v7358 = vsel %vm6798, %v6686, %v7246
      %v7359 = vsel %vm6799, %v6687, %v7247
      %v7360 = vsel %vm6800, %v6688, %v7248
      %v7361 = vsel %vm6801, %v6689, %v7249
      %v7362 = vsel %vm6802, %v6690, %v7250
      %v7363 = vsel %vm6803, %v6691, %v7251
      %v7364 = vsel %vm6804, %v6692, %v7252
      %v7365 = vsel %vm6805, %v6693, %v7253
      %v7366 = vsel %vm6806, %v6694, %v7254
      %v7367 = vsel %vm6807, %v6695, %v7255
      %v7368 = vsel %vm6808, %v6696, %v7256
      %v7369 = vsel %vm6809, %v6697, %v7257
      %v7370 = vsel %vm6810, %v6698, %v7258
      %v7371 = vsel %vm6811, %v6699, %v7259
      %v7372 = vsel %vm6812, %v6700, %v7260
      %v7373 = vsel %vm6813, %v6701, %v7261
      %v7374 = vsel %vm6814, %v6702, %v7262
      %v7375 = vsel %vm6815, %v6703, %v7263
      %v7376 = vsel %vm6816, %v6704, %v7264
      %v7377 = vsel %vm6817, %v6705, %v7265
      %v7378 = vsel %vm6818, %v6706, %v7266
      %v7379 = vsel %vm6819, %v6707, %v7267
      %v7380 = vsel %vm6820, %v6708, %v7268
      %v7381 = vsel %vm6821, %v6709, %v7269
      %vm7382 = vcmask 523264
      %7383 = vst.msk [vmem:[%s226] sm:$0xff] %vm7382, %v7270
      %7384 = vst.msk [vmem:[%s226 + $0x8] sm:$0xff] %vm7382, %v7271
      %7385 = vst.msk [vmem:[%s226 + $0x10] sm:$0xff] %vm7382, %v7272
      %7386 = vst.msk [vmem:[%s226 + $0x18] sm:$0xff] %vm7382, %v7273
      %7387 = vst.msk [vmem:[%s226 + $0x20] sm:$0xff] %vm7382, %v7274
      %7388 = vst.msk [vmem:[%s226 + $0x28] sm:$0xff] %vm7382, %v7275
      %7389 = vst.msk [vmem:[%s226 + $0x30] sm:$0xff] %vm7382, %v7276
      %7390 = vst.msk [vmem:[%s226 + $0x38] sm:$0xff] %vm7382, %v7277
      %7391 = vst.msk [vmem:[%s226 + $0x40] sm:$0xff] %vm7382, %v7278
      %7392 = vst.msk [vmem:[%s226 + $0x48] sm:$0xff] %vm7382, %v7279
      %7393 = vst.msk [vmem:[%s226 + $0x50] sm:$0xff] %vm7382, %v7280
      %7394 = vst.msk [vmem:[%s226 + $0x58] sm:$0xff] %vm7382, %v7281
      %7395 = vst.msk [vmem:[%s226 + $0x60] sm:$0xff] %vm7382, %v7282
      %7396 = vst.msk [vmem:[%s226 + $0x68] sm:$0xff] %vm7382, %v7283
      %7397 = vst.msk [vmem:[%s226 + $0x70] sm:$0xff] %vm7382, %v7284
      %7398 = vst.msk [vmem:[%s226 + $0x78] sm:$0xff] %vm7382, %v7285
      %7399 = vst.msk [vmem:[%s226 + $0x80] sm:$0xff] %vm7382, %v7286
      %7400 = vst.msk [vmem:[%s226 + $0x88] sm:$0xff] %vm7382, %v7287
      %7401 = vst.msk [vmem:[%s226 + $0x90] sm:$0xff] %vm7382, %v7288
      %7402 = vst.msk [vmem:[%s226 + $0x98] sm:$0xff] %vm7382, %v7289
      %7403 = vst.msk [vmem:[%s226 + $0xa0] sm:$0xff] %vm7382, %v7290
      %7404 = vst.msk [vmem:[%s226 + $0xa8] sm:$0xff] %vm7382, %v7291
      %7405 = vst.msk [vmem:[%s226 + $0xb0] sm:$0xff] %vm7382, %v7292
      %7406 = vst.msk [vmem:[%s226 + $0xb8] sm:$0xff] %vm7382, %v7293
      %7407 = vst.msk [vmem:[%s226 + $0xc0] sm:$0xff] %vm7382, %v7294
      %7408 = vst.msk [vmem:[%s226 + $0xc8] sm:$0xff] %vm7382, %v7295
      %7409 = vst.msk [vmem:[%s226 + $0xd0] sm:$0xff] %vm7382, %v7296
      %7410 = vst.msk [vmem:[%s226 + $0xd8] sm:$0xff] %vm7382, %v7297
      %7411 = vst.msk [vmem:[%s226 + $0xe0] sm:$0xff] %vm7382, %v7298
      %7412 = vst.msk [vmem:[%s226 + $0xe8] sm:$0xff] %vm7382, %v7299
      %7413 = vst.msk [vmem:[%s226 + $0xf0] sm:$0xff] %vm7382, %v7300
      %7414 = vst.msk [vmem:[%s226 + $0xf8] sm:$0xff] %vm7382, %v7301
      %7415 = vst.msk [vmem:[%s226 + $0x100] sm:$0xff] %vm7382, %v7302
      %7416 = vst.msk [vmem:[%s226 + $0x108] sm:$0xff] %vm7382, %v7303
      %7417 = vst.msk [vmem:[%s226 + $0x110] sm:$0xff] %vm7382, %v7304
      %7418 = vst.msk [vmem:[%s226 + $0x118] sm:$0xff] %vm7382, %v7305
      %7419 = vst.msk [vmem:[%s226 + $0x120] sm:$0xff] %vm7382, %v7306
      %7420 = vst.msk [vmem:[%s226 + $0x128] sm:$0xff] %vm7382, %v7307
      %7421 = vst.msk [vmem:[%s226 + $0x130] sm:$0xff] %vm7382, %v7308
      %7422 = vst.msk [vmem:[%s226 + $0x138] sm:$0xff] %vm7382, %v7309
      %7423 = vst.msk [vmem:[%s226 + $0x140] sm:$0xff] %vm7382, %v7310
      %7424 = vst.msk [vmem:[%s226 + $0x148] sm:$0xff] %vm7382, %v7311
      %7425 = vst.msk [vmem:[%s226 + $0x150] sm:$0xff] %vm7382, %v7312
      %7426 = vst.msk [vmem:[%s226 + $0x158] sm:$0xff] %vm7382, %v7313
      %7427 = vst.msk [vmem:[%s226 + $0x160] sm:$0xff] %vm7382, %v7314
      %7428 = vst.msk [vmem:[%s226 + $0x168] sm:$0xff] %vm7382, %v7315
      %7429 = vst.msk [vmem:[%s226 + $0x170] sm:$0xff] %vm7382, %v7316
      %7430 = vst.msk [vmem:[%s226 + $0x178] sm:$0xff] %vm7382, %v7317
      %7431 = vst.msk [vmem:[%s226 + $0x180] sm:$0xff] %vm7382, %v7318
      %7432 = vst.msk [vmem:[%s226 + $0x188] sm:$0xff] %vm7382, %v7319
      %7433 = vst.msk [vmem:[%s226 + $0x190] sm:$0xff] %vm7382, %v7320
      %7434 = vst.msk [vmem:[%s226 + $0x198] sm:$0xff] %vm7382, %v7321
      %7435 = vst.msk [vmem:[%s226 + $0x1a0] sm:$0xff] %vm7382, %v7322
      %7436 = vst.msk [vmem:[%s226 + $0x1a8] sm:$0xff] %vm7382, %v7323
      %7437 = vst.msk [vmem:[%s226 + $0x1b0] sm:$0xff] %vm7382, %v7324
      %7438 = vst.msk [vmem:[%s226 + $0x1b8] sm:$0xff] %vm7382, %v7325
      %7439 = vst.msk [vmem:[%s226 + $0x1c0] sm:$0xff] %vm7382, %v7326
      %7440 = vst.msk [vmem:[%s226 + $0x1c8] sm:$0xff] %vm7382, %v7327
      %7441 = vst.msk [vmem:[%s226 + $0x1d0] sm:$0xff] %vm7382, %v7328
      %7442 = vst.msk [vmem:[%s226 + $0x1d8] sm:$0xff] %vm7382, %v7329
      %7443 = vst.msk [vmem:[%s226 + $0x1e0] sm:$0xff] %vm7382, %v7330
      %7444 = vst.msk [vmem:[%s226 + $0x1e8] sm:$0xff] %vm7382, %v7331
      %7445 = vst.msk [vmem:[%s226 + $0x1f0] sm:$0xff] %vm7382, %v7332
      %7446 = vst.msk [vmem:[%s226 + $0x1f8] sm:$0xff] %vm7382, %v7333
      %7447 = vst.msk [vmem:[%s226 + $0x200] sm:$0xff] %vm7382, %v7334
      %7448 = vst.msk [vmem:[%s226 + $0x208] sm:$0xff] %vm7382, %v7335
      %7449 = vst.msk [vmem:[%s226 + $0x210] sm:$0xff] %vm7382, %v7336
      %7450 = vst.msk [vmem:[%s226 + $0x218] sm:$0xff] %vm7382, %v7337
      %7451 = vst.msk [vmem:[%s226 + $0x220] sm:$0xff] %vm7382, %v7338
      %7452 = vst.msk [vmem:[%s226 + $0x228] sm:$0xff] %vm7382, %v7339
      %7453 = vst.msk [vmem:[%s226 + $0x230] sm:$0xff] %vm7382, %v7340
      %7454 = vst.msk [vmem:[%s226 + $0x238] sm:$0xff] %vm7382, %v7341
      %7455 = vst.msk [vmem:[%s226 + $0x240] sm:$0xff] %vm7382, %v7342
      %7456 = vst.msk [vmem:[%s226 + $0x248] sm:$0xff] %vm7382, %v7343
      %7457 = vst.msk [vmem:[%s226 + $0x250] sm:$0xff] %vm7382, %v7344
      %7458 = vst.msk [vmem:[%s226 + $0x258] sm:$0xff] %vm7382, %v7345
      %7459 = vst.msk [vmem:[%s226 + $0x260] sm:$0xff] %vm7382, %v7346
      %7460 = vst.msk [vmem:[%s226 + $0x268] sm:$0xff] %vm7382, %v7347
      %7461 = vst.msk [vmem:[%s226 + $0x270] sm:$0xff] %vm7382, %v7348
      %7462 = vst.msk [vmem:[%s226 + $0x278] sm:$0xff] %vm7382, %v7349
      %7463 = vst.msk [vmem:[%s226 + $0x280] sm:$0xff] %vm7382, %v7350
      %7464 = vst.msk [vmem:[%s226 + $0x288] sm:$0xff] %vm7382, %v7351
      %7465 = vst.msk [vmem:[%s226 + $0x290] sm:$0xff] %vm7382, %v7352
      %7466 = vst.msk [vmem:[%s226 + $0x298] sm:$0xff] %vm7382, %v7353
      %7467 = vst.msk [vmem:[%s226 + $0x2a0] sm:$0xff] %vm7382, %v7354
      %7468 = vst.msk [vmem:[%s226 + $0x2a8] sm:$0xff] %vm7382, %v7355
      %7469 = vst.msk [vmem:[%s226 + $0x2b0] sm:$0xff] %vm7382, %v7356
      %7470 = vst.msk [vmem:[%s226 + $0x2b8] sm:$0xff] %vm7382, %v7357
      %7471 = vst.msk [vmem:[%s226 + $0x2c0] sm:$0xff] %vm7382, %v7358
      %7472 = vst.msk [vmem:[%s226 + $0x2c8] sm:$0xff] %vm7382, %v7359
      %7473 = vst.msk [vmem:[%s226 + $0x2d0] sm:$0xff] %vm7382, %v7360
      %7474 = vst.msk [vmem:[%s226 + $0x2d8] sm:$0xff] %vm7382, %v7361
      %7475 = vst.msk [vmem:[%s226 + $0x2e0] sm:$0xff] %vm7382, %v7362
      %7476 = vst.msk [vmem:[%s226 + $0x2e8] sm:$0xff] %vm7382, %v7363
      %7477 = vst.msk [vmem:[%s226 + $0x2f0] sm:$0xff] %vm7382, %v7364
      %7478 = vst.msk [vmem:[%s226 + $0x2f8] sm:$0xff] %vm7382, %v7365
      %7479 = vst.msk [vmem:[%s226 + $0x300] sm:$0xff] %vm7382, %v7366
      %7480 = vst.msk [vmem:[%s226 + $0x308] sm:$0xff] %vm7382, %v7367
      %7481 = vst.msk [vmem:[%s226 + $0x310] sm:$0xff] %vm7382, %v7368
      %7482 = vst.msk [vmem:[%s226 + $0x318] sm:$0xff] %vm7382, %v7369
      %7483 = vst.msk [vmem:[%s226 + $0x320] sm:$0xff] %vm7382, %v7370
      %7484 = vst.msk [vmem:[%s226 + $0x328] sm:$0xff] %vm7382, %v7371
      %7485 = vst.msk [vmem:[%s226 + $0x330] sm:$0xff] %vm7382, %v7372
      %7486 = vst.msk [vmem:[%s226 + $0x338] sm:$0xff] %vm7382, %v7373
      %7487 = vst.msk [vmem:[%s226 + $0x340] sm:$0xff] %vm7382, %v7374
      %7488 = vst.msk [vmem:[%s226 + $0x348] sm:$0xff] %vm7382, %v7375
      %7489 = vst.msk [vmem:[%s226 + $0x350] sm:$0xff] %vm7382, %v7376
      %7490 = vst.msk [vmem:[%s226 + $0x358] sm:$0xff] %vm7382, %v7377
      %7491 = vst.msk [vmem:[%s226 + $0x360] sm:$0xff] %vm7382, %v7378
      %7492 = vst.msk [vmem:[%s226 + $0x368] sm:$0xff] %vm7382, %v7379
      %7493 = vst.msk [vmem:[%s226 + $0x370] sm:$0xff] %vm7382, %v7380
      %7494 = vst.msk [vmem:[%s226 + $0x378] sm:$0xff] %vm7382, %v7381
      %s7495 = smul.u32 112, %s16
      %p7496 = scmp.lt.s32.totalorder %s7495, 223
      %s7497 = scalar_select %p7496, %s7495, 223
      %s7498 = smul.addr %s7497, 8
      %s7499 = scalar_lea.vmem %s5, %s7498
      // Predicated region
      $region41: #{cnn_forward.1} parent=39 // pred_check
        %p7500 = pneg %p144
      $region42: #{cnn_forward.1} parent=39 // pred_check_branch
        %7502 = sbr.rel (%p7500) target = $region44
      $region43: #{cnn_forward.1} parent=39 // pred_region
        %s7503 = smul.u32 112, %s16
      $region44: #{cnn_forward.1} parent=39 // pred_fallthru
        _
    $region40: #{cnn_forward.1} parent=5 // pred_fallthru
      _
    %p7504 = scmp.le.s32.totalorder 2, %s11
    // Predicated region
    $region45: #{cnn_forward.1} parent=5 // pred_check
      %p7505 = pneg %p7504
    $region46: #{cnn_forward.1} parent=5 // pred_check_branch
      %7507 = sbr.rel (%p7505) target = $region48
    $region47: #{cnn_forward.1} parent=5 // pred_region
      %s7508 = ssub.s32 %s11, 2
      // Predicated region
      $region49: #{cnn_forward.1} parent=47 // pred_check
        %p7509 = pneg %p150
      $region50: #{cnn_forward.1} parent=47 // pred_check_branch
        %7511 = sbr.rel (%p7509) target = $region52
      $region51: #{cnn_forward.1} parent=47 // pred_region
        %s7512 = smul.u32 112, %s17
        %p7513 = scmp.lt.s32.totalorder %s7512, 223
        %s7514 = scalar_select %p7513, %s7512, 223
        %s7515 = smul.addr %s7514, 8
        %s7516 = scalar_lea.vmem %s5, %s7515
      $region52: #{cnn_forward.1} parent=47 // pred_fallthru
        _
    $region48: #{cnn_forward.1} parent=5 // pred_fallthru
      _
  $region6: #{cnn_forward.1} parent=0 // loop_footer
    %s15 = sadd.s32 1, %s11
  $region7: #{cnn_forward.1} parent=0 // loop_footer_branch
    %10 = sbr.rel target = $region3
  $region8: #{cnn_forward.1} parent=0 // loop_exit
    _

</llo_original>
